<compile_context>
chip_gen: v7x
topology: tpu7x:2x2x1
jax: 0.10.0
libtpu: 0.0.40
codegen_flags: <defaults>
</compile_context>

<pallas_src>
import functools

import jax
import jax.numpy as jnp
from jax.experimental import pallas as pl
from jax.experimental.pallas import tpu as pltpu


# -----------------------------------------------------------------------------
# Hardware-aware knobs
# -----------------------------------------------------------------------------
def _vmem_budget_bytes():
    """~75% of per-core VMEM (v5e/v6e: 128 MiB, v7x: 64 MiB), safe fallback."""
    try:
        cap = int(pltpu.get_tpu_info().vmem_capacity_bytes)
    except Exception:
        cap = 64 * 1024 * 1024
    return max(16 * 1024 * 1024, (cap * 3) // 4)


def _is_v5():
    try:
        return "v5" in jax.devices()[0].device_kind.lower()
    except Exception:
        return False


_VMEM_LIMIT = _vmem_budget_bytes()


def _pick_cout_tile(cout, cin, r_in, *, extra_in_bytes=0):
    """Cout tile: native-MXU-width aware (v5e -> 128) + VMEM-budget aware."""
    prefs = (128, 256) if _is_v5() else (256, 128)
    divisible = [tn for tn in prefs if cout % tn == 0]
    for tn in divisible:
        est = (3 * r_in * cin * 2 * 2        # three plane blocks, double-buffered
               + r_in * 3 * cin * 2          # lane-stacked bf16 scratch
               + 27 * cin * tn * 2 * 2       # weight tile, double-buffered
               + r_in * tn * (4 + 2 * 2)     # f32 accumulator + output block
               + extra_in_bytes)
        if est <= (_VMEM_LIMIT * 3) // 4:
            return tn
    if divisible:
        return min(divisible)
    return cout


def _pick_spatial_tile(s, cap=1024):
    """Return (tile_rows, padded_rows) for the GroupNorm passes."""
    if s <= cap:
        return s, s
    for ts in range(cap - cap % 8, 255, -8):      # large multiple-of-8 divisors
        if s % ts == 0:
            return ts, s
    ts = 512                                      # ragged tail, masked in-kernel
    return ts, ((s + ts - 1) // ts) * ts


# -----------------------------------------------------------------------------
# GroupNorm + SiLU (two tiled passes on the padded, channels-last layout)
# -----------------------------------------------------------------------------
def _gn_stats_kernel(x_ref, m_ref, o_ref):
    """Accumulate per-channel sum / sum-of-squares across spatial tiles."""
    x = jnp.where(m_ref[...] > 0.0, x_ref[0].astype(jnp.float32), 0.0)  # (TS, C)
    s1 = jnp.sum(x, axis=0, keepdims=True)
    s2 = jnp.sum(x * x, axis=0, keepdims=True)
    stats = jnp.concatenate([s1, s2], axis=0)                           # (2, C)

    @pl.when(pl.program_id(1) == 0)
    def _init():
        o_ref[0] = stats

    @pl.when(pl.program_id(1) > 0)
    def _acc():
        o_ref[0] = o_ref[0] + stats


def _gn_apply_silu_kernel(x_ref, scale_ref, shift_ref, m_ref, o_ref):
    """y = mask * silu(x * scale + shift); masked (pad/halo) rows stay zero."""
    x = x_ref[0].astype(jnp.float32)                                    # (TS, C)
    t = x * scale_ref[0] + shift_ref[0]
    y = t * jax.nn.sigmoid(t)
    o_ref[0] = jnp.where(m_ref[...] > 0.0, y, 0.0).astype(o_ref.dtype)


def group_norm_silu(x, gamma, beta, num_groups, *, count, mask_rows,
                    eps=1e-6, out_dtype=jnp.bfloat16):
    """x: (B, S, C) channels-last with zero pad rows; mask_rows: (S,) validity.

    Returns silu(groupnorm(x)) with masked rows forced back to exact zero.
    `count` is the number of *real* voxels per (batch, group) element.
    """
    B, S, C = x.shape
    G = num_groups
    Cg = C // G
    TS, S_pad = _pick_spatial_tile(S)
    ST = S_pad // TS
    mask = jnp.pad(mask_rows.astype(jnp.float32), (0, S_pad - S)).reshape(S_pad, 1)

    stats = pl.pallas_call(
        _gn_stats_kernel,
        out_shape=jax.ShapeDtypeStruct((B, 2, C), jnp.float32),
        grid=(B, ST),
        in_specs=[pl.BlockSpec((1, TS, C), lambda b, s: (b, s, 0)),
                  pl.BlockSpec((TS, 1), lambda b, s: (s, 0))],
        out_specs=pl.BlockSpec((1, 2, C), lambda b, s: (b, 0, 0)),
        compiler_params=pltpu.CompilerParams(
            dimension_semantics=("parallel", "arbitrary"),
            vmem_limit_bytes=_VMEM_LIMIT),
    )(x, mask)

    # Tiny per-(batch, group) reduction + affine folding in plain XLA.
    # TODO(synk): single-pass E[x^2]-E[x]^2 in f32; switch to a mean-shifted
    # two-pass scheme if very large spatial extents show cancellation issues.
    s1 = stats[:, 0, :].reshape(B, G, Cg).sum(axis=-1)    # (B, G)
    s2 = stats[:, 1, :].reshape(B, G, Cg).sum(axis=-1)    # (B, G)
    mean = s1 / count
    var = jnp.maximum(s2 / count - mean * mean, 0.0)
    inv = jax.lax.rsqrt(var + eps)                        # (B, G)
    inv_c = jnp.repeat(inv, Cg, axis=1)                   # (B, C)
    mean_c = jnp.repeat(mean, Cg, axis=1)                 # (B, C)
    scale = inv_c * gamma[None, :].astype(jnp.float32)    # (B, C)
    shift = beta[None, :].astype(jnp.float32) - mean_c * scale

    return pl.pallas_call(
        _gn_apply_silu_kernel,
        out_shape=jax.ShapeDtypeStruct((B, S, C), out_dtype),
        grid=(B, ST),
        in_specs=[pl.BlockSpec((1, TS, C), lambda b, s: (b, s, 0)),
                  pl.BlockSpec((1, 1, C), lambda b, s: (b, 0, 0)),
                  pl.BlockSpec((1, 1, C), lambda b, s: (b, 0, 0)),
                  pl.BlockSpec((TS, 1), lambda b, s: (s, 0))],
        out_specs=pl.BlockSpec((1, TS, C), lambda b, s: (b, s, 0)),
        compiler_params=pltpu.CompilerParams(
            dimension_semantics=("parallel", "parallel"),
            vmem_limit_bytes=_VMEM_LIMIT),
    )(x, scale.reshape(B, 1, C), shift.reshape(B, 1, C), mask)


# -----------------------------------------------------------------------------
# 3x3x3 conv kernels: 9 deep-K MXU matmuls over halo-offset loads, fused epilogue
# -----------------------------------------------------------------------------
def _accumulate_taps(stk_ref, w_ref, *, cin3, wp2, n_out):
    """Sum of 9 matmuls with K = 3*Cin over the lane-stacked depth planes.

    stk_ref: (R_in, 3*Cin) bf16 halo-extended rows (R_in = n_out + 2*(wp2+1)).
    Tap (kh, kw) is a static-offset row load: offset = kh*wp2 + kw.  No
    concatenate/roll copies and no activation up-casts; f32 accumulation only.
    """
    tn = w_ref.shape[-1]
    acc = jnp.zeros((n_out, tn), jnp.float32)
    for kh in range(3):
        for kw in range(3):
            t = kh * 3 + kw
            off = kh * wp2 + kw                      # = hs + (kh-1)*wp2 + (kw-1)
            lhs = stk_ref[pl.ds(off, n_out), :]      # (n_out, 3*Cin) bf16
            acc = acc + jnp.dot(lhs, w_ref[pl.ds(t * cin3, cin3), :],
                                preferred_element_type=jnp.float32)
    return acc


def _conv1_kernel(p0, p1, p2, w_ref, tb_ref, m_ref, o_ref, stk_ref,
                  *, cin, wp2, n_out, d_planes):
    """conv1: out = mask * (conv3(h) + (conv1_b + temb_add)).

    Depth-boundary output planes (d == 0 / d == D+1) are written as zeros so
    the output is already depth-padded for GroupNorm2 / conv2.
    """
    d = pl.program_id(2)
    is_boundary = (d == 0) | (d == d_planes - 1)

    @pl.when(is_boundary)
    def _zero():
        o_ref[...] = jnp.zeros_like(o_ref)

    @pl.when(jnp.logical_not(is_boundary))
    def _compute():
        stk_ref[...] = jnp.concatenate([p0[...], p1[...], p2[...]], axis=-1)
        acc = _accumulate_taps(stk_ref, w_ref, cin3=3 * cin, wp2=wp2,
                               n_out=n_out)
        acc = acc + tb_ref[...]           # conv1 bias + temb projection (folded)
        acc = acc * m_ref[...]            # zero the pad-ring / halo rows
        o_ref[...] = acc.astype(o_ref.dtype)


def _conv2_nin_kernel(p0, p1, p2, w_ref, b_ref, xs_ref, wn_ref, o_ref, stk_ref,
                      *, cin, wp2, n_out):
    """conv2 + fused nin shortcut: out = conv3(h) + (b2 + nin_b) + x @ w_nin."""
    stk_ref[...] = jnp.concatenate([p0[...], p1[...], p2[...]], axis=-1)
    acc = _accumulate_taps(stk_ref, w_ref, cin3=3 * cin, wp2=wp2, n_out=n_out)
    acc = acc + b_ref[...]
    acc = acc + jnp.dot(xs_ref[...], wn_ref[...],
                        preferred_element_type=jnp.float32)
    o_ref[...] = acc.astype(o_ref.dtype)


def _conv2_add_kernel(p0, p1, p2, w_ref, b_ref, xs_ref, o_ref, stk_ref,
                      *, cin, wp2, n_out):
    """conv2 + identity residual (in_channels == out_channels)."""
    stk_ref[...] = jnp.concatenate([p0[...], p1[...], p2[...]], axis=-1)
    acc = _accumulate_taps(stk_ref, w_ref, cin3=3 * cin, wp2=wp2, n_out=n_out)
    acc = acc + b_ref[...] + xs_ref[...].astype(jnp.float32)
    o_ref[...] = acc.astype(o_ref.dtype)


def conv1_fused(h1, w_mat, tb, mask_rows, *, wp2, out_dtype=jnp.bfloat16):
    """conv1 of the halo'd padded activation, fused bias+temb, padded output.

    h1:   (B, D+2, R_in, Cin) bf16, zero depth/HW pad + 2*hs row halo, masked.
    out:  (B, D+2, R_out, Cout) with R_out = R_in - 2*hs; depth-boundary planes
          and non-interior rows are exact zeros (directly consumable by GN2 and
          conv2 — no crop / re-pad HBM passes).
    """
    B, Dp2, R_in, Cin = h1.shape
    hs = wp2 + 1
    R_out = R_in - 2 * hs
    Cout = w_mat.shape[1]
    TN = _pick_cout_tile(Cout, Cin, R_in)
    NT = Cout // TN

    def plane_spec(kd):
        return pl.BlockSpec(
            (None, None, R_in, Cin),
            lambda n, b, d, kd=kd: (b, jnp.clip(d - 1 + kd, 0, Dp2 - 1), 0, 0))

    kernel = functools.partial(_conv1_kernel, cin=Cin, wp2=wp2,
                               n_out=R_out, d_planes=Dp2)
    flops = 2 * B * (Dp2 - 2) * R_out * (27 * Cin) * Cout
    bytes_acc = (3 * h1.size * h1.dtype.itemsize
                 + w_mat.size * w_mat.dtype.itemsize
                 + B * Dp2 * R_out * Cout * jnp.dtype(out_dtype).itemsize)

    return pl.pallas_call(
        kernel,
        out_shape=jax.ShapeDtypeStruct((B, Dp2, R_out, Cout), out_dtype),
        grid=(NT, B, Dp2),
        in_specs=[plane_spec(0), plane_spec(1), plane_spec(2),
                  pl.BlockSpec((27 * Cin, TN), lambda n, b, d: (0, n)),
                  pl.BlockSpec((None, 1, TN), lambda n, b, d: (b, 0, n)),
                  pl.BlockSpec((R_out, 1), lambda n, b, d: (0, 0))],
        out_specs=pl.BlockSpec((None, None, R_out, TN),
                               lambda n, b, d: (b, d, 0, n)),
        scratch_shapes=[pltpu.VMEM((R_in, 3 * Cin), h1.dtype)],
        compiler_params=pltpu.CompilerParams(
            dimension_semantics=("parallel", "parallel", "parallel"),
            vmem_limit_bytes=_VMEM_LIMIT),
        cost_estimate=pl.CostEstimate(flops=flops, transcendentals=0,
                                      bytes_accessed=bytes_acc),
    )(h1, h1, h1, w_mat, tb, mask_rows)


def conv2_fused(h3, w_mat, bias2, xs, wn, *, wp2, out_dtype=jnp.float32):
    """conv2 + fused residual (wn=None -> identity shortcut).

    h3:  (B, D+2, R_in, C)  bf16, depth-padded + hs row halo (masked zeros)
    xs:  (B, D, Npp, Cs)    shortcut input at padded-HW resolution
    out: (B, D, Npp, Cout)  padded-HW resolution (crop interior afterwards)
    """
    B, Dp2, R_in, Cin = h3.shape
    D = Dp2 - 2
    hs = wp2 + 1
    R_out = R_in - 2 * hs
    Cout = w_mat.shape[1]
    Cs = xs.shape[-1]
    TN = _pick_cout_tile(Cout, Cin, R_in,
                         extra_in_bytes=2 * R_out * Cs * xs.dtype.itemsize)
    NT = Cout // TN

    def plane_spec(kd):
        return pl.BlockSpec((None, None, R_in, Cin),
                            lambda n, b, d, kd=kd: (b, d + kd, 0, 0))

    in_specs = [plane_spec(0), plane_spec(1), plane_spec(2),
                pl.BlockSpec((27 * Cin, TN), lambda n, b, d: (0, n)),
                pl.BlockSpec((1, TN), lambda n, b, d: (0, n))]
    args = [h3, h3, h3, w_mat, bias2]
    flops = 2 * B * D * R_out * (27 * Cin) * Cout
    bytes_acc = (3 * h3.size * h3.dtype.itemsize
                 + w_mat.size * w_mat.dtype.itemsize
                 + xs.size * xs.dtype.itemsize
                 + B * D * R_out * Cout * jnp.dtype(out_dtype).itemsize)

    if wn is not None:
        kernel = functools.partial(_conv2_nin_kernel, cin=Cin, wp2=wp2,
                                   n_out=R_out)
        in_specs += [pl.BlockSpec((None, None, R_out, Cs),
                                  lambda n, b, d: (b, d, 0, 0)),
                     pl.BlockSpec((Cs, TN), lambda n, b, d: (0, n))]
        args += [xs, wn]
        flops += 2 * B * D * R_out * Cs * Cout
    else:
        kernel = functools.partial(_conv2_add_kernel, cin=Cin, wp2=wp2,
                                   n_out=R_out)
        in_specs.append(pl.BlockSpec((None, None, R_out, TN),
                                     lambda n, b, d: (b, d, 0, n)))
        args.append(xs)

    return pl.pallas_call(
        kernel,
        out_shape=jax.ShapeDtypeStruct((B, D, R_out, Cout), out_dtype),
        grid=(NT, B, D),
        in_specs=in_specs,
        out_specs=pl.BlockSpec((None, None, R_out, TN),
                               lambda n, b, d: (b, d, 0, n)),
        scratch_shapes=[pltpu.VMEM((R_in, 3 * Cin), h3.dtype)],
        compiler_params=pltpu.CompilerParams(
            dimension_semantics=("parallel", "parallel", "parallel"),
            vmem_limit_bytes=_VMEM_LIMIT),
        cost_estimate=pl.CostEstimate(flops=flops, transcendentals=0,
                                      bytes_accessed=bytes_acc),
    )(*args)


# -----------------------------------------------------------------------------
# Weight packing + mask helpers
# -----------------------------------------------------------------------------
def conv3_weight_to_mat(w):
    """PyTorch Conv3d weight (Co, Ci, kD, kH, kW) -> (27*Ci, Co) with rows
    ordered (kH, kW, kD, Ci) to match the lane-stacked-depth kernel LHS."""
    co, ci = w.shape[0], w.shape[1]
    return jnp.transpose(w, (3, 4, 2, 1, 0)).reshape(27 * ci, co)


def _row_validity_mask(H, W, halo):
    """(Npp + 2*halo,) f32 mask: 1 on interior rows (h in [1,H], w in [1,W])."""
    wp2 = W + 2
    p = jnp.arange((H + 2) * wp2)
    ph, pw = p // wp2, p % wp2
    m = ((ph >= 1) & (ph <= H) & (pw >= 1) & (pw <= W)).astype(jnp.float32)
    return jnp.pad(m, (halo, halo))


def _gn_mask(D, H, W, halo):
    """((D+2)*(Npp+2*halo),) validity mask for the depth/HW-padded GN layout."""
    rowm = _row_validity_mask(H, W, halo)
    dm = jnp.concatenate([jnp.zeros((1,), jnp.float32),
                          jnp.ones((D,), jnp.float32),
                          jnp.zeros((1,), jnp.float32)])
    return (dm[:, None] * rowm[None, :]).reshape(-1)


# -----------------------------------------------------------------------------
# ResnetBlock forward
# -----------------------------------------------------------------------------
def resnet_block_forward(x, temb, params, *, num_groups=16, eps=1e-6):
    """x: (B, Cin, D, H, W) NCDHW,  temb: (B, temb_channels). Returns NCDHW f32."""
    B, Cin, D, H, W = x.shape
    Cout = params["conv1_w"].shape[0]
    f32, bf16 = jnp.float32, jnp.bfloat16
    wp2 = W + 2
    hs = wp2 + 1
    Npp = (H + 2) * wp2
    R2 = Npp + 2 * hs        # conv1 output / conv2 input rows (halo = hs)
    R1 = Npp + 4 * hs        # conv1 input rows (halo = 2*hs)

    # channels-last + a single zero-pad (depth +-1, HW ring, row halo 2*hs).
    x_cl = jnp.transpose(x, (0, 2, 3, 4, 1))                 # (B, D, H, W, Cin)
    x_pad = jnp.pad(x_cl, ((0, 0), (1, 1), (1, 1), (1, 1), (0, 0)))
    x_pad = x_pad.reshape(B, D + 2, Npp, Cin)
    x_pad = jnp.pad(x_pad, ((0, 0), (0, 0), (2 * hs, 2 * hs), (0, 0)))

    # h = nonlinearity(norm1(x)) on the padded layout (pad rows stay zero).
    m1 = _gn_mask(D, H, W, 2 * hs)
    h1 = group_norm_silu(x_pad.reshape(B, (D + 2) * R1, Cin),
                         params["norm1_g"], params["norm1_b"], num_groups,
                         count=float(D * H * W * (Cin // num_groups)),
                         mask_rows=m1, eps=eps, out_dtype=bf16)
    h1 = h1.reshape(B, D + 2, R1, Cin)

    # temb projection (tiny, plain XLA); conv1 bias folded into the add.
    t = temb.astype(f32)
    t = t * jax.nn.sigmoid(t)
    tb = (jnp.dot(t, params["temb_w"].T, precision=jax.lax.Precision.HIGHEST)
          + params["temb_b"] + params["conv1_b"]).astype(f32)     # (B, Cout)

    # conv1 (+ bias + temb), written directly in the depth/HW-padded layout.
    w1 = conv3_weight_to_mat(params["conv1_w"]).astype(bf16)
    mrow = _row_validity_mask(H, W, hs).reshape(R2, 1)
    h2 = conv1_fused(h1, w1, tb.reshape(B, 1, Cout), mrow, wp2=wp2,
                     out_dtype=bf16)                              # (B, D+2, R2, Cout)

    # h = nonlinearity(norm2(h)); dropout = identity (eval mode).
    m2 = _gn_mask(D, H, W, hs)
    h3 = group_norm_silu(h2.reshape(B, (D + 2) * R2, Cout),
                         params["norm2_g"], params["norm2_b"], num_groups,
                         count=float(D * H * W * (Cout // num_groups)),
                         mask_rows=m2, eps=eps, out_dtype=bf16)
    h3 = h3.reshape(B, D + 2, R2, Cout)

    # out = conv2(h) + bias + shortcut(x)   (shortcut fused into conv2)
    w2 = conv3_weight_to_mat(params["conv2_w"]).astype(bf16)
    xs_rows = x_pad[:, 1:D + 1, 2 * hs:2 * hs + Npp, :]           # (B, D, Npp, Cin)
    if "nin_w" in params:                                         # Cin != Cout
        b2 = (params["conv2_b"] + params["nin_b"]).reshape(1, Cout).astype(f32)
        wn = params["nin_w"].reshape(Cout, Cin).T.astype(bf16)    # (Cin, Cout)
        out = conv2_fused(h3, w2, b2, xs_rows.astype(bf16), wn, wp2=wp2,
                          out_dtype=f32)
    else:                                                         # identity shortcut
        b2 = params["conv2_b"].reshape(1, Cout).astype(f32)
        out = conv2_fused(h3, w2, b2, xs_rows.astype(f32), None, wp2=wp2,
                          out_dtype=f32)

    out = out.reshape(B, D, H + 2, W + 2, Cout)[:, :, 1:H + 1, 1:W + 1, :]
    return jnp.transpose(out, (0, 4, 1, 2, 3))                    # NCDHW f32


# -----------------------------------------------------------------------------
# Pure-JAX reference (for correctness check)
# -----------------------------------------------------------------------------
def resnet_block_reference(x, temb, params, *, num_groups=16, eps=1e-6):
    hi = jax.lax.Precision.HIGHEST

    def gn(v, gamma, beta):
        B, C = v.shape[0], v.shape[1]
        vg = v.reshape(B, num_groups, C // num_groups, -1)
        mean = vg.mean(axis=(2, 3), keepdims=True)
        var = vg.var(axis=(2, 3), keepdims=True)
        vn = ((vg - mean) / jnp.sqrt(var + eps)).reshape(v.shape)
        return vn * gamma[None, :, None, None, None] + beta[None, :, None, None, None]

    def silu(v):
        return v * jax.nn.sigmoid(v)

    def conv3(v, w, b, pad):
        out = jax.lax.conv_general_dilated(
            v, w, window_strides=(1, 1, 1), padding=[(pad, pad)] * 3,
            dimension_numbers=("NCDHW", "OIDHW", "NCDHW"), precision=hi)
        return out + b[None, :, None, None, None]

    h = silu(gn(x, params["norm1_g"], params["norm1_b"]))
    h = conv3(h, params["conv1_w"], params["conv1_b"], 1)
    tadd = jnp.dot(silu(temb), params["temb_w"].T, precision=hi) + params["temb_b"]
    h = h + tadd[:, :, None, None, None]
    h = silu(gn(h, params["norm2_g"], params["norm2_b"]))
    h = conv3(h, params["conv2_w"], params["conv2_b"], 1)
    if "nin_w" in params:
        sc = conv3(x, params["nin_w"], params["nin_b"], 0)
    else:
        sc = x
    return sc + h


# -----------------------------------------------------------------------------
# Deterministic parameter construction + smoke test
# -----------------------------------------------------------------------------
def make_params(key, in_channels, out_channels, temb_channels):
    ks = jax.random.split(key, 8)
    scale = 0.05
    p = {
        "norm1_g": jnp.ones((in_channels,), jnp.float32),
        "norm1_b": jnp.zeros((in_channels,), jnp.float32),
        "conv1_w": scale * jax.random.normal(
            ks[0], (out_channels, in_channels, 3, 3, 3), jnp.float32),
        "conv1_b": scale * jax.random.normal(ks[1], (out_channels,), jnp.float32),
        "temb_w": scale * jax.random.normal(
            ks[2], (out_channels, temb_channels), jnp.float32),
        "temb_b": scale * jax.random.normal(ks[3], (out_channels,), jnp.float32),
        "norm2_g": jnp.ones((out_channels,), jnp.float32),
        "norm2_b": jnp.zeros((out_channels,), jnp.float32),
        "conv2_w": scale * jax.random.normal(
            ks[4], (out_channels, out_channels, 3, 3, 3), jnp.float32),
        "conv2_b": scale * jax.random.normal(ks[5], (out_channels,), jnp.float32),
    }
    if in_channels != out_channels:
        p["nin_w"] = scale * jax.random.normal(
            ks[6], (out_channels, in_channels, 1, 1, 1), jnp.float32)
        p["nin_b"] = scale * jax.random.normal(ks[7], (out_channels,), jnp.float32)
    return p


if __name__ == "__main__":
    NUM_GROUPS = 16
    configs = [
        dict(B=2, Cin=16, Cout=32, D=4, H=4, W=4, TEMB=32),   # nin_shortcut path
        dict(B=1, Cin=32, Cout=32, D=4, H=4, W=4, TEMB=32),   # identity shortcut
    ]

    key = jax.random.PRNGKey(0)
    fwd = jax.jit(functools.partial(resnet_block_forward, num_groups=NUM_GROUPS))
    ref_fn = jax.jit(functools.partial(resnet_block_reference,
                                       num_groups=NUM_GROUPS))

    for i, cfg in enumerate(configs):
        key, kx, kt, kp = jax.random.split(key, 4)
        x = jax.random.normal(
            kx, (cfg["B"], cfg["Cin"], cfg["D"], cfg["H"], cfg["W"]), jnp.float32)
        temb = jax.random.normal(kt, (cfg["B"], cfg["TEMB"]), jnp.float32)
        params = make_params(kp, cfg["Cin"], cfg["Cout"], cfg["TEMB"])

        out = jax.block_until_ready(fwd(x, temb, params))
        assert out.shape == (cfg["B"], cfg["Cout"], cfg["D"], cfg["H"], cfg["W"]), \
            out.shape
        assert bool(jnp.all(jnp.isfinite(out)))

        ref = jax.block_until_ready(ref_fn(x, temb, params))
        max_err = float(jnp.max(jnp.abs(out - ref)))
        assert max_err < 1e-1, f"config {i}: max abs error vs reference: {max_err}"

    print("KERNEL_OK")
</pallas_src>

<mosaic_0001>
module attributes {stable_mosaic.version = 11 : i64} {
  func.func @_gn_apply_silu_kernel(%arg0: i32, %arg1: i32, %arg2: memref<1x384x16xf32, #tpu.memory_space<vmem>>, %arg3: memref<1x1x16xf32, #tpu.memory_space<vmem>>, %arg4: memref<1x1x16xf32, #tpu.memory_space<vmem>>, %arg5: memref<384x1xf32, #tpu.memory_space<vmem>>, %arg6: memref<1x384x16xbf16, #tpu.memory_space<vmem>>) attributes {dimension_semantics = [#tpu.dimension_semantics<parallel>, #tpu.dimension_semantics<parallel>], iteration_bounds = array<i64: 2, 1>, scalar_prefetch = 0 : i64, scratch_operands = 0 : i64, tpu.core_type = #tpu.core_type<tc>, window_params = [{transform_indices = @transform_0, window_bounds = array<i64: 1, 384, 16>}, {transform_indices = @transform_1, window_bounds = array<i64: 1, 1, 16>}, {transform_indices = @transform_2, window_bounds = array<i64: 1, 1, 16>}, {transform_indices = @transform_3, window_bounds = array<i64: 384, 1>}, {transform_indices = @transform_4, window_bounds = array<i64: 1, 384, 16>}]} {
    %c0 = arith.constant 0 : index
    %c0_0 = arith.constant 0 : index
    %c0_1 = arith.constant 0 : index
    %0 = vector.load %arg2[%c0, %c0_0, %c0_1] : memref<1x384x16xf32, #tpu.memory_space<vmem>>, vector<1x384x16xf32>
    %1 = vector.shape_cast %0 : vector<1x384x16xf32> to vector<384x16xf32>
    %c0_2 = arith.constant 0 : index
    %c0_3 = arith.constant 0 : index
    %c0_4 = arith.constant 0 : index
    %2 = vector.load %arg3[%c0_2, %c0_3, %c0_4] : memref<1x1x16xf32, #tpu.memory_space<vmem>>, vector<1x1x16xf32>
    %3 = vector.shape_cast %2 : vector<1x1x16xf32> to vector<1x16xf32>
    %4 = vector.broadcast %3 : vector<1x16xf32> to vector<384x16xf32>
    %5 = arith.mulf %1, %4 : vector<384x16xf32>
    %c0_5 = arith.constant 0 : index
    %c0_6 = arith.constant 0 : index
    %c0_7 = arith.constant 0 : index
    %6 = vector.load %arg4[%c0_5, %c0_6, %c0_7] : memref<1x1x16xf32, #tpu.memory_space<vmem>>, vector<1x1x16xf32>
    %7 = vector.shape_cast %6 : vector<1x1x16xf32> to vector<1x16xf32>
    %8 = vector.broadcast %7 : vector<1x16xf32> to vector<384x16xf32>
    %9 = arith.addf %5, %8 : vector<384x16xf32>
    %10 = arith.negf %9 : vector<384x16xf32>
    %11 = math.exp %10 : vector<384x16xf32>
    %cst = arith.constant 1.000000e+00 : f32
    %12 = vector.broadcast %cst : f32 to vector<384x16xf32>
    %13 = arith.addf %12, %11 : vector<384x16xf32>
    %14 = arith.divf %12, %13 : vector<384x16xf32>
    %15 = arith.mulf %9, %14 : vector<384x16xf32>
    %c0_8 = arith.constant 0 : index
    %c0_9 = arith.constant 0 : index
    %16 = vector.load %arg5[%c0_8, %c0_9] : memref<384x1xf32, #tpu.memory_space<vmem>>, vector<384x1xf32>
    %cst_10 = arith.constant 0.000000e+00 : f32
    %17 = vector.broadcast %cst_10 : f32 to vector<384x1xf32>
    %18 = arith.cmpf ogt, %16, %17 : vector<384x1xf32>
    %cst_11 = arith.constant 0.000000e+00 : f32
    %19 = vector.shape_cast %18 : vector<384x1xi1> to vector<384x1xi1>
    %20 = vector.broadcast %19 : vector<384x1xi1> to vector<384x16xi1>
    %21 = vector.broadcast %cst_11 : f32 to vector<384x16xf32>
    %22 = arith.select %20, %15, %21 : vector<384x16xi1>, vector<384x16xf32>
    %23 = arith.truncf %22 : vector<384x16xf32> to vector<384x16xbf16>
    %c0_12 = arith.constant 0 : index
    %c0_13 = arith.constant 0 : index
    %c0_14 = arith.constant 0 : index
    %24 = vector.load %arg6[%c0_12, %c0_13, %c0_14] : memref<1x384x16xbf16, #tpu.memory_space<vmem>>, vector<1x384x16xbf16>
    %25 = vector.shape_cast %24 : vector<1x384x16xbf16> to vector<384x16xbf16>
    %26 = vector.shape_cast %23 : vector<384x16xbf16> to vector<1x384x16xbf16>
    tpu.vector_store %arg6[%c0_12, %c0_13, %c0_14], %26 {strides = array<i32>} : memref<1x384x16xbf16, #tpu.memory_space<vmem>>, vector<1x384x16xbf16>,
    return
  }
  func.func @transform_0(%arg0: i32, %arg1: i32) -> (i32, i32, i32) {
    %c0_i32 = arith.constant 0 : i32
    %c0_i32_0 = arith.constant 0 : i32
    return %arg0, %arg1, %c0_i32 : i32, i32, i32
  }
  func.func @transform_1(%arg0: i32, %arg1: i32) -> (i32, i32, i32) {
    %c0_i32 = arith.constant 0 : i32
    %c0_i32_0 = arith.constant 0 : i32
    %c0_i32_1 = arith.constant 0 : i32
    return %arg0, %c0_i32, %c0_i32_0 : i32, i32, i32
  }
  func.func @transform_2(%arg0: i32, %arg1: i32) -> (i32, i32, i32) {
    %c0_i32 = arith.constant 0 : i32
    %c0_i32_0 = arith.constant 0 : i32
    %c0_i32_1 = arith.constant 0 : i32
    return %arg0, %c0_i32, %c0_i32_0 : i32, i32, i32
  }
  func.func @transform_3(%arg0: i32, %arg1: i32) -> (i32, i32) {
    %c0_i32 = arith.constant 0 : i32
    %c0_i32_0 = arith.constant 0 : i32
    return %arg1, %c0_i32 : i32, i32
  }
  func.func @transform_4(%arg0: i32, %arg1: i32) -> (i32, i32, i32) {
    %c0_i32 = arith.constant 0 : i32
    %c0_i32_0 = arith.constant 0 : i32
    return %arg0, %arg1, %c0_i32 : i32, i32, i32
  }
}

module attributes {stable_mosaic.version = 11 : i64} {
  func.func @_gn_stats_kernel(%arg0: i32, %arg1: i32, %arg2: memref<1x384x16xf32, #tpu.memory_space<vmem>>, %arg3: memref<384x1xf32, #tpu.memory_space<vmem>>, %arg4: memref<1x2x16xf32, #tpu.memory_space<vmem>>) attributes {dimension_semantics = [#tpu.dimension_semantics<parallel>, #tpu.dimension_semantics<arbitrary>], iteration_bounds = array<i64: 2, 1>, scalar_prefetch = 0 : i64, scratch_operands = 0 : i64, tpu.core_type = #tpu.core_type<tc>, window_params = [{transform_indices = @transform_0, window_bounds = array<i64: 1, 384, 16>}, {transform_indices = @transform_1, window_bounds = array<i64: 384, 1>}, {transform_indices = @transform_2, window_bounds = array<i64: 1, 2, 16>}]} {
    %c0 = arith.constant 0 : index
    %c0_0 = arith.constant 0 : index
    %0 = vector.load %arg3[%c0, %c0_0] : memref<384x1xf32, #tpu.memory_space<vmem>>, vector<384x1xf32>
    %cst = arith.constant 0.000000e+00 : f32
    %1 = vector.broadcast %cst : f32 to vector<384x1xf32>
    %2 = arith.cmpf ogt, %0, %1 : vector<384x1xf32>
    %c0_1 = arith.constant 0 : index
    %c0_2 = arith.constant 0 : index
    %c0_3 = arith.constant 0 : index
    %3 = vector.load %arg2[%c0_1, %c0_2, %c0_3] : memref<1x384x16xf32, #tpu.memory_space<vmem>>, vector<1x384x16xf32>
    %4 = vector.shape_cast %3 : vector<1x384x16xf32> to vector<384x16xf32>
    %cst_4 = arith.constant 0.000000e+00 : f32
    %5 = vector.shape_cast %2 : vector<384x1xi1> to vector<384x1xi1>
    %6 = vector.broadcast %5 : vector<384x1xi1> to vector<384x16xi1>
    %7 = vector.broadcast %cst_4 : f32 to vector<384x16xf32>
    %8 = arith.select %6, %4, %7 : vector<384x16xi1>, vector<384x16xf32>
    %cst_5 = arith.constant dense<0.000000e+00> : vector<16xf32>
    %9 = vector.multi_reduction <add>, %8, %cst_5 [0] : vector<384x16xf32> to vector<16xf32>
    %10 = vector.shape_cast %9 : vector<16xf32> to vector<1x16xf32>
    %11 = arith.mulf %8, %8 : vector<384x16xf32>
    %cst_6 = arith.constant dense<0.000000e+00> : vector<16xf32>
    %12 = vector.multi_reduction <add>, %11, %cst_6 [0] : vector<384x16xf32> to vector<16xf32>
    %13 = vector.shape_cast %12 : vector<16xf32> to vector<1x16xf32>
    %14 = tpu.concatenate %10, %13 in 0 : vector<1x16xf32>, vector<1x16xf32> -> vector<2x16xf32>
    %c0_i32 = arith.constant 0 : i32
    %15 = arith.cmpi eq, %arg1, %c0_i32 : i32
    %16 = arith.extui %15 : i1 to i32
    %c0_i32_7 = arith.constant 0 : i32
    %17 = arith.cmpi ne, %16, %c0_i32_7 : i32
    scf.if %17 {
      %c0_10 = arith.constant 0 : index
      %c0_11 = arith.constant 0 : index
      %c0_12 = arith.constant 0 : index
      %21 = vector.load %arg4[%c0_10, %c0_11, %c0_12] : memref<1x2x16xf32, #tpu.memory_space<vmem>>, vector<1x2x16xf32>
      %22 = vector.shape_cast %21 : vector<1x2x16xf32> to vector<2x16xf32>
      %23 = vector.shape_cast %14 : vector<2x16xf32> to vector<1x2x16xf32>
      tpu.vector_store %arg4[%c0_10, %c0_11, %c0_12], %23 {strides = array<i32>} : memref<1x2x16xf32, #tpu.memory_space<vmem>>, vector<1x2x16xf32>,
    } else {
    }
    %c0_i32_8 = arith.constant 0 : i32
    %18 = arith.cmpi sgt, %arg1, %c0_i32_8 : i32
    %19 = arith.extui %18 : i1 to i32
    %c0_i32_9 = arith.constant 0 : i32
    %20 = arith.cmpi ne, %19, %c0_i32_9 : i32
    scf.if %20 {
      %c0_10 = arith.constant 0 : index
      %c0_11 = arith.constant 0 : index
      %c0_12 = arith.constant 0 : index
      %21 = vector.load %arg4[%c0_10, %c0_11, %c0_12] : memref<1x2x16xf32, #tpu.memory_space<vmem>>, vector<1x2x16xf32>
      %22 = vector.shape_cast %21 : vector<1x2x16xf32> to vector<2x16xf32>
      %23 = arith.addf %22, %14 : vector<2x16xf32>
      %c0_13 = arith.constant 0 : index
      %c0_14 = arith.constant 0 : index
      %c0_15 = arith.constant 0 : index
      %24 = vector.load %arg4[%c0_13, %c0_14, %c0_15] : memref<1x2x16xf32, #tpu.memory_space<vmem>>, vector<1x2x16xf32>
      %25 = vector.shape_cast %24 : vector<1x2x16xf32> to vector<2x16xf32>
      %26 = vector.shape_cast %23 : vector<2x16xf32> to vector<1x2x16xf32>
      tpu.vector_store %arg4[%c0_13, %c0_14, %c0_15], %26 {strides = array<i32>} : memref<1x2x16xf32, #tpu.memory_space<vmem>>, vector<1x2x16xf32>,
    } else {
    }
    return
  }
  func.func @transform_0(%arg0: i32, %arg1: i32) -> (i32, i32, i32) {
    %c0_i32 = arith.constant 0 : i32
    %c0_i32_0 = arith.constant 0 : i32
    return %arg0, %arg1, %c0_i32 : i32, i32, i32
  }
  func.func @transform_1(%arg0: i32, %arg1: i32) -> (i32, i32) {
    %c0_i32 = arith.constant 0 : i32
    %c0_i32_0 = arith.constant 0 : i32
    return %arg1, %c0_i32 : i32, i32
  }
  func.func @transform_2(%arg0: i32, %arg1: i32) -> (i32, i32, i32) {
    %c0_i32 = arith.constant 0 : i32
    %c0_i32_0 = arith.constant 0 : i32
    %c0_i32_1 = arith.constant 0 : i32
    return %arg0, %c0_i32, %c0_i32_0 : i32, i32, i32
  }
}

module attributes {stable_mosaic.version = 11 : i64} {
  func.func @_conv1_kernel(%arg0: i32, %arg1: i32, %arg2: i32, %arg3: memref<1x1x64x16xbf16, #tpu.memory_space<vmem>>, %arg4: memref<1x1x64x16xbf16, #tpu.memory_space<vmem>>, %arg5: memref<1x1x64x16xbf16, #tpu.memory_space<vmem>>, %arg6: memref<432x32xbf16, #tpu.memory_space<vmem>>, %arg7: memref<1x1x32xf32, #tpu.memory_space<vmem>>, %arg8: memref<50x1xf32, #tpu.memory_space<vmem>>, %arg9: memref<1x1x50x32xbf16, #tpu.memory_space<vmem>>, %arg10: memref<64x48xbf16, #tpu.memory_space<vmem>>) attributes {dimension_semantics = [#tpu.dimension_semantics<parallel>, #tpu.dimension_semantics<parallel>, #tpu.dimension_semantics<parallel>], iteration_bounds = array<i64: 1, 2, 6>, scalar_prefetch = 0 : i64, scratch_operands = 1 : i64, tpu.core_type = #tpu.core_type<tc>, window_params = [{transform_indices = @transform_0, window_bounds = array<i64: 1, 1, 64, 16>}, {transform_indices = @transform_1, window_bounds = array<i64: 1, 1, 64, 16>}, {transform_indices = @transform_2, window_bounds = array<i64: 1, 1, 64, 16>}, {transform_indices = @transform_3, window_bounds = array<i64: 432, 32>}, {transform_indices = @transform_4, window_bounds = array<i64: 1, 1, 32>}, {pipeline_mode = #tpu.pipeline_mode<synchronous>, transform_indices = @transform_5, window_bounds = array<i64: 50, 1>}, {transform_indices = @transform_6, window_bounds = array<i64: 1, 1, 50, 32>}]} {
    %c0_i32 = arith.constant 0 : i32
    %0 = arith.cmpi eq, %arg2, %c0_i32 : i32
    %c5_i32 = arith.constant 5 : i32
    %1 = arith.cmpi eq, %arg2, %c5_i32 : i32
    %2 = arith.ori %0, %1 : i1
    %3 = arith.extui %2 : i1 to i32
    %c0_i32_0 = arith.constant 0 : i32
    %4 = arith.cmpi ne, %3, %c0_i32_0 : i32
    scf.if %4 {
      %cst = arith.constant 0.000000e+00 : bf16
      %8 = vector.broadcast %cst : bf16 to vector<50x32xbf16>
      %c0 = arith.constant 0 : index
      %c0_2 = arith.constant 0 : index
      %c0_3 = arith.constant 0 : index
      %c0_4 = arith.constant 0 : index
      %9 = vector.load %arg9[%c0, %c0_2, %c0_3, %c0_4] : memref<1x1x50x32xbf16, #tpu.memory_space<vmem>>, vector<1x1x50x32xbf16>
      %10 = vector.shape_cast %9 : vector<1x1x50x32xbf16> to vector<50x32xbf16>
      %11 = vector.shape_cast %8 : vector<50x32xbf16> to vector<1x1x50x32xbf16>
      tpu.vector_store %arg9[%c0, %c0_2, %c0_3, %c0_4], %11 {strides = array<i32>} : memref<1x1x50x32xbf16, #tpu.memory_space<vmem>>, vector<1x1x50x32xbf16>,
    } else {
    }
    %true = arith.constant true
    %5 = arith.xori %2, %true : i1
    %6 = arith.extui %5 : i1 to i32
    %c0_i32_1 = arith.constant 0 : i32
    %7 = arith.cmpi ne, %6, %c0_i32_1 : i32
    scf.if %7 {
      %c0 = arith.constant 0 : index
      %c0_2 = arith.constant 0 : index
      %c0_3 = arith.constant 0 : index
      %c0_4 = arith.constant 0 : index
      %8 = vector.load %arg3[%c0, %c0_2, %c0_3, %c0_4] : memref<1x1x64x16xbf16, #tpu.memory_space<vmem>>, vector<1x1x64x16xbf16>
      %9 = vector.shape_cast %8 : vector<1x1x64x16xbf16> to vector<64x16xbf16>
      %c0_5 = arith.constant 0 : index
      %c0_6 = arith.constant 0 : index
      %c0_7 = arith.constant 0 : index
      %c0_8 = arith.constant 0 : index
      %10 = vector.load %arg4[%c0_5, %c0_6, %c0_7, %c0_8] : memref<1x1x64x16xbf16, #tpu.memory_space<vmem>>, vector<1x1x64x16xbf16>
      %11 = vector.shape_cast %10 : vector<1x1x64x16xbf16> to vector<64x16xbf16>
      %c0_9 = arith.constant 0 : index
      %c0_10 = arith.constant 0 : index
      %c0_11 = arith.constant 0 : index
      %c0_12 = arith.constant 0 : index
      %12 = vector.load %arg5[%c0_9, %c0_10, %c0_11, %c0_12] : memref<1x1x64x16xbf16, #tpu.memory_space<vmem>>, vector<1x1x64x16xbf16>
      %13 = vector.shape_cast %12 : vector<1x1x64x16xbf16> to vector<64x16xbf16>
      %14 = tpu.concatenate %9, %11, %13 in 1 : vector<64x16xbf16>, vector<64x16xbf16>, vector<64x16xbf16> -> vector<64x48xbf16>
      %c0_13 = arith.constant 0 : index
      %c0_14 = arith.constant 0 : index
      %15 = vector.load %arg10[%c0_13, %c0_14] : memref<64x48xbf16, #tpu.memory_space<vmem>>, vector<64x48xbf16>
      tpu.vector_store %arg10[%c0_13, %c0_14], %14 {strides = array<i32>} : memref<64x48xbf16, #tpu.memory_space<vmem>>, vector<64x48xbf16>,
      %cst = arith.constant 0.000000e+00 : f32
      %16 = vector.broadcast %cst : f32 to vector<50x32xf32>
      %c0_15 = arith.constant 0 : index
      %c0_16 = arith.constant 0 : index
      %17 = vector.load %arg10[%c0_15, %c0_16] : memref<64x48xbf16, #tpu.memory_space<vmem>>, vector<50x48xbf16>
      %c0_17 = arith.constant 0 : index
      %c0_18 = arith.constant 0 : index
      %18 = vector.load %arg6[%c0_17, %c0_18] : memref<432x32xbf16, #tpu.memory_space<vmem>>, vector<48x32xbf16>
      %cst_19 = arith.constant dense<0.000000e+00> : vector<50x32xf32>
      %19 = tpu.matmul %17, %18, %cst_19 {dimension_numbers = #tpu.dot_dimension_numbers<[1], [0], [0], [1], [0, 0, 1, 1], [], []>} : vector<50x48xbf16>, vector<48x32xbf16>, vector<50x32xf32> -> vector<50x32xf32>
      %20 = arith.addf %16, %19 : vector<50x32xf32>
      %c1 = arith.constant 1 : index
      %c0_20 = arith.constant 0 : index
      %21 = vector.load %arg10[%c1, %c0_20] : memref<64x48xbf16, #tpu.memory_space<vmem>>, vector<50x48xbf16>
      %c48 = arith.constant 48 : index
      %c0_21 = arith.constant 0 : index
      %22 = vector.load %arg6[%c48, %c0_21] : memref<432x32xbf16, #tpu.memory_space<vmem>>, vector<48x32xbf16>
      %cst_22 = arith.constant dense<0.000000e+00> : vector<50x32xf32>
      %23 = tpu.matmul %21, %22, %cst_22 {dimension_numbers = #tpu.dot_dimension_numbers<[1], [0], [0], [1], [0, 0, 1, 1], [], []>} : vector<50x48xbf16>, vector<48x32xbf16>, vector<50x32xf32> -> vector<50x32xf32>
      %24 = arith.addf %20, %23 : vector<50x32xf32>
      %c2 = arith.constant 2 : index
      %c0_23 = arith.constant 0 : index
      %25 = vector.load %arg10[%c2, %c0_23] : memref<64x48xbf16, #tpu.memory_space<vmem>>, vector<50x48xbf16>
      %c96 = arith.constant 96 : index
      %c0_24 = arith.constant 0 : index
      %26 = vector.load %arg6[%c96, %c0_24] : memref<432x32xbf16, #tpu.memory_space<vmem>>, vector<48x32xbf16>
      %cst_25 = arith.constant dense<0.000000e+00> : vector<50x32xf32>
      %27 = tpu.matmul %25, %26, %cst_25 {dimension_numbers = #tpu.dot_dimension_numbers<[1], [0], [0], [1], [0, 0, 1, 1], [], []>} : vector<50x48xbf16>, vector<48x32xbf16>, vector<50x32xf32> -> vector<50x32xf32>
      %28 = arith.addf %24, %27 : vector<50x32xf32>
      %c6 = arith.constant 6 : index
      %c0_26 = arith.constant 0 : index
      %29 = vector.load %arg10[%c6, %c0_26] : memref<64x48xbf16, #tpu.memory_space<vmem>>, vector<50x48xbf16>
      %c144 = arith.constant 144 : index
      %c0_27 = arith.constant 0 : index
      %30 = vector.load %arg6[%c144, %c0_27] : memref<432x32xbf16, #tpu.memory_space<vmem>>, vector<48x32xbf16>
      %cst_28 = arith.constant dense<0.000000e+00> : vector<50x32xf32>
      %31 = tpu.matmul %29, %30, %cst_28 {dimension_numbers = #tpu.dot_dimension_numbers<[1], [0], [0], [1], [0, 0, 1, 1], [], []>} : vector<50x48xbf16>, vector<48x32xbf16>, vector<50x32xf32> -> vector<50x32xf32>
      %32 = arith.addf %28, %31 : vector<50x32xf32>
      %c7 = arith.constant 7 : index
      %c0_29 = arith.constant 0 : index
      %33 = vector.load %arg10[%c7, %c0_29] : memref<64x48xbf16, #tpu.memory_space<vmem>>, vector<50x48xbf16>
      %c192 = arith.constant 192 : index
      %c0_30 = arith.constant 0 : index
      %34 = vector.load %arg6[%c192, %c0_30] : memref<432x32xbf16, #tpu.memory_space<vmem>>, vector<48x32xbf16>
      %cst_31 = arith.constant dense<0.000000e+00> : vector<50x32xf32>
      %35 = tpu.matmul %33, %34, %cst_31 {dimension_numbers = #tpu.dot_dimension_numbers<[1], [0], [0], [1], [0, 0, 1, 1], [], []>} : vector<50x48xbf16>, vector<48x32xbf16>, vector<50x32xf32> -> vector<50x32xf32>
      %36 = arith.addf %32, %35 : vector<50x32xf32>
      %c8 = arith.constant 8 : index
      %c0_32 = arith.constant 0 : index
      %37 = vector.load %arg10[%c8, %c0_32] : memref<64x48xbf16, #tpu.memory_space<vmem>>, vector<50x48xbf16>
      %c240 = arith.constant 240 : index
      %c0_33 = arith.constant 0 : index
      %38 = vector.load %arg6[%c240, %c0_33] : memref<432x32xbf16, #tpu.memory_space<vmem>>, vector<48x32xbf16>
      %cst_34 = arith.constant dense<0.000000e+00> : vector<50x32xf32>
      %39 = tpu.matmul %37, %38, %cst_34 {dimension_numbers = #tpu.dot_dimension_numbers<[1], [0], [0], [1], [0, 0, 1, 1], [], []>} : vector<50x48xbf16>, vector<48x32xbf16>, vector<50x32xf32> -> vector<50x32xf32>
      %40 = arith.addf %36, %39 : vector<50x32xf32>
      %c12 = arith.constant 12 : index
      %c0_35 = arith.constant 0 : index
      %41 = vector.load %arg10[%c12, %c0_35] : memref<64x48xbf16, #tpu.memory_space<vmem>>, vector<50x48xbf16>
      %c288 = arith.constant 288 : index
      %c0_36 = arith.constant 0 : index
      %42 = vector.load %arg6[%c288, %c0_36] : memref<432x32xbf16, #tpu.memory_space<vmem>>, vector<48x32xbf16>
      %cst_37 = arith.constant dense<0.000000e+00> : vector<50x32xf32>
      %43 = tpu.matmul %41, %42, %cst_37 {dimension_numbers = #tpu.dot_dimension_numbers<[1], [0], [0], [1], [0, 0, 1, 1], [], []>} : vector<50x48xbf16>, vector<48x32xbf16>, vector<50x32xf32> -> vector<50x32xf32>
      %44 = arith.addf %40, %43 : vector<50x32xf32>
      %c13 = arith.constant 13 : index
      %c0_38 = arith.constant 0 : index
      %45 = vector.load %arg10[%c13, %c0_38] : memref<64x48xbf16, #tpu.memory_space<vmem>>, vector<50x48xbf16>
      %c336 = arith.constant 336 : index
      %c0_39 = arith.constant 0 : index
      %46 = vector.load %arg6[%c336, %c0_39] : memref<432x32xbf16, #tpu.memory_space<vmem>>, vector<48x32xbf16>
      %cst_40 = arith.constant dense<0.000000e+00> : vector<50x32xf32>
      %47 = tpu.matmul %45, %46, %cst_40 {dimension_numbers = #tpu.dot_dimension_numbers<[1], [0], [0], [1], [0, 0, 1, 1], [], []>} : vector<50x48xbf16>, vector<48x32xbf16>, vector<50x32xf32> -> vector<50x32xf32>
      %48 = arith.addf %44, %47 : vector<50x32xf32>
      %c14 = arith.constant 14 : index
      %c0_41 = arith.constant 0 : index
      %49 = vector.load %arg10[%c14, %c0_41] : memref<64x48xbf16, #tpu.memory_space<vmem>>, vector<50x48xbf16>
      %c384 = arith.constant 384 : index
      %c0_42 = arith.constant 0 : index
      %50 = vector.load %arg6[%c384, %c0_42] : memref<432x32xbf16, #tpu.memory_space<vmem>>, vector<48x32xbf16>
      %cst_43 = arith.constant dense<0.000000e+00> : vector<50x32xf32>
      %51 = tpu.matmul %49, %50, %cst_43 {dimension_numbers = #tpu.dot_dimension_numbers<[1], [0], [0], [1], [0, 0, 1, 1], [], []>} : vector<50x48xbf16>, vector<48x32xbf16>, vector<50x32xf32> -> vector<50x32xf32>
      %52 = arith.addf %48, %51 : vector<50x32xf32>
      %c0_44 = arith.constant 0 : index
      %c0_45 = arith.constant 0 : index
      %c0_46 = arith.constant 0 : index
      %53 = vector.load %arg7[%c0_44, %c0_45, %c0_46] : memref<1x1x32xf32, #tpu.memory_space<vmem>>, vector<1x1x32xf32>
      %54 = vector.shape_cast %53 : vector<1x1x32xf32> to vector<1x32xf32>
      %55 = vector.broadcast %54 : vector<1x32xf32> to vector<50x32xf32>
      %56 = arith.addf %52, %55 : vector<50x32xf32>
      %c0_47 = arith.constant 0 : index
      %c0_48 = arith.constant 0 : index
      %57 = vector.load %arg8[%c0_47, %c0_48] : memref<50x1xf32, #tpu.memory_space<vmem>>, vector<50x1xf32>
      %58 = vector.broadcast %57 : vector<50x1xf32> to vector<50x32xf32>
      %59 = arith.mulf %56, %58 : vector<50x32xf32>
      %60 = arith.truncf %59 : vector<50x32xf32> to vector<50x32xbf16>
      %c0_49 = arith.constant 0 : index
      %c0_50 = arith.constant 0 : index
      %c0_51 = arith.constant 0 : index
      %c0_52 = arith.constant 0 : index
      %61 = vector.load %arg9[%c0_49, %c0_50, %c0_51, %c0_52] : memref<1x1x50x32xbf16, #tpu.memory_space<vmem>>, vector<1x1x50x32xbf16>
      %62 = vector.shape_cast %61 : vector<1x1x50x32xbf16> to vector<50x32xbf16>
      %63 = vector.shape_cast %60 : vector<50x32xbf16> to vector<1x1x50x32xbf16>
      tpu.vector_store %arg9[%c0_49, %c0_50, %c0_51, %c0_52], %63 {strides = array<i32>} : memref<1x1x50x32xbf16, #tpu.memory_space<vmem>>, vector<1x1x50x32xbf16>,
    } else {
    }
    return
  }
  func.func @transform_0(%arg0: i32, %arg1: i32, %arg2: i32) -> (i32, i32, i32, i32) {
    %c1_i32 = arith.constant 1 : i32
    %0 = arith.subi %arg2, %c1_i32 : i32
    %c0_i32 = arith.constant 0 : i32
    %1 = arith.addi %0, %c0_i32 : i32
    %c0_i32_0 = arith.constant 0 : i32
    %c5_i32 = arith.constant 5 : i32
    %2 = arith.maxsi %c0_i32_0, %1 : i32
    %3 = arith.minsi %c5_i32, %2 : i32
    %c0_i32_1 = arith.constant 0 : i32
    %c0_i32_2 = arith.constant 0 : i32
    %c0_i32_3 = arith.constant 0 : i32
    return %arg1, %3, %c0_i32_1, %c0_i32_2 : i32, i32, i32, i32
  }
  func.func @transform_1(%arg0: i32, %arg1: i32, %arg2: i32) -> (i32, i32, i32, i32) {
    %c1_i32 = arith.constant 1 : i32
    %0 = arith.subi %arg2, %c1_i32 : i32
    %c1_i32_0 = arith.constant 1 : i32
    %1 = arith.addi %0, %c1_i32_0 : i32
    %c0_i32 = arith.constant 0 : i32
    %c5_i32 = arith.constant 5 : i32
    %2 = arith.maxsi %c0_i32, %1 : i32
    %3 = arith.minsi %c5_i32, %2 : i32
    %c0_i32_1 = arith.constant 0 : i32
    %c0_i32_2 = arith.constant 0 : i32
    %c0_i32_3 = arith.constant 0 : i32
    return %arg1, %3, %c0_i32_1, %c0_i32_2 : i32, i32, i32, i32
  }
  func.func @transform_2(%arg0: i32, %arg1: i32, %arg2: i32) -> (i32, i32, i32, i32) {
    %c1_i32 = arith.constant 1 : i32
    %0 = arith.subi %arg2, %c1_i32 : i32
    %c2_i32 = arith.constant 2 : i32
    %1 = arith.addi %0, %c2_i32 : i32
    %c0_i32 = arith.constant 0 : i32
    %c5_i32 = arith.constant 5 : i32
    %2 = arith.maxsi %c0_i32, %1 : i32
    %3 = arith.minsi %c5_i32, %2 : i32
    %c0_i32_0 = arith.constant 0 : i32
    %c0_i32_1 = arith.constant 0 : i32
    %c0_i32_2 = arith.constant 0 : i32
    return %arg1, %3, %c0_i32_0, %c0_i32_1 : i32, i32, i32, i32
  }
  func.func @transform_3(%arg0: i32, %arg1: i32, %arg2: i32) -> (i32, i32) {
    %c0_i32 = arith.constant 0 : i32
    %c0_i32_0 = arith.constant 0 : i32
    return %c0_i32, %arg0 : i32, i32
  }
  func.func @transform_4(%arg0: i32, %arg1: i32, %arg2: i32) -> (i32, i32, i32) {
    %c0_i32 = arith.constant 0 : i32
    %c0_i32_0 = arith.constant 0 : i32
    return %arg1, %c0_i32, %arg0 : i32, i32, i32
  }
  func.func @transform_5(%arg0: i32, %arg1: i32, %arg2: i32) -> (i32, i32) {
    %c0_i32 = arith.constant 0 : i32
    %c0_i32_0 = arith.constant 0 : i32
    %c0_i32_1 = arith.constant 0 : i32
    return %c0_i32, %c0_i32_0 : i32, i32
  }
  func.func @transform_6(%arg0: i32, %arg1: i32, %arg2: i32) -> (i32, i32, i32, i32) {
    %c0_i32 = arith.constant 0 : i32
    %c0_i32_0 = arith.constant 0 : i32
    return %arg1, %arg2, %c0_i32, %arg0 : i32, i32, i32, i32
  }
}

module attributes {stable_mosaic.version = 11 : i64} {
  func.func @_gn_stats_kernel(%arg0: i32, %arg1: i32, %arg2: memref<1x300x32xbf16, #tpu.memory_space<vmem>>, %arg3: memref<300x1xf32, #tpu.memory_space<vmem>>, %arg4: memref<1x2x32xf32, #tpu.memory_space<vmem>>) attributes {dimension_semantics = [#tpu.dimension_semantics<parallel>, #tpu.dimension_semantics<arbitrary>], iteration_bounds = array<i64: 2, 1>, scalar_prefetch = 0 : i64, scratch_operands = 0 : i64, tpu.core_type = #tpu.core_type<tc>, window_params = [{transform_indices = @transform_0, window_bounds = array<i64: 1, 300, 32>}, {transform_indices = @transform_1, window_bounds = array<i64: 300, 1>}, {transform_indices = @transform_2, window_bounds = array<i64: 1, 2, 32>}]} {
    %c0 = arith.constant 0 : index
    %c0_0 = arith.constant 0 : index
    %0 = vector.load %arg3[%c0, %c0_0] : memref<300x1xf32, #tpu.memory_space<vmem>>, vector<300x1xf32>
    %cst = arith.constant 0.000000e+00 : f32
    %1 = vector.broadcast %cst : f32 to vector<300x1xf32>
    %2 = arith.cmpf ogt, %0, %1 : vector<300x1xf32>
    %c0_1 = arith.constant 0 : index
    %c0_2 = arith.constant 0 : index
    %c0_3 = arith.constant 0 : index
    %3 = vector.load %arg2[%c0_1, %c0_2, %c0_3] : memref<1x300x32xbf16, #tpu.memory_space<vmem>>, vector<1x300x32xbf16>
    %4 = vector.shape_cast %3 : vector<1x300x32xbf16> to vector<300x32xbf16>
    %5 = arith.extf %4 : vector<300x32xbf16> to vector<300x32xf32>
    %cst_4 = arith.constant 0.000000e+00 : f32
    %6 = vector.shape_cast %2 : vector<300x1xi1> to vector<300x1xi1>
    %7 = vector.broadcast %6 : vector<300x1xi1> to vector<300x32xi1>
    %8 = vector.broadcast %cst_4 : f32 to vector<300x32xf32>
    %9 = arith.select %7, %5, %8 : vector<300x32xi1>, vector<300x32xf32>
    %cst_5 = arith.constant dense<0.000000e+00> : vector<32xf32>
    %10 = vector.multi_reduction <add>, %9, %cst_5 [0] : vector<300x32xf32> to vector<32xf32>
    %11 = vector.shape_cast %10 : vector<32xf32> to vector<1x32xf32>
    %12 = arith.mulf %9, %9 : vector<300x32xf32>
    %cst_6 = arith.constant dense<0.000000e+00> : vector<32xf32>
    %13 = vector.multi_reduction <add>, %12, %cst_6 [0] : vector<300x32xf32> to vector<32xf32>
    %14 = vector.shape_cast %13 : vector<32xf32> to vector<1x32xf32>
    %15 = tpu.concatenate %11, %14 in 0 : vector<1x32xf32>, vector<1x32xf32> -> vector<2x32xf32>
    %c0_i32 = arith.constant 0 : i32
    %16 = arith.cmpi eq, %arg1, %c0_i32 : i32
    %17 = arith.extui %16 : i1 to i32
    %c0_i32_7 = arith.constant 0 : i32
    %18 = arith.cmpi ne, %17, %c0_i32_7 : i32
    scf.if %18 {
      %c0_10 = arith.constant 0 : index
      %c0_11 = arith.constant 0 : index
      %c0_12 = arith.constant 0 : index
      %22 = vector.load %arg4[%c0_10, %c0_11, %c0_12] : memref<1x2x32xf32, #tpu.memory_space<vmem>>, vector<1x2x32xf32>
      %23 = vector.shape_cast %22 : vector<1x2x32xf32> to vector<2x32xf32>
      %24 = vector.shape_cast %15 : vector<2x32xf32> to vector<1x2x32xf32>
      tpu.vector_store %arg4[%c0_10, %c0_11, %c0_12], %24 {strides = array<i32>} : memref<1x2x32xf32, #tpu.memory_space<vmem>>, vector<1x2x32xf32>,
    } else {
    }
    %c0_i32_8 = arith.constant 0 : i32
    %19 = arith.cmpi sgt, %arg1, %c0_i32_8 : i32
    %20 = arith.extui %19 : i1 to i32
    %c0_i32_9 = arith.constant 0 : i32
    %21 = arith.cmpi ne, %20, %c0_i32_9 : i32
    scf.if %21 {
      %c0_10 = arith.constant 0 : index
      %c0_11 = arith.constant 0 : index
      %c0_12 = arith.constant 0 : index
      %22 = vector.load %arg4[%c0_10, %c0_11, %c0_12] : memref<1x2x32xf32, #tpu.memory_space<vmem>>, vector<1x2x32xf32>
      %23 = vector.shape_cast %22 : vector<1x2x32xf32> to vector<2x32xf32>
      %24 = arith.addf %23, %15 : vector<2x32xf32>
      %c0_13 = arith.constant 0 : index
      %c0_14 = arith.constant 0 : index
      %c0_15 = arith.constant 0 : index
      %25 = vector.load %arg4[%c0_13, %c0_14, %c0_15] : memref<1x2x32xf32, #tpu.memory_space<vmem>>, vector<1x2x32xf32>
      %26 = vector.shape_cast %25 : vector<1x2x32xf32> to vector<2x32xf32>
      %27 = vector.shape_cast %24 : vector<2x32xf32> to vector<1x2x32xf32>
      tpu.vector_store %arg4[%c0_13, %c0_14, %c0_15], %27 {strides = array<i32>} : memref<1x2x32xf32, #tpu.memory_space<vmem>>, vector<1x2x32xf32>,
    } else {
    }
    return
  }
  func.func @transform_0(%arg0: i32, %arg1: i32) -> (i32, i32, i32) {
    %c0_i32 = arith.constant 0 : i32
    %c0_i32_0 = arith.constant 0 : i32
    return %arg0, %arg1, %c0_i32 : i32, i32, i32
  }
  func.func @transform_1(%arg0: i32, %arg1: i32) -> (i32, i32) {
    %c0_i32 = arith.constant 0 : i32
    %c0_i32_0 = arith.constant 0 : i32
    return %arg1, %c0_i32 : i32, i32
  }
  func.func @transform_2(%arg0: i32, %arg1: i32) -> (i32, i32, i32) {
    %c0_i32 = arith.constant 0 : i32
    %c0_i32_0 = arith.constant 0 : i32
    %c0_i32_1 = arith.constant 0 : i32
    return %arg0, %c0_i32, %c0_i32_0 : i32, i32, i32
  }
}

module attributes {stable_mosaic.version = 11 : i64} {
  func.func @_gn_apply_silu_kernel(%arg0: i32, %arg1: i32, %arg2: memref<1x300x32xbf16, #tpu.memory_space<vmem>>, %arg3: memref<1x1x32xf32, #tpu.memory_space<vmem>>, %arg4: memref<1x1x32xf32, #tpu.memory_space<vmem>>, %arg5: memref<300x1xf32, #tpu.memory_space<vmem>>, %arg6: memref<1x300x32xbf16, #tpu.memory_space<vmem>>) attributes {dimension_semantics = [#tpu.dimension_semantics<parallel>, #tpu.dimension_semantics<parallel>], iteration_bounds = array<i64: 2, 1>, scalar_prefetch = 0 : i64, scratch_operands = 0 : i64, tpu.core_type = #tpu.core_type<tc>, window_params = [{transform_indices = @transform_0, window_bounds = array<i64: 1, 300, 32>}, {transform_indices = @transform_1, window_bounds = array<i64: 1, 1, 32>}, {transform_indices = @transform_2, window_bounds = array<i64: 1, 1, 32>}, {transform_indices = @transform_3, window_bounds = array<i64: 300, 1>}, {transform_indices = @transform_4, window_bounds = array<i64: 1, 300, 32>}]} {
    %c0 = arith.constant 0 : index
    %c0_0 = arith.constant 0 : index
    %c0_1 = arith.constant 0 : index
    %0 = vector.load %arg2[%c0, %c0_0, %c0_1] : memref<1x300x32xbf16, #tpu.memory_space<vmem>>, vector<1x300x32xbf16>
    %1 = vector.shape_cast %0 : vector<1x300x32xbf16> to vector<300x32xbf16>
    %2 = arith.extf %1 : vector<300x32xbf16> to vector<300x32xf32>
    %c0_2 = arith.constant 0 : index
    %c0_3 = arith.constant 0 : index
    %c0_4 = arith.constant 0 : index
    %3 = vector.load %arg3[%c0_2, %c0_3, %c0_4] : memref<1x1x32xf32, #tpu.memory_space<vmem>>, vector<1x1x32xf32>
    %4 = vector.shape_cast %3 : vector<1x1x32xf32> to vector<1x32xf32>
    %5 = vector.broadcast %4 : vector<1x32xf32> to vector<300x32xf32>
    %6 = arith.mulf %2, %5 : vector<300x32xf32>
    %c0_5 = arith.constant 0 : index
    %c0_6 = arith.constant 0 : index
    %c0_7 = arith.constant 0 : index
    %7 = vector.load %arg4[%c0_5, %c0_6, %c0_7] : memref<1x1x32xf32, #tpu.memory_space<vmem>>, vector<1x1x32xf32>
    %8 = vector.shape_cast %7 : vector<1x1x32xf32> to vector<1x32xf32>
    %9 = vector.broadcast %8 : vector<1x32xf32> to vector<300x32xf32>
    %10 = arith.addf %6, %9 : vector<300x32xf32>
    %11 = arith.negf %10 : vector<300x32xf32>
    %12 = math.exp %11 : vector<300x32xf32>
    %cst = arith.constant 1.000000e+00 : f32
    %13 = vector.broadcast %cst : f32 to vector<300x32xf32>
    %14 = arith.addf %13, %12 : vector<300x32xf32>
    %15 = arith.divf %13, %14 : vector<300x32xf32>
    %16 = arith.mulf %10, %15 : vector<300x32xf32>
    %c0_8 = arith.constant 0 : index
    %c0_9 = arith.constant 0 : index
    %17 = vector.load %arg5[%c0_8, %c0_9] : memref<300x1xf32, #tpu.memory_space<vmem>>, vector<300x1xf32>
    %cst_10 = arith.constant 0.000000e+00 : f32
    %18 = vector.broadcast %cst_10 : f32 to vector<300x1xf32>
    %19 = arith.cmpf ogt, %17, %18 : vector<300x1xf32>
    %cst_11 = arith.constant 0.000000e+00 : f32
    %20 = vector.shape_cast %19 : vector<300x1xi1> to vector<300x1xi1>
    %21 = vector.broadcast %20 : vector<300x1xi1> to vector<300x32xi1>
    %22 = vector.broadcast %cst_11 : f32 to vector<300x32xf32>
    %23 = arith.select %21, %16, %22 : vector<300x32xi1>, vector<300x32xf32>
    %24 = arith.truncf %23 : vector<300x32xf32> to vector<300x32xbf16>
    %c0_12 = arith.constant 0 : index
    %c0_13 = arith.constant 0 : index
    %c0_14 = arith.constant 0 : index
    %25 = vector.load %arg6[%c0_12, %c0_13, %c0_14] : memref<1x300x32xbf16, #tpu.memory_space<vmem>>, vector<1x300x32xbf16>
    %26 = vector.shape_cast %25 : vector<1x300x32xbf16> to vector<300x32xbf16>
    %27 = vector.shape_cast %24 : vector<300x32xbf16> to vector<1x300x32xbf16>
    tpu.vector_store %arg6[%c0_12, %c0_13, %c0_14], %27 {strides = array<i32>} : memref<1x300x32xbf16, #tpu.memory_space<vmem>>, vector<1x300x32xbf16>,
    return
  }
  func.func @transform_0(%arg0: i32, %arg1: i32) -> (i32, i32, i32) {
    %c0_i32 = arith.constant 0 : i32
    %c0_i32_0 = arith.constant 0 : i32
    return %arg0, %arg1, %c0_i32 : i32, i32, i32
  }
  func.func @transform_1(%arg0: i32, %arg1: i32) -> (i32, i32, i32) {
    %c0_i32 = arith.constant 0 : i32
    %c0_i32_0 = arith.constant 0 : i32
    %c0_i32_1 = arith.constant 0 : i32
    return %arg0, %c0_i32, %c0_i32_0 : i32, i32, i32
  }
  func.func @transform_2(%arg0: i32, %arg1: i32) -> (i32, i32, i32) {
    %c0_i32 = arith.constant 0 : i32
    %c0_i32_0 = arith.constant 0 : i32
    %c0_i32_1 = arith.constant 0 : i32
    return %arg0, %c0_i32, %c0_i32_0 : i32, i32, i32
  }
  func.func @transform_3(%arg0: i32, %arg1: i32) -> (i32, i32) {
    %c0_i32 = arith.constant 0 : i32
    %c0_i32_0 = arith.constant 0 : i32
    return %arg1, %c0_i32 : i32, i32
  }
  func.func @transform_4(%arg0: i32, %arg1: i32) -> (i32, i32, i32) {
    %c0_i32 = arith.constant 0 : i32
    %c0_i32_0 = arith.constant 0 : i32
    return %arg0, %arg1, %c0_i32 : i32, i32, i32
  }
}

module attributes {stable_mosaic.version = 11 : i64} {
  func.func @_conv2_nin_kernel(%arg0: i32, %arg1: i32, %arg2: i32, %arg3: memref<1x1x50x32xbf16, #tpu.memory_space<vmem>>, %arg4: memref<1x1x50x32xbf16, #tpu.memory_space<vmem>>, %arg5: memref<1x1x50x32xbf16, #tpu.memory_space<vmem>>, %arg6: memref<864x32xbf16, #tpu.memory_space<vmem>>, %arg7: memref<1x32xf32, #tpu.memory_space<vmem>>, %arg8: memref<1x1x36x16xbf16, #tpu.memory_space<vmem>>, %arg9: memref<16x32xbf16, #tpu.memory_space<vmem>>, %arg10: memref<1x1x36x32xf32, #tpu.memory_space<vmem>>, %arg11: memref<50x96xbf16, #tpu.memory_space<vmem>>) attributes {dimension_semantics = [#tpu.dimension_semantics<parallel>, #tpu.dimension_semantics<parallel>, #tpu.dimension_semantics<parallel>], iteration_bounds = array<i64: 1, 2, 4>, scalar_prefetch = 0 : i64, scratch_operands = 1 : i64, tpu.core_type = #tpu.core_type<tc>, window_params = [{transform_indices = @transform_0, window_bounds = array<i64: 1, 1, 50, 32>}, {transform_indices = @transform_1, window_bounds = array<i64: 1, 1, 50, 32>}, {transform_indices = @transform_2, window_bounds = array<i64: 1, 1, 50, 32>}, {transform_indices = @transform_3, window_bounds = array<i64: 864, 32>}, {transform_indices = @transform_4, window_bounds = array<i64: 1, 32>}, {transform_indices = @transform_5, window_bounds = array<i64: 1, 1, 36, 16>}, {transform_indices = @transform_6, window_bounds = array<i64: 16, 32>}, {transform_indices = @transform_7, window_bounds = array<i64: 1, 1, 36, 32>}]} {
    %c0 = arith.constant 0 : index
    %c0_0 = arith.constant 0 : index
    %c0_1 = arith.constant 0 : index
    %c0_2 = arith.constant 0 : index
    %0 = vector.load %arg3[%c0, %c0_0, %c0_1, %c0_2] : memref<1x1x50x32xbf16, #tpu.memory_space<vmem>>, vector<1x1x50x32xbf16>
    %1 = vector.shape_cast %0 : vector<1x1x50x32xbf16> to vector<50x32xbf16>
    %c0_3 = arith.constant 0 : index
    %c0_4 = arith.constant 0 : index
    %c0_5 = arith.constant 0 : index
    %c0_6 = arith.constant 0 : index
    %2 = vector.load %arg4[%c0_3, %c0_4, %c0_5, %c0_6] : memref<1x1x50x32xbf16, #tpu.memory_space<vmem>>, vector<1x1x50x32xbf16>
    %3 = vector.shape_cast %2 : vector<1x1x50x32xbf16> to vector<50x32xbf16>
    %c0_7 = arith.constant 0 : index
    %c0_8 = arith.constant 0 : index
    %c0_9 = arith.constant 0 : index
    %c0_10 = arith.constant 0 : index
    %4 = vector.load %arg5[%c0_7, %c0_8, %c0_9, %c0_10] : memref<1x1x50x32xbf16, #tpu.memory_space<vmem>>, vector<1x1x50x32xbf16>
    %5 = vector.shape_cast %4 : vector<1x1x50x32xbf16> to vector<50x32xbf16>
    %6 = tpu.concatenate %1, %3, %5 in 1 : vector<50x32xbf16>, vector<50x32xbf16>, vector<50x32xbf16> -> vector<50x96xbf16>
    %c0_11 = arith.constant 0 : index
    %c0_12 = arith.constant 0 : index
    %7 = vector.load %arg11[%c0_11, %c0_12] : memref<50x96xbf16, #tpu.memory_space<vmem>>, vector<50x96xbf16>
    tpu.vector_store %arg11[%c0_11, %c0_12], %6 {strides = array<i32>} : memref<50x96xbf16, #tpu.memory_space<vmem>>, vector<50x96xbf16>,
    %cst = arith.constant 0.000000e+00 : f32
    %8 = vector.broadcast %cst : f32 to vector<36x32xf32>
    %c0_13 = arith.constant 0 : index
    %c0_14 = arith.constant 0 : index
    %9 = vector.load %arg11[%c0_13, %c0_14] : memref<50x96xbf16, #tpu.memory_space<vmem>>, vector<36x96xbf16>
    %c0_15 = arith.constant 0 : index
    %c0_16 = arith.constant 0 : index
    %10 = vector.load %arg6[%c0_15, %c0_16] : memref<864x32xbf16, #tpu.memory_space<vmem>>, vector<96x32xbf16>
    %cst_17 = arith.constant dense<0.000000e+00> : vector<36x32xf32>
    %11 = tpu.matmul %9, %10, %cst_17 {dimension_numbers = #tpu.dot_dimension_numbers<[1], [0], [0], [1], [0, 0, 1, 1], [], []>} : vector<36x96xbf16>, vector<96x32xbf16>, vector<36x32xf32> -> vector<36x32xf32>
    %12 = arith.addf %8, %11 : vector<36x32xf32>
    %c1 = arith.constant 1 : index
    %c0_18 = arith.constant 0 : index
    %13 = vector.load %arg11[%c1, %c0_18] : memref<50x96xbf16, #tpu.memory_space<vmem>>, vector<36x96xbf16>
    %c96 = arith.constant 96 : index
    %c0_19 = arith.constant 0 : index
    %14 = vector.load %arg6[%c96, %c0_19] : memref<864x32xbf16, #tpu.memory_space<vmem>>, vector<96x32xbf16>
    %cst_20 = arith.constant dense<0.000000e+00> : vector<36x32xf32>
    %15 = tpu.matmul %13, %14, %cst_20 {dimension_numbers = #tpu.dot_dimension_numbers<[1], [0], [0], [1], [0, 0, 1, 1], [], []>} : vector<36x96xbf16>, vector<96x32xbf16>, vector<36x32xf32> -> vector<36x32xf32>
    %16 = arith.addf %12, %15 : vector<36x32xf32>
    %c2 = arith.constant 2 : index
    %c0_21 = arith.constant 0 : index
    %17 = vector.load %arg11[%c2, %c0_21] : memref<50x96xbf16, #tpu.memory_space<vmem>>, vector<36x96xbf16>
    %c192 = arith.constant 192 : index
    %c0_22 = arith.constant 0 : index
    %18 = vector.load %arg6[%c192, %c0_22] : memref<864x32xbf16, #tpu.memory_space<vmem>>, vector<96x32xbf16>
    %cst_23 = arith.constant dense<0.000000e+00> : vector<36x32xf32>
    %19 = tpu.matmul %17, %18, %cst_23 {dimension_numbers = #tpu.dot_dimension_numbers<[1], [0], [0], [1], [0, 0, 1, 1], [], []>} : vector<36x96xbf16>, vector<96x32xbf16>, vector<36x32xf32> -> vector<36x32xf32>
    %20 = arith.addf %16, %19 : vector<36x32xf32>
    %c6 = arith.constant 6 : index
    %c0_24 = arith.constant 0 : index
    %21 = vector.load %arg11[%c6, %c0_24] : memref<50x96xbf16, #tpu.memory_space<vmem>>, vector<36x96xbf16>
    %c288 = arith.constant 288 : index
    %c0_25 = arith.constant 0 : index
    %22 = vector.load %arg6[%c288, %c0_25] : memref<864x32xbf16, #tpu.memory_space<vmem>>, vector<96x32xbf16>
    %cst_26 = arith.constant dense<0.000000e+00> : vector<36x32xf32>
    %23 = tpu.matmul %21, %22, %cst_26 {dimension_numbers = #tpu.dot_dimension_numbers<[1], [0], [0], [1], [0, 0, 1, 1], [], []>} : vector<36x96xbf16>, vector<96x32xbf16>, vector<36x32xf32> -> vector<36x32xf32>
    %24 = arith.addf %20, %23 : vector<36x32xf32>
    %c7 = arith.constant 7 : index
    %c0_27 = arith.constant 0 : index
    %25 = vector.load %arg11[%c7, %c0_27] : memref<50x96xbf16, #tpu.memory_space<vmem>>, vector<36x96xbf16>
    %c384 = arith.constant 384 : index
    %c0_28 = arith.constant 0 : index
    %26 = vector.load %arg6[%c384, %c0_28] : memref<864x32xbf16, #tpu.memory_space<vmem>>, vector<96x32xbf16>
    %cst_29 = arith.constant dense<0.000000e+00> : vector<36x32xf32>
    %27 = tpu.matmul %25, %26, %cst_29 {dimension_numbers = #tpu.dot_dimension_numbers<[1], [0], [0], [1], [0, 0, 1, 1], [], []>} : vector<36x96xbf16>, vector<96x32xbf16>, vector<36x32xf32> -> vector<36x32xf32>
    %28 = arith.addf %24, %27 : vector<36x32xf32>
    %c8 = arith.constant 8 : index
    %c0_30 = arith.constant 0 : index
    %29 = vector.load %arg11[%c8, %c0_30] : memref<50x96xbf16, #tpu.memory_space<vmem>>, vector<36x96xbf16>
    %c480 = arith.constant 480 : index
    %c0_31 = arith.constant 0 : index
    %30 = vector.load %arg6[%c480, %c0_31] : memref<864x32xbf16, #tpu.memory_space<vmem>>, vector<96x32xbf16>
    %cst_32 = arith.constant dense<0.000000e+00> : vector<36x32xf32>
    %31 = tpu.matmul %29, %30, %cst_32 {dimension_numbers = #tpu.dot_dimension_numbers<[1], [0], [0], [1], [0, 0, 1, 1], [], []>} : vector<36x96xbf16>, vector<96x32xbf16>, vector<36x32xf32> -> vector<36x32xf32>
    %32 = arith.addf %28, %31 : vector<36x32xf32>
    %c12 = arith.constant 12 : index
    %c0_33 = arith.constant 0 : index
    %33 = vector.load %arg11[%c12, %c0_33] : memref<50x96xbf16, #tpu.memory_space<vmem>>, vector<36x96xbf16>
    %c576 = arith.constant 576 : index
    %c0_34 = arith.constant 0 : index
    %34 = vector.load %arg6[%c576, %c0_34] : memref<864x32xbf16, #tpu.memory_space<vmem>>, vector<96x32xbf16>
    %cst_35 = arith.constant dense<0.000000e+00> : vector<36x32xf32>
    %35 = tpu.matmul %33, %34, %cst_35 {dimension_numbers = #tpu.dot_dimension_numbers<[1], [0], [0], [1], [0, 0, 1, 1], [], []>} : vector<36x96xbf16>, vector<96x32xbf16>, vector<36x32xf32> -> vector<36x32xf32>
    %36 = arith.addf %32, %35 : vector<36x32xf32>
    %c13 = arith.constant 13 : index
    %c0_36 = arith.constant 0 : index
    %37 = vector.load %arg11[%c13, %c0_36] : memref<50x96xbf16, #tpu.memory_space<vmem>>, vector<36x96xbf16>
    %c672 = arith.constant 672 : index
    %c0_37 = arith.constant 0 : index
    %38 = vector.load %arg6[%c672, %c0_37] : memref<864x32xbf16, #tpu.memory_space<vmem>>, vector<96x32xbf16>
    %cst_38 = arith.constant dense<0.000000e+00> : vector<36x32xf32>
    %39 = tpu.matmul %37, %38, %cst_38 {dimension_numbers = #tpu.dot_dimension_numbers<[1], [0], [0], [1], [0, 0, 1, 1], [], []>} : vector<36x96xbf16>, vector<96x32xbf16>, vector<36x32xf32> -> vector<36x32xf32>
    %40 = arith.addf %36, %39 : vector<36x32xf32>
    %c14 = arith.constant 14 : index
    %c0_39 = arith.constant 0 : index
    %41 = vector.load %arg11[%c14, %c0_39] : memref<50x96xbf16, #tpu.memory_space<vmem>>, vector<36x96xbf16>
    %c768 = arith.constant 768 : index
    %c0_40 = arith.constant 0 : index
    %42 = vector.load %arg6[%c768, %c0_40] : memref<864x32xbf16, #tpu.memory_space<vmem>>, vector<96x32xbf16>
    %cst_41 = arith.constant dense<0.000000e+00> : vector<36x32xf32>
    %43 = tpu.matmul %41, %42, %cst_41 {dimension_numbers = #tpu.dot_dimension_numbers<[1], [0], [0], [1], [0, 0, 1, 1], [], []>} : vector<36x96xbf16>, vector<96x32xbf16>, vector<36x32xf32> -> vector<36x32xf32>
    %44 = arith.addf %40, %43 : vector<36x32xf32>
    %c0_42 = arith.constant 0 : index
    %c0_43 = arith.constant 0 : index
    %45 = vector.load %arg7[%c0_42, %c0_43] : memref<1x32xf32, #tpu.memory_space<vmem>>, vector<1x32xf32>
    %46 = vector.broadcast %45 : vector<1x32xf32> to vector<36x32xf32>
    %47 = arith.addf %44, %46 : vector<36x32xf32>
    %c0_44 = arith.constant 0 : index
    %c0_45 = arith.constant 0 : index
    %c0_46 = arith.constant 0 : index
    %c0_47 = arith.constant 0 : index
    %48 = vector.load %arg8[%c0_44, %c0_45, %c0_46, %c0_47] : memref<1x1x36x16xbf16, #tpu.memory_space<vmem>>, vector<1x1x36x16xbf16>
    %49 = vector.shape_cast %48 : vector<1x1x36x16xbf16> to vector<36x16xbf16>
    %c0_48 = arith.constant 0 : index
    %c0_49 = arith.constant 0 : index
    %50 = vector.load %arg9[%c0_48, %c0_49] : memref<16x32xbf16, #tpu.memory_space<vmem>>, vector<16x32xbf16>
    %cst_50 = arith.constant dense<0.000000e+00> : vector<36x32xf32>
    %51 = tpu.matmul %49, %50, %cst_50 {dimension_numbers = #tpu.dot_dimension_numbers<[1], [0], [0], [1], [0, 0, 1, 1], [], []>} : vector<36x16xbf16>, vector<16x32xbf16>, vector<36x32xf32> -> vector<36x32xf32>
    %52 = arith.addf %47, %51 : vector<36x32xf32>
    %c0_51 = arith.constant 0 : index
    %c0_52 = arith.constant 0 : index
    %c0_53 = arith.constant 0 : index
    %c0_54 = arith.constant 0 : index
    %53 = vector.load %arg10[%c0_51, %c0_52, %c0_53, %c0_54] : memref<1x1x36x32xf32, #tpu.memory_space<vmem>>, vector<1x1x36x32xf32>
    %54 = vector.shape_cast %53 : vector<1x1x36x32xf32> to vector<36x32xf32>
    %55 = vector.shape_cast %52 : vector<36x32xf32> to vector<1x1x36x32xf32>
    tpu.vector_store %arg10[%c0_51, %c0_52, %c0_53, %c0_54], %55 {strides = array<i32>} : memref<1x1x36x32xf32, #tpu.memory_space<vmem>>, vector<1x1x36x32xf32>,
    return
  }
  func.func @transform_0(%arg0: i32, %arg1: i32, %arg2: i32) -> (i32, i32, i32, i32) {
    %c0_i32 = arith.constant 0 : i32
    %0 = arith.addi %arg2, %c0_i32 : i32
    %c0_i32_0 = arith.constant 0 : i32
    %c0_i32_1 = arith.constant 0 : i32
    %c0_i32_2 = arith.constant 0 : i32
    return %arg1, %0, %c0_i32_0, %c0_i32_1 : i32, i32, i32, i32
  }
  func.func @transform_1(%arg0: i32, %arg1: i32, %arg2: i32) -> (i32, i32, i32, i32) {
    %c1_i32 = arith.constant 1 : i32
    %0 = arith.addi %arg2, %c1_i32 : i32
    %c0_i32 = arith.constant 0 : i32
    %c0_i32_0 = arith.constant 0 : i32
    %c0_i32_1 = arith.constant 0 : i32
    return %arg1, %0, %c0_i32, %c0_i32_0 : i32, i32, i32, i32
  }
  func.func @transform_2(%arg0: i32, %arg1: i32, %arg2: i32) -> (i32, i32, i32, i32) {
    %c2_i32 = arith.constant 2 : i32
    %0 = arith.addi %arg2, %c2_i32 : i32
    %c0_i32 = arith.constant 0 : i32
    %c0_i32_0 = arith.constant 0 : i32
    %c0_i32_1 = arith.constant 0 : i32
    return %arg1, %0, %c0_i32, %c0_i32_0 : i32, i32, i32, i32
  }
  func.func @transform_3(%arg0: i32, %arg1: i32, %arg2: i32) -> (i32, i32) {
    %c0_i32 = arith.constant 0 : i32
    %c0_i32_0 = arith.constant 0 : i32
    return %c0_i32, %arg0 : i32, i32
  }
  func.func @transform_4(%arg0: i32, %arg1: i32, %arg2: i32) -> (i32, i32) {
    %c0_i32 = arith.constant 0 : i32
    %c0_i32_0 = arith.constant 0 : i32
    return %c0_i32, %arg0 : i32, i32
  }
  func.func @transform_5(%arg0: i32, %arg1: i32, %arg2: i32) -> (i32, i32, i32, i32) {
    %c0_i32 = arith.constant 0 : i32
    %c0_i32_0 = arith.constant 0 : i32
    %c0_i32_1 = arith.constant 0 : i32
    return %arg1, %arg2, %c0_i32, %c0_i32_0 : i32, i32, i32, i32
  }
  func.func @transform_6(%arg0: i32, %arg1: i32, %arg2: i32) -> (i32, i32) {
    %c0_i32 = arith.constant 0 : i32
    %c0_i32_0 = arith.constant 0 : i32
    return %c0_i32, %arg0 : i32, i32
  }
  func.func @transform_7(%arg0: i32, %arg1: i32, %arg2: i32) -> (i32, i32, i32, i32) {
    %c0_i32 = arith.constant 0 : i32
    %c0_i32_0 = arith.constant 0 : i32
    return %arg1, %arg2, %c0_i32, %arg0 : i32, i32, i32, i32
  }
}

</mosaic_0001>

<llo_original>
// kernel: resnet_block_forward.6
$region0: #{resnet_block_forward.6}
  #allocation0 [shape = 'u32[]', space=smem, size = 0x4, offset = 0x4, fixed_abs, tag = 'smem constant byte address 0x4 - core index']
  #allocation1 [shape = 'u32[144,128]{1,0:T(1,128)}', space=vmem, size = 0x12000, scoped, tag = 'internal scratch']
  %s0 = inlined_call_operand.vmem [shape: f32[2,384,16], index: 0, kind: input, shape index: {}]
  %s1 = inlined_call_operand.vmem [shape: f32[384,1], index: 1, kind: input, shape index: {}]
  %s2 = inlined_call_operand.vmem [shape: f32[2,2,16], index: 2, kind: output, shape index: {}]
  %s3 = sld [smem:[#allocation0]]
  $region49: #{resnet_block_forward.6} parent=0
    _
  %s5 = ssub.s32 1, %s3
  %s6 = scalar_select 0, %s5, %s3
  loop: start=0, step=1, limit=4
  $region2: #{resnet_block_forward.6} parent=0 // loop_pre_header
    _
  $region3: #{resnet_block_forward.6} parent=0 // loop_header
    %s8 = sphi 0, %s12
    %p9 = scmp.ge.s32.totalorder %s8, 4
    %s15 = sphi 0, %s27
    %s16 = sphi 0, %s23
    %s17 = sphi 0, %s15
    %s18 = sphi 0, %s16
    %s19 = sphi 0, %s17
    %s20 = sphi 0, %s18
    %s32 = sphi 0, %s34
    %s35 = sphi 0, %s32
    %s36 = sphi 0, %s35
    %s52 = sphi 0, %s36
    %s58 = sphi 0, %s60
    %s61 = sphi 0, %s58
    %s62 = sphi 0, %s61
    %s78 = sphi 0, %s62
    %s84 = sphi 0, %s86
    %s87 = sphi 0, %s84
    %s88 = sphi 0, %s87
    %s104 = sphi 0, %s88
  $region4: #{resnet_block_forward.6} parent=0 // loop_header_branch
    %11 = sbr.rel (%p9) target = $region8
  $region5: #{resnet_block_forward.6} parent=0 // loop_body
    %s13 = ssub.s32 %s8, 1
    %s14 = ssub.s32 %s8, 2
    %s21 = sadd.s32 1, %s16
    %p22 = scmp.ge.s32.totalorder %s21, 1
    %s23 = scalar_select %p22, 0, %s21
    %s24 = sadd.s32 1, %s15
    %s25 = scalar_select %p22, %s24, %s15
    %p26 = scmp.ge.s32.totalorder %s25, 2
    %s27 = scalar_select %p26, 0, %s25
    %s28 = ssub.s32 %s15, %s27
    %s29 = ssub.s32 %s16, %s23
    %s30 = sor.u32 %s28, %s29
    %p31 = scmp.eq.s32.totalorder %s30, 0
    %s33 = sadd.s32 %s32, 1
    %s34 = scalar_select %p31, %s32, %s33
    %p37 = pneg %p31
    %p38 = scmp.eq.s32.totalorder %s8, 1
    %p39 = por %p37, %p38
    %p40 = scmp.ne.s32.totalorder %s32, %s35
    %p41 = scmp.eq.s32.totalorder %s8, 0
    %p42 = por %p40, %p41
    %p43 = scmp.ne.s32.totalorder %s32, %s35
    %p44 = scmp.eq.s32.totalorder %s13, 1
    %p45 = por %p43, %p44
    %p46 = scmp.ne.s32.totalorder %s35, %s36
    %p47 = scmp.eq.s32.totalorder %s13, 0
    %p48 = por %p46, %p47
    %p49 = scmp.ne.s32.totalorder %s35, %s36
    %p50 = scmp.eq.s32.totalorder %s14, 1
    %p51 = por %p49, %p50
    %p53 = scmp.ne.s32.totalorder %s36, %s52
    %p54 = scmp.eq.s32.totalorder %s14, 0
    %p55 = por %p53, %p54
    %s56 = ssub.s32 %s16, %s23
    %p57 = scmp.eq.s32.totalorder %s56, 0
    %s59 = sadd.s32 %s58, 1
    %s60 = scalar_select %p57, %s58, %s59
    %p63 = pneg %p57
    %p64 = scmp.eq.s32.totalorder %s8, 1
    %p65 = por %p63, %p64
    %p66 = scmp.ne.s32.totalorder %s58, %s61
    %p67 = scmp.eq.s32.totalorder %s8, 0
    %p68 = por %p66, %p67
    %p69 = scmp.ne.s32.totalorder %s58, %s61
    %p70 = scmp.eq.s32.totalorder %s13, 1
    %p71 = por %p69, %p70
    %p72 = scmp.ne.s32.totalorder %s61, %s62
    %p73 = scmp.eq.s32.totalorder %s13, 0
    %p74 = por %p72, %p73
    %p75 = scmp.ne.s32.totalorder %s61, %s62
    %p76 = scmp.eq.s32.totalorder %s14, 1
    %p77 = por %p75, %p76
    %p79 = scmp.ne.s32.totalorder %s62, %s78
    %p80 = scmp.eq.s32.totalorder %s14, 0
    %p81 = por %p79, %p80
    %s82 = ssub.s32 %s15, %s27
    %p83 = scmp.eq.s32.totalorder %s82, 0
    %s85 = sadd.s32 %s84, 1
    %s86 = scalar_select %p83, %s84, %s85
    %p89 = pneg %p83
    %p90 = scmp.eq.s32.totalorder %s8, 1
    %p91 = por %p89, %p90
    %p92 = scmp.ne.s32.totalorder %s84, %s87
    %p93 = scmp.eq.s32.totalorder %s8, 0
    %p94 = por %p92, %p93
    %p95 = scmp.ne.s32.totalorder %s84, %s87
    %p96 = scmp.eq.s32.totalorder %s13, 1
    %p97 = por %p95, %p96
    %p98 = scmp.ne.s32.totalorder %s87, %s88
    %p99 = scmp.eq.s32.totalorder %s13, 0
    %p100 = por %p98, %p99
    %p101 = scmp.ne.s32.totalorder %s87, %s88
    %p102 = scmp.eq.s32.totalorder %s14, 1
    %p103 = por %p101, %p102
    %p105 = scmp.ne.s32.totalorder %s88, %s104
    %p106 = scmp.eq.s32.totalorder %s14, 0
    %p107 = por %p105, %p106
    %p108 = scmp.le.s32.totalorder 1, %s8
    %p109 = scmp.lt.s32.totalorder %s8, 3
    %p110 = pnand %p108, %p109
    %p111 = pneg %p110
    // Predicated region
    $region9: #{resnet_block_forward.6} parent=5 // pred_check
      _
    $region10: #{resnet_block_forward.6} parent=5 // pred_check_branch
      %113 = sbr.rel (%p110) target = $region12
    $region11: #{resnet_block_forward.6} parent=5 // pred_region
      %s114 = ssub.s32 %s8, 1
      // Predicated region
      $region13: #{resnet_block_forward.6} parent=11 // pred_check
        %p115 = pneg %p74
      $region14: #{resnet_block_forward.6} parent=11 // pred_check_branch
        %117 = sbr.rel (%p115) target = $region16
      $region15: #{resnet_block_forward.6} parent=11 // pred_region
        %s118 = smul.u32 48, %s18
        %p119 = scmp.lt.s32.totalorder %s118, 47
        %s120 = scalar_select %p119, %s118, 47
        %s121 = smul.addr %s120, 8
        %s122 = scalar_lea.vmem %s1, %s121
        %s123 = smul.u32 48, %s18
      $region16: #{resnet_block_forward.6} parent=11 // pred_fallthru
        _
    $region12: #{resnet_block_forward.6} parent=5 // pred_fallthru
      _
    %p124 = scmp.lt.s32.totalorder %s8, 2
    // Predicated region
    $region17: #{resnet_block_forward.6} parent=5 // pred_check
      %p125 = pneg %p124
    $region18: #{resnet_block_forward.6} parent=5 // pred_check_branch
      %127 = sbr.rel (%p125) target = $region20
    $region19: #{resnet_block_forward.6} parent=5 // pred_region
      // Predicated region
      $region21: #{resnet_block_forward.6} parent=19 // pred_check
        %p128 = pneg %p42
      $region22: #{resnet_block_forward.6} parent=19 // pred_check_branch
        %130 = sbr.rel (%p128) target = $region24
      $region23: #{resnet_block_forward.6} parent=19 // pred_region
        %s131 = smul.u32 48, %s16
        %p132 = scmp.lt.s32.totalorder %s15, 1
        %s133 = scalar_select %p132, %s15, 1
        %p134 = scmp.lt.s32.totalorder %s131, 47
        %s135 = scalar_select %p134, %s131, 47
        %s136 = smul.addr %s133, 48
        %s137 = sadd.s32 %s135, %s136
        %s138 = smul.addr %s137, 8
        %s139 = scalar_lea.vmem %s0, %s138
        %s140 = smul.u32 48, %s16
      $region24: #{resnet_block_forward.6} parent=19 // pred_fallthru
        _
    $region20: #{resnet_block_forward.6} parent=5 // pred_fallthru
      _
    %p141 = scmp.le.s32.totalorder 1, %s8
    %p142 = scmp.lt.s32.totalorder %s8, 3
    %p143 = pnand %p141, %p142
    %p144 = pneg %p143
    // Predicated region
    $region25: #{resnet_block_forward.6} parent=5 // pred_check
      _
    $region26: #{resnet_block_forward.6} parent=5 // pred_check_branch
      %146 = sbr.rel (%p143) target = $region28
    $region27: #{resnet_block_forward.6} parent=5 // pred_region
      %s147 = ssub.s32 %s8, 1
      %s148 = smul.u32 48, %s18
      %p149 = scmp.lt.s32.totalorder %s17, 1
      %s150 = scalar_select %p149, %s17, 1
      %p151 = scmp.lt.s32.totalorder %s148, 47
      %s152 = scalar_select %p151, %s148, 47
      %s153 = smul.addr %s150, 48
      %s154 = sadd.s32 %s152, %s153
      %s155 = smul.addr %s154, 8
      %s156 = scalar_lea.vmem %s0, %s155
      %p157 = pneg %p48
      %p158 = pneg %p45
      %s159 = smul.u32 48, %s18
      %p160 = scmp.lt.s32.totalorder %s159, 47
      %s161 = scalar_select %p160, %s159, 47
      %s162 = smul.addr %s161, 8
      %s163 = scalar_lea.vmem %s1, %s162
      %p164 = pneg %p74
      %p165 = pneg %p71
      %p166 = pneg %p100
      %p167 = pneg %p97
      %p168 = scmp.lt.s32.totalorder %s17, 1
      %s169 = scalar_select %p168, %s17, 1
      %s170 = smul.addr %s169, 2
      %s171 = scalar_lea.vmem %s2, %s170
      %s172 = smul.u32 48, %s18
      %p173 = scmp.lt.s32.totalorder %s17, 1
      %s174 = scalar_select %p173, %s17, 1
      %p175 = scmp.lt.s32.totalorder %s172, 47
      %s176 = scalar_select %p175, %s172, 47
      %s177 = smul.addr %s174, 48
      %s178 = sadd.s32 %s176, %s177
      %s179 = smul.addr %s178, 8
      %s180 = scalar_lea.vmem %s0, %s179
      %s181 = smul.u32 48, %s18
      %s182 = smul.u32 48, %s18
      %p183 = scmp.lt.s32.totalorder %s182, 47
      %s184 = scalar_select %p183, %s182, 47
      %s185 = smul.addr %s184, 8
      %s186 = scalar_lea.vmem %s1, %s185
      %s187 = smul.u32 48, %s18
      %p188 = scmp.lt.s32.totalorder %s17, 1
      %s189 = scalar_select %p188, %s17, 1
      %s190 = smul.addr %s189, 2
      %s191 = scalar_lea.vmem %s2, %s190
      %v192 = vld [vmem:[%s186] sm:$0xff]
      %v193 = vld [vmem:[%s186 + $0x8] sm:$0xff]
      %v194 = vld [vmem:[%s186 + $0x10] sm:$0xff]
      %v195 = vld [vmem:[%s186 + $0x18] sm:$0xff]
      %v196 = vld [vmem:[%s186 + $0x20] sm:$0xff]
      %v197 = vld [vmem:[%s186 + $0x28] sm:$0xff]
      %v198 = vld [vmem:[%s186 + $0x30] sm:$0xff]
      %v199 = vld [vmem:[%s186 + $0x38] sm:$0xff]
      %v200 = vld [vmem:[%s186 + $0x40] sm:$0xff]
      %v201 = vld [vmem:[%s186 + $0x48] sm:$0xff]
      %v202 = vld [vmem:[%s186 + $0x50] sm:$0xff]
      %v203 = vld [vmem:[%s186 + $0x58] sm:$0xff]
      %v204 = vld [vmem:[%s186 + $0x60] sm:$0xff]
      %v205 = vld [vmem:[%s186 + $0x68] sm:$0xff]
      %v206 = vld [vmem:[%s186 + $0x70] sm:$0xff]
      %v207 = vld [vmem:[%s186 + $0x78] sm:$0xff]
      %v208 = vld [vmem:[%s186 + $0x80] sm:$0xff]
      %v209 = vld [vmem:[%s186 + $0x88] sm:$0xff]
      %v210 = vld [vmem:[%s186 + $0x90] sm:$0xff]
      %v211 = vld [vmem:[%s186 + $0x98] sm:$0xff]
      %v212 = vld [vmem:[%s186 + $0xa0] sm:$0xff]
      %v213 = vld [vmem:[%s186 + $0xa8] sm:$0xff]
      %v214 = vld [vmem:[%s186 + $0xb0] sm:$0xff]
      %v215 = vld [vmem:[%s186 + $0xb8] sm:$0xff]
      %v216 = vld [vmem:[%s186 + $0xc0] sm:$0xff]
      %v217 = vld [vmem:[%s186 + $0xc8] sm:$0xff]
      %v218 = vld [vmem:[%s186 + $0xd0] sm:$0xff]
      %v219 = vld [vmem:[%s186 + $0xd8] sm:$0xff]
      %v220 = vld [vmem:[%s186 + $0xe0] sm:$0xff]
      %v221 = vld [vmem:[%s186 + $0xe8] sm:$0xff]
      %v222 = vld [vmem:[%s186 + $0xf0] sm:$0xff]
      %v223 = vld [vmem:[%s186 + $0xf8] sm:$0xff]
      %v224 = vld [vmem:[%s186 + $0x100] sm:$0xff]
      %v225 = vld [vmem:[%s186 + $0x108] sm:$0xff]
      %v226 = vld [vmem:[%s186 + $0x110] sm:$0xff]
      %v227 = vld [vmem:[%s186 + $0x118] sm:$0xff]
      %v228 = vld [vmem:[%s186 + $0x120] sm:$0xff]
      %v229 = vld [vmem:[%s186 + $0x128] sm:$0xff]
      %v230 = vld [vmem:[%s186 + $0x130] sm:$0xff]
      %v231 = vld [vmem:[%s186 + $0x138] sm:$0xff]
      %v232 = vld [vmem:[%s186 + $0x140] sm:$0xff]
      %v233 = vld [vmem:[%s186 + $0x148] sm:$0xff]
      %v234 = vld [vmem:[%s186 + $0x150] sm:$0xff]
      %v235 = vld [vmem:[%s186 + $0x158] sm:$0xff]
      %v236 = vld [vmem:[%s186 + $0x160] sm:$0xff]
      %v237 = vld [vmem:[%s186 + $0x168] sm:$0xff]
      %v238 = vld [vmem:[%s186 + $0x170] sm:$0xff]
      %v239 = vld [vmem:[%s186 + $0x178] sm:$0xff]
      %vm240 = vcmp.gt.f32.partialorder %v192, 0.0
      %vm241 = vcmp.gt.f32.partialorder %v193, 0.0
      %vm242 = vcmp.gt.f32.partialorder %v194, 0.0
      %vm243 = vcmp.gt.f32.partialorder %v195, 0.0
      %vm244 = vcmp.gt.f32.partialorder %v196, 0.0
      %vm245 = vcmp.gt.f32.partialorder %v197, 0.0
      %vm246 = vcmp.gt.f32.partialorder %v198, 0.0
      %vm247 = vcmp.gt.f32.partialorder %v199, 0.0
      %vm248 = vcmp.gt.f32.partialorder %v200, 0.0
      %vm249 = vcmp.gt.f32.partialorder %v201, 0.0
      %vm250 = vcmp.gt.f32.partialorder %v202, 0.0
      %vm251 = vcmp.gt.f32.partialorder %v203, 0.0
      %vm252 = vcmp.gt.f32.partialorder %v204, 0.0
      %vm253 = vcmp.gt.f32.partialorder %v205, 0.0
      %vm254 = vcmp.gt.f32.partialorder %v206, 0.0
      %vm255 = vcmp.gt.f32.partialorder %v207, 0.0
      %vm256 = vcmp.gt.f32.partialorder %v208, 0.0
      %vm257 = vcmp.gt.f32.partialorder %v209, 0.0
      %vm258 = vcmp.gt.f32.partialorder %v210, 0.0
      %vm259 = vcmp.gt.f32.partialorder %v211, 0.0
      %vm260 = vcmp.gt.f32.partialorder %v212, 0.0
      %vm261 = vcmp.gt.f32.partialorder %v213, 0.0
      %vm262 = vcmp.gt.f32.partialorder %v214, 0.0
      %vm263 = vcmp.gt.f32.partialorder %v215, 0.0
      %vm264 = vcmp.gt.f32.partialorder %v216, 0.0
      %vm265 = vcmp.gt.f32.partialorder %v217, 0.0
      %vm266 = vcmp.gt.f32.partialorder %v218, 0.0
      %vm267 = vcmp.gt.f32.partialorder %v219, 0.0
      %vm268 = vcmp.gt.f32.partialorder %v220, 0.0
      %vm269 = vcmp.gt.f32.partialorder %v221, 0.0
      %vm270 = vcmp.gt.f32.partialorder %v222, 0.0
      %vm271 = vcmp.gt.f32.partialorder %v223, 0.0
      %vm272 = vcmp.gt.f32.partialorder %v224, 0.0
      %vm273 = vcmp.gt.f32.partialorder %v225, 0.0
      %vm274 = vcmp.gt.f32.partialorder %v226, 0.0
      %vm275 = vcmp.gt.f32.partialorder %v227, 0.0
      %vm276 = vcmp.gt.f32.partialorder %v228, 0.0
      %vm277 = vcmp.gt.f32.partialorder %v229, 0.0
      %vm278 = vcmp.gt.f32.partialorder %v230, 0.0
      %vm279 = vcmp.gt.f32.partialorder %v231, 0.0
      %vm280 = vcmp.gt.f32.partialorder %v232, 0.0
      %vm281 = vcmp.gt.f32.partialorder %v233, 0.0
      %vm282 = vcmp.gt.f32.partialorder %v234, 0.0
      %vm283 = vcmp.gt.f32.partialorder %v235, 0.0
      %vm284 = vcmp.gt.f32.partialorder %v236, 0.0
      %vm285 = vcmp.gt.f32.partialorder %v237, 0.0
      %vm286 = vcmp.gt.f32.partialorder %v238, 0.0
      %vm287 = vcmp.gt.f32.partialorder %v239, 0.0
      %v288 = vld [vmem:[%s180] sm:$0xff]
      %v289 = vld [vmem:[%s180 + $0x8] sm:$0xff]
      %v290 = vld [vmem:[%s180 + $0x10] sm:$0xff]
      %v291 = vld [vmem:[%s180 + $0x18] sm:$0xff]
      %v292 = vld [vmem:[%s180 + $0x20] sm:$0xff]
      %v293 = vld [vmem:[%s180 + $0x28] sm:$0xff]
      %v294 = vld [vmem:[%s180 + $0x30] sm:$0xff]
      %v295 = vld [vmem:[%s180 + $0x38] sm:$0xff]
      %v296 = vld [vmem:[%s180 + $0x40] sm:$0xff]
      %v297 = vld [vmem:[%s180 + $0x48] sm:$0xff]
      %v298 = vld [vmem:[%s180 + $0x50] sm:$0xff]
      %v299 = vld [vmem:[%s180 + $0x58] sm:$0xff]
      %v300 = vld [vmem:[%s180 + $0x60] sm:$0xff]
      %v301 = vld [vmem:[%s180 + $0x68] sm:$0xff]
      %v302 = vld [vmem:[%s180 + $0x70] sm:$0xff]
      %v303 = vld [vmem:[%s180 + $0x78] sm:$0xff]
      %v304 = vld [vmem:[%s180 + $0x80] sm:$0xff]
      %v305 = vld [vmem:[%s180 + $0x88] sm:$0xff]
      %v306 = vld [vmem:[%s180 + $0x90] sm:$0xff]
      %v307 = vld [vmem:[%s180 + $0x98] sm:$0xff]
      %v308 = vld [vmem:[%s180 + $0xa0] sm:$0xff]
      %v309 = vld [vmem:[%s180 + $0xa8] sm:$0xff]
      %v310 = vld [vmem:[%s180 + $0xb0] sm:$0xff]
      %v311 = vld [vmem:[%s180 + $0xb8] sm:$0xff]
      %v312 = vld [vmem:[%s180 + $0xc0] sm:$0xff]
      %v313 = vld [vmem:[%s180 + $0xc8] sm:$0xff]
      %v314 = vld [vmem:[%s180 + $0xd0] sm:$0xff]
      %v315 = vld [vmem:[%s180 + $0xd8] sm:$0xff]
      %v316 = vld [vmem:[%s180 + $0xe0] sm:$0xff]
      %v317 = vld [vmem:[%s180 + $0xe8] sm:$0xff]
      %v318 = vld [vmem:[%s180 + $0xf0] sm:$0xff]
      %v319 = vld [vmem:[%s180 + $0xf8] sm:$0xff]
      %v320 = vld [vmem:[%s180 + $0x100] sm:$0xff]
      %v321 = vld [vmem:[%s180 + $0x108] sm:$0xff]
      %v322 = vld [vmem:[%s180 + $0x110] sm:$0xff]
      %v323 = vld [vmem:[%s180 + $0x118] sm:$0xff]
      %v324 = vld [vmem:[%s180 + $0x120] sm:$0xff]
      %v325 = vld [vmem:[%s180 + $0x128] sm:$0xff]
      %v326 = vld [vmem:[%s180 + $0x130] sm:$0xff]
      %v327 = vld [vmem:[%s180 + $0x138] sm:$0xff]
      %v328 = vld [vmem:[%s180 + $0x140] sm:$0xff]
      %v329 = vld [vmem:[%s180 + $0x148] sm:$0xff]
      %v330 = vld [vmem:[%s180 + $0x150] sm:$0xff]
      %v331 = vld [vmem:[%s180 + $0x158] sm:$0xff]
      %v332 = vld [vmem:[%s180 + $0x160] sm:$0xff]
      %v333 = vld [vmem:[%s180 + $0x168] sm:$0xff]
      %v334 = vld [vmem:[%s180 + $0x170] sm:$0xff]
      %v335 = vld [vmem:[%s180 + $0x178] sm:$0xff]
      %v336 = vsel %vm240, 1, 0
      %v337 = vsel %vm241, 1, 0
      %v338 = vsel %vm242, 1, 0
      %v339 = vsel %vm243, 1, 0
      %v340 = vsel %vm244, 1, 0
      %v341 = vsel %vm245, 1, 0
      %v342 = vsel %vm246, 1, 0
      %v343 = vsel %vm247, 1, 0
      %v344 = vsel %vm248, 1, 0
      %v345 = vsel %vm249, 1, 0
      %v346 = vsel %vm250, 1, 0
      %v347 = vsel %vm251, 1, 0
      %v348 = vsel %vm252, 1, 0
      %v349 = vsel %vm253, 1, 0
      %v350 = vsel %vm254, 1, 0
      %v351 = vsel %vm255, 1, 0
      %v352 = vsel %vm256, 1, 0
      %v353 = vsel %vm257, 1, 0
      %v354 = vsel %vm258, 1, 0
      %v355 = vsel %vm259, 1, 0
      %v356 = vsel %vm260, 1, 0
      %v357 = vsel %vm261, 1, 0
      %v358 = vsel %vm262, 1, 0
      %v359 = vsel %vm263, 1, 0
      %v360 = vsel %vm264, 1, 0
      %v361 = vsel %vm265, 1, 0
      %v362 = vsel %vm266, 1, 0
      %v363 = vsel %vm267, 1, 0
      %v364 = vsel %vm268, 1, 0
      %v365 = vsel %vm269, 1, 0
      %v366 = vsel %vm270, 1, 0
      %v367 = vsel %vm271, 1, 0
      %v368 = vsel %vm272, 1, 0
      %v369 = vsel %vm273, 1, 0
      %v370 = vsel %vm274, 1, 0
      %v371 = vsel %vm275, 1, 0
      %v372 = vsel %vm276, 1, 0
      %v373 = vsel %vm277, 1, 0
      %v374 = vsel %vm278, 1, 0
      %v375 = vsel %vm279, 1, 0
      %v376 = vsel %vm280, 1, 0
      %v377 = vsel %vm281, 1, 0
      %v378 = vsel %vm282, 1, 0
      %v379 = vsel %vm283, 1, 0
      %v380 = vsel %vm284, 1, 0
      %v381 = vsel %vm285, 1, 0
      %v382 = vsel %vm286, 1, 0
      %v383 = vsel %vm287, 1, 0
      %384 = vset.pattern.permute.xlu0 0
      %385 = vperm.xlu0 %384, %v336
      %v386 = vpop.permute.xlu0 %385
      %387 = vset.pattern.permute.xlu0 0
      %388 = vperm.xlu0 %387, %v337
      %v389 = vpop.permute.xlu0 %388
      %390 = vset.pattern.permute.xlu0 0
      %391 = vperm.xlu0 %390, %v338
      %v392 = vpop.permute.xlu0 %391
      %393 = vset.pattern.permute.xlu0 0
      %394 = vperm.xlu0 %393, %v339
      %v395 = vpop.permute.xlu0 %394
      %396 = vset.pattern.permute.xlu0 0
      %397 = vperm.xlu0 %396, %v340
      %v398 = vpop.permute.xlu0 %397
      %399 = vset.pattern.permute.xlu0 0
      %400 = vperm.xlu0 %399, %v341
      %v401 = vpop.permute.xlu0 %400
      %402 = vset.pattern.permute.xlu0 0
      %403 = vperm.xlu0 %402, %v342
      %v404 = vpop.permute.xlu0 %403
      %405 = vset.pattern.permute.xlu0 0
      %406 = vperm.xlu0 %405, %v343
      %v407 = vpop.permute.xlu0 %406
      %408 = vset.pattern.permute.xlu0 0
      %409 = vperm.xlu0 %408, %v344
      %v410 = vpop.permute.xlu0 %409
      %411 = vset.pattern.permute.xlu0 0
      %412 = vperm.xlu0 %411, %v345
      %v413 = vpop.permute.xlu0 %412
      %414 = vset.pattern.permute.xlu0 0
      %415 = vperm.xlu0 %414, %v346
      %v416 = vpop.permute.xlu0 %415
      %417 = vset.pattern.permute.xlu0 0
      %418 = vperm.xlu0 %417, %v347
      %v419 = vpop.permute.xlu0 %418
      %420 = vset.pattern.permute.xlu0 0
      %421 = vperm.xlu0 %420, %v348
      %v422 = vpop.permute.xlu0 %421
      %423 = vset.pattern.permute.xlu0 0
      %424 = vperm.xlu0 %423, %v349
      %v425 = vpop.permute.xlu0 %424
      %426 = vset.pattern.permute.xlu0 0
      %427 = vperm.xlu0 %426, %v350
      %v428 = vpop.permute.xlu0 %427
      %429 = vset.pattern.permute.xlu0 0
      %430 = vperm.xlu0 %429, %v351
      %v431 = vpop.permute.xlu0 %430
      %432 = vset.pattern.permute.xlu0 0
      %433 = vperm.xlu0 %432, %v352
      %v434 = vpop.permute.xlu0 %433
      %435 = vset.pattern.permute.xlu0 0
      %436 = vperm.xlu0 %435, %v353
      %v437 = vpop.permute.xlu0 %436
      %438 = vset.pattern.permute.xlu0 0
      %439 = vperm.xlu0 %438, %v354
      %v440 = vpop.permute.xlu0 %439
      %441 = vset.pattern.permute.xlu0 0
      %442 = vperm.xlu0 %441, %v355
      %v443 = vpop.permute.xlu0 %442
      %444 = vset.pattern.permute.xlu0 0
      %445 = vperm.xlu0 %444, %v356
      %v446 = vpop.permute.xlu0 %445
      %447 = vset.pattern.permute.xlu0 0
      %448 = vperm.xlu0 %447, %v357
      %v449 = vpop.permute.xlu0 %448
      %450 = vset.pattern.permute.xlu0 0
      %451 = vperm.xlu0 %450, %v358
      %v452 = vpop.permute.xlu0 %451
      %453 = vset.pattern.permute.xlu0 0
      %454 = vperm.xlu0 %453, %v359
      %v455 = vpop.permute.xlu0 %454
      %456 = vset.pattern.permute.xlu0 0
      %457 = vperm.xlu0 %456, %v360
      %v458 = vpop.permute.xlu0 %457
      %459 = vset.pattern.permute.xlu0 0
      %460 = vperm.xlu0 %459, %v361
      %v461 = vpop.permute.xlu0 %460
      %462 = vset.pattern.permute.xlu0 0
      %463 = vperm.xlu0 %462, %v362
      %v464 = vpop.permute.xlu0 %463
      %465 = vset.pattern.permute.xlu0 0
      %466 = vperm.xlu0 %465, %v363
      %v467 = vpop.permute.xlu0 %466
      %468 = vset.pattern.permute.xlu0 0
      %469 = vperm.xlu0 %468, %v364
      %v470 = vpop.permute.xlu0 %469
      %471 = vset.pattern.permute.xlu0 0
      %472 = vperm.xlu0 %471, %v365
      %v473 = vpop.permute.xlu0 %472
      %474 = vset.pattern.permute.xlu0 0
      %475 = vperm.xlu0 %474, %v366
      %v476 = vpop.permute.xlu0 %475
      %477 = vset.pattern.permute.xlu0 0
      %478 = vperm.xlu0 %477, %v367
      %v479 = vpop.permute.xlu0 %478
      %480 = vset.pattern.permute.xlu0 0
      %481 = vperm.xlu0 %480, %v368
      %v482 = vpop.permute.xlu0 %481
      %483 = vset.pattern.permute.xlu0 0
      %484 = vperm.xlu0 %483, %v369
      %v485 = vpop.permute.xlu0 %484
      %486 = vset.pattern.permute.xlu0 0
      %487 = vperm.xlu0 %486, %v370
      %v488 = vpop.permute.xlu0 %487
      %489 = vset.pattern.permute.xlu0 0
      %490 = vperm.xlu0 %489, %v371
      %v491 = vpop.permute.xlu0 %490
      %492 = vset.pattern.permute.xlu0 0
      %493 = vperm.xlu0 %492, %v372
      %v494 = vpop.permute.xlu0 %493
      %495 = vset.pattern.permute.xlu0 0
      %496 = vperm.xlu0 %495, %v373
      %v497 = vpop.permute.xlu0 %496
      %498 = vset.pattern.permute.xlu0 0
      %499 = vperm.xlu0 %498, %v374
      %v500 = vpop.permute.xlu0 %499
      %501 = vset.pattern.permute.xlu0 0
      %502 = vperm.xlu0 %501, %v375
      %v503 = vpop.permute.xlu0 %502
      %504 = vset.pattern.permute.xlu0 0
      %505 = vperm.xlu0 %504, %v376
      %v506 = vpop.permute.xlu0 %505
      %507 = vset.pattern.permute.xlu0 0
      %508 = vperm.xlu0 %507, %v377
      %v509 = vpop.permute.xlu0 %508
      %510 = vset.pattern.permute.xlu0 0
      %511 = vperm.xlu0 %510, %v378
      %v512 = vpop.permute.xlu0 %511
      %513 = vset.pattern.permute.xlu0 0
      %514 = vperm.xlu0 %513, %v379
      %v515 = vpop.permute.xlu0 %514
      %516 = vset.pattern.permute.xlu0 0
      %517 = vperm.xlu0 %516, %v380
      %v518 = vpop.permute.xlu0 %517
      %519 = vset.pattern.permute.xlu0 0
      %520 = vperm.xlu0 %519, %v381
      %v521 = vpop.permute.xlu0 %520
      %522 = vset.pattern.permute.xlu0 0
      %523 = vperm.xlu0 %522, %v382
      %v524 = vpop.permute.xlu0 %523
      %525 = vset.pattern.permute.xlu0 0
      %526 = vperm.xlu0 %525, %v383
      %v527 = vpop.permute.xlu0 %526
      %vm528 = vcmp.eq.s32.totalorder %v386, 1
      %vm529 = vcmp.eq.s32.totalorder %v389, 1
      %vm530 = vcmp.eq.s32.totalorder %v392, 1
      %vm531 = vcmp.eq.s32.totalorder %v395, 1
      %vm532 = vcmp.eq.s32.totalorder %v398, 1
      %vm533 = vcmp.eq.s32.totalorder %v401, 1
      %vm534 = vcmp.eq.s32.totalorder %v404, 1
      %vm535 = vcmp.eq.s32.totalorder %v407, 1
      %vm536 = vcmp.eq.s32.totalorder %v410, 1
      %vm537 = vcmp.eq.s32.totalorder %v413, 1
      %vm538 = vcmp.eq.s32.totalorder %v416, 1
      %vm539 = vcmp.eq.s32.totalorder %v419, 1
      %vm540 = vcmp.eq.s32.totalorder %v422, 1
      %vm541 = vcmp.eq.s32.totalorder %v425, 1
      %vm542 = vcmp.eq.s32.totalorder %v428, 1
      %vm543 = vcmp.eq.s32.totalorder %v431, 1
      %vm544 = vcmp.eq.s32.totalorder %v434, 1
      %vm545 = vcmp.eq.s32.totalorder %v437, 1
      %vm546 = vcmp.eq.s32.totalorder %v440, 1
      %vm547 = vcmp.eq.s32.totalorder %v443, 1
      %vm548 = vcmp.eq.s32.totalorder %v446, 1
      %vm549 = vcmp.eq.s32.totalorder %v449, 1
      %vm550 = vcmp.eq.s32.totalorder %v452, 1
      %vm551 = vcmp.eq.s32.totalorder %v455, 1
      %vm552 = vcmp.eq.s32.totalorder %v458, 1
      %vm553 = vcmp.eq.s32.totalorder %v461, 1
      %vm554 = vcmp.eq.s32.totalorder %v464, 1
      %vm555 = vcmp.eq.s32.totalorder %v467, 1
      %vm556 = vcmp.eq.s32.totalorder %v470, 1
      %vm557 = vcmp.eq.s32.totalorder %v473, 1
      %vm558 = vcmp.eq.s32.totalorder %v476, 1
      %vm559 = vcmp.eq.s32.totalorder %v479, 1
      %vm560 = vcmp.eq.s32.totalorder %v482, 1
      %vm561 = vcmp.eq.s32.totalorder %v485, 1
      %vm562 = vcmp.eq.s32.totalorder %v488, 1
      %vm563 = vcmp.eq.s32.totalorder %v491, 1
      %vm564 = vcmp.eq.s32.totalorder %v494, 1
      %vm565 = vcmp.eq.s32.totalorder %v497, 1
      %vm566 = vcmp.eq.s32.totalorder %v500, 1
      %vm567 = vcmp.eq.s32.totalorder %v503, 1
      %vm568 = vcmp.eq.s32.totalorder %v506, 1
      %vm569 = vcmp.eq.s32.totalorder %v509, 1
      %vm570 = vcmp.eq.s32.totalorder %v512, 1
      %vm571 = vcmp.eq.s32.totalorder %v515, 1
      %vm572 = vcmp.eq.s32.totalorder %v518, 1
      %vm573 = vcmp.eq.s32.totalorder %v521, 1
      %vm574 = vcmp.eq.s32.totalorder %v524, 1
      %vm575 = vcmp.eq.s32.totalorder %v527, 1
      %v576 = vsel %vm528, %v288, 0.0
      %v577 = vsel %vm529, %v289, 0.0
      %v578 = vsel %vm530, %v290, 0.0
      %v579 = vsel %vm531, %v291, 0.0
      %v580 = vsel %vm532, %v292, 0.0
      %v581 = vsel %vm533, %v293, 0.0
      %v582 = vsel %vm534, %v294, 0.0
      %v583 = vsel %vm535, %v295, 0.0
      %v584 = vsel %vm536, %v296, 0.0
      %v585 = vsel %vm537, %v297, 0.0
      %v586 = vsel %vm538, %v298, 0.0
      %v587 = vsel %vm539, %v299, 0.0
      %v588 = vsel %vm540, %v300, 0.0
      %v589 = vsel %vm541, %v301, 0.0
      %v590 = vsel %vm542, %v302, 0.0
      %v591 = vsel %vm543, %v303, 0.0
      %v592 = vsel %vm544, %v304, 0.0
      %v593 = vsel %vm545, %v305, 0.0
      %v594 = vsel %vm546, %v306, 0.0
      %v595 = vsel %vm547, %v307, 0.0
      %v596 = vsel %vm548, %v308, 0.0
      %v597 = vsel %vm549, %v309, 0.0
      %v598 = vsel %vm550, %v310, 0.0
      %v599 = vsel %vm551, %v311, 0.0
      %v600 = vsel %vm552, %v312, 0.0
      %v601 = vsel %vm553, %v313, 0.0
      %v602 = vsel %vm554, %v314, 0.0
      %v603 = vsel %vm555, %v315, 0.0
      %v604 = vsel %vm556, %v316, 0.0
      %v605 = vsel %vm557, %v317, 0.0
      %v606 = vsel %vm558, %v318, 0.0
      %v607 = vsel %vm559, %v319, 0.0
      %v608 = vsel %vm560, %v320, 0.0
      %v609 = vsel %vm561, %v321, 0.0
      %v610 = vsel %vm562, %v322, 0.0
      %v611 = vsel %vm563, %v323, 0.0
      %v612 = vsel %vm564, %v324, 0.0
      %v613 = vsel %vm565, %v325, 0.0
      %v614 = vsel %vm566, %v326, 0.0
      %v615 = vsel %vm567, %v327, 0.0
      %v616 = vsel %vm568, %v328, 0.0
      %v617 = vsel %vm569, %v329, 0.0
      %v618 = vsel %vm570, %v330, 0.0
      %v619 = vsel %vm571, %v331, 0.0
      %v620 = vsel %vm572, %v332, 0.0
      %v621 = vsel %vm573, %v333, 0.0
      %v622 = vsel %vm574, %v334, 0.0
      %v623 = vsel %vm575, %v335, 0.0
      %vm624 = vcmask 130048
      %v625 = vsel %vm624, %v576, 0.0
      %v626 = vsel %vm624, %v577, 0.0
      %v627 = vadd.f32 %v625, %v626
      %v628 = vsel %vm624, %v578, 0.0
      %v629 = vadd.f32 %v627, %v628
      %v630 = vsel %vm624, %v579, 0.0
      %v631 = vadd.f32 %v629, %v630
      %v632 = vsel %vm624, %v580, 0.0
      %v633 = vadd.f32 %v631, %v632
      %v634 = vsel %vm624, %v581, 0.0
      %v635 = vadd.f32 %v633, %v634
      %v636 = vsel %vm624, %v582, 0.0
      %v637 = vadd.f32 %v635, %v636
      %v638 = vsel %vm624, %v583, 0.0
      %v639 = vadd.f32 %v637, %v638
      %v640 = vsel %vm624, %v584, 0.0
      %v641 = vadd.f32 %v639, %v640
      %v642 = vsel %vm624, %v585, 0.0
      %v643 = vadd.f32 %v641, %v642
      %v644 = vsel %vm624, %v586, 0.0
      %v645 = vadd.f32 %v643, %v644
      %v646 = vsel %vm624, %v587, 0.0
      %v647 = vadd.f32 %v645, %v646
      %v648 = vsel %vm624, %v588, 0.0
      %v649 = vadd.f32 %v647, %v648
      %v650 = vsel %vm624, %v589, 0.0
      %v651 = vadd.f32 %v649, %v650
      %v652 = vsel %vm624, %v590, 0.0
      %v653 = vadd.f32 %v651, %v652
      %v654 = vsel %vm624, %v591, 0.0
      %v655 = vadd.f32 %v653, %v654
      %v656 = vsel %vm624, %v592, 0.0
      %v657 = vadd.f32 %v655, %v656
      %v658 = vsel %vm624, %v593, 0.0
      %v659 = vadd.f32 %v657, %v658
      %v660 = vsel %vm624, %v594, 0.0
      %v661 = vadd.f32 %v659, %v660
      %v662 = vsel %vm624, %v595, 0.0
      %v663 = vadd.f32 %v661, %v662
      %v664 = vsel %vm624, %v596, 0.0
      %v665 = vadd.f32 %v663, %v664
      %v666 = vsel %vm624, %v597, 0.0
      %v667 = vadd.f32 %v665, %v666
      %v668 = vsel %vm624, %v598, 0.0
      %v669 = vadd.f32 %v667, %v668
      %v670 = vsel %vm624, %v599, 0.0
      %v671 = vadd.f32 %v669, %v670
      %v672 = vsel %vm624, %v600, 0.0
      %v673 = vadd.f32 %v671, %v672
      %v674 = vsel %vm624, %v601, 0.0
      %v675 = vadd.f32 %v673, %v674
      %v676 = vsel %vm624, %v602, 0.0
      %v677 = vadd.f32 %v675, %v676
      %v678 = vsel %vm624, %v603, 0.0
      %v679 = vadd.f32 %v677, %v678
      %v680 = vsel %vm624, %v604, 0.0
      %v681 = vadd.f32 %v679, %v680
      %v682 = vsel %vm624, %v605, 0.0
      %v683 = vadd.f32 %v681, %v682
      %v684 = vsel %vm624, %v606, 0.0
      %v685 = vadd.f32 %v683, %v684
      %v686 = vsel %vm624, %v607, 0.0
      %v687 = vadd.f32 %v685, %v686
      %v688 = vsel %vm624, %v608, 0.0
      %v689 = vadd.f32 %v687, %v688
      %v690 = vsel %vm624, %v609, 0.0
      %v691 = vadd.f32 %v689, %v690
      %v692 = vsel %vm624, %v610, 0.0
      %v693 = vadd.f32 %v691, %v692
      %v694 = vsel %vm624, %v611, 0.0
      %v695 = vadd.f32 %v693, %v694
      %v696 = vsel %vm624, %v612, 0.0
      %v697 = vadd.f32 %v695, %v696
      %v698 = vsel %vm624, %v613, 0.0
      %v699 = vadd.f32 %v697, %v698
      %v700 = vsel %vm624, %v614, 0.0
      %v701 = vadd.f32 %v699, %v700
      %v702 = vsel %vm624, %v615, 0.0
      %v703 = vadd.f32 %v701, %v702
      %v704 = vsel %vm624, %v616, 0.0
      %v705 = vadd.f32 %v703, %v704
      %v706 = vsel %vm624, %v617, 0.0
      %v707 = vadd.f32 %v705, %v706
      %v708 = vsel %vm624, %v618, 0.0
      %v709 = vadd.f32 %v707, %v708
      %v710 = vsel %vm624, %v619, 0.0
      %v711 = vadd.f32 %v709, %v710
      %v712 = vsel %vm624, %v620, 0.0
      %v713 = vadd.f32 %v711, %v712
      %v714 = vsel %vm624, %v621, 0.0
      %v715 = vadd.f32 %v713, %v714
      %v716 = vsel %vm624, %v622, 0.0
      %v717 = vadd.f32 %v715, %v716
      %v718 = vsel %vm624, %v623, 0.0
      %v719 = vadd.f32 %v717, %v718
      %v720 = vrot.slane %v719, 4
      %v721 = vadd.f32 %v719, %v720
      %v722 = vrot.slane %v721, 2
      %v723 = vadd.f32 %v721, %v722
      %v724 = vrot.slane %v723, 1
      %v725 = vadd.f32 %v723, %v724
      %v726 = vmul.f32 %v576, %v576
      %v727 = vmul.f32 %v577, %v577
      %v728 = vmul.f32 %v578, %v578
      %v729 = vmul.f32 %v579, %v579
      %v730 = vmul.f32 %v580, %v580
      %v731 = vmul.f32 %v581, %v581
      %v732 = vmul.f32 %v582, %v582
      %v733 = vmul.f32 %v583, %v583
      %v734 = vmul.f32 %v584, %v584
      %v735 = vmul.f32 %v585, %v585
      %v736 = vmul.f32 %v586, %v586
      %v737 = vmul.f32 %v587, %v587
      %v738 = vmul.f32 %v588, %v588
      %v739 = vmul.f32 %v589, %v589
      %v740 = vmul.f32 %v590, %v590
      %v741 = vmul.f32 %v591, %v591
      %v742 = vmul.f32 %v592, %v592
      %v743 = vmul.f32 %v593, %v593
      %v744 = vmul.f32 %v594, %v594
      %v745 = vmul.f32 %v595, %v595
      %v746 = vmul.f32 %v596, %v596
      %v747 = vmul.f32 %v597, %v597
      %v748 = vmul.f32 %v598, %v598
      %v749 = vmul.f32 %v599, %v599
      %v750 = vmul.f32 %v600, %v600
      %v751 = vmul.f32 %v601, %v601
      %v752 = vmul.f32 %v602, %v602
      %v753 = vmul.f32 %v603, %v603
      %v754 = vmul.f32 %v604, %v604
      %v755 = vmul.f32 %v605, %v605
      %v756 = vmul.f32 %v606, %v606
      %v757 = vmul.f32 %v607, %v607
      %v758 = vmul.f32 %v608, %v608
      %v759 = vmul.f32 %v609, %v609
      %v760 = vmul.f32 %v610, %v610
      %v761 = vmul.f32 %v611, %v611
      %v762 = vmul.f32 %v612, %v612
      %v763 = vmul.f32 %v613, %v613
      %v764 = vmul.f32 %v614, %v614
      %v765 = vmul.f32 %v615, %v615
      %v766 = vmul.f32 %v616, %v616
      %v767 = vmul.f32 %v617, %v617
      %v768 = vmul.f32 %v618, %v618
      %v769 = vmul.f32 %v619, %v619
      %v770 = vmul.f32 %v620, %v620
      %v771 = vmul.f32 %v621, %v621
      %v772 = vmul.f32 %v622, %v622
      %v773 = vmul.f32 %v623, %v623
      %v774 = vsel %vm624, %v726, 0.0
      %v775 = vsel %vm624, %v727, 0.0
      %v776 = vadd.f32 %v774, %v775
      %v777 = vsel %vm624, %v728, 0.0
      %v778 = vadd.f32 %v776, %v777
      %v779 = vsel %vm624, %v729, 0.0
      %v780 = vadd.f32 %v778, %v779
      %v781 = vsel %vm624, %v730, 0.0
      %v782 = vadd.f32 %v780, %v781
      %v783 = vsel %vm624, %v731, 0.0
      %v784 = vadd.f32 %v782, %v783
      %v785 = vsel %vm624, %v732, 0.0
      %v786 = vadd.f32 %v784, %v785
      %v787 = vsel %vm624, %v733, 0.0
      %v788 = vadd.f32 %v786, %v787
      %v789 = vsel %vm624, %v734, 0.0
      %v790 = vadd.f32 %v788, %v789
      %v791 = vsel %vm624, %v735, 0.0
      %v792 = vadd.f32 %v790, %v791
      %v793 = vsel %vm624, %v736, 0.0
      %v794 = vadd.f32 %v792, %v793
      %v795 = vsel %vm624, %v737, 0.0
      %v796 = vadd.f32 %v794, %v795
      %v797 = vsel %vm624, %v738, 0.0
      %v798 = vadd.f32 %v796, %v797
      %v799 = vsel %vm624, %v739, 0.0
      %v800 = vadd.f32 %v798, %v799
      %v801 = vsel %vm624, %v740, 0.0
      %v802 = vadd.f32 %v800, %v801
      %v803 = vsel %vm624, %v741, 0.0
      %v804 = vadd.f32 %v802, %v803
      %v805 = vsel %vm624, %v742, 0.0
      %v806 = vadd.f32 %v804, %v805
      %v807 = vsel %vm624, %v743, 0.0
      %v808 = vadd.f32 %v806, %v807
      %v809 = vsel %vm624, %v744, 0.0
      %v810 = vadd.f32 %v808, %v809
      %v811 = vsel %vm624, %v745, 0.0
      %v812 = vadd.f32 %v810, %v811
      %v813 = vsel %vm624, %v746, 0.0
      %v814 = vadd.f32 %v812, %v813
      %v815 = vsel %vm624, %v747, 0.0
      %v816 = vadd.f32 %v814, %v815
      %v817 = vsel %vm624, %v748, 0.0
      %v818 = vadd.f32 %v816, %v817
      %v819 = vsel %vm624, %v749, 0.0
      %v820 = vadd.f32 %v818, %v819
      %v821 = vsel %vm624, %v750, 0.0
      %v822 = vadd.f32 %v820, %v821
      %v823 = vsel %vm624, %v751, 0.0
      %v824 = vadd.f32 %v822, %v823
      %v825 = vsel %vm624, %v752, 0.0
      %v826 = vadd.f32 %v824, %v825
      %v827 = vsel %vm624, %v753, 0.0
      %v828 = vadd.f32 %v826, %v827
      %v829 = vsel %vm624, %v754, 0.0
      %v830 = vadd.f32 %v828, %v829
      %v831 = vsel %vm624, %v755, 0.0
      %v832 = vadd.f32 %v830, %v831
      %v833 = vsel %vm624, %v756, 0.0
      %v834 = vadd.f32 %v832, %v833
      %v835 = vsel %vm624, %v757, 0.0
      %v836 = vadd.f32 %v834, %v835
      %v837 = vsel %vm624, %v758, 0.0
      %v838 = vadd.f32 %v836, %v837
      %v839 = vsel %vm624, %v759, 0.0
      %v840 = vadd.f32 %v838, %v839
      %v841 = vsel %vm624, %v760, 0.0
      %v842 = vadd.f32 %v840, %v841
      %v843 = vsel %vm624, %v761, 0.0
      %v844 = vadd.f32 %v842, %v843
      %v845 = vsel %vm624, %v762, 0.0
      %v846 = vadd.f32 %v844, %v845
      %v847 = vsel %vm624, %v763, 0.0
      %v848 = vadd.f32 %v846, %v847
      %v849 = vsel %vm624, %v764, 0.0
      %v850 = vadd.f32 %v848, %v849
      %v851 = vsel %vm624, %v765, 0.0
      %v852 = vadd.f32 %v850, %v851
      %v853 = vsel %vm624, %v766, 0.0
      %v854 = vadd.f32 %v852, %v853
      %v855 = vsel %vm624, %v767, 0.0
      %v856 = vadd.f32 %v854, %v855
      %v857 = vsel %vm624, %v768, 0.0
      %v858 = vadd.f32 %v856, %v857
      %v859 = vsel %vm624, %v769, 0.0
      %v860 = vadd.f32 %v858, %v859
      %v861 = vsel %vm624, %v770, 0.0
      %v862 = vadd.f32 %v860, %v861
      %v863 = vsel %vm624, %v771, 0.0
      %v864 = vadd.f32 %v862, %v863
      %v865 = vsel %vm624, %v772, 0.0
      %v866 = vadd.f32 %v864, %v865
      %v867 = vsel %vm624, %v773, 0.0
      %v868 = vadd.f32 %v866, %v867
      %v869 = vrot.slane %v868, 4
      %v870 = vadd.f32 %v868, %v869
      %v871 = vrot.slane %v870, 2
      %v872 = vadd.f32 %v870, %v871
      %v873 = vrot.slane %v872, 1
      %v874 = vadd.f32 %v872, %v873
      %vm875 = vcmask 1040384
      %v876 = vsel %vm875, %v725, %v874
      %p877 = scmp.eq.s32.totalorder %s18, 0
      // Predicated region
      $region29: #{resnet_block_forward.6} parent=27 // pred_check
        %p878 = pneg %p877
      $region30: #{resnet_block_forward.6} parent=27 // pred_check_branch
        %880 = sbr.rel (%p878) target = $region32
      $region31: #{resnet_block_forward.6} parent=27 // pred_region
        %vm881 = vcmask 123904
        %882 = vst.msk [vmem:[%s191] sm:$0x3] %vm881, %v876
      $region32: #{resnet_block_forward.6} parent=27 // pred_fallthru
        _
      %p883 = scmp.gt.s32.totalorder %s18, 0
      // Predicated region
      $region33: #{resnet_block_forward.6} parent=27 // pred_check
        %p884 = pneg %p883
      $region34: #{resnet_block_forward.6} parent=27 // pred_check_branch
        %886 = sbr.rel (%p884) target = $region36
      $region35: #{resnet_block_forward.6} parent=27 // pred_region
        %v887 = vld [vmem:[%s191] sm:$0x3]
        %v888 = vadd.f32 %v887, %v876
        %vm889 = vcmask 123904
        %890 = vst.msk [vmem:[%s191] sm:$0x3] %vm889, %v888
      $region36: #{resnet_block_forward.6} parent=27 // pred_fallthru
        _
      %p891 = scmp.lt.s32.totalorder %s17, 1
      %s892 = scalar_select %p891, %s17, 1
      %s893 = smul.addr %s892, 2
      %s894 = scalar_lea.vmem %s2, %s893
      // Predicated region
      $region37: #{resnet_block_forward.6} parent=27 // pred_check
        %p895 = pneg %p97
      $region38: #{resnet_block_forward.6} parent=27 // pred_check_branch
        %897 = sbr.rel (%p895) target = $region40
      $region39: #{resnet_block_forward.6} parent=27 // pred_region
        _
      $region40: #{resnet_block_forward.6} parent=27 // pred_fallthru
        _
    $region28: #{resnet_block_forward.6} parent=5 // pred_fallthru
      _
    %p898 = scmp.le.s32.totalorder 2, %s8
    // Predicated region
    $region41: #{resnet_block_forward.6} parent=5 // pred_check
      %p899 = pneg %p898
    $region42: #{resnet_block_forward.6} parent=5 // pred_check_branch
      %901 = sbr.rel (%p899) target = $region44
    $region43: #{resnet_block_forward.6} parent=5 // pred_region
      %s902 = ssub.s32 %s8, 2
      // Predicated region
      $region45: #{resnet_block_forward.6} parent=43 // pred_check
        %p903 = pneg %p103
      $region46: #{resnet_block_forward.6} parent=43 // pred_check_branch
        %905 = sbr.rel (%p903) target = $region48
      $region47: #{resnet_block_forward.6} parent=43 // pred_region
        %p906 = scmp.lt.s32.totalorder %s19, 1
        %s907 = scalar_select %p906, %s19, 1
        %s908 = smul.addr %s907, 2
        %s909 = scalar_lea.vmem %s2, %s908
      $region48: #{resnet_block_forward.6} parent=43 // pred_fallthru
        _
    $region44: #{resnet_block_forward.6} parent=5 // pred_fallthru
      _
  $region6: #{resnet_block_forward.6} parent=0 // loop_footer
    %s12 = sadd.s32 1, %s8
  $region7: #{resnet_block_forward.6} parent=0 // loop_footer_branch
    %7 = sbr.rel target = $region3
  $region8: #{resnet_block_forward.6} parent=0 // loop_exit
    _

// kernel: resnet_block_forward.7
$region0: #{resnet_block_forward.7}
  #allocation0 [shape = 'u32[]', space=smem, size = 0x4, offset = 0x4, fixed_abs, tag = 'smem constant byte address 0x4 - core index']
  #allocation1 [shape = 'u32[144,128]{1,0:T(1,128)}', space=vmem, size = 0x12000, scoped, tag = 'internal scratch']
  %s0 = inlined_call_operand.vmem [shape: f32[2,384,16], index: 0, kind: input, shape index: {}]
  %s1 = inlined_call_operand.vmem [shape: f32[2,1,16], index: 1, kind: input, shape index: {}]
  %s2 = inlined_call_operand.vmem [shape: f32[2,1,16], index: 2, kind: input, shape index: {}]
  %s3 = inlined_call_operand.vmem [shape: f32[384,1], index: 3, kind: input, shape index: {}]
  %s4 = inlined_call_operand.vmem [shape: bf16[2,384,16], index: 4, kind: output, shape index: {}]
  %s5 = sld [smem:[#allocation0]]
  $region49: #{resnet_block_forward.7} parent=0
    _
  %s7 = ssub.s32 1, %s5
  %s8 = scalar_select 0, %s7, %s5
  loop: start=0, step=1, limit=4
  $region2: #{resnet_block_forward.7} parent=0 // loop_pre_header
    _
  $region3: #{resnet_block_forward.7} parent=0 // loop_header
    %s10 = sphi 0, %s14
    %p11 = scmp.ge.s32.totalorder %s10, 4
    %s17 = sphi 0, %s29
    %s18 = sphi 0, %s25
    %s19 = sphi 0, %s17
    %s20 = sphi 0, %s18
    %s21 = sphi 0, %s19
    %s22 = sphi 0, %s20
    %s34 = sphi 0, %s36
    %s37 = sphi 0, %s34
    %s38 = sphi 0, %s37
    %s54 = sphi 0, %s38
    %s60 = sphi 0, %s62
    %s63 = sphi 0, %s60
    %s64 = sphi 0, %s63
    %s80 = sphi 0, %s64
    %s86 = sphi 0, %s88
    %s89 = sphi 0, %s86
    %s90 = sphi 0, %s89
    %s106 = sphi 0, %s90
    %s112 = sphi 0, %s114
    %s115 = sphi 0, %s112
    %s116 = sphi 0, %s115
    %s132 = sphi 0, %s116
    %s140 = sphi 0, %s142
    %s143 = sphi 0, %s140
    %s144 = sphi 0, %s143
    %s160 = sphi 0, %s144
  $region4: #{resnet_block_forward.7} parent=0 // loop_header_branch
    %13 = sbr.rel (%p11) target = $region8
  $region5: #{resnet_block_forward.7} parent=0 // loop_body
    %s15 = ssub.s32 %s10, 1
    %s16 = ssub.s32 %s10, 2
    %s23 = sadd.s32 1, %s18
    %p24 = scmp.ge.s32.totalorder %s23, 1
    %s25 = scalar_select %p24, 0, %s23
    %s26 = sadd.s32 1, %s17
    %s27 = scalar_select %p24, %s26, %s17
    %p28 = scmp.ge.s32.totalorder %s27, 2
    %s29 = scalar_select %p28, 0, %s27
    %s30 = ssub.s32 %s17, %s29
    %s31 = ssub.s32 %s18, %s25
    %s32 = sor.u32 %s30, %s31
    %p33 = scmp.eq.s32.totalorder %s32, 0
    %s35 = sadd.s32 %s34, 1
    %s36 = scalar_select %p33, %s34, %s35
    %p39 = pneg %p33
    %p40 = scmp.eq.s32.totalorder %s10, 1
    %p41 = por %p39, %p40
    %p42 = scmp.ne.s32.totalorder %s34, %s37
    %p43 = scmp.eq.s32.totalorder %s10, 0
    %p44 = por %p42, %p43
    %p45 = scmp.ne.s32.totalorder %s34, %s37
    %p46 = scmp.eq.s32.totalorder %s15, 1
    %p47 = por %p45, %p46
    %p48 = scmp.ne.s32.totalorder %s37, %s38
    %p49 = scmp.eq.s32.totalorder %s15, 0
    %p50 = por %p48, %p49
    %p51 = scmp.ne.s32.totalorder %s37, %s38
    %p52 = scmp.eq.s32.totalorder %s16, 1
    %p53 = por %p51, %p52
    %p55 = scmp.ne.s32.totalorder %s38, %s54
    %p56 = scmp.eq.s32.totalorder %s16, 0
    %p57 = por %p55, %p56
    %s58 = ssub.s32 %s17, %s29
    %p59 = scmp.eq.s32.totalorder %s58, 0
    %s61 = sadd.s32 %s60, 1
    %s62 = scalar_select %p59, %s60, %s61
    %p65 = pneg %p59
    %p66 = scmp.eq.s32.totalorder %s10, 1
    %p67 = por %p65, %p66
    %p68 = scmp.ne.s32.totalorder %s60, %s63
    %p69 = scmp.eq.s32.totalorder %s10, 0
    %p70 = por %p68, %p69
    %p71 = scmp.ne.s32.totalorder %s60, %s63
    %p72 = scmp.eq.s32.totalorder %s15, 1
    %p73 = por %p71, %p72
    %p74 = scmp.ne.s32.totalorder %s63, %s64
    %p75 = scmp.eq.s32.totalorder %s15, 0
    %p76 = por %p74, %p75
    %p77 = scmp.ne.s32.totalorder %s63, %s64
    %p78 = scmp.eq.s32.totalorder %s16, 1
    %p79 = por %p77, %p78
    %p81 = scmp.ne.s32.totalorder %s64, %s80
    %p82 = scmp.eq.s32.totalorder %s16, 0
    %p83 = por %p81, %p82
    %s84 = ssub.s32 %s17, %s29
    %p85 = scmp.eq.s32.totalorder %s84, 0
    %s87 = sadd.s32 %s86, 1
    %s88 = scalar_select %p85, %s86, %s87
    %p91 = pneg %p85
    %p92 = scmp.eq.s32.totalorder %s10, 1
    %p93 = por %p91, %p92
    %p94 = scmp.ne.s32.totalorder %s86, %s89
    %p95 = scmp.eq.s32.totalorder %s10, 0
    %p96 = por %p94, %p95
    %p97 = scmp.ne.s32.totalorder %s86, %s89
    %p98 = scmp.eq.s32.totalorder %s15, 1
    %p99 = por %p97, %p98
    %p100 = scmp.ne.s32.totalorder %s89, %s90
    %p101 = scmp.eq.s32.totalorder %s15, 0
    %p102 = por %p100, %p101
    %p103 = scmp.ne.s32.totalorder %s89, %s90
    %p104 = scmp.eq.s32.totalorder %s16, 1
    %p105 = por %p103, %p104
    %p107 = scmp.ne.s32.totalorder %s90, %s106
    %p108 = scmp.eq.s32.totalorder %s16, 0
    %p109 = por %p107, %p108
    %s110 = ssub.s32 %s18, %s25
    %p111 = scmp.eq.s32.totalorder %s110, 0
    %s113 = sadd.s32 %s112, 1
    %s114 = scalar_select %p111, %s112, %s113
    %p117 = pneg %p111
    %p118 = scmp.eq.s32.totalorder %s10, 1
    %p119 = por %p117, %p118
    %p120 = scmp.ne.s32.totalorder %s112, %s115
    %p121 = scmp.eq.s32.totalorder %s10, 0
    %p122 = por %p120, %p121
    %p123 = scmp.ne.s32.totalorder %s112, %s115
    %p124 = scmp.eq.s32.totalorder %s15, 1
    %p125 = por %p123, %p124
    %p126 = scmp.ne.s32.totalorder %s115, %s116
    %p127 = scmp.eq.s32.totalorder %s15, 0
    %p128 = por %p126, %p127
    %p129 = scmp.ne.s32.totalorder %s115, %s116
    %p130 = scmp.eq.s32.totalorder %s16, 1
    %p131 = por %p129, %p130
    %p133 = scmp.ne.s32.totalorder %s116, %s132
    %p134 = scmp.eq.s32.totalorder %s16, 0
    %p135 = por %p133, %p134
    %s136 = ssub.s32 %s17, %s29
    %s137 = ssub.s32 %s18, %s25
    %s138 = sor.u32 %s136, %s137
    %p139 = scmp.eq.s32.totalorder %s138, 0
    %s141 = sadd.s32 %s140, 1
    %s142 = scalar_select %p139, %s140, %s141
    %p145 = pneg %p139
    %p146 = scmp.eq.s32.totalorder %s10, 1
    %p147 = por %p145, %p146
    %p148 = scmp.ne.s32.totalorder %s140, %s143
    %p149 = scmp.eq.s32.totalorder %s10, 0
    %p150 = por %p148, %p149
    %p151 = scmp.ne.s32.totalorder %s140, %s143
    %p152 = scmp.eq.s32.totalorder %s15, 1
    %p153 = por %p151, %p152
    %p154 = scmp.ne.s32.totalorder %s143, %s144
    %p155 = scmp.eq.s32.totalorder %s15, 0
    %p156 = por %p154, %p155
    %p157 = scmp.ne.s32.totalorder %s143, %s144
    %p158 = scmp.eq.s32.totalorder %s16, 1
    %p159 = por %p157, %p158
    %p161 = scmp.ne.s32.totalorder %s144, %s160
    %p162 = scmp.eq.s32.totalorder %s16, 0
    %p163 = por %p161, %p162
    %p164 = scmp.le.s32.totalorder 1, %s10
    %p165 = scmp.lt.s32.totalorder %s10, 3
    %p166 = pnand %p164, %p165
    %p167 = pneg %p166
    // Predicated region
    $region9: #{resnet_block_forward.7} parent=5 // pred_check
      _
    $region10: #{resnet_block_forward.7} parent=5 // pred_check_branch
      %169 = sbr.rel (%p166) target = $region12
    $region11: #{resnet_block_forward.7} parent=5 // pred_region
      %s170 = ssub.s32 %s10, 1
      // Predicated region
      $region13: #{resnet_block_forward.7} parent=11 // pred_check
        %p171 = pneg %p128
      $region14: #{resnet_block_forward.7} parent=11 // pred_check_branch
        %173 = sbr.rel (%p171) target = $region16
      $region15: #{resnet_block_forward.7} parent=11 // pred_region
        %s174 = smul.u32 48, %s20
        %p175 = scmp.lt.s32.totalorder %s174, 47
        %s176 = scalar_select %p175, %s174, 47
        %s177 = smul.addr %s176, 8
        %s178 = scalar_lea.vmem %s3, %s177
        %s179 = smul.u32 48, %s20
      $region16: #{resnet_block_forward.7} parent=11 // pred_fallthru
        _
    $region12: #{resnet_block_forward.7} parent=5 // pred_fallthru
      _
    %p180 = scmp.lt.s32.totalorder %s10, 2
    // Predicated region
    $region17: #{resnet_block_forward.7} parent=5 // pred_check
      %p181 = pneg %p180
    $region18: #{resnet_block_forward.7} parent=5 // pred_check_branch
      %183 = sbr.rel (%p181) target = $region20
    $region19: #{resnet_block_forward.7} parent=5 // pred_region
      // Predicated region
      $region21: #{resnet_block_forward.7} parent=19 // pred_check
        %p184 = pneg %p44
      $region22: #{resnet_block_forward.7} parent=19 // pred_check_branch
        %186 = sbr.rel (%p184) target = $region24
      $region23: #{resnet_block_forward.7} parent=19 // pred_region
        %s187 = smul.u32 48, %s18
        %p188 = scmp.lt.s32.totalorder %s17, 1
        %s189 = scalar_select %p188, %s17, 1
        %p190 = scmp.lt.s32.totalorder %s187, 47
        %s191 = scalar_select %p190, %s187, 47
        %s192 = smul.addr %s189, 48
        %s193 = sadd.s32 %s191, %s192
        %s194 = smul.addr %s193, 8
        %s195 = scalar_lea.vmem %s0, %s194
        %s196 = smul.u32 48, %s18
      $region24: #{resnet_block_forward.7} parent=19 // pred_fallthru
        _
      // Predicated region
      $region25: #{resnet_block_forward.7} parent=19 // pred_check
        %p197 = pneg %p70
      $region26: #{resnet_block_forward.7} parent=19 // pred_check_branch
        %199 = sbr.rel (%p197) target = $region28
      $region27: #{resnet_block_forward.7} parent=19 // pred_region
        %p200 = scmp.lt.s32.totalorder %s17, 1
        %s201 = scalar_select %p200, %s17, 1
        %s202 = scalar_lea.vmem %s1, %s201
      $region28: #{resnet_block_forward.7} parent=19 // pred_fallthru
        _
      // Predicated region
      $region29: #{resnet_block_forward.7} parent=19 // pred_check
        %p203 = pneg %p96
      $region30: #{resnet_block_forward.7} parent=19 // pred_check_branch
        %205 = sbr.rel (%p203) target = $region32
      $region31: #{resnet_block_forward.7} parent=19 // pred_region
        %p206 = scmp.lt.s32.totalorder %s17, 1
        %s207 = scalar_select %p206, %s17, 1
        %s208 = scalar_lea.vmem %s2, %s207
      $region32: #{resnet_block_forward.7} parent=19 // pred_fallthru
        _
    $region20: #{resnet_block_forward.7} parent=5 // pred_fallthru
      _
    %p209 = scmp.le.s32.totalorder 1, %s10
    %p210 = scmp.lt.s32.totalorder %s10, 3
    %p211 = pnand %p209, %p210
    %p212 = pneg %p211
    // Predicated region
    $region33: #{resnet_block_forward.7} parent=5 // pred_check
      _
    $region34: #{resnet_block_forward.7} parent=5 // pred_check_branch
      %214 = sbr.rel (%p211) target = $region36
    $region35: #{resnet_block_forward.7} parent=5 // pred_region
      %s215 = ssub.s32 %s10, 1
      %s216 = smul.u32 48, %s20
      %p217 = scmp.lt.s32.totalorder %s19, 1
      %s218 = scalar_select %p217, %s19, 1
      %p219 = scmp.lt.s32.totalorder %s216, 47
      %s220 = scalar_select %p219, %s216, 47
      %s221 = smul.addr %s218, 48
      %s222 = sadd.s32 %s220, %s221
      %s223 = smul.addr %s222, 8
      %s224 = scalar_lea.vmem %s0, %s223
      %p225 = pneg %p50
      %p226 = pneg %p47
      %p227 = scmp.lt.s32.totalorder %s19, 1
      %s228 = scalar_select %p227, %s19, 1
      %s229 = scalar_lea.vmem %s1, %s228
      %p230 = pneg %p76
      %p231 = pneg %p73
      %p232 = scmp.lt.s32.totalorder %s19, 1
      %s233 = scalar_select %p232, %s19, 1
      %s234 = scalar_lea.vmem %s2, %s233
      %p235 = pneg %p102
      %p236 = pneg %p99
      %s237 = smul.u32 48, %s20
      %p238 = scmp.lt.s32.totalorder %s237, 47
      %s239 = scalar_select %p238, %s237, 47
      %s240 = smul.addr %s239, 8
      %s241 = scalar_lea.vmem %s3, %s240
      %p242 = pneg %p128
      %p243 = pneg %p125
      %p244 = pneg %p156
      %p245 = pneg %p153
      %s246 = smul.u32 48, %s20
      %p247 = scmp.lt.s32.totalorder %s19, 1
      %s248 = scalar_select %p247, %s19, 1
      %p249 = scmp.lt.s32.totalorder %s246, 47
      %s250 = scalar_select %p249, %s246, 47
      %s251 = smul.addr %s248, 48
      %s252 = sadd.s32 %s250, %s251
      %s253 = smul.addr %s252, 4
      %s254 = scalar_lea.vmem %s4, %s253
      %s255 = smul.u32 48, %s20
      %p256 = scmp.lt.s32.totalorder %s19, 1
      %s257 = scalar_select %p256, %s19, 1
      %p258 = scmp.lt.s32.totalorder %s255, 47
      %s259 = scalar_select %p258, %s255, 47
      %s260 = smul.addr %s257, 48
      %s261 = sadd.s32 %s259, %s260
      %s262 = smul.addr %s261, 8
      %s263 = scalar_lea.vmem %s0, %s262
      %s264 = smul.u32 48, %s20
      %p265 = scmp.lt.s32.totalorder %s19, 1
      %s266 = scalar_select %p265, %s19, 1
      %s267 = scalar_lea.vmem %s1, %s266
      %p268 = scmp.lt.s32.totalorder %s19, 1
      %s269 = scalar_select %p268, %s19, 1
      %s270 = scalar_lea.vmem %s2, %s269
      %s271 = smul.u32 48, %s20
      %p272 = scmp.lt.s32.totalorder %s271, 47
      %s273 = scalar_select %p272, %s271, 47
      %s274 = smul.addr %s273, 8
      %s275 = scalar_lea.vmem %s3, %s274
      %s276 = smul.u32 48, %s20
      %s277 = smul.u32 48, %s20
      %p278 = scmp.lt.s32.totalorder %s19, 1
      %s279 = scalar_select %p278, %s19, 1
      %p280 = scmp.lt.s32.totalorder %s277, 47
      %s281 = scalar_select %p280, %s277, 47
      %s282 = smul.addr %s279, 48
      %s283 = sadd.s32 %s281, %s282
      %s284 = smul.addr %s283, 4
      %s285 = scalar_lea.vmem %s4, %s284
      %s286 = smul.u32 48, %s20
      %v287 = vld [vmem:[%s263] sm:$0xff]
      %v288 = vld [vmem:[%s263 + $0x8] sm:$0xff]
      %v289 = vld [vmem:[%s263 + $0x10] sm:$0xff]
      %v290 = vld [vmem:[%s263 + $0x18] sm:$0xff]
      %v291 = vld [vmem:[%s263 + $0x20] sm:$0xff]
      %v292 = vld [vmem:[%s263 + $0x28] sm:$0xff]
      %v293 = vld [vmem:[%s263 + $0x30] sm:$0xff]
      %v294 = vld [vmem:[%s263 + $0x38] sm:$0xff]
      %v295 = vld [vmem:[%s263 + $0x40] sm:$0xff]
      %v296 = vld [vmem:[%s263 + $0x48] sm:$0xff]
      %v297 = vld [vmem:[%s263 + $0x50] sm:$0xff]
      %v298 = vld [vmem:[%s263 + $0x58] sm:$0xff]
      %v299 = vld [vmem:[%s263 + $0x60] sm:$0xff]
      %v300 = vld [vmem:[%s263 + $0x68] sm:$0xff]
      %v301 = vld [vmem:[%s263 + $0x70] sm:$0xff]
      %v302 = vld [vmem:[%s263 + $0x78] sm:$0xff]
      %v303 = vld [vmem:[%s263 + $0x80] sm:$0xff]
      %v304 = vld [vmem:[%s263 + $0x88] sm:$0xff]
      %v305 = vld [vmem:[%s263 + $0x90] sm:$0xff]
      %v306 = vld [vmem:[%s263 + $0x98] sm:$0xff]
      %v307 = vld [vmem:[%s263 + $0xa0] sm:$0xff]
      %v308 = vld [vmem:[%s263 + $0xa8] sm:$0xff]
      %v309 = vld [vmem:[%s263 + $0xb0] sm:$0xff]
      %v310 = vld [vmem:[%s263 + $0xb8] sm:$0xff]
      %v311 = vld [vmem:[%s263 + $0xc0] sm:$0xff]
      %v312 = vld [vmem:[%s263 + $0xc8] sm:$0xff]
      %v313 = vld [vmem:[%s263 + $0xd0] sm:$0xff]
      %v314 = vld [vmem:[%s263 + $0xd8] sm:$0xff]
      %v315 = vld [vmem:[%s263 + $0xe0] sm:$0xff]
      %v316 = vld [vmem:[%s263 + $0xe8] sm:$0xff]
      %v317 = vld [vmem:[%s263 + $0xf0] sm:$0xff]
      %v318 = vld [vmem:[%s263 + $0xf8] sm:$0xff]
      %v319 = vld [vmem:[%s263 + $0x100] sm:$0xff]
      %v320 = vld [vmem:[%s263 + $0x108] sm:$0xff]
      %v321 = vld [vmem:[%s263 + $0x110] sm:$0xff]
      %v322 = vld [vmem:[%s263 + $0x118] sm:$0xff]
      %v323 = vld [vmem:[%s263 + $0x120] sm:$0xff]
      %v324 = vld [vmem:[%s263 + $0x128] sm:$0xff]
      %v325 = vld [vmem:[%s263 + $0x130] sm:$0xff]
      %v326 = vld [vmem:[%s263 + $0x138] sm:$0xff]
      %v327 = vld [vmem:[%s263 + $0x140] sm:$0xff]
      %v328 = vld [vmem:[%s263 + $0x148] sm:$0xff]
      %v329 = vld [vmem:[%s263 + $0x150] sm:$0xff]
      %v330 = vld [vmem:[%s263 + $0x158] sm:$0xff]
      %v331 = vld [vmem:[%s263 + $0x160] sm:$0xff]
      %v332 = vld [vmem:[%s263 + $0x168] sm:$0xff]
      %v333 = vld [vmem:[%s263 + $0x170] sm:$0xff]
      %v334 = vld [vmem:[%s263 + $0x178] sm:$0xff]
      %v335 = vld [vmem:[%s267] sm:$0x1]
      %v337 = vlaneseq
      %v338 = vshrl.u32 %v337, 7
      %v339 = vsub.s32 0, %v338
      %v340 = vrot.slane %v335, %v339
      %v342 = vmul.f32 %v287, %v340
      %v343 = vmul.f32 %v288, %v340
      %v344 = vmul.f32 %v289, %v340
      %v345 = vmul.f32 %v290, %v340
      %v346 = vmul.f32 %v291, %v340
      %v347 = vmul.f32 %v292, %v340
      %v348 = vmul.f32 %v293, %v340
      %v349 = vmul.f32 %v294, %v340
      %v350 = vmul.f32 %v295, %v340
      %v351 = vmul.f32 %v296, %v340
      %v352 = vmul.f32 %v297, %v340
      %v353 = vmul.f32 %v298, %v340
      %v354 = vmul.f32 %v299, %v340
      %v355 = vmul.f32 %v300, %v340
      %v356 = vmul.f32 %v301, %v340
      %v357 = vmul.f32 %v302, %v340
      %v358 = vmul.f32 %v303, %v340
      %v359 = vmul.f32 %v304, %v340
      %v360 = vmul.f32 %v305, %v340
      %v361 = vmul.f32 %v306, %v340
      %v362 = vmul.f32 %v307, %v340
      %v363 = vmul.f32 %v308, %v340
      %v364 = vmul.f32 %v309, %v340
      %v365 = vmul.f32 %v310, %v340
      %v366 = vmul.f32 %v311, %v340
      %v367 = vmul.f32 %v312, %v340
      %v368 = vmul.f32 %v313, %v340
      %v369 = vmul.f32 %v314, %v340
      %v370 = vmul.f32 %v315, %v340
      %v371 = vmul.f32 %v316, %v340
      %v372 = vmul.f32 %v317, %v340
      %v373 = vmul.f32 %v318, %v340
      %v374 = vmul.f32 %v319, %v340
      %v375 = vmul.f32 %v320, %v340
      %v376 = vmul.f32 %v321, %v340
      %v377 = vmul.f32 %v322, %v340
      %v378 = vmul.f32 %v323, %v340
      %v379 = vmul.f32 %v324, %v340
      %v380 = vmul.f32 %v325, %v340
      %v381 = vmul.f32 %v326, %v340
      %v382 = vmul.f32 %v327, %v340
      %v383 = vmul.f32 %v328, %v340
      %v384 = vmul.f32 %v329, %v340
      %v385 = vmul.f32 %v330, %v340
      %v386 = vmul.f32 %v331, %v340
      %v387 = vmul.f32 %v332, %v340
      %v388 = vmul.f32 %v333, %v340
      %v389 = vmul.f32 %v334, %v340
      %v390 = vld [vmem:[%s270] sm:$0x1]
      %v392 = vlaneseq
      %v393 = vshrl.u32 %v392, 7
      %v394 = vsub.s32 0, %v393
      %v395 = vrot.slane %v390, %v394
      %v397 = vadd.f32 %v342, %v395
      %v398 = vadd.f32 %v343, %v395
      %v399 = vadd.f32 %v344, %v395
      %v400 = vadd.f32 %v345, %v395
      %v401 = vadd.f32 %v346, %v395
      %v402 = vadd.f32 %v347, %v395
      %v403 = vadd.f32 %v348, %v395
      %v404 = vadd.f32 %v349, %v395
      %v405 = vadd.f32 %v350, %v395
      %v406 = vadd.f32 %v351, %v395
      %v407 = vadd.f32 %v352, %v395
      %v408 = vadd.f32 %v353, %v395
      %v409 = vadd.f32 %v354, %v395
      %v410 = vadd.f32 %v355, %v395
      %v411 = vadd.f32 %v356, %v395
      %v412 = vadd.f32 %v357, %v395
      %v413 = vadd.f32 %v358, %v395
      %v414 = vadd.f32 %v359, %v395
      %v415 = vadd.f32 %v360, %v395
      %v416 = vadd.f32 %v361, %v395
      %v417 = vadd.f32 %v362, %v395
      %v418 = vadd.f32 %v363, %v395
      %v419 = vadd.f32 %v364, %v395
      %v420 = vadd.f32 %v365, %v395
      %v421 = vadd.f32 %v366, %v395
      %v422 = vadd.f32 %v367, %v395
      %v423 = vadd.f32 %v368, %v395
      %v424 = vadd.f32 %v369, %v395
      %v425 = vadd.f32 %v370, %v395
      %v426 = vadd.f32 %v371, %v395
      %v427 = vadd.f32 %v372, %v395
      %v428 = vadd.f32 %v373, %v395
      %v429 = vadd.f32 %v374, %v395
      %v430 = vadd.f32 %v375, %v395
      %v431 = vadd.f32 %v376, %v395
      %v432 = vadd.f32 %v377, %v395
      %v433 = vadd.f32 %v378, %v395
      %v434 = vadd.f32 %v379, %v395
      %v435 = vadd.f32 %v380, %v395
      %v436 = vadd.f32 %v381, %v395
      %v437 = vadd.f32 %v382, %v395
      %v438 = vadd.f32 %v383, %v395
      %v439 = vadd.f32 %v384, %v395
      %v440 = vadd.f32 %v385, %v395
      %v441 = vadd.f32 %v386, %v395
      %v442 = vadd.f32 %v387, %v395
      %v443 = vadd.f32 %v388, %v395
      %v444 = vadd.f32 %v389, %v395
      %v445 = vxor.u32 %v397, 2147483648
      %v446 = vxor.u32 %v398, 2147483648
      %v447 = vxor.u32 %v399, 2147483648
      %v448 = vxor.u32 %v400, 2147483648
      %v449 = vxor.u32 %v401, 2147483648
      %v450 = vxor.u32 %v402, 2147483648
      %v451 = vxor.u32 %v403, 2147483648
      %v452 = vxor.u32 %v404, 2147483648
      %v453 = vxor.u32 %v405, 2147483648
      %v454 = vxor.u32 %v406, 2147483648
      %v455 = vxor.u32 %v407, 2147483648
      %v456 = vxor.u32 %v408, 2147483648
      %v457 = vxor.u32 %v409, 2147483648
      %v458 = vxor.u32 %v410, 2147483648
      %v459 = vxor.u32 %v411, 2147483648
      %v460 = vxor.u32 %v412, 2147483648
      %v461 = vxor.u32 %v413, 2147483648
      %v462 = vxor.u32 %v414, 2147483648
      %v463 = vxor.u32 %v415, 2147483648
      %v464 = vxor.u32 %v416, 2147483648
      %v465 = vxor.u32 %v417, 2147483648
      %v466 = vxor.u32 %v418, 2147483648
      %v467 = vxor.u32 %v419, 2147483648
      %v468 = vxor.u32 %v420, 2147483648
      %v469 = vxor.u32 %v421, 2147483648
      %v470 = vxor.u32 %v422, 2147483648
      %v471 = vxor.u32 %v423, 2147483648
      %v472 = vxor.u32 %v424, 2147483648
      %v473 = vxor.u32 %v425, 2147483648
      %v474 = vxor.u32 %v426, 2147483648
      %v475 = vxor.u32 %v427, 2147483648
      %v476 = vxor.u32 %v428, 2147483648
      %v477 = vxor.u32 %v429, 2147483648
      %v478 = vxor.u32 %v430, 2147483648
      %v479 = vxor.u32 %v431, 2147483648
      %v480 = vxor.u32 %v432, 2147483648
      %v481 = vxor.u32 %v433, 2147483648
      %v482 = vxor.u32 %v434, 2147483648
      %v483 = vxor.u32 %v435, 2147483648
      %v484 = vxor.u32 %v436, 2147483648
      %v485 = vxor.u32 %v437, 2147483648
      %v486 = vxor.u32 %v438, 2147483648
      %v487 = vxor.u32 %v439, 2147483648
      %v488 = vxor.u32 %v440, 2147483648
      %v489 = vxor.u32 %v441, 2147483648
      %v490 = vxor.u32 %v442, 2147483648
      %v491 = vxor.u32 %v443, 2147483648
      %v492 = vxor.u32 %v444, 2147483648
      %v493 = vmul.f32 %v445, 1.442695
      %v494 = vpow.pop %v493
      %v495 = vmul.f32 %v446, 1.442695
      %v496 = vpow.pop %v495
      %v497 = vmul.f32 %v447, 1.442695
      %v498 = vpow.pop %v497
      %v499 = vmul.f32 %v448, 1.442695
      %v500 = vpow.pop %v499
      %v501 = vmul.f32 %v449, 1.442695
      %v502 = vpow.pop %v501
      %v503 = vmul.f32 %v450, 1.442695
      %v504 = vpow.pop %v503
      %v505 = vmul.f32 %v451, 1.442695
      %v506 = vpow.pop %v505
      %v507 = vmul.f32 %v452, 1.442695
      %v508 = vpow.pop %v507
      %v509 = vmul.f32 %v453, 1.442695
      %v510 = vpow.pop %v509
      %v511 = vmul.f32 %v454, 1.442695
      %v512 = vpow.pop %v511
      %v513 = vmul.f32 %v455, 1.442695
      %v514 = vpow.pop %v513
      %v515 = vmul.f32 %v456, 1.442695
      %v516 = vpow.pop %v515
      %v517 = vmul.f32 %v457, 1.442695
      %v518 = vpow.pop %v517
      %v519 = vmul.f32 %v458, 1.442695
      %v520 = vpow.pop %v519
      %v521 = vmul.f32 %v459, 1.442695
      %v522 = vpow.pop %v521
      %v523 = vmul.f32 %v460, 1.442695
      %v524 = vpow.pop %v523
      %v525 = vmul.f32 %v461, 1.442695
      %v526 = vpow.pop %v525
      %v527 = vmul.f32 %v462, 1.442695
      %v528 = vpow.pop %v527
      %v529 = vmul.f32 %v463, 1.442695
      %v530 = vpow.pop %v529
      %v531 = vmul.f32 %v464, 1.442695
      %v532 = vpow.pop %v531
      %v533 = vmul.f32 %v465, 1.442695
      %v534 = vpow.pop %v533
      %v535 = vmul.f32 %v466, 1.442695
      %v536 = vpow.pop %v535
      %v537 = vmul.f32 %v467, 1.442695
      %v538 = vpow.pop %v537
      %v539 = vmul.f32 %v468, 1.442695
      %v540 = vpow.pop %v539
      %v541 = vmul.f32 %v469, 1.442695
      %v542 = vpow.pop %v541
      %v543 = vmul.f32 %v470, 1.442695
      %v544 = vpow.pop %v543
      %v545 = vmul.f32 %v471, 1.442695
      %v546 = vpow.pop %v545
      %v547 = vmul.f32 %v472, 1.442695
      %v548 = vpow.pop %v547
      %v549 = vmul.f32 %v473, 1.442695
      %v550 = vpow.pop %v549
      %v551 = vmul.f32 %v474, 1.442695
      %v552 = vpow.pop %v551
      %v553 = vmul.f32 %v475, 1.442695
      %v554 = vpow.pop %v553
      %v555 = vmul.f32 %v476, 1.442695
      %v556 = vpow.pop %v555
      %v557 = vmul.f32 %v477, 1.442695
      %v558 = vpow.pop %v557
      %v559 = vmul.f32 %v478, 1.442695
      %v560 = vpow.pop %v559
      %v561 = vmul.f32 %v479, 1.442695
      %v562 = vpow.pop %v561
      %v563 = vmul.f32 %v480, 1.442695
      %v564 = vpow.pop %v563
      %v565 = vmul.f32 %v481, 1.442695
      %v566 = vpow.pop %v565
      %v567 = vmul.f32 %v482, 1.442695
      %v568 = vpow.pop %v567
      %v569 = vmul.f32 %v483, 1.442695
      %v570 = vpow.pop %v569
      %v571 = vmul.f32 %v484, 1.442695
      %v572 = vpow.pop %v571
      %v573 = vmul.f32 %v485, 1.442695
      %v574 = vpow.pop %v573
      %v575 = vmul.f32 %v486, 1.442695
      %v576 = vpow.pop %v575
      %v577 = vmul.f32 %v487, 1.442695
      %v578 = vpow.pop %v577
      %v579 = vmul.f32 %v488, 1.442695
      %v580 = vpow.pop %v579
      %v581 = vmul.f32 %v489, 1.442695
      %v582 = vpow.pop %v581
      %v583 = vmul.f32 %v490, 1.442695
      %v584 = vpow.pop %v583
      %v585 = vmul.f32 %v491, 1.442695
      %v586 = vpow.pop %v585
      %v587 = vmul.f32 %v492, 1.442695
      %v588 = vpow.pop %v587
      %v589 = vadd.f32 %v494, 1.0
      %v590 = vadd.f32 %v496, 1.0
      %v591 = vadd.f32 %v498, 1.0
      %v592 = vadd.f32 %v500, 1.0
      %v593 = vadd.f32 %v502, 1.0
      %v594 = vadd.f32 %v504, 1.0
      %v595 = vadd.f32 %v506, 1.0
      %v596 = vadd.f32 %v508, 1.0
      %v597 = vadd.f32 %v510, 1.0
      %v598 = vadd.f32 %v512, 1.0
      %v599 = vadd.f32 %v514, 1.0
      %v600 = vadd.f32 %v516, 1.0
      %v601 = vadd.f32 %v518, 1.0
      %v602 = vadd.f32 %v520, 1.0
      %v603 = vadd.f32 %v522, 1.0
      %v604 = vadd.f32 %v524, 1.0
      %v605 = vadd.f32 %v526, 1.0
      %v606 = vadd.f32 %v528, 1.0
      %v607 = vadd.f32 %v530, 1.0
      %v608 = vadd.f32 %v532, 1.0
      %v609 = vadd.f32 %v534, 1.0
      %v610 = vadd.f32 %v536, 1.0
      %v611 = vadd.f32 %v538, 1.0
      %v612 = vadd.f32 %v540, 1.0
      %v613 = vadd.f32 %v542, 1.0
      %v614 = vadd.f32 %v544, 1.0
      %v615 = vadd.f32 %v546, 1.0
      %v616 = vadd.f32 %v548, 1.0
      %v617 = vadd.f32 %v550, 1.0
      %v618 = vadd.f32 %v552, 1.0
      %v619 = vadd.f32 %v554, 1.0
      %v620 = vadd.f32 %v556, 1.0
      %v621 = vadd.f32 %v558, 1.0
      %v622 = vadd.f32 %v560, 1.0
      %v623 = vadd.f32 %v562, 1.0
      %v624 = vadd.f32 %v564, 1.0
      %v625 = vadd.f32 %v566, 1.0
      %v626 = vadd.f32 %v568, 1.0
      %v627 = vadd.f32 %v570, 1.0
      %v628 = vadd.f32 %v572, 1.0
      %v629 = vadd.f32 %v574, 1.0
      %v630 = vadd.f32 %v576, 1.0
      %v631 = vadd.f32 %v578, 1.0
      %v632 = vadd.f32 %v580, 1.0
      %v633 = vadd.f32 %v582, 1.0
      %v634 = vadd.f32 %v584, 1.0
      %v635 = vadd.f32 %v586, 1.0
      %v636 = vadd.f32 %v588, 1.0
      %v637 = vrcp.pop %v589
      %v638 = vmul.f32 1.0, %v637
      %v639 = vrcp.pop %v590
      %v640 = vmul.f32 1.0, %v639
      %v641 = vrcp.pop %v591
      %v642 = vmul.f32 1.0, %v641
      %v643 = vrcp.pop %v592
      %v644 = vmul.f32 1.0, %v643
      %v645 = vrcp.pop %v593
      %v646 = vmul.f32 1.0, %v645
      %v647 = vrcp.pop %v594
      %v648 = vmul.f32 1.0, %v647
      %v649 = vrcp.pop %v595
      %v650 = vmul.f32 1.0, %v649
      %v651 = vrcp.pop %v596
      %v652 = vmul.f32 1.0, %v651
      %v653 = vrcp.pop %v597
      %v654 = vmul.f32 1.0, %v653
      %v655 = vrcp.pop %v598
      %v656 = vmul.f32 1.0, %v655
      %v657 = vrcp.pop %v599
      %v658 = vmul.f32 1.0, %v657
      %v659 = vrcp.pop %v600
      %v660 = vmul.f32 1.0, %v659
      %v661 = vrcp.pop %v601
      %v662 = vmul.f32 1.0, %v661
      %v663 = vrcp.pop %v602
      %v664 = vmul.f32 1.0, %v663
      %v665 = vrcp.pop %v603
      %v666 = vmul.f32 1.0, %v665
      %v667 = vrcp.pop %v604
      %v668 = vmul.f32 1.0, %v667
      %v669 = vrcp.pop %v605
      %v670 = vmul.f32 1.0, %v669
      %v671 = vrcp.pop %v606
      %v672 = vmul.f32 1.0, %v671
      %v673 = vrcp.pop %v607
      %v674 = vmul.f32 1.0, %v673
      %v675 = vrcp.pop %v608
      %v676 = vmul.f32 1.0, %v675
      %v677 = vrcp.pop %v609
      %v678 = vmul.f32 1.0, %v677
      %v679 = vrcp.pop %v610
      %v680 = vmul.f32 1.0, %v679
      %v681 = vrcp.pop %v611
      %v682 = vmul.f32 1.0, %v681
      %v683 = vrcp.pop %v612
      %v684 = vmul.f32 1.0, %v683
      %v685 = vrcp.pop %v613
      %v686 = vmul.f32 1.0, %v685
      %v687 = vrcp.pop %v614
      %v688 = vmul.f32 1.0, %v687
      %v689 = vrcp.pop %v615
      %v690 = vmul.f32 1.0, %v689
      %v691 = vrcp.pop %v616
      %v692 = vmul.f32 1.0, %v691
      %v693 = vrcp.pop %v617
      %v694 = vmul.f32 1.0, %v693
      %v695 = vrcp.pop %v618
      %v696 = vmul.f32 1.0, %v695
      %v697 = vrcp.pop %v619
      %v698 = vmul.f32 1.0, %v697
      %v699 = vrcp.pop %v620
      %v700 = vmul.f32 1.0, %v699
      %v701 = vrcp.pop %v621
      %v702 = vmul.f32 1.0, %v701
      %v703 = vrcp.pop %v622
      %v704 = vmul.f32 1.0, %v703
      %v705 = vrcp.pop %v623
      %v706 = vmul.f32 1.0, %v705
      %v707 = vrcp.pop %v624
      %v708 = vmul.f32 1.0, %v707
      %v709 = vrcp.pop %v625
      %v710 = vmul.f32 1.0, %v709
      %v711 = vrcp.pop %v626
      %v712 = vmul.f32 1.0, %v711
      %v713 = vrcp.pop %v627
      %v714 = vmul.f32 1.0, %v713
      %v715 = vrcp.pop %v628
      %v716 = vmul.f32 1.0, %v715
      %v717 = vrcp.pop %v629
      %v718 = vmul.f32 1.0, %v717
      %v719 = vrcp.pop %v630
      %v720 = vmul.f32 1.0, %v719
      %v721 = vrcp.pop %v631
      %v722 = vmul.f32 1.0, %v721
      %v723 = vrcp.pop %v632
      %v724 = vmul.f32 1.0, %v723
      %v725 = vrcp.pop %v633
      %v726 = vmul.f32 1.0, %v725
      %v727 = vrcp.pop %v634
      %v728 = vmul.f32 1.0, %v727
      %v729 = vrcp.pop %v635
      %v730 = vmul.f32 1.0, %v729
      %v731 = vrcp.pop %v636
      %v732 = vmul.f32 1.0, %v731
      %v733 = vmul.f32 %v397, %v638
      %v734 = vmul.f32 %v398, %v640
      %v735 = vmul.f32 %v399, %v642
      %v736 = vmul.f32 %v400, %v644
      %v737 = vmul.f32 %v401, %v646
      %v738 = vmul.f32 %v402, %v648
      %v739 = vmul.f32 %v403, %v650
      %v740 = vmul.f32 %v404, %v652
      %v741 = vmul.f32 %v405, %v654
      %v742 = vmul.f32 %v406, %v656
      %v743 = vmul.f32 %v407, %v658
      %v744 = vmul.f32 %v408, %v660
      %v745 = vmul.f32 %v409, %v662
      %v746 = vmul.f32 %v410, %v664
      %v747 = vmul.f32 %v411, %v666
      %v748 = vmul.f32 %v412, %v668
      %v749 = vmul.f32 %v413, %v670
      %v750 = vmul.f32 %v414, %v672
      %v751 = vmul.f32 %v415, %v674
      %v752 = vmul.f32 %v416, %v676
      %v753 = vmul.f32 %v417, %v678
      %v754 = vmul.f32 %v418, %v680
      %v755 = vmul.f32 %v419, %v682
      %v756 = vmul.f32 %v420, %v684
      %v757 = vmul.f32 %v421, %v686
      %v758 = vmul.f32 %v422, %v688
      %v759 = vmul.f32 %v423, %v690
      %v760 = vmul.f32 %v424, %v692
      %v761 = vmul.f32 %v425, %v694
      %v762 = vmul.f32 %v426, %v696
      %v763 = vmul.f32 %v427, %v698
      %v764 = vmul.f32 %v428, %v700
      %v765 = vmul.f32 %v429, %v702
      %v766 = vmul.f32 %v430, %v704
      %v767 = vmul.f32 %v431, %v706
      %v768 = vmul.f32 %v432, %v708
      %v769 = vmul.f32 %v433, %v710
      %v770 = vmul.f32 %v434, %v712
      %v771 = vmul.f32 %v435, %v714
      %v772 = vmul.f32 %v436, %v716
      %v773 = vmul.f32 %v437, %v718
      %v774 = vmul.f32 %v438, %v720
      %v775 = vmul.f32 %v439, %v722
      %v776 = vmul.f32 %v440, %v724
      %v777 = vmul.f32 %v441, %v726
      %v778 = vmul.f32 %v442, %v728
      %v779 = vmul.f32 %v443, %v730
      %v780 = vmul.f32 %v444, %v732
      %v781 = vld [vmem:[%s275] sm:$0xff]
      %v782 = vld [vmem:[%s275 + $0x8] sm:$0xff]
      %v783 = vld [vmem:[%s275 + $0x10] sm:$0xff]
      %v784 = vld [vmem:[%s275 + $0x18] sm:$0xff]
      %v785 = vld [vmem:[%s275 + $0x20] sm:$0xff]
      %v786 = vld [vmem:[%s275 + $0x28] sm:$0xff]
      %v787 = vld [vmem:[%s275 + $0x30] sm:$0xff]
      %v788 = vld [vmem:[%s275 + $0x38] sm:$0xff]
      %v789 = vld [vmem:[%s275 + $0x40] sm:$0xff]
      %v790 = vld [vmem:[%s275 + $0x48] sm:$0xff]
      %v791 = vld [vmem:[%s275 + $0x50] sm:$0xff]
      %v792 = vld [vmem:[%s275 + $0x58] sm:$0xff]
      %v793 = vld [vmem:[%s275 + $0x60] sm:$0xff]
      %v794 = vld [vmem:[%s275 + $0x68] sm:$0xff]
      %v795 = vld [vmem:[%s275 + $0x70] sm:$0xff]
      %v796 = vld [vmem:[%s275 + $0x78] sm:$0xff]
      %v797 = vld [vmem:[%s275 + $0x80] sm:$0xff]
      %v798 = vld [vmem:[%s275 + $0x88] sm:$0xff]
      %v799 = vld [vmem:[%s275 + $0x90] sm:$0xff]
      %v800 = vld [vmem:[%s275 + $0x98] sm:$0xff]
      %v801 = vld [vmem:[%s275 + $0xa0] sm:$0xff]
      %v802 = vld [vmem:[%s275 + $0xa8] sm:$0xff]
      %v803 = vld [vmem:[%s275 + $0xb0] sm:$0xff]
      %v804 = vld [vmem:[%s275 + $0xb8] sm:$0xff]
      %v805 = vld [vmem:[%s275 + $0xc0] sm:$0xff]
      %v806 = vld [vmem:[%s275 + $0xc8] sm:$0xff]
      %v807 = vld [vmem:[%s275 + $0xd0] sm:$0xff]
      %v808 = vld [vmem:[%s275 + $0xd8] sm:$0xff]
      %v809 = vld [vmem:[%s275 + $0xe0] sm:$0xff]
      %v810 = vld [vmem:[%s275 + $0xe8] sm:$0xff]
      %v811 = vld [vmem:[%s275 + $0xf0] sm:$0xff]
      %v812 = vld [vmem:[%s275 + $0xf8] sm:$0xff]
      %v813 = vld [vmem:[%s275 + $0x100] sm:$0xff]
      %v814 = vld [vmem:[%s275 + $0x108] sm:$0xff]
      %v815 = vld [vmem:[%s275 + $0x110] sm:$0xff]
      %v816 = vld [vmem:[%s275 + $0x118] sm:$0xff]
      %v817 = vld [vmem:[%s275 + $0x120] sm:$0xff]
      %v818 = vld [vmem:[%s275 + $0x128] sm:$0xff]
      %v819 = vld [vmem:[%s275 + $0x130] sm:$0xff]
      %v820 = vld [vmem:[%s275 + $0x138] sm:$0xff]
      %v821 = vld [vmem:[%s275 + $0x140] sm:$0xff]
      %v822 = vld [vmem:[%s275 + $0x148] sm:$0xff]
      %v823 = vld [vmem:[%s275 + $0x150] sm:$0xff]
      %v824 = vld [vmem:[%s275 + $0x158] sm:$0xff]
      %v825 = vld [vmem:[%s275 + $0x160] sm:$0xff]
      %v826 = vld [vmem:[%s275 + $0x168] sm:$0xff]
      %v827 = vld [vmem:[%s275 + $0x170] sm:$0xff]
      %v828 = vld [vmem:[%s275 + $0x178] sm:$0xff]
      %vm829 = vcmp.gt.f32.partialorder %v781, 0.0
      %vm830 = vcmp.gt.f32.partialorder %v782, 0.0
      %vm831 = vcmp.gt.f32.partialorder %v783, 0.0
      %vm832 = vcmp.gt.f32.partialorder %v784, 0.0
      %vm833 = vcmp.gt.f32.partialorder %v785, 0.0
      %vm834 = vcmp.gt.f32.partialorder %v786, 0.0
      %vm835 = vcmp.gt.f32.partialorder %v787, 0.0
      %vm836 = vcmp.gt.f32.partialorder %v788, 0.0
      %vm837 = vcmp.gt.f32.partialorder %v789, 0.0
      %vm838 = vcmp.gt.f32.partialorder %v790, 0.0
      %vm839 = vcmp.gt.f32.partialorder %v791, 0.0
      %vm840 = vcmp.gt.f32.partialorder %v792, 0.0
      %vm841 = vcmp.gt.f32.partialorder %v793, 0.0
      %vm842 = vcmp.gt.f32.partialorder %v794, 0.0
      %vm843 = vcmp.gt.f32.partialorder %v795, 0.0
      %vm844 = vcmp.gt.f32.partialorder %v796, 0.0
      %vm845 = vcmp.gt.f32.partialorder %v797, 0.0
      %vm846 = vcmp.gt.f32.partialorder %v798, 0.0
      %vm847 = vcmp.gt.f32.partialorder %v799, 0.0
      %vm848 = vcmp.gt.f32.partialorder %v800, 0.0
      %vm849 = vcmp.gt.f32.partialorder %v801, 0.0
      %vm850 = vcmp.gt.f32.partialorder %v802, 0.0
      %vm851 = vcmp.gt.f32.partialorder %v803, 0.0
      %vm852 = vcmp.gt.f32.partialorder %v804, 0.0
      %vm853 = vcmp.gt.f32.partialorder %v805, 0.0
      %vm854 = vcmp.gt.f32.partialorder %v806, 0.0
      %vm855 = vcmp.gt.f32.partialorder %v807, 0.0
      %vm856 = vcmp.gt.f32.partialorder %v808, 0.0
      %vm857 = vcmp.gt.f32.partialorder %v809, 0.0
      %vm858 = vcmp.gt.f32.partialorder %v810, 0.0
      %vm859 = vcmp.gt.f32.partialorder %v811, 0.0
      %vm860 = vcmp.gt.f32.partialorder %v812, 0.0
      %vm861 = vcmp.gt.f32.partialorder %v813, 0.0
      %vm862 = vcmp.gt.f32.partialorder %v814, 0.0
      %vm863 = vcmp.gt.f32.partialorder %v815, 0.0
      %vm864 = vcmp.gt.f32.partialorder %v816, 0.0
      %vm865 = vcmp.gt.f32.partialorder %v817, 0.0
      %vm866 = vcmp.gt.f32.partialorder %v818, 0.0
      %vm867 = vcmp.gt.f32.partialorder %v819, 0.0
      %vm868 = vcmp.gt.f32.partialorder %v820, 0.0
      %vm869 = vcmp.gt.f32.partialorder %v821, 0.0
      %vm870 = vcmp.gt.f32.partialorder %v822, 0.0
      %vm871 = vcmp.gt.f32.partialorder %v823, 0.0
      %vm872 = vcmp.gt.f32.partialorder %v824, 0.0
      %vm873 = vcmp.gt.f32.partialorder %v825, 0.0
      %vm874 = vcmp.gt.f32.partialorder %v826, 0.0
      %vm875 = vcmp.gt.f32.partialorder %v827, 0.0
      %vm876 = vcmp.gt.f32.partialorder %v828, 0.0
      %v877 = vsel %vm829, 1, 0
      %v878 = vsel %vm830, 1, 0
      %v879 = vsel %vm831, 1, 0
      %v880 = vsel %vm832, 1, 0
      %v881 = vsel %vm833, 1, 0
      %v882 = vsel %vm834, 1, 0
      %v883 = vsel %vm835, 1, 0
      %v884 = vsel %vm836, 1, 0
      %v885 = vsel %vm837, 1, 0
      %v886 = vsel %vm838, 1, 0
      %v887 = vsel %vm839, 1, 0
      %v888 = vsel %vm840, 1, 0
      %v889 = vsel %vm841, 1, 0
      %v890 = vsel %vm842, 1, 0
      %v891 = vsel %vm843, 1, 0
      %v892 = vsel %vm844, 1, 0
      %v893 = vsel %vm845, 1, 0
      %v894 = vsel %vm846, 1, 0
      %v895 = vsel %vm847, 1, 0
      %v896 = vsel %vm848, 1, 0
      %v897 = vsel %vm849, 1, 0
      %v898 = vsel %vm850, 1, 0
      %v899 = vsel %vm851, 1, 0
      %v900 = vsel %vm852, 1, 0
      %v901 = vsel %vm853, 1, 0
      %v902 = vsel %vm854, 1, 0
      %v903 = vsel %vm855, 1, 0
      %v904 = vsel %vm856, 1, 0
      %v905 = vsel %vm857, 1, 0
      %v906 = vsel %vm858, 1, 0
      %v907 = vsel %vm859, 1, 0
      %v908 = vsel %vm860, 1, 0
      %v909 = vsel %vm861, 1, 0
      %v910 = vsel %vm862, 1, 0
      %v911 = vsel %vm863, 1, 0
      %v912 = vsel %vm864, 1, 0
      %v913 = vsel %vm865, 1, 0
      %v914 = vsel %vm866, 1, 0
      %v915 = vsel %vm867, 1, 0
      %v916 = vsel %vm868, 1, 0
      %v917 = vsel %vm869, 1, 0
      %v918 = vsel %vm870, 1, 0
      %v919 = vsel %vm871, 1, 0
      %v920 = vsel %vm872, 1, 0
      %v921 = vsel %vm873, 1, 0
      %v922 = vsel %vm874, 1, 0
      %v923 = vsel %vm875, 1, 0
      %v924 = vsel %vm876, 1, 0
      %925 = vset.pattern.permute.xlu0 0
      %926 = vperm.xlu0 %925, %v877
      %v927 = vpop.permute.xlu0 %926
      %928 = vset.pattern.permute.xlu0 0
      %929 = vperm.xlu0 %928, %v878
      %v930 = vpop.permute.xlu0 %929
      %931 = vset.pattern.permute.xlu0 0
      %932 = vperm.xlu0 %931, %v879
      %v933 = vpop.permute.xlu0 %932
      %934 = vset.pattern.permute.xlu0 0
      %935 = vperm.xlu0 %934, %v880
      %v936 = vpop.permute.xlu0 %935
      %937 = vset.pattern.permute.xlu0 0
      %938 = vperm.xlu0 %937, %v881
      %v939 = vpop.permute.xlu0 %938
      %940 = vset.pattern.permute.xlu0 0
      %941 = vperm.xlu0 %940, %v882
      %v942 = vpop.permute.xlu0 %941
      %943 = vset.pattern.permute.xlu0 0
      %944 = vperm.xlu0 %943, %v883
      %v945 = vpop.permute.xlu0 %944
      %946 = vset.pattern.permute.xlu0 0
      %947 = vperm.xlu0 %946, %v884
      %v948 = vpop.permute.xlu0 %947
      %949 = vset.pattern.permute.xlu0 0
      %950 = vperm.xlu0 %949, %v885
      %v951 = vpop.permute.xlu0 %950
      %952 = vset.pattern.permute.xlu0 0
      %953 = vperm.xlu0 %952, %v886
      %v954 = vpop.permute.xlu0 %953
      %955 = vset.pattern.permute.xlu0 0
      %956 = vperm.xlu0 %955, %v887
      %v957 = vpop.permute.xlu0 %956
      %958 = vset.pattern.permute.xlu0 0
      %959 = vperm.xlu0 %958, %v888
      %v960 = vpop.permute.xlu0 %959
      %961 = vset.pattern.permute.xlu0 0
      %962 = vperm.xlu0 %961, %v889
      %v963 = vpop.permute.xlu0 %962
      %964 = vset.pattern.permute.xlu0 0
      %965 = vperm.xlu0 %964, %v890
      %v966 = vpop.permute.xlu0 %965
      %967 = vset.pattern.permute.xlu0 0
      %968 = vperm.xlu0 %967, %v891
      %v969 = vpop.permute.xlu0 %968
      %970 = vset.pattern.permute.xlu0 0
      %971 = vperm.xlu0 %970, %v892
      %v972 = vpop.permute.xlu0 %971
      %973 = vset.pattern.permute.xlu0 0
      %974 = vperm.xlu0 %973, %v893
      %v975 = vpop.permute.xlu0 %974
      %976 = vset.pattern.permute.xlu0 0
      %977 = vperm.xlu0 %976, %v894
      %v978 = vpop.permute.xlu0 %977
      %979 = vset.pattern.permute.xlu0 0
      %980 = vperm.xlu0 %979, %v895
      %v981 = vpop.permute.xlu0 %980
      %982 = vset.pattern.permute.xlu0 0
      %983 = vperm.xlu0 %982, %v896
      %v984 = vpop.permute.xlu0 %983
      %985 = vset.pattern.permute.xlu0 0
      %986 = vperm.xlu0 %985, %v897
      %v987 = vpop.permute.xlu0 %986
      %988 = vset.pattern.permute.xlu0 0
      %989 = vperm.xlu0 %988, %v898
      %v990 = vpop.permute.xlu0 %989
      %991 = vset.pattern.permute.xlu0 0
      %992 = vperm.xlu0 %991, %v899
      %v993 = vpop.permute.xlu0 %992
      %994 = vset.pattern.permute.xlu0 0
      %995 = vperm.xlu0 %994, %v900
      %v996 = vpop.permute.xlu0 %995
      %997 = vset.pattern.permute.xlu0 0
      %998 = vperm.xlu0 %997, %v901
      %v999 = vpop.permute.xlu0 %998
      %1000 = vset.pattern.permute.xlu0 0
      %1001 = vperm.xlu0 %1000, %v902
      %v1002 = vpop.permute.xlu0 %1001
      %1003 = vset.pattern.permute.xlu0 0
      %1004 = vperm.xlu0 %1003, %v903
      %v1005 = vpop.permute.xlu0 %1004
      %1006 = vset.pattern.permute.xlu0 0
      %1007 = vperm.xlu0 %1006, %v904
      %v1008 = vpop.permute.xlu0 %1007
      %1009 = vset.pattern.permute.xlu0 0
      %1010 = vperm.xlu0 %1009, %v905
      %v1011 = vpop.permute.xlu0 %1010
      %1012 = vset.pattern.permute.xlu0 0
      %1013 = vperm.xlu0 %1012, %v906
      %v1014 = vpop.permute.xlu0 %1013
      %1015 = vset.pattern.permute.xlu0 0
      %1016 = vperm.xlu0 %1015, %v907
      %v1017 = vpop.permute.xlu0 %1016
      %1018 = vset.pattern.permute.xlu0 0
      %1019 = vperm.xlu0 %1018, %v908
      %v1020 = vpop.permute.xlu0 %1019
      %1021 = vset.pattern.permute.xlu0 0
      %1022 = vperm.xlu0 %1021, %v909
      %v1023 = vpop.permute.xlu0 %1022
      %1024 = vset.pattern.permute.xlu0 0
      %1025 = vperm.xlu0 %1024, %v910
      %v1026 = vpop.permute.xlu0 %1025
      %1027 = vset.pattern.permute.xlu0 0
      %1028 = vperm.xlu0 %1027, %v911
      %v1029 = vpop.permute.xlu0 %1028
      %1030 = vset.pattern.permute.xlu0 0
      %1031 = vperm.xlu0 %1030, %v912
      %v1032 = vpop.permute.xlu0 %1031
      %1033 = vset.pattern.permute.xlu0 0
      %1034 = vperm.xlu0 %1033, %v913
      %v1035 = vpop.permute.xlu0 %1034
      %1036 = vset.pattern.permute.xlu0 0
      %1037 = vperm.xlu0 %1036, %v914
      %v1038 = vpop.permute.xlu0 %1037
      %1039 = vset.pattern.permute.xlu0 0
      %1040 = vperm.xlu0 %1039, %v915
      %v1041 = vpop.permute.xlu0 %1040
      %1042 = vset.pattern.permute.xlu0 0
      %1043 = vperm.xlu0 %1042, %v916
      %v1044 = vpop.permute.xlu0 %1043
      %1045 = vset.pattern.permute.xlu0 0
      %1046 = vperm.xlu0 %1045, %v917
      %v1047 = vpop.permute.xlu0 %1046
      %1048 = vset.pattern.permute.xlu0 0
      %1049 = vperm.xlu0 %1048, %v918
      %v1050 = vpop.permute.xlu0 %1049
      %1051 = vset.pattern.permute.xlu0 0
      %1052 = vperm.xlu0 %1051, %v919
      %v1053 = vpop.permute.xlu0 %1052
      %1054 = vset.pattern.permute.xlu0 0
      %1055 = vperm.xlu0 %1054, %v920
      %v1056 = vpop.permute.xlu0 %1055
      %1057 = vset.pattern.permute.xlu0 0
      %1058 = vperm.xlu0 %1057, %v921
      %v1059 = vpop.permute.xlu0 %1058
      %1060 = vset.pattern.permute.xlu0 0
      %1061 = vperm.xlu0 %1060, %v922
      %v1062 = vpop.permute.xlu0 %1061
      %1063 = vset.pattern.permute.xlu0 0
      %1064 = vperm.xlu0 %1063, %v923
      %v1065 = vpop.permute.xlu0 %1064
      %1066 = vset.pattern.permute.xlu0 0
      %1067 = vperm.xlu0 %1066, %v924
      %v1068 = vpop.permute.xlu0 %1067
      %vm1069 = vcmp.eq.s32.totalorder %v927, 1
      %vm1070 = vcmp.eq.s32.totalorder %v930, 1
      %vm1071 = vcmp.eq.s32.totalorder %v933, 1
      %vm1072 = vcmp.eq.s32.totalorder %v936, 1
      %vm1073 = vcmp.eq.s32.totalorder %v939, 1
      %vm1074 = vcmp.eq.s32.totalorder %v942, 1
      %vm1075 = vcmp.eq.s32.totalorder %v945, 1
      %vm1076 = vcmp.eq.s32.totalorder %v948, 1
      %vm1077 = vcmp.eq.s32.totalorder %v951, 1
      %vm1078 = vcmp.eq.s32.totalorder %v954, 1
      %vm1079 = vcmp.eq.s32.totalorder %v957, 1
      %vm1080 = vcmp.eq.s32.totalorder %v960, 1
      %vm1081 = vcmp.eq.s32.totalorder %v963, 1
      %vm1082 = vcmp.eq.s32.totalorder %v966, 1
      %vm1083 = vcmp.eq.s32.totalorder %v969, 1
      %vm1084 = vcmp.eq.s32.totalorder %v972, 1
      %vm1085 = vcmp.eq.s32.totalorder %v975, 1
      %vm1086 = vcmp.eq.s32.totalorder %v978, 1
      %vm1087 = vcmp.eq.s32.totalorder %v981, 1
      %vm1088 = vcmp.eq.s32.totalorder %v984, 1
      %vm1089 = vcmp.eq.s32.totalorder %v987, 1
      %vm1090 = vcmp.eq.s32.totalorder %v990, 1
      %vm1091 = vcmp.eq.s32.totalorder %v993, 1
      %vm1092 = vcmp.eq.s32.totalorder %v996, 1
      %vm1093 = vcmp.eq.s32.totalorder %v999, 1
      %vm1094 = vcmp.eq.s32.totalorder %v1002, 1
      %vm1095 = vcmp.eq.s32.totalorder %v1005, 1
      %vm1096 = vcmp.eq.s32.totalorder %v1008, 1
      %vm1097 = vcmp.eq.s32.totalorder %v1011, 1
      %vm1098 = vcmp.eq.s32.totalorder %v1014, 1
      %vm1099 = vcmp.eq.s32.totalorder %v1017, 1
      %vm1100 = vcmp.eq.s32.totalorder %v1020, 1
      %vm1101 = vcmp.eq.s32.totalorder %v1023, 1
      %vm1102 = vcmp.eq.s32.totalorder %v1026, 1
      %vm1103 = vcmp.eq.s32.totalorder %v1029, 1
      %vm1104 = vcmp.eq.s32.totalorder %v1032, 1
      %vm1105 = vcmp.eq.s32.totalorder %v1035, 1
      %vm1106 = vcmp.eq.s32.totalorder %v1038, 1
      %vm1107 = vcmp.eq.s32.totalorder %v1041, 1
      %vm1108 = vcmp.eq.s32.totalorder %v1044, 1
      %vm1109 = vcmp.eq.s32.totalorder %v1047, 1
      %vm1110 = vcmp.eq.s32.totalorder %v1050, 1
      %vm1111 = vcmp.eq.s32.totalorder %v1053, 1
      %vm1112 = vcmp.eq.s32.totalorder %v1056, 1
      %vm1113 = vcmp.eq.s32.totalorder %v1059, 1
      %vm1114 = vcmp.eq.s32.totalorder %v1062, 1
      %vm1115 = vcmp.eq.s32.totalorder %v1065, 1
      %vm1116 = vcmp.eq.s32.totalorder %v1068, 1
      %v1117 = vsel %vm1069, %v733, 0.0
      %v1118 = vsel %vm1070, %v734, 0.0
      %v1119 = vsel %vm1071, %v735, 0.0
      %v1120 = vsel %vm1072, %v736, 0.0
      %v1121 = vsel %vm1073, %v737, 0.0
      %v1122 = vsel %vm1074, %v738, 0.0
      %v1123 = vsel %vm1075, %v739, 0.0
      %v1124 = vsel %vm1076, %v740, 0.0
      %v1125 = vsel %vm1077, %v741, 0.0
      %v1126 = vsel %vm1078, %v742, 0.0
      %v1127 = vsel %vm1079, %v743, 0.0
      %v1128 = vsel %vm1080, %v744, 0.0
      %v1129 = vsel %vm1081, %v745, 0.0
      %v1130 = vsel %vm1082, %v746, 0.0
      %v1131 = vsel %vm1083, %v747, 0.0
      %v1132 = vsel %vm1084, %v748, 0.0
      %v1133 = vsel %vm1085, %v749, 0.0
      %v1134 = vsel %vm1086, %v750, 0.0
      %v1135 = vsel %vm1087, %v751, 0.0
      %v1136 = vsel %vm1088, %v752, 0.0
      %v1137 = vsel %vm1089, %v753, 0.0
      %v1138 = vsel %vm1090, %v754, 0.0
      %v1139 = vsel %vm1091, %v755, 0.0
      %v1140 = vsel %vm1092, %v756, 0.0
      %v1141 = vsel %vm1093, %v757, 0.0
      %v1142 = vsel %vm1094, %v758, 0.0
      %v1143 = vsel %vm1095, %v759, 0.0
      %v1144 = vsel %vm1096, %v760, 0.0
      %v1145 = vsel %vm1097, %v761, 0.0
      %v1146 = vsel %vm1098, %v762, 0.0
      %v1147 = vsel %vm1099, %v763, 0.0
      %v1148 = vsel %vm1100, %v764, 0.0
      %v1149 = vsel %vm1101, %v765, 0.0
      %v1150 = vsel %vm1102, %v766, 0.0
      %v1151 = vsel %vm1103, %v767, 0.0
      %v1152 = vsel %vm1104, %v768, 0.0
      %v1153 = vsel %vm1105, %v769, 0.0
      %v1154 = vsel %vm1106, %v770, 0.0
      %v1155 = vsel %vm1107, %v771, 0.0
      %v1156 = vsel %vm1108, %v772, 0.0
      %v1157 = vsel %vm1109, %v773, 0.0
      %v1158 = vsel %vm1110, %v774, 0.0
      %v1159 = vsel %vm1111, %v775, 0.0
      %v1160 = vsel %vm1112, %v776, 0.0
      %v1161 = vsel %vm1113, %v777, 0.0
      %v1162 = vsel %vm1114, %v778, 0.0
      %v1163 = vsel %vm1115, %v779, 0.0
      %v1164 = vsel %vm1116, %v780, 0.0
      %v1165 = vpack.c.bf16 %v1118, %v1117
      %v1166 = vpack.c.bf16 %v1120, %v1119
      %v1167 = vpack.c.bf16 %v1122, %v1121
      %v1168 = vpack.c.bf16 %v1124, %v1123
      %v1169 = vpack.c.bf16 %v1126, %v1125
      %v1170 = vpack.c.bf16 %v1128, %v1127
      %v1171 = vpack.c.bf16 %v1130, %v1129
      %v1172 = vpack.c.bf16 %v1132, %v1131
      %v1173 = vpack.c.bf16 %v1134, %v1133
      %v1174 = vpack.c.bf16 %v1136, %v1135
      %v1175 = vpack.c.bf16 %v1138, %v1137
      %v1176 = vpack.c.bf16 %v1140, %v1139
      %v1177 = vpack.c.bf16 %v1142, %v1141
      %v1178 = vpack.c.bf16 %v1144, %v1143
      %v1179 = vpack.c.bf16 %v1146, %v1145
      %v1180 = vpack.c.bf16 %v1148, %v1147
      %v1181 = vpack.c.bf16 %v1150, %v1149
      %v1182 = vpack.c.bf16 %v1152, %v1151
      %v1183 = vpack.c.bf16 %v1154, %v1153
      %v1184 = vpack.c.bf16 %v1156, %v1155
      %v1185 = vpack.c.bf16 %v1158, %v1157
      %v1186 = vpack.c.bf16 %v1160, %v1159
      %v1187 = vpack.c.bf16 %v1162, %v1161
      %v1188 = vpack.c.bf16 %v1164, %v1163
      %v1213 = vunpack.c.l.b16 %v1165
      %v1214 = vunpack.c.h.b16 %v1165
      %v1215 = vunpack.c.l.b16 %v1166
      %v1216 = vunpack.c.h.b16 %v1166
      %v1217 = vunpack.c.l.b16 %v1167
      %v1218 = vunpack.c.h.b16 %v1167
      %v1219 = vunpack.c.l.b16 %v1168
      %v1220 = vunpack.c.h.b16 %v1168
      %v1221 = vunpack.c.l.b16 %v1169
      %v1222 = vunpack.c.h.b16 %v1169
      %v1223 = vunpack.c.l.b16 %v1170
      %v1224 = vunpack.c.h.b16 %v1170
      %v1225 = vunpack.c.l.b16 %v1171
      %v1226 = vunpack.c.h.b16 %v1171
      %v1227 = vunpack.c.l.b16 %v1172
      %v1228 = vunpack.c.h.b16 %v1172
      %v1229 = vunpack.c.l.b16 %v1173
      %v1230 = vunpack.c.h.b16 %v1173
      %v1231 = vunpack.c.l.b16 %v1174
      %v1232 = vunpack.c.h.b16 %v1174
      %v1233 = vunpack.c.l.b16 %v1175
      %v1234 = vunpack.c.h.b16 %v1175
      %v1235 = vunpack.c.l.b16 %v1176
      %v1236 = vunpack.c.h.b16 %v1176
      %v1237 = vunpack.c.l.b16 %v1177
      %v1238 = vunpack.c.h.b16 %v1177
      %v1239 = vunpack.c.l.b16 %v1178
      %v1240 = vunpack.c.h.b16 %v1178
      %v1241 = vunpack.c.l.b16 %v1179
      %v1242 = vunpack.c.h.b16 %v1179
      %v1243 = vunpack.c.l.b16 %v1180
      %v1244 = vunpack.c.h.b16 %v1180
      %v1245 = vunpack.c.l.b16 %v1181
      %v1246 = vunpack.c.h.b16 %v1181
      %v1247 = vunpack.c.l.b16 %v1182
      %v1248 = vunpack.c.h.b16 %v1182
      %v1249 = vunpack.c.l.b16 %v1183
      %v1250 = vunpack.c.h.b16 %v1183
      %v1251 = vunpack.c.l.b16 %v1184
      %v1252 = vunpack.c.h.b16 %v1184
      %v1253 = vunpack.c.l.b16 %v1185
      %v1254 = vunpack.c.h.b16 %v1185
      %v1255 = vunpack.c.l.b16 %v1186
      %v1256 = vunpack.c.h.b16 %v1186
      %v1257 = vunpack.c.l.b16 %v1187
      %v1258 = vunpack.c.h.b16 %v1187
      %v1259 = vunpack.c.l.b16 %v1188
      %v1260 = vunpack.c.h.b16 %v1188
      %v1261 = vpack.c.b16 %v1213, %v1213
      %v1262 = vpack.c.b16 %v1214, %v1214
      %v1263 = vpack.c.b16 %v1215, %v1215
      %v1264 = vpack.c.b16 %v1216, %v1216
      %v1265 = vpack.c.b16 %v1217, %v1217
      %v1266 = vpack.c.b16 %v1218, %v1218
      %v1267 = vpack.c.b16 %v1219, %v1219
      %v1268 = vpack.c.b16 %v1220, %v1220
      %v1269 = vpack.c.b16 %v1221, %v1221
      %v1270 = vpack.c.b16 %v1222, %v1222
      %v1271 = vpack.c.b16 %v1223, %v1223
      %v1272 = vpack.c.b16 %v1224, %v1224
      %v1273 = vpack.c.b16 %v1225, %v1225
      %v1274 = vpack.c.b16 %v1226, %v1226
      %v1275 = vpack.c.b16 %v1227, %v1227
      %v1276 = vpack.c.b16 %v1228, %v1228
      %v1277 = vpack.c.b16 %v1229, %v1229
      %v1278 = vpack.c.b16 %v1230, %v1230
      %v1279 = vpack.c.b16 %v1231, %v1231
      %v1280 = vpack.c.b16 %v1232, %v1232
      %v1281 = vpack.c.b16 %v1233, %v1233
      %v1282 = vpack.c.b16 %v1234, %v1234
      %v1283 = vpack.c.b16 %v1235, %v1235
      %v1284 = vpack.c.b16 %v1236, %v1236
      %v1285 = vpack.c.b16 %v1237, %v1237
      %v1286 = vpack.c.b16 %v1238, %v1238
      %v1287 = vpack.c.b16 %v1239, %v1239
      %v1288 = vpack.c.b16 %v1240, %v1240
      %v1289 = vpack.c.b16 %v1241, %v1241
      %v1290 = vpack.c.b16 %v1242, %v1242
      %v1291 = vpack.c.b16 %v1243, %v1243
      %v1292 = vpack.c.b16 %v1244, %v1244
      %v1293 = vpack.c.b16 %v1245, %v1245
      %v1294 = vpack.c.b16 %v1246, %v1246
      %v1295 = vpack.c.b16 %v1247, %v1247
      %v1296 = vpack.c.b16 %v1248, %v1248
      %v1297 = vpack.c.b16 %v1249, %v1249
      %v1298 = vpack.c.b16 %v1250, %v1250
      %v1299 = vpack.c.b16 %v1251, %v1251
      %v1300 = vpack.c.b16 %v1252, %v1252
      %v1301 = vpack.c.b16 %v1253, %v1253
      %v1302 = vpack.c.b16 %v1254, %v1254
      %v1303 = vpack.c.b16 %v1255, %v1255
      %v1304 = vpack.c.b16 %v1256, %v1256
      %v1305 = vpack.c.b16 %v1257, %v1257
      %v1306 = vpack.c.b16 %v1258, %v1258
      %v1307 = vpack.c.b16 %v1259, %v1259
      %v1308 = vpack.c.b16 %v1260, %v1260
      %vm1357 = vcmask 125952
      %1358 = vst.msk [vmem:[%s285] sm:$0xf] %vm1357, %v1261
      %1359 = vst.msk [vmem:[%s285 + $0x4] sm:$0xf] %vm1357, %v1262
      %1360 = vst.msk [vmem:[%s285 + $0x8] sm:$0xf] %vm1357, %v1263
      %1361 = vst.msk [vmem:[%s285 + $0xc] sm:$0xf] %vm1357, %v1264
      %1362 = vst.msk [vmem:[%s285 + $0x10] sm:$0xf] %vm1357, %v1265
      %1363 = vst.msk [vmem:[%s285 + $0x14] sm:$0xf] %vm1357, %v1266
      %1364 = vst.msk [vmem:[%s285 + $0x18] sm:$0xf] %vm1357, %v1267
      %1365 = vst.msk [vmem:[%s285 + $0x1c] sm:$0xf] %vm1357, %v1268
      %1366 = vst.msk [vmem:[%s285 + $0x20] sm:$0xf] %vm1357, %v1269
      %1367 = vst.msk [vmem:[%s285 + $0x24] sm:$0xf] %vm1357, %v1270
      %1368 = vst.msk [vmem:[%s285 + $0x28] sm:$0xf] %vm1357, %v1271
      %1369 = vst.msk [vmem:[%s285 + $0x2c] sm:$0xf] %vm1357, %v1272
      %1370 = vst.msk [vmem:[%s285 + $0x30] sm:$0xf] %vm1357, %v1273
      %1371 = vst.msk [vmem:[%s285 + $0x34] sm:$0xf] %vm1357, %v1274
      %1372 = vst.msk [vmem:[%s285 + $0x38] sm:$0xf] %vm1357, %v1275
      %1373 = vst.msk [vmem:[%s285 + $0x3c] sm:$0xf] %vm1357, %v1276
      %1374 = vst.msk [vmem:[%s285 + $0x40] sm:$0xf] %vm1357, %v1277
      %1375 = vst.msk [vmem:[%s285 + $0x44] sm:$0xf] %vm1357, %v1278
      %1376 = vst.msk [vmem:[%s285 + $0x48] sm:$0xf] %vm1357, %v1279
      %1377 = vst.msk [vmem:[%s285 + $0x4c] sm:$0xf] %vm1357, %v1280
      %1378 = vst.msk [vmem:[%s285 + $0x50] sm:$0xf] %vm1357, %v1281
      %1379 = vst.msk [vmem:[%s285 + $0x54] sm:$0xf] %vm1357, %v1282
      %1380 = vst.msk [vmem:[%s285 + $0x58] sm:$0xf] %vm1357, %v1283
      %1381 = vst.msk [vmem:[%s285 + $0x5c] sm:$0xf] %vm1357, %v1284
      %1382 = vst.msk [vmem:[%s285 + $0x60] sm:$0xf] %vm1357, %v1285
      %1383 = vst.msk [vmem:[%s285 + $0x64] sm:$0xf] %vm1357, %v1286
      %1384 = vst.msk [vmem:[%s285 + $0x68] sm:$0xf] %vm1357, %v1287
      %1385 = vst.msk [vmem:[%s285 + $0x6c] sm:$0xf] %vm1357, %v1288
      %1386 = vst.msk [vmem:[%s285 + $0x70] sm:$0xf] %vm1357, %v1289
      %1387 = vst.msk [vmem:[%s285 + $0x74] sm:$0xf] %vm1357, %v1290
      %1388 = vst.msk [vmem:[%s285 + $0x78] sm:$0xf] %vm1357, %v1291
      %1389 = vst.msk [vmem:[%s285 + $0x7c] sm:$0xf] %vm1357, %v1292
      %1390 = vst.msk [vmem:[%s285 + $0x80] sm:$0xf] %vm1357, %v1293
      %1391 = vst.msk [vmem:[%s285 + $0x84] sm:$0xf] %vm1357, %v1294
      %1392 = vst.msk [vmem:[%s285 + $0x88] sm:$0xf] %vm1357, %v1295
      %1393 = vst.msk [vmem:[%s285 + $0x8c] sm:$0xf] %vm1357, %v1296
      %1394 = vst.msk [vmem:[%s285 + $0x90] sm:$0xf] %vm1357, %v1297
      %1395 = vst.msk [vmem:[%s285 + $0x94] sm:$0xf] %vm1357, %v1298
      %1396 = vst.msk [vmem:[%s285 + $0x98] sm:$0xf] %vm1357, %v1299
      %1397 = vst.msk [vmem:[%s285 + $0x9c] sm:$0xf] %vm1357, %v1300
      %1398 = vst.msk [vmem:[%s285 + $0xa0] sm:$0xf] %vm1357, %v1301
      %1399 = vst.msk [vmem:[%s285 + $0xa4] sm:$0xf] %vm1357, %v1302
      %1400 = vst.msk [vmem:[%s285 + $0xa8] sm:$0xf] %vm1357, %v1303
      %1401 = vst.msk [vmem:[%s285 + $0xac] sm:$0xf] %vm1357, %v1304
      %1402 = vst.msk [vmem:[%s285 + $0xb0] sm:$0xf] %vm1357, %v1305
      %1403 = vst.msk [vmem:[%s285 + $0xb4] sm:$0xf] %vm1357, %v1306
      %1404 = vst.msk [vmem:[%s285 + $0xb8] sm:$0xf] %vm1357, %v1307
      %1405 = vst.msk [vmem:[%s285 + $0xbc] sm:$0xf] %vm1357, %v1308
      %s1406 = smul.u32 48, %s20
      %p1407 = scmp.lt.s32.totalorder %s19, 1
      %s1408 = scalar_select %p1407, %s19, 1
      %p1409 = scmp.lt.s32.totalorder %s1406, 47
      %s1410 = scalar_select %p1409, %s1406, 47
      %s1411 = smul.addr %s1408, 48
      %s1412 = sadd.s32 %s1410, %s1411
      %s1413 = smul.addr %s1412, 4
      %s1414 = scalar_lea.vmem %s4, %s1413
      // Predicated region
      $region37: #{resnet_block_forward.7} parent=35 // pred_check
        %p1415 = pneg %p153
      $region38: #{resnet_block_forward.7} parent=35 // pred_check_branch
        %1417 = sbr.rel (%p1415) target = $region40
      $region39: #{resnet_block_forward.7} parent=35 // pred_region
        %s1418 = smul.u32 48, %s20
      $region40: #{resnet_block_forward.7} parent=35 // pred_fallthru
        _
    $region36: #{resnet_block_forward.7} parent=5 // pred_fallthru
      _
    %p1419 = scmp.le.s32.totalorder 2, %s10
    // Predicated region
    $region41: #{resnet_block_forward.7} parent=5 // pred_check
      %p1420 = pneg %p1419
    $region42: #{resnet_block_forward.7} parent=5 // pred_check_branch
      %1422 = sbr.rel (%p1420) target = $region44
    $region43: #{resnet_block_forward.7} parent=5 // pred_region
      %s1423 = ssub.s32 %s10, 2
      // Predicated region
      $region45: #{resnet_block_forward.7} parent=43 // pred_check
        %p1424 = pneg %p159
      $region46: #{resnet_block_forward.7} parent=43 // pred_check_branch
        %1426 = sbr.rel (%p1424) target = $region48
      $region47: #{resnet_block_forward.7} parent=43 // pred_region
        %s1427 = smul.u32 48, %s22
        %p1428 = scmp.lt.s32.totalorder %s21, 1
        %s1429 = scalar_select %p1428, %s21, 1
        %p1430 = scmp.lt.s32.totalorder %s1427, 47
        %s1431 = scalar_select %p1430, %s1427, 47
        %s1432 = smul.addr %s1429, 48
        %s1433 = sadd.s32 %s1431, %s1432
        %s1434 = smul.addr %s1433, 4
        %s1435 = scalar_lea.vmem %s4, %s1434
      $region48: #{resnet_block_forward.7} parent=43 // pred_fallthru
        _
    $region44: #{resnet_block_forward.7} parent=5 // pred_fallthru
      _
  $region6: #{resnet_block_forward.7} parent=0 // loop_footer
    %s14 = sadd.s32 1, %s10
  $region7: #{resnet_block_forward.7} parent=0 // loop_footer_branch
    %9 = sbr.rel target = $region3
  $region8: #{resnet_block_forward.7} parent=0 // loop_exit
    _

// kernel: resnet_block_forward.8
$region0: #{resnet_block_forward.8}
  #allocation0 [shape = 'u32[]', space=smem, size = 0x4, offset = 0x4, fixed_abs, tag = 'smem constant byte address 0x4 - core index']
  #allocation1 [shape = 'u32[144,128]{1,0:T(1,128)}', space=vmem, size = 0x12000, scoped, tag = 'internal scratch']
  #allocation2 [shape = 'bf16[64,48]{1,0:T(16,128)(2,1)}', space=vmem, size = 0x4000, scoped, tag = 'scratch operand']
  %s0 = inlined_call_operand.vmem [shape: bf16[2,6,64,16], index: 0, kind: input, shape index: {}, may-alias: {0,1,2}]
  %s1 = inlined_call_operand.vmem [shape: bf16[2,6,64,16], index: 1, kind: input, shape index: {}, may-alias: {0,1,2}]
  %s2 = inlined_call_operand.vmem [shape: bf16[2,6,64,16], index: 2, kind: input, shape index: {}, may-alias: {0,1,2}]
  %s3 = inlined_call_operand.vmem [shape: bf16[432,32], index: 3, kind: input, shape index: {}]
  %s4 = inlined_call_operand.vmem [shape: f32[2,1,32], index: 4, kind: input, shape index: {}]
  %s5 = inlined_call_operand.vmem [shape: f32[50,1], index: 5, kind: input, shape index: {}]
  %s6 = inlined_call_operand.vmem [shape: bf16[2,6,50,32], index: 6, kind: output, shape index: {}]
  %s7 = sld [smem:[#allocation0]]
  $region65: #{resnet_block_forward.8} parent=0
    _
  %s9 = ssub.s32 1, %s7
  %s10 = scalar_select 0, %s9, %s7
  loop: start=0, step=1, limit=14
  $region2: #{resnet_block_forward.8} parent=0 // loop_pre_header
    _
  $region3: #{resnet_block_forward.8} parent=0 // loop_header
    %s12 = sphi 0, %s16
    %p13 = scmp.ge.s32.totalorder %s12, 14
    %s19 = sphi 0, %s38
    %s20 = sphi 0, %s34
    %s21 = sphi 0, %s30
    %s22 = sphi 0, %s19
    %s23 = sphi 0, %s20
    %s24 = sphi 0, %s21
    %s25 = sphi 0, %s22
    %s26 = sphi 0, %s23
    %s27 = sphi 0, %s24
    %s53 = sphi 0, %s55
    %s56 = sphi 0, %s53
    %s57 = sphi 0, %s56
    %s73 = sphi 0, %s57
    %s89 = sphi 0, %s91
    %s92 = sphi 0, %s89
    %s93 = sphi 0, %s92
    %s109 = sphi 0, %s93
    %s127 = sphi 0, %s129
    %s130 = sphi 0, %s127
    %s131 = sphi 0, %s130
    %s147 = sphi 0, %s131
    %s153 = sphi 0, %s155
    %s156 = sphi 0, %s153
    %s157 = sphi 0, %s156
    %s173 = sphi 0, %s157
    %s181 = sphi 0, %s183
    %s184 = sphi 0, %s181
    %s185 = sphi 0, %s184
    %s201 = sphi 0, %s185
    %s205 = sphi 0, %s205
    %s207 = sphi 0, %s205
    %s208 = sphi 0, %s207
    %s222 = sphi 0, %s208
    %s232 = sphi 0, %s234
    %s235 = sphi 0, %s232
    %s236 = sphi 0, %s235
    %s252 = sphi 0, %s236
  $region4: #{resnet_block_forward.8} parent=0 // loop_header_branch
    %15 = sbr.rel (%p13) target = $region8
  $region5: #{resnet_block_forward.8} parent=0 // loop_body
    %s17 = ssub.s32 %s12, 1
    %s18 = ssub.s32 %s12, 2
    %s28 = sadd.s32 1, %s21
    %p29 = scmp.ge.s32.totalorder %s28, 6
    %s30 = scalar_select %p29, 0, %s28
    %s31 = sadd.s32 1, %s20
    %s32 = scalar_select %p29, %s31, %s20
    %p33 = scmp.ge.s32.totalorder %s32, 2
    %s34 = scalar_select %p33, 0, %s32
    %s35 = sadd.s32 1, %s19
    %s36 = scalar_select %p33, %s35, %s19
    %p37 = scmp.ge.s32.totalorder %s36, 1
    %s38 = scalar_select %p37, 0, %s36
    %s39 = ssub.s32 %s21, 1
    %p40 = scmp.gt.s32.totalorder %s39, 0
    %s41 = scalar_select %p40, %s39, 0
    %p42 = scmp.lt.s32.totalorder %s41, 5
    %s43 = scalar_select %p42, %s41, 5
    %s44 = ssub.s32 %s30, 1
    %p45 = scmp.gt.s32.totalorder %s44, 0
    %s46 = scalar_select %p45, %s44, 0
    %p47 = scmp.lt.s32.totalorder %s46, 5
    %s48 = scalar_select %p47, %s46, 5
    %s49 = ssub.s32 %s20, %s34
    %s50 = ssub.s32 %s43, %s48
    %s51 = sor.u32 %s49, %s50
    %p52 = scmp.eq.s32.totalorder %s51, 0
    %s54 = sadd.s32 %s53, 1
    %s55 = scalar_select %p52, %s53, %s54
    %p58 = pneg %p52
    %p59 = scmp.eq.s32.totalorder %s12, 11
    %p60 = por %p58, %p59
    %p61 = scmp.ne.s32.totalorder %s53, %s56
    %p62 = scmp.eq.s32.totalorder %s12, 0
    %p63 = por %p61, %p62
    %p64 = scmp.ne.s32.totalorder %s53, %s56
    %p65 = scmp.eq.s32.totalorder %s17, 11
    %p66 = por %p64, %p65
    %p67 = scmp.ne.s32.totalorder %s56, %s57
    %p68 = scmp.eq.s32.totalorder %s17, 0
    %p69 = por %p67, %p68
    %p70 = scmp.ne.s32.totalorder %s56, %s57
    %p71 = scmp.eq.s32.totalorder %s18, 11
    %p72 = por %p70, %p71
    %p74 = scmp.ne.s32.totalorder %s57, %s73
    %p75 = scmp.eq.s32.totalorder %s18, 0
    %p76 = por %p74, %p75
    %p77 = scmp.gt.s32.totalorder %s21, 0
    %s78 = scalar_select %p77, %s21, 0
    %p79 = scmp.lt.s32.totalorder %s78, 5
    %s80 = scalar_select %p79, %s78, 5
    %p81 = scmp.gt.s32.totalorder %s30, 0
    %s82 = scalar_select %p81, %s30, 0
    %p83 = scmp.lt.s32.totalorder %s82, 5
    %s84 = scalar_select %p83, %s82, 5
    %s85 = ssub.s32 %s20, %s34
    %s86 = ssub.s32 %s80, %s84
    %s87 = sor.u32 %s85, %s86
    %p88 = scmp.eq.s32.totalorder %s87, 0
    %s90 = sadd.s32 %s89, 1
    %s91 = scalar_select %p88, %s89, %s90
    %p94 = pneg %p88
    %p95 = scmp.eq.s32.totalorder %s12, 11
    %p96 = por %p94, %p95
    %p97 = scmp.ne.s32.totalorder %s89, %s92
    %p98 = scmp.eq.s32.totalorder %s12, 0
    %p99 = por %p97, %p98
    %p100 = scmp.ne.s32.totalorder %s89, %s92
    %p101 = scmp.eq.s32.totalorder %s17, 11
    %p102 = por %p100, %p101
    %p103 = scmp.ne.s32.totalorder %s92, %s93
    %p104 = scmp.eq.s32.totalorder %s17, 0
    %p105 = por %p103, %p104
    %p106 = scmp.ne.s32.totalorder %s92, %s93
    %p107 = scmp.eq.s32.totalorder %s18, 11
    %p108 = por %p106, %p107
    %p110 = scmp.ne.s32.totalorder %s93, %s109
    %p111 = scmp.eq.s32.totalorder %s18, 0
    %p112 = por %p110, %p111
    %s113 = sadd.s32 %s21, 1
    %p114 = scmp.gt.s32.totalorder %s113, 0
    %s115 = scalar_select %p114, %s113, 0
    %p116 = scmp.lt.s32.totalorder %s115, 5
    %s117 = scalar_select %p116, %s115, 5
    %s118 = sadd.s32 %s30, 1
    %p119 = scmp.gt.s32.totalorder %s118, 0
    %s120 = scalar_select %p119, %s118, 0
    %p121 = scmp.lt.s32.totalorder %s120, 5
    %s122 = scalar_select %p121, %s120, 5
    %s123 = ssub.s32 %s20, %s34
    %s124 = ssub.s32 %s117, %s122
    %s125 = sor.u32 %s123, %s124
    %p126 = scmp.eq.s32.totalorder %s125, 0
    %s128 = sadd.s32 %s127, 1
    %s129 = scalar_select %p126, %s127, %s128
    %p132 = pneg %p126
    %p133 = scmp.eq.s32.totalorder %s12, 11
    %p134 = por %p132, %p133
    %p135 = scmp.ne.s32.totalorder %s127, %s130
    %p136 = scmp.eq.s32.totalorder %s12, 0
    %p137 = por %p135, %p136
    %p138 = scmp.ne.s32.totalorder %s127, %s130
    %p139 = scmp.eq.s32.totalorder %s17, 11
    %p140 = por %p138, %p139
    %p141 = scmp.ne.s32.totalorder %s130, %s131
    %p142 = scmp.eq.s32.totalorder %s17, 0
    %p143 = por %p141, %p142
    %p144 = scmp.ne.s32.totalorder %s130, %s131
    %p145 = scmp.eq.s32.totalorder %s18, 11
    %p146 = por %p144, %p145
    %p148 = scmp.ne.s32.totalorder %s131, %s147
    %p149 = scmp.eq.s32.totalorder %s18, 0
    %p150 = por %p148, %p149
    %s151 = ssub.s32 %s19, %s38
    %p152 = scmp.eq.s32.totalorder %s151, 0
    %s154 = sadd.s32 %s153, 1
    %s155 = scalar_select %p152, %s153, %s154
    %p158 = pneg %p152
    %p159 = scmp.eq.s32.totalorder %s12, 11
    %p160 = por %p158, %p159
    %p161 = scmp.ne.s32.totalorder %s153, %s156
    %p162 = scmp.eq.s32.totalorder %s12, 0
    %p163 = por %p161, %p162
    %p164 = scmp.ne.s32.totalorder %s153, %s156
    %p165 = scmp.eq.s32.totalorder %s17, 11
    %p166 = por %p164, %p165
    %p167 = scmp.ne.s32.totalorder %s156, %s157
    %p168 = scmp.eq.s32.totalorder %s17, 0
    %p169 = por %p167, %p168
    %p170 = scmp.ne.s32.totalorder %s156, %s157
    %p171 = scmp.eq.s32.totalorder %s18, 11
    %p172 = por %p170, %p171
    %p174 = scmp.ne.s32.totalorder %s157, %s173
    %p175 = scmp.eq.s32.totalorder %s18, 0
    %p176 = por %p174, %p175
    %s177 = ssub.s32 %s20, %s34
    %s178 = ssub.s32 %s19, %s38
    %s179 = sor.u32 %s177, %s178
    %p180 = scmp.eq.s32.totalorder %s179, 0
    %s182 = sadd.s32 %s181, 1
    %s183 = scalar_select %p180, %s181, %s182
    %p186 = pneg %p180
    %p187 = scmp.eq.s32.totalorder %s12, 11
    %p188 = por %p186, %p187
    %p189 = scmp.ne.s32.totalorder %s181, %s184
    %p190 = scmp.eq.s32.totalorder %s12, 0
    %p191 = por %p189, %p190
    %p192 = scmp.ne.s32.totalorder %s181, %s184
    %p193 = scmp.eq.s32.totalorder %s17, 11
    %p194 = por %p192, %p193
    %p195 = scmp.ne.s32.totalorder %s184, %s185
    %p196 = scmp.eq.s32.totalorder %s17, 0
    %p197 = por %p195, %p196
    %p198 = scmp.ne.s32.totalorder %s184, %s185
    %p199 = scmp.eq.s32.totalorder %s18, 11
    %p200 = por %p198, %p199
    %p202 = scmp.ne.s32.totalorder %s185, %s201
    %p203 = scmp.eq.s32.totalorder %s18, 0
    %p204 = por %p202, %p203
    %s206 = sadd.s32 %s205, 1
    %p209 = scmp.eq.s32.totalorder %s12, 11
    %p210 = scmp.ne.s32.totalorder %s205, %s207
    %p211 = scmp.eq.s32.totalorder %s12, 0
    %p212 = por %p210, %p211
    %p213 = scmp.ne.s32.totalorder %s205, %s207
    %p214 = scmp.eq.s32.totalorder %s17, 11
    %p215 = por %p213, %p214
    %p216 = scmp.ne.s32.totalorder %s207, %s208
    %p217 = scmp.eq.s32.totalorder %s17, 0
    %p218 = por %p216, %p217
    %p219 = scmp.ne.s32.totalorder %s207, %s208
    %p220 = scmp.eq.s32.totalorder %s18, 11
    %p221 = por %p219, %p220
    %p223 = scmp.ne.s32.totalorder %s208, %s222
    %p224 = scmp.eq.s32.totalorder %s18, 0
    %p225 = por %p223, %p224
    %s226 = ssub.s32 %s20, %s34
    %s227 = ssub.s32 %s21, %s30
    %s228 = sor.u32 %s226, %s227
    %s229 = ssub.s32 %s19, %s38
    %s230 = sor.u32 %s228, %s229
    %p231 = scmp.eq.s32.totalorder %s230, 0
    %s233 = sadd.s32 %s232, 1
    %s234 = scalar_select %p231, %s232, %s233
    %p237 = pneg %p231
    %p238 = scmp.eq.s32.totalorder %s12, 11
    %p239 = por %p237, %p238
    %p240 = scmp.ne.s32.totalorder %s232, %s235
    %p241 = scmp.eq.s32.totalorder %s12, 0
    %p242 = por %p240, %p241
    %p243 = scmp.ne.s32.totalorder %s232, %s235
    %p244 = scmp.eq.s32.totalorder %s17, 11
    %p245 = por %p243, %p244
    %p246 = scmp.ne.s32.totalorder %s235, %s236
    %p247 = scmp.eq.s32.totalorder %s17, 0
    %p248 = por %p246, %p247
    %p249 = scmp.ne.s32.totalorder %s235, %s236
    %p250 = scmp.eq.s32.totalorder %s18, 11
    %p251 = por %p249, %p250
    %p253 = scmp.ne.s32.totalorder %s236, %s252
    %p254 = scmp.eq.s32.totalorder %s18, 0
    %p255 = por %p253, %p254
    %p256 = scmp.le.s32.totalorder 1, %s12
    %p257 = scmp.lt.s32.totalorder %s12, 13
    %p258 = pnand %p256, %p257
    %p259 = pneg %p258
    // Predicated region
    $region9: #{resnet_block_forward.8} parent=5 // pred_check
      _
    $region10: #{resnet_block_forward.8} parent=5 // pred_check_branch
      %261 = sbr.rel (%p258) target = $region12
    $region11: #{resnet_block_forward.8} parent=5 // pred_region
      %s262 = ssub.s32 %s12, 1
      // Predicated region
      $region13: #{resnet_block_forward.8} parent=11 // pred_check
        %p263 = pneg %p169
      $region14: #{resnet_block_forward.8} parent=11 // pred_check_branch
        %265 = sbr.rel (%p263) target = $region16
      $region15: #{resnet_block_forward.8} parent=11 // pred_region
        %p266 = scmp.lt.s32.totalorder %s22, 0
        %s267 = scalar_select %p266, %s22, 0
        %s268 = smul.addr %s267, 4
        %s269 = scalar_lea.vmem %s3, %s268
      $region16: #{resnet_block_forward.8} parent=11 // pred_fallthru
        _
      // Predicated region
      $region17: #{resnet_block_forward.8} parent=11 // pred_check
        %p270 = pneg %p218
      $region18: #{resnet_block_forward.8} parent=11 // pred_check_branch
        %272 = sbr.rel (%p270) target = $region20
      $region19: #{resnet_block_forward.8} parent=11 // pred_region
        _
      $region20: #{resnet_block_forward.8} parent=11 // pred_fallthru
        _
    $region12: #{resnet_block_forward.8} parent=5 // pred_fallthru
      _
    %p273 = scmp.lt.s32.totalorder %s12, 12
    // Predicated region
    $region21: #{resnet_block_forward.8} parent=5 // pred_check
      %p274 = pneg %p273
    $region22: #{resnet_block_forward.8} parent=5 // pred_check_branch
      %276 = sbr.rel (%p274) target = $region24
    $region23: #{resnet_block_forward.8} parent=5 // pred_region
      // Predicated region
      $region25: #{resnet_block_forward.8} parent=23 // pred_check
        %p277 = pneg %p63
      $region26: #{resnet_block_forward.8} parent=23 // pred_check_branch
        %279 = sbr.rel (%p277) target = $region28
      $region27: #{resnet_block_forward.8} parent=23 // pred_region
        %s280 = ssub.s32 %s21, 1
        %p281 = scmp.gt.s32.totalorder %s280, 0
        %s282 = scalar_select %p281, %s280, 0
        %p283 = scmp.lt.s32.totalorder %s282, 5
        %s284 = scalar_select %p283, %s282, 5
        %p285 = scmp.lt.s32.totalorder %s20, 1
        %s286 = scalar_select %p285, %s20, 1
        %p287 = scmp.lt.s32.totalorder %s284, 5
        %s288 = scalar_select %p287, %s284, 5
        %s289 = smul.addr %s288, 8
        %s290 = smul.addr %s286, 48
        %s291 = sadd.s32 %s289, %s290
        %s292 = smul.addr %s291, 4
        %s293 = scalar_lea.vmem %s0, %s292
        %s294 = ssub.s32 %s21, 1
        %p295 = scmp.gt.s32.totalorder %s294, 0
        %s296 = scalar_select %p295, %s294, 0
        %p297 = scmp.lt.s32.totalorder %s296, 5
        %s298 = scalar_select %p297, %s296, 5
      $region28: #{resnet_block_forward.8} parent=23 // pred_fallthru
        _
      // Predicated region
      $region29: #{resnet_block_forward.8} parent=23 // pred_check
        %p299 = pneg %p99
      $region30: #{resnet_block_forward.8} parent=23 // pred_check_branch
        %301 = sbr.rel (%p299) target = $region32
      $region31: #{resnet_block_forward.8} parent=23 // pred_region
        %p302 = scmp.gt.s32.totalorder %s21, 0
        %s303 = scalar_select %p302, %s21, 0
        %p304 = scmp.lt.s32.totalorder %s303, 5
        %s305 = scalar_select %p304, %s303, 5
        %p306 = scmp.lt.s32.totalorder %s20, 1
        %s307 = scalar_select %p306, %s20, 1
        %p308 = scmp.lt.s32.totalorder %s305, 5
        %s309 = scalar_select %p308, %s305, 5
        %s310 = smul.addr %s309, 8
        %s311 = smul.addr %s307, 48
        %s312 = sadd.s32 %s310, %s311
        %s313 = smul.addr %s312, 4
        %s314 = scalar_lea.vmem %s1, %s313
        %p315 = scmp.gt.s32.totalorder %s21, 0
        %s316 = scalar_select %p315, %s21, 0
        %p317 = scmp.lt.s32.totalorder %s316, 5
        %s318 = scalar_select %p317, %s316, 5
      $region32: #{resnet_block_forward.8} parent=23 // pred_fallthru
        _
      // Predicated region
      $region33: #{resnet_block_forward.8} parent=23 // pred_check
        %p319 = pneg %p137
      $region34: #{resnet_block_forward.8} parent=23 // pred_check_branch
        %321 = sbr.rel (%p319) target = $region36
      $region35: #{resnet_block_forward.8} parent=23 // pred_region
        %s322 = sadd.s32 %s21, 1
        %p323 = scmp.gt.s32.totalorder %s322, 0
        %s324 = scalar_select %p323, %s322, 0
        %p325 = scmp.lt.s32.totalorder %s324, 5
        %s326 = scalar_select %p325, %s324, 5
        %p327 = scmp.lt.s32.totalorder %s20, 1
        %s328 = scalar_select %p327, %s20, 1
        %p329 = scmp.lt.s32.totalorder %s326, 5
        %s330 = scalar_select %p329, %s326, 5
        %s331 = smul.addr %s330, 8
        %s332 = smul.addr %s328, 48
        %s333 = sadd.s32 %s331, %s332
        %s334 = smul.addr %s333, 4
        %s335 = scalar_lea.vmem %s2, %s334
        %s336 = sadd.s32 %s21, 1
        %p337 = scmp.gt.s32.totalorder %s336, 0
        %s338 = scalar_select %p337, %s336, 0
        %p339 = scmp.lt.s32.totalorder %s338, 5
        %s340 = scalar_select %p339, %s338, 5
      $region36: #{resnet_block_forward.8} parent=23 // pred_fallthru
        _
      // Predicated region
      $region37: #{resnet_block_forward.8} parent=23 // pred_check
        %p341 = pneg %p191
      $region38: #{resnet_block_forward.8} parent=23 // pred_check_branch
        %343 = sbr.rel (%p341) target = $region40
      $region39: #{resnet_block_forward.8} parent=23 // pred_region
        %p344 = scmp.lt.s32.totalorder %s20, 1
        %s345 = scalar_select %p344, %s20, 1
        %p346 = scmp.lt.s32.totalorder %s19, 0
        %s347 = scalar_select %p346, %s19, 0
        %s348 = sadd.s32 %s347, %s345
        %s349 = scalar_lea.vmem %s4, %s348
      $region40: #{resnet_block_forward.8} parent=23 // pred_fallthru
        _
    $region24: #{resnet_block_forward.8} parent=5 // pred_fallthru
      _
    %p350 = scmp.le.s32.totalorder 1, %s12
    %p351 = scmp.lt.s32.totalorder %s12, 13
    %p352 = pnand %p350, %p351
    %p353 = pneg %p352
    // Predicated region
    $region41: #{resnet_block_forward.8} parent=5 // pred_check
      _
    $region42: #{resnet_block_forward.8} parent=5 // pred_check_branch
      %355 = sbr.rel (%p352) target = $region44
    $region43: #{resnet_block_forward.8} parent=5 // pred_region
      %s356 = ssub.s32 %s12, 1
      %s357 = ssub.s32 %s24, 1
      %p358 = scmp.gt.s32.totalorder %s357, 0
      %s359 = scalar_select %p358, %s357, 0
      %p360 = scmp.lt.s32.totalorder %s359, 5
      %s361 = scalar_select %p360, %s359, 5
      %p362 = scmp.lt.s32.totalorder %s23, 1
      %s363 = scalar_select %p362, %s23, 1
      %p364 = scmp.lt.s32.totalorder %s361, 5
      %s365 = scalar_select %p364, %s361, 5
      %s366 = smul.addr %s365, 8
      %s367 = smul.addr %s363, 48
      %s368 = sadd.s32 %s366, %s367
      %s369 = smul.addr %s368, 4
      %s370 = scalar_lea.vmem %s0, %s369
      %p371 = pneg %p69
      %p372 = pneg %p66
      %p373 = scmp.gt.s32.totalorder %s24, 0
      %s374 = scalar_select %p373, %s24, 0
      %p375 = scmp.lt.s32.totalorder %s374, 5
      %s376 = scalar_select %p375, %s374, 5
      %p377 = scmp.lt.s32.totalorder %s23, 1
      %s378 = scalar_select %p377, %s23, 1
      %p379 = scmp.lt.s32.totalorder %s376, 5
      %s380 = scalar_select %p379, %s376, 5
      %s381 = smul.addr %s380, 8
      %s382 = smul.addr %s378, 48
      %s383 = sadd.s32 %s381, %s382
      %s384 = smul.addr %s383, 4
      %s385 = scalar_lea.vmem %s1, %s384
      %p386 = pneg %p105
      %p387 = pneg %p102
      %s388 = sadd.s32 %s24, 1
      %p389 = scmp.gt.s32.totalorder %s388, 0
      %s390 = scalar_select %p389, %s388, 0
      %p391 = scmp.lt.s32.totalorder %s390, 5
      %s392 = scalar_select %p391, %s390, 5
      %p393 = scmp.lt.s32.totalorder %s23, 1
      %s394 = scalar_select %p393, %s23, 1
      %p395 = scmp.lt.s32.totalorder %s392, 5
      %s396 = scalar_select %p395, %s392, 5
      %s397 = smul.addr %s396, 8
      %s398 = smul.addr %s394, 48
      %s399 = sadd.s32 %s397, %s398
      %s400 = smul.addr %s399, 4
      %s401 = scalar_lea.vmem %s2, %s400
      %p402 = pneg %p143
      %p403 = pneg %p140
      %p404 = scmp.lt.s32.totalorder %s22, 0
      %s405 = scalar_select %p404, %s22, 0
      %s406 = smul.addr %s405, 4
      %s407 = scalar_lea.vmem %s3, %s406
      %p408 = pneg %p169
      %p409 = pneg %p166
      %p410 = scmp.lt.s32.totalorder %s23, 1
      %s411 = scalar_select %p410, %s23, 1
      %p412 = scmp.lt.s32.totalorder %s22, 0
      %s413 = scalar_select %p412, %s22, 0
      %s414 = sadd.s32 %s413, %s411
      %s415 = scalar_lea.vmem %s4, %s414
      %p416 = pneg %p197
      %p417 = pneg %p194
      %p418 = pneg %p218
      %p419 = pneg %p215
      %p420 = pneg %p248
      %p421 = pneg %p245
      %p422 = scmp.lt.s32.totalorder %s23, 1
      %s423 = scalar_select %p422, %s23, 1
      %p424 = scmp.lt.s32.totalorder %s24, 5
      %s425 = scalar_select %p424, %s24, 5
      %p426 = scmp.lt.s32.totalorder %s22, 0
      %s427 = scalar_select %p426, %s22, 0
      %s428 = smul.addr %s425, 7
      %s429 = sadd.s32 %s427, %s428
      %s430 = smul.addr %s423, 42
      %s431 = sadd.s32 %s429, %s430
      %s432 = smul.addr %s431, 4
      %s433 = scalar_lea.vmem %s6, %s432
      %s434 = ssub.s32 %s24, 1
      %p435 = scmp.gt.s32.totalorder %s434, 0
      %s436 = scalar_select %p435, %s434, 0
      %p437 = scmp.lt.s32.totalorder %s436, 5
      %s438 = scalar_select %p437, %s436, 5
      %p439 = scmp.lt.s32.totalorder %s23, 1
      %s440 = scalar_select %p439, %s23, 1
      %p441 = scmp.lt.s32.totalorder %s438, 5
      %s442 = scalar_select %p441, %s438, 5
      %s443 = smul.addr %s442, 8
      %s444 = smul.addr %s440, 48
      %s445 = sadd.s32 %s443, %s444
      %s446 = smul.addr %s445, 4
      %s447 = scalar_lea.vmem %s0, %s446
      %s448 = ssub.s32 %s24, 1
      %p449 = scmp.gt.s32.totalorder %s448, 0
      %s450 = scalar_select %p449, %s448, 0
      %p451 = scmp.lt.s32.totalorder %s450, 5
      %s452 = scalar_select %p451, %s450, 5
      %p453 = scmp.gt.s32.totalorder %s24, 0
      %s454 = scalar_select %p453, %s24, 0
      %p455 = scmp.lt.s32.totalorder %s454, 5
      %s456 = scalar_select %p455, %s454, 5
      %p457 = scmp.lt.s32.totalorder %s23, 1
      %s458 = scalar_select %p457, %s23, 1
      %p459 = scmp.lt.s32.totalorder %s456, 5
      %s460 = scalar_select %p459, %s456, 5
      %s461 = smul.addr %s460, 8
      %s462 = smul.addr %s458, 48
      %s463 = sadd.s32 %s461, %s462
      %s464 = smul.addr %s463, 4
      %s465 = scalar_lea.vmem %s1, %s464
      %p466 = scmp.gt.s32.totalorder %s24, 0
      %s467 = scalar_select %p466, %s24, 0
      %p468 = scmp.lt.s32.totalorder %s467, 5
      %s469 = scalar_select %p468, %s467, 5
      %s470 = sadd.s32 %s24, 1
      %p471 = scmp.gt.s32.totalorder %s470, 0
      %s472 = scalar_select %p471, %s470, 0
      %p473 = scmp.lt.s32.totalorder %s472, 5
      %s474 = scalar_select %p473, %s472, 5
      %p475 = scmp.lt.s32.totalorder %s23, 1
      %s476 = scalar_select %p475, %s23, 1
      %p477 = scmp.lt.s32.totalorder %s474, 5
      %s478 = scalar_select %p477, %s474, 5
      %s479 = smul.addr %s478, 8
      %s480 = smul.addr %s476, 48
      %s481 = sadd.s32 %s479, %s480
      %s482 = smul.addr %s481, 4
      %s483 = scalar_lea.vmem %s2, %s482
      %s484 = sadd.s32 %s24, 1
      %p485 = scmp.gt.s32.totalorder %s484, 0
      %s486 = scalar_select %p485, %s484, 0
      %p487 = scmp.lt.s32.totalorder %s486, 5
      %s488 = scalar_select %p487, %s486, 5
      %p489 = scmp.lt.s32.totalorder %s22, 0
      %s490 = scalar_select %p489, %s22, 0
      %s491 = smul.addr %s490, 4
      %s492 = scalar_lea.vmem %s3, %s491
      %p493 = scmp.lt.s32.totalorder %s23, 1
      %s494 = scalar_select %p493, %s23, 1
      %p495 = scmp.lt.s32.totalorder %s22, 0
      %s496 = scalar_select %p495, %s22, 0
      %s497 = sadd.s32 %s496, %s494
      %s498 = scalar_lea.vmem %s4, %s497
      %p499 = scmp.lt.s32.totalorder %s23, 1
      %s500 = scalar_select %p499, %s23, 1
      %p501 = scmp.lt.s32.totalorder %s24, 5
      %s502 = scalar_select %p501, %s24, 5
      %p503 = scmp.lt.s32.totalorder %s22, 0
      %s504 = scalar_select %p503, %s22, 0
      %s505 = smul.addr %s502, 7
      %s506 = sadd.s32 %s504, %s505
      %s507 = smul.addr %s500, 42
      %s508 = sadd.s32 %s506, %s507
      %s509 = smul.addr %s508, 4
      %s510 = scalar_lea.vmem %s6, %s509
      %p512 = scmp.eq.s32.totalorder %s24, 0
      %p513 = scmp.eq.s32.totalorder %s24, 5
      %p514 = por %p512, %p513
      // Predicated region
      $region45: #{resnet_block_forward.8} parent=43 // pred_check
        %p515 = pneg %p514
      $region46: #{resnet_block_forward.8} parent=43 // pred_check_branch
        %517 = sbr.rel (%p515) target = $region48
      $region47: #{resnet_block_forward.8} parent=43 // pred_region
        %vm518 = vcmask 257024
        %519 = vst.msk [vmem:[%s510] sm:$0xf] %vm518, 0
        %520 = vst.msk [vmem:[%s510 + $0x4] sm:$0xf] %vm518, 0
        %521 = vst.msk [vmem:[%s510 + $0x8] sm:$0xf] %vm518, 0
        %522 = vst.msk [vmem:[%s510 + $0xc] sm:$0xf] %vm518, 0
        %523 = vst.msk [vmem:[%s510 + $0x10] sm:$0xf] %vm518, 0
        %524 = vst.msk [vmem:[%s510 + $0x14] sm:$0xf] %vm518, 0
        %vm525 = vcmask 253952
        %526 = vst.msk [vmem:[%s510 + $0x18] sm:$0x1] %vm525, 0
      $region48: #{resnet_block_forward.8} parent=43 // pred_fallthru
        _
      %p527 = pneg %p514
      // Predicated region
      $region49: #{resnet_block_forward.8} parent=43 // pred_check
        _
      $region50: #{resnet_block_forward.8} parent=43 // pred_check_branch
        %529 = sbr.rel (%p514) target = $region52
      $region51: #{resnet_block_forward.8} parent=43 // pred_region
        %v530 = vld [vmem:[%s447] sm:$0xf]
        %v531 = vld [vmem:[%s447 + $0x4] sm:$0xf]
        %v532 = vld [vmem:[%s447 + $0x8] sm:$0xf]
        %v533 = vld [vmem:[%s447 + $0xc] sm:$0xf]
        %v534 = vld [vmem:[%s447 + $0x10] sm:$0xf]
        %v535 = vld [vmem:[%s447 + $0x14] sm:$0xf]
        %v536 = vld [vmem:[%s447 + $0x18] sm:$0xf]
        %v537 = vld [vmem:[%s447 + $0x1c] sm:$0xf]
        %v538 = vld [vmem:[%s465] sm:$0xf]
        %v539 = vld [vmem:[%s465 + $0x4] sm:$0xf]
        %v540 = vld [vmem:[%s465 + $0x8] sm:$0xf]
        %v541 = vld [vmem:[%s465 + $0xc] sm:$0xf]
        %v542 = vld [vmem:[%s465 + $0x10] sm:$0xf]
        %v543 = vld [vmem:[%s465 + $0x14] sm:$0xf]
        %v544 = vld [vmem:[%s465 + $0x18] sm:$0xf]
        %v545 = vld [vmem:[%s465 + $0x1c] sm:$0xf]
        %v546 = vld [vmem:[%s483] sm:$0xf]
        %v547 = vld [vmem:[%s483 + $0x4] sm:$0xf]
        %v548 = vld [vmem:[%s483 + $0x8] sm:$0xf]
        %v549 = vld [vmem:[%s483 + $0xc] sm:$0xf]
        %v550 = vld [vmem:[%s483 + $0x10] sm:$0xf]
        %v551 = vld [vmem:[%s483 + $0x14] sm:$0xf]
        %v552 = vld [vmem:[%s483 + $0x18] sm:$0xf]
        %v553 = vld [vmem:[%s483 + $0x1c] sm:$0xf]
        %v562 = vunpack.c.l.b16 %v530
        %v563 = vunpack.c.l.b16 %v531
        %v564 = vunpack.c.l.b16 %v532
        %v565 = vunpack.c.l.b16 %v533
        %v566 = vunpack.c.l.b16 %v534
        %v567 = vunpack.c.l.b16 %v535
        %v568 = vunpack.c.l.b16 %v536
        %v569 = vunpack.c.l.b16 %v537
        %v570 = vpack.c.b16 %v563, %v562
        %v571 = vpack.c.b16 %v565, %v564
        %v572 = vpack.c.b16 %v567, %v566
        %v573 = vpack.c.b16 %v569, %v568
        %v582 = vunpack.c.l.b16 %v538
        %v583 = vunpack.c.l.b16 %v539
        %v584 = vunpack.c.l.b16 %v540
        %v585 = vunpack.c.l.b16 %v541
        %v586 = vunpack.c.l.b16 %v542
        %v587 = vunpack.c.l.b16 %v543
        %v588 = vunpack.c.l.b16 %v544
        %v589 = vunpack.c.l.b16 %v545
        %v590 = vpack.c.b16 %v583, %v582
        %v591 = vpack.c.b16 %v585, %v584
        %v592 = vpack.c.b16 %v587, %v586
        %v593 = vpack.c.b16 %v589, %v588
        %594 = vrot.lane.b32.xlu0 %v590, 16
        %v595 = vpop.permute.xlu0 %594
        %596 = vrot.lane.b32.xlu0 %v591, 16
        %v597 = vpop.permute.xlu0 %596
        %598 = vrot.lane.b32.xlu0 %v592, 16
        %v599 = vpop.permute.xlu0 %598
        %600 = vrot.lane.b32.xlu0 %v593, 16
        %v601 = vpop.permute.xlu0 %600
        %v610 = vunpack.c.l.b16 %v546
        %v611 = vunpack.c.l.b16 %v547
        %v612 = vunpack.c.l.b16 %v548
        %v613 = vunpack.c.l.b16 %v549
        %v614 = vunpack.c.l.b16 %v550
        %v615 = vunpack.c.l.b16 %v551
        %v616 = vunpack.c.l.b16 %v552
        %v617 = vunpack.c.l.b16 %v553
        %v618 = vpack.c.b16 %v611, %v610
        %v619 = vpack.c.b16 %v613, %v612
        %v620 = vpack.c.b16 %v615, %v614
        %v621 = vpack.c.b16 %v617, %v616
        %622 = vrot.lane.b32.xlu0 %v618, 32
        %v623 = vpop.permute.xlu0 %622
        %624 = vrot.lane.b32.xlu0 %v619, 32
        %v625 = vpop.permute.xlu0 %624
        %626 = vrot.lane.b32.xlu0 %v620, 32
        %v627 = vpop.permute.xlu0 %626
        %628 = vrot.lane.b32.xlu0 %v621, 32
        %v629 = vpop.permute.xlu0 %628
        %vm630 = vcmask 130048
        %v633 = vsel %vm630, %v570, %v595
        %v636 = vsel %vm630, %v571, %v597
        %v639 = vsel %vm630, %v572, %v599
        %v642 = vsel %vm630, %v573, %v601
        %vm643 = vcmask 261120
        %v645 = vsel %vm643, %v633, %v623
        %v648 = vsel %vm643, %v636, %v625
        %v651 = vsel %vm643, %v639, %v627
        %v654 = vsel %vm643, %v642, %v629
        %vm656 = vcmask 392192
        %657 = vst.msk [vmem:[#allocation2] sm:$0xff] %vm656, %v645
        %658 = vst.msk [vmem:[#allocation2 + $0x8] sm:$0xff] %vm656, %v648
        %659 = vst.msk [vmem:[#allocation2 + $0x10] sm:$0xff] %vm656, %v651
        %660 = vst.msk [vmem:[#allocation2 + $0x18] sm:$0xff] %vm656, %v654
        %v661 = vld [vmem:[#allocation2] sm:$0xff]
        %v662 = vld [vmem:[#allocation2 + $0x8] sm:$0xff]
        %v663 = vld [vmem:[#allocation2 + $0x10] sm:$0xff]
        %v664 = vld [vmem:[#allocation2 + $0x18] sm:$0x1]
        %v665 = vld [vmem:[%s492] sm:$0xf]
        %v666 = vld [vmem:[%s492 + $0x4] sm:$0xf]
        %v667 = vld [vmem:[%s492 + $0x8] sm:$0xf]
        %v668 = vld [vmem:[%s492 + $0xc] sm:$0xf]
        %v669 = vld [vmem:[%s492 + $0x10] sm:$0xf]
        %v670 = vld [vmem:[%s492 + $0x14] sm:$0xf]
        %v671 = vld [vmem:[#allocation2 + $0x18] sm:$0x3]
        %v672 = vld [vmem:[%s492 + $0x18] sm:$0xf]
        %v673 = vld [vmem:[%s492 + $0x1c] sm:$0xf]
        %v674 = vld [vmem:[%s492 + $0x20] sm:$0xf]
        %v675 = vld [vmem:[%s492 + $0x24] sm:$0xf]
        %v676 = vld [vmem:[%s492 + $0x28] sm:$0xf]
        %v677 = vld [vmem:[%s492 + $0x2c] sm:$0xf]
        %vm678 = vsmask.f32 7424
        %v680 = vshrl.u32 %v661, 16
        %v682 = vshll.u32 %v661, 16
        %v684 = vrot.slane %v682, 1
        %v685 = vor.u32 %v680, %v684
        %v687 = vshll.u32 %v662, 16
        %v689 = vrot.slane %v687, 1
        %v690 = vsel %vm678, %v685, %v689
        %v691 = vshrl.u32 %v662, 16
        %v693 = vor.u32 %v691, %v689
        %v695 = vshll.u32 %v663, 16
        %v697 = vrot.slane %v695, 1
        %v698 = vsel %vm678, %v693, %v697
        %v699 = vshrl.u32 %v663, 16
        %v701 = vor.u32 %v699, %v697
        %v703 = vshll.u32 %v671, 16
        %v705 = vrot.slane %v703, 1
        %v706 = vsel %vm678, %v701, %v705
        %v707 = vshrl.u32 %v671, 16
        %v709 = vor.u32 %v707, %v705
        %v716 = vunpack.c.l.b16 %v672
        %v717 = vunpack.c.l.b16 %v673
        %v718 = vunpack.c.l.b16 %v674
        %v719 = vunpack.c.l.b16 %v675
        %v720 = vunpack.c.l.b16 %v676
        %v721 = vunpack.c.l.b16 %v677
        %v722 = vpack.c.b16 %v717, %v716
        %v723 = vpack.c.b16 %v719, %v718
        %v724 = vpack.c.b16 %v721, %v720
        %v729 = vsel %vm656, %v690, 0
        %v732 = vsel %vm656, %v698, 0
        %v735 = vsel %vm656, %v706, 0
        %v738 = vsel %vm656, %v709, 0
        %740 = vmatprep.subr.bf16.mxu0 0
        %741 = vmatpush1.bf16.msra.mxu0 %v722
        %742 = vmatprep.subr.bf16.mxu0 0
        %743 = vmatpush1.bf16.msra.mxu0 %v723
        %744 = vmatprep.subr.bf16.mxu0 0
        %745 = vmatpush1.bf16.msra.mxu0 %v724
        %746 = vmatprep.subr.bf16.mxu0 0
        %747 = vmatpush1.bf16.msra.mxu0 0
        %748 = vmatprep.subr.bf16.mxu0 0
        %749 = vmatpush1.bf16.msra.mxu0 0
        %750 = vmatprep.subr.bf16.mxu0 0
        %751 = vmatpush1.bf16.msra.mxu0 0
        %752 = vmatprep.subr.bf16.mxu0 0
        %753 = vmatpush1.bf16.msra.mxu0 0
        %754 = vmatprep.subr.bf16.mxu0 0
        %755 = vmatpush1.bf16.msra.mxu0 0
        %756 = vmatprep.subr.bf16.mxu0 0
        %757 = vmatpush1.bf16.msra.mxu0 0
        %758 = vmatprep.subr.bf16.mxu0 0
        %759 = vmatpush1.bf16.msra.mxu0 0
        %760 = vmatprep.subr.bf16.mxu0 0
        %761 = vmatpush1.bf16.msra.mxu0 0
        %762 = vmatprep.subr.bf16.mxu0 0
        %763 = vmatpush1.bf16.msra.mxu0 0
        %764 = vmatprep.subr.bf16.mxu0 0
        %765 = vmatpush1.bf16.msra.mxu0 0
        %766 = vmatprep.subr.bf16.mxu0 0
        %767 = vmatpush1.bf16.msra.mxu0 0
        %768 = vmatprep.subr.bf16.mxu0 0
        %769 = vmatpush1.bf16.msra.mxu0 0
        %770 = vmatprep.subr.bf16.mxu0 0
        %771 = vmatpush1.bf16.msra.mxu0 0
        %772 = vmatprep.mubr.bf16.mxu0 0
        %773 = vmatmul.mubr.bf16.gmra.mrb[0].mxu0 %v729
        %v774 = vpop.f32.mrb[0].mxu0
        %v775 = vadd.f32 0.0, %v774
        %v776 = vpop.f32.mrb[0].mxu0
        %v777 = vpop.f32.mrb[0].mxu0
        %v778 = vadd.f32 0.0, %v777
        %v779 = vpop.f32.mrb[0].mxu0
        %780 = vmatprep.mubr.bf16.mxu0 0
        %781 = vmatmul.mubr.bf16.gmra.mrb[0].mxu0 %v732
        %v782 = vpop.f32.mrb[0].mxu0
        %v783 = vadd.f32 0.0, %v782
        %v784 = vpop.f32.mrb[0].mxu0
        %v785 = vpop.f32.mrb[0].mxu0
        %v786 = vadd.f32 0.0, %v785
        %v787 = vpop.f32.mrb[0].mxu0
        %788 = vmatprep.mubr.bf16.mxu0 0
        %789 = vmatmul.mubr.bf16.gmra.mrb[0].mxu0 %v735
        %v790 = vpop.f32.mrb[0].mxu0
        %v791 = vadd.f32 0.0, %v790
        %v792 = vpop.f32.mrb[0].mxu0
        %v793 = vpop.f32.mrb[0].mxu0
        %v794 = vadd.f32 0.0, %v793
        %v795 = vpop.f32.mrb[0].mxu0
        %796 = vmatprep.mubr.bf16.mxu0 0
        %797 = vmatmul.mubr.bf16.gmra.mrb[0].mxu0 %v738
        %v798 = vpop.f32.mrb[0].mxu0
        %v799 = vadd.f32 0.0, %v798
        %v800 = vpop.f32.mrb[0].mxu0
        %v801 = vpop.f32.mrb[0].mxu0
        %v802 = vpop.f32.mrb[0].mxu0
        %803 = vdwg.mxu0
        %v810 = vunpack.c.l.b16 %v665
        %v811 = vunpack.c.l.b16 %v666
        %v812 = vunpack.c.l.b16 %v667
        %v813 = vunpack.c.l.b16 %v668
        %v814 = vunpack.c.l.b16 %v669
        %v815 = vunpack.c.l.b16 %v670
        %v816 = vpack.c.b16 %v811, %v810
        %v817 = vpack.c.b16 %v813, %v812
        %v818 = vpack.c.b16 %v815, %v814
        %v822 = vsel %vm656, %v661, 0
        %v824 = vsel %vm656, %v662, 0
        %v826 = vsel %vm656, %v663, 0
        %v829 = vsel %vm656, %v664, 0
        %831 = vmatprep.subr.bf16.mxu0 0
        %832 = vmatpush1.bf16.msra.mxu0 %v816
        %833 = vmatprep.subr.bf16.mxu0 0
        %834 = vmatpush1.bf16.msra.mxu0 %v817
        %835 = vmatprep.subr.bf16.mxu0 0
        %836 = vmatpush1.bf16.msra.mxu0 %v818
        %837 = vmatprep.subr.bf16.mxu0 0
        %838 = vmatpush1.bf16.msra.mxu0 0
        %839 = vmatprep.subr.bf16.mxu0 0
        %840 = vmatpush1.bf16.msra.mxu0 0
        %841 = vmatprep.subr.bf16.mxu0 0
        %842 = vmatpush1.bf16.msra.mxu0 0
        %843 = vmatprep.subr.bf16.mxu0 0
        %844 = vmatpush1.bf16.msra.mxu0 0
        %845 = vmatprep.subr.bf16.mxu0 0
        %846 = vmatpush1.bf16.msra.mxu0 0
        %847 = vmatprep.subr.bf16.mxu0 0
        %848 = vmatpush1.bf16.msra.mxu0 0
        %849 = vmatprep.subr.bf16.mxu0 0
        %850 = vmatpush1.bf16.msra.mxu0 0
        %851 = vmatprep.subr.bf16.mxu0 0
        %852 = vmatpush1.bf16.msra.mxu0 0
        %853 = vmatprep.subr.bf16.mxu0 0
        %854 = vmatpush1.bf16.msra.mxu0 0
        %855 = vmatprep.subr.bf16.mxu0 0
        %856 = vmatpush1.bf16.msra.mxu0 0
        %857 = vmatprep.subr.bf16.mxu0 0
        %858 = vmatpush1.bf16.msra.mxu0 0
        %859 = vmatprep.subr.bf16.mxu0 0
        %860 = vmatpush1.bf16.msra.mxu0 0
        %861 = vmatprep.subr.bf16.mxu0 0
        %862 = vmatpush1.bf16.msra.mxu0 0
        %863 = vmatprep.mubr.bf16.mxu0 0
        %864 = vmatmul.mubr.bf16.gmra.mrb[0].mxu0 %v822
        %v865 = vpop.f32.mrb[0].mxu0
        %v866 = vadd.f32 %v775, %v865
        %v867 = vpop.f32.mrb[0].mxu0
        %v868 = vpop.f32.mrb[0].mxu0
        %v869 = vadd.f32 %v778, %v868
        %v870 = vpop.f32.mrb[0].mxu0
        %871 = vmatprep.mubr.bf16.mxu0 0
        %872 = vmatmul.mubr.bf16.gmra.mrb[0].mxu0 %v824
        %v873 = vpop.f32.mrb[0].mxu0
        %v874 = vadd.f32 %v783, %v873
        %v875 = vpop.f32.mrb[0].mxu0
        %v876 = vpop.f32.mrb[0].mxu0
        %v877 = vadd.f32 %v786, %v876
        %v878 = vpop.f32.mrb[0].mxu0
        %879 = vmatprep.mubr.bf16.mxu0 0
        %880 = vmatmul.mubr.bf16.gmra.mrb[0].mxu0 %v826
        %v881 = vpop.f32.mrb[0].mxu0
        %v882 = vadd.f32 %v791, %v881
        %v883 = vpop.f32.mrb[0].mxu0
        %v884 = vpop.f32.mrb[0].mxu0
        %v885 = vadd.f32 %v794, %v884
        %v886 = vpop.f32.mrb[0].mxu0
        %887 = vmatprep.mubr.bf16.mxu0 0
        %888 = vmatmul.mubr.bf16.gmra.mrb[0].mxu0 %v829
        %v889 = vpop.f32.mrb[0].mxu0
        %v890 = vadd.f32 %v799, %v889
        %v891 = vpop.f32.mrb[0].mxu0
        %v892 = vpop.f32.mrb[0].mxu0
        %v893 = vpop.f32.mrb[0].mxu0
        %894 = vdwg.mxu0
        %v895 = vld [vmem:[#allocation2] sm:$0xfe]
        %v896 = vld [vmem:[%s492 + $0x30] sm:$0xf]
        %v897 = vld [vmem:[%s492 + $0x34] sm:$0xf]
        %v898 = vld [vmem:[%s492 + $0x38] sm:$0xf]
        %v899 = vld [vmem:[%s492 + $0x3c] sm:$0xf]
        %v900 = vld [vmem:[%s492 + $0x40] sm:$0xf]
        %v901 = vld [vmem:[%s492 + $0x44] sm:$0xf]
        %vm906 = vcmask 1046528
        %v907 = vrot.slane %v895, 1
        %v908 = vrot.slane %v662, 1
        %v909 = vsel %vm906, %v907, %v908
        %v910 = vrot.slane %v663, 1
        %v911 = vsel %vm906, %v908, %v910
        %v912 = vrot.slane %v671, 1
        %v913 = vsel %vm906, %v910, %v912
        %v920 = vunpack.c.l.b16 %v896
        %v921 = vunpack.c.l.b16 %v897
        %v922 = vunpack.c.l.b16 %v898
        %v923 = vunpack.c.l.b16 %v899
        %v924 = vunpack.c.l.b16 %v900
        %v925 = vunpack.c.l.b16 %v901
        %v926 = vpack.c.b16 %v921, %v920
        %v927 = vpack.c.b16 %v923, %v922
        %v928 = vpack.c.b16 %v925, %v924
        %v933 = vsel %vm656, %v909, 0
        %v936 = vsel %vm656, %v911, 0
        %v939 = vsel %vm656, %v913, 0
        %v942 = vsel %vm656, %v912, 0
        %944 = vmatprep.subr.bf16.mxu0 0
        %945 = vmatpush1.bf16.msra.mxu0 %v926
        %946 = vmatprep.subr.bf16.mxu0 0
        %947 = vmatpush1.bf16.msra.mxu0 %v927
        %948 = vmatprep.subr.bf16.mxu0 0
        %949 = vmatpush1.bf16.msra.mxu0 %v928
        %950 = vmatprep.subr.bf16.mxu0 0
        %951 = vmatpush1.bf16.msra.mxu0 0
        %952 = vmatprep.subr.bf16.mxu0 0
        %953 = vmatpush1.bf16.msra.mxu0 0
        %954 = vmatprep.subr.bf16.mxu0 0
        %955 = vmatpush1.bf16.msra.mxu0 0
        %956 = vmatprep.subr.bf16.mxu0 0
        %957 = vmatpush1.bf16.msra.mxu0 0
        %958 = vmatprep.subr.bf16.mxu0 0
        %959 = vmatpush1.bf16.msra.mxu0 0
        %960 = vmatprep.subr.bf16.mxu0 0
        %961 = vmatpush1.bf16.msra.mxu0 0
        %962 = vmatprep.subr.bf16.mxu0 0
        %963 = vmatpush1.bf16.msra.mxu0 0
        %964 = vmatprep.subr.bf16.mxu0 0
        %965 = vmatpush1.bf16.msra.mxu0 0
        %966 = vmatprep.subr.bf16.mxu0 0
        %967 = vmatpush1.bf16.msra.mxu0 0
        %968 = vmatprep.subr.bf16.mxu0 0
        %969 = vmatpush1.bf16.msra.mxu0 0
        %970 = vmatprep.subr.bf16.mxu0 0
        %971 = vmatpush1.bf16.msra.mxu0 0
        %972 = vmatprep.subr.bf16.mxu0 0
        %973 = vmatpush1.bf16.msra.mxu0 0
        %974 = vmatprep.subr.bf16.mxu0 0
        %975 = vmatpush1.bf16.msra.mxu0 0
        %976 = vmatprep.mubr.bf16.mxu0 0
        %977 = vmatmul.mubr.bf16.gmra.mrb[0].mxu0 %v933
        %v978 = vpop.f32.mrb[0].mxu0
        %v979 = vadd.f32 0.0, %v978
        %v980 = vpop.f32.mrb[0].mxu0
        %v981 = vpop.f32.mrb[0].mxu0
        %v982 = vadd.f32 0.0, %v981
        %v983 = vpop.f32.mrb[0].mxu0
        %984 = vmatprep.mubr.bf16.mxu0 0
        %985 = vmatmul.mubr.bf16.gmra.mrb[0].mxu0 %v936
        %v986 = vpop.f32.mrb[0].mxu0
        %v987 = vadd.f32 0.0, %v986
        %v988 = vpop.f32.mrb[0].mxu0
        %v989 = vpop.f32.mrb[0].mxu0
        %v990 = vadd.f32 0.0, %v989
        %v991 = vpop.f32.mrb[0].mxu0
        %992 = vmatprep.mubr.bf16.mxu0 0
        %993 = vmatmul.mubr.bf16.gmra.mrb[0].mxu0 %v939
        %v994 = vpop.f32.mrb[0].mxu0
        %v995 = vadd.f32 0.0, %v994
        %v996 = vpop.f32.mrb[0].mxu0
        %v997 = vpop.f32.mrb[0].mxu0
        %v998 = vadd.f32 0.0, %v997
        %v999 = vpop.f32.mrb[0].mxu0
        %1000 = vmatprep.mubr.bf16.mxu0 0
        %1001 = vmatmul.mubr.bf16.gmra.mrb[0].mxu0 %v942
        %v1002 = vpop.f32.mrb[0].mxu0
        %v1003 = vadd.f32 0.0, %v1002
        %v1004 = vpop.f32.mrb[0].mxu0
        %v1005 = vpop.f32.mrb[0].mxu0
        %v1006 = vpop.f32.mrb[0].mxu0
        %1007 = vdwg.mxu0
        %v1008 = vadd.f32 %v866, %v979
        %v1009 = vadd.f32 %v869, %v982
        %v1010 = vadd.f32 %v874, %v987
        %v1011 = vadd.f32 %v877, %v990
        %v1012 = vadd.f32 %v882, %v995
        %v1013 = vadd.f32 %v885, %v998
        %v1014 = vadd.f32 %v890, %v1003
        %v1015 = vld [vmem:[#allocation2] sm:$0xf8]
        %v1016 = vld [vmem:[#allocation2 + $0x18] sm:$0xf]
        %v1017 = vld [vmem:[%s492 + $0x48] sm:$0xf]
        %v1018 = vld [vmem:[%s492 + $0x4c] sm:$0xf]
        %v1019 = vld [vmem:[%s492 + $0x50] sm:$0xf]
        %v1020 = vld [vmem:[%s492 + $0x54] sm:$0xf]
        %v1021 = vld [vmem:[%s492 + $0x58] sm:$0xf]
        %v1022 = vld [vmem:[%s492 + $0x5c] sm:$0xf]
        %vm1025 = vcmask 1044480
        %v1026 = vrot.slane %v1015, 3
        %v1027 = vrot.slane %v662, 3
        %v1028 = vsel %vm1025, %v1026, %v1027
        %v1029 = vrot.slane %v663, 3
        %v1030 = vsel %vm1025, %v1027, %v1029
        %v1031 = vrot.slane %v1016, 3
        %v1032 = vsel %vm1025, %v1029, %v1031
        %v1039 = vunpack.c.l.b16 %v1017
        %v1040 = vunpack.c.l.b16 %v1018
        %v1041 = vunpack.c.l.b16 %v1019
        %v1042 = vunpack.c.l.b16 %v1020
        %v1043 = vunpack.c.l.b16 %v1021
        %v1044 = vunpack.c.l.b16 %v1022
        %v1045 = vpack.c.b16 %v1040, %v1039
        %v1046 = vpack.c.b16 %v1042, %v1041
        %v1047 = vpack.c.b16 %v1044, %v1043
        %v1052 = vsel %vm656, %v1028, 0
        %v1055 = vsel %vm656, %v1030, 0
        %v1058 = vsel %vm656, %v1032, 0
        %v1061 = vsel %vm656, %v1031, 0
        %1063 = vmatprep.subr.bf16.mxu0 0
        %1064 = vmatpush1.bf16.msra.mxu0 %v1045
        %1065 = vmatprep.subr.bf16.mxu0 0
        %1066 = vmatpush1.bf16.msra.mxu0 %v1046
        %1067 = vmatprep.subr.bf16.mxu0 0
        %1068 = vmatpush1.bf16.msra.mxu0 %v1047
        %1069 = vmatprep.subr.bf16.mxu0 0
        %1070 = vmatpush1.bf16.msra.mxu0 0
        %1071 = vmatprep.subr.bf16.mxu0 0
        %1072 = vmatpush1.bf16.msra.mxu0 0
        %1073 = vmatprep.subr.bf16.mxu0 0
        %1074 = vmatpush1.bf16.msra.mxu0 0
        %1075 = vmatprep.subr.bf16.mxu0 0
        %1076 = vmatpush1.bf16.msra.mxu0 0
        %1077 = vmatprep.subr.bf16.mxu0 0
        %1078 = vmatpush1.bf16.msra.mxu0 0
        %1079 = vmatprep.subr.bf16.mxu0 0
        %1080 = vmatpush1.bf16.msra.mxu0 0
        %1081 = vmatprep.subr.bf16.mxu0 0
        %1082 = vmatpush1.bf16.msra.mxu0 0
        %1083 = vmatprep.subr.bf16.mxu0 0
        %1084 = vmatpush1.bf16.msra.mxu0 0
        %1085 = vmatprep.subr.bf16.mxu0 0
        %1086 = vmatpush1.bf16.msra.mxu0 0
        %1087 = vmatprep.subr.bf16.mxu0 0
        %1088 = vmatpush1.bf16.msra.mxu0 0
        %1089 = vmatprep.subr.bf16.mxu0 0
        %1090 = vmatpush1.bf16.msra.mxu0 0
        %1091 = vmatprep.subr.bf16.mxu0 0
        %1092 = vmatpush1.bf16.msra.mxu0 0
        %1093 = vmatprep.subr.bf16.mxu0 0
        %1094 = vmatpush1.bf16.msra.mxu0 0
        %1095 = vmatprep.mubr.bf16.mxu0 0
        %1096 = vmatmul.mubr.bf16.gmra.mrb[0].mxu0 %v1052
        %v1097 = vpop.f32.mrb[0].mxu0
        %v1098 = vadd.f32 0.0, %v1097
        %v1099 = vpop.f32.mrb[0].mxu0
        %v1100 = vpop.f32.mrb[0].mxu0
        %v1101 = vadd.f32 0.0, %v1100
        %v1102 = vpop.f32.mrb[0].mxu0
        %1103 = vmatprep.mubr.bf16.mxu0 0
        %1104 = vmatmul.mubr.bf16.gmra.mrb[0].mxu0 %v1055
        %v1105 = vpop.f32.mrb[0].mxu0
        %v1106 = vadd.f32 0.0, %v1105
        %v1107 = vpop.f32.mrb[0].mxu0
        %v1108 = vpop.f32.mrb[0].mxu0
        %v1109 = vadd.f32 0.0, %v1108
        %v1110 = vpop.f32.mrb[0].mxu0
        %1111 = vmatprep.mubr.bf16.mxu0 0
        %1112 = vmatmul.mubr.bf16.gmra.mrb[0].mxu0 %v1058
        %v1113 = vpop.f32.mrb[0].mxu0
        %v1114 = vadd.f32 0.0, %v1113
        %v1115 = vpop.f32.mrb[0].mxu0
        %v1116 = vpop.f32.mrb[0].mxu0
        %v1117 = vadd.f32 0.0, %v1116
        %v1118 = vpop.f32.mrb[0].mxu0
        %1119 = vmatprep.mubr.bf16.mxu0 0
        %1120 = vmatmul.mubr.bf16.gmra.mrb[0].mxu0 %v1061
        %v1121 = vpop.f32.mrb[0].mxu0
        %v1122 = vadd.f32 0.0, %v1121
        %v1123 = vpop.f32.mrb[0].mxu0
        %v1124 = vpop.f32.mrb[0].mxu0
        %v1125 = vpop.f32.mrb[0].mxu0
        %1126 = vdwg.mxu0
        %v1127 = vadd.f32 %v1008, %v1098
        %v1128 = vadd.f32 %v1009, %v1101
        %v1129 = vadd.f32 %v1010, %v1106
        %v1130 = vadd.f32 %v1011, %v1109
        %v1131 = vadd.f32 %v1012, %v1114
        %v1132 = vadd.f32 %v1013, %v1117
        %v1133 = vadd.f32 %v1014, %v1122
        %v1134 = vld [vmem:[#allocation2 + $0x18] sm:$0x1f]
        %v1135 = vld [vmem:[%s492 + $0x60] sm:$0xf]
        %v1136 = vld [vmem:[%s492 + $0x64] sm:$0xf]
        %v1137 = vld [vmem:[%s492 + $0x68] sm:$0xf]
        %v1138 = vld [vmem:[%s492 + $0x6c] sm:$0xf]
        %v1139 = vld [vmem:[%s492 + $0x70] sm:$0xf]
        %v1140 = vld [vmem:[%s492 + $0x74] sm:$0xf]
        %vm1141 = vsmask.f32 4352
        %v1143 = vshrl.u32 %v1015, 16
        %v1145 = vrot.slane %v1143, 3
        %v1146 = vshll.u32 %v1015, 16
        %v1148 = vrot.slane %v1146, 4
        %v1149 = vor.u32 %v1145, %v1148
        %v1150 = vrot.slane %v691, 3
        %v1151 = vrot.slane %v687, 4
        %v1152 = vor.u32 %v1150, %v1151
        %v1153 = vsel %vm1141, %v1149, %v1152
        %v1154 = vrot.slane %v699, 3
        %v1155 = vrot.slane %v695, 4
        %v1156 = vor.u32 %v1154, %v1155
        %v1157 = vsel %vm1141, %v1152, %v1156
        %v1159 = vshrl.u32 %v1134, 16
        %v1161 = vrot.slane %v1159, 3
        %v1162 = vshll.u32 %v1134, 16
        %v1164 = vrot.slane %v1162, 4
        %v1165 = vor.u32 %v1161, %v1164
        %v1166 = vsel %vm1141, %v1156, %v1165
        %v1173 = vunpack.c.l.b16 %v1135
        %v1174 = vunpack.c.l.b16 %v1136
        %v1175 = vunpack.c.l.b16 %v1137
        %v1176 = vunpack.c.l.b16 %v1138
        %v1177 = vunpack.c.l.b16 %v1139
        %v1178 = vunpack.c.l.b16 %v1140
        %v1179 = vpack.c.b16 %v1174, %v1173
        %v1180 = vpack.c.b16 %v1176, %v1175
        %v1181 = vpack.c.b16 %v1178, %v1177
        %v1186 = vsel %vm656, %v1153, 0
        %v1189 = vsel %vm656, %v1157, 0
        %v1192 = vsel %vm656, %v1166, 0
        %v1195 = vsel %vm656, %v1165, 0
        %1197 = vmatprep.subr.bf16.mxu0 0
        %1198 = vmatpush1.bf16.msra.mxu0 %v1179
        %1199 = vmatprep.subr.bf16.mxu0 0
        %1200 = vmatpush1.bf16.msra.mxu0 %v1180
        %1201 = vmatprep.subr.bf16.mxu0 0
        %1202 = vmatpush1.bf16.msra.mxu0 %v1181
        %1203 = vmatprep.subr.bf16.mxu0 0
        %1204 = vmatpush1.bf16.msra.mxu0 0
        %1205 = vmatprep.subr.bf16.mxu0 0
        %1206 = vmatpush1.bf16.msra.mxu0 0
        %1207 = vmatprep.subr.bf16.mxu0 0
        %1208 = vmatpush1.bf16.msra.mxu0 0
        %1209 = vmatprep.subr.bf16.mxu0 0
        %1210 = vmatpush1.bf16.msra.mxu0 0
        %1211 = vmatprep.subr.bf16.mxu0 0
        %1212 = vmatpush1.bf16.msra.mxu0 0
        %1213 = vmatprep.subr.bf16.mxu0 0
        %1214 = vmatpush1.bf16.msra.mxu0 0
        %1215 = vmatprep.subr.bf16.mxu0 0
        %1216 = vmatpush1.bf16.msra.mxu0 0
        %1217 = vmatprep.subr.bf16.mxu0 0
        %1218 = vmatpush1.bf16.msra.mxu0 0
        %1219 = vmatprep.subr.bf16.mxu0 0
        %1220 = vmatpush1.bf16.msra.mxu0 0
        %1221 = vmatprep.subr.bf16.mxu0 0
        %1222 = vmatpush1.bf16.msra.mxu0 0
        %1223 = vmatprep.subr.bf16.mxu0 0
        %1224 = vmatpush1.bf16.msra.mxu0 0
        %1225 = vmatprep.subr.bf16.mxu0 0
        %1226 = vmatpush1.bf16.msra.mxu0 0
        %1227 = vmatprep.subr.bf16.mxu0 0
        %1228 = vmatpush1.bf16.msra.mxu0 0
        %1229 = vmatprep.mubr.bf16.mxu0 0
        %1230 = vmatmul.mubr.bf16.gmra.mrb[0].mxu0 %v1186
        %v1231 = vpop.f32.mrb[0].mxu0
        %v1232 = vadd.f32 0.0, %v1231
        %v1233 = vpop.f32.mrb[0].mxu0
        %v1234 = vpop.f32.mrb[0].mxu0
        %v1235 = vadd.f32 0.0, %v1234
        %v1236 = vpop.f32.mrb[0].mxu0
        %1237 = vmatprep.mubr.bf16.mxu0 0
        %1238 = vmatmul.mubr.bf16.gmra.mrb[0].mxu0 %v1189
        %v1239 = vpop.f32.mrb[0].mxu0
        %v1240 = vadd.f32 0.0, %v1239
        %v1241 = vpop.f32.mrb[0].mxu0
        %v1242 = vpop.f32.mrb[0].mxu0
        %v1243 = vadd.f32 0.0, %v1242
        %v1244 = vpop.f32.mrb[0].mxu0
        %1245 = vmatprep.mubr.bf16.mxu0 0
        %1246 = vmatmul.mubr.bf16.gmra.mrb[0].mxu0 %v1192
        %v1247 = vpop.f32.mrb[0].mxu0
        %v1248 = vadd.f32 0.0, %v1247
        %v1249 = vpop.f32.mrb[0].mxu0
        %v1250 = vpop.f32.mrb[0].mxu0
        %v1251 = vadd.f32 0.0, %v1250
        %v1252 = vpop.f32.mrb[0].mxu0
        %1253 = vmatprep.mubr.bf16.mxu0 0
        %1254 = vmatmul.mubr.bf16.gmra.mrb[0].mxu0 %v1195
        %v1255 = vpop.f32.mrb[0].mxu0
        %v1256 = vadd.f32 0.0, %v1255
        %v1257 = vpop.f32.mrb[0].mxu0
        %v1258 = vpop.f32.mrb[0].mxu0
        %v1259 = vpop.f32.mrb[0].mxu0
        %1260 = vdwg.mxu0
        %v1261 = vadd.f32 %v1127, %v1232
        %v1262 = vadd.f32 %v1128, %v1235
        %v1263 = vadd.f32 %v1129, %v1240
        %v1264 = vadd.f32 %v1130, %v1243
        %v1265 = vadd.f32 %v1131, %v1248
        %v1266 = vadd.f32 %v1132, %v1251
        %v1267 = vadd.f32 %v1133, %v1256
        %v1268 = vld [vmem:[#allocation2] sm:$0xf0]
        %v1269 = vld [vmem:[%s492 + $0x78] sm:$0xf]
        %v1270 = vld [vmem:[%s492 + $0x7c] sm:$0xf]
        %v1271 = vld [vmem:[%s492 + $0x80] sm:$0xf]
        %v1272 = vld [vmem:[%s492 + $0x84] sm:$0xf]
        %v1273 = vld [vmem:[%s492 + $0x88] sm:$0xf]
        %v1274 = vld [vmem:[%s492 + $0x8c] sm:$0xf]
        %vm1277 = vcmask 1043456
        %v1278 = vrot.slane %v1268, 4
        %v1279 = vrot.slane %v662, 4
        %v1280 = vsel %vm1277, %v1278, %v1279
        %v1281 = vrot.slane %v663, 4
        %v1282 = vsel %vm1277, %v1279, %v1281
        %v1283 = vrot.slane %v1134, 4
        %v1284 = vsel %vm1277, %v1281, %v1283
        %v1291 = vunpack.c.l.b16 %v1269
        %v1292 = vunpack.c.l.b16 %v1270
        %v1293 = vunpack.c.l.b16 %v1271
        %v1294 = vunpack.c.l.b16 %v1272
        %v1295 = vunpack.c.l.b16 %v1273
        %v1296 = vunpack.c.l.b16 %v1274
        %v1297 = vpack.c.b16 %v1292, %v1291
        %v1298 = vpack.c.b16 %v1294, %v1293
        %v1299 = vpack.c.b16 %v1296, %v1295
        %v1304 = vsel %vm656, %v1280, 0
        %v1307 = vsel %vm656, %v1282, 0
        %v1310 = vsel %vm656, %v1284, 0
        %v1313 = vsel %vm656, %v1283, 0
        %1315 = vmatprep.subr.bf16.mxu0 0
        %1316 = vmatpush1.bf16.msra.mxu0 %v1297
        %1317 = vmatprep.subr.bf16.mxu0 0
        %1318 = vmatpush1.bf16.msra.mxu0 %v1298
        %1319 = vmatprep.subr.bf16.mxu0 0
        %1320 = vmatpush1.bf16.msra.mxu0 %v1299
        %1321 = vmatprep.subr.bf16.mxu0 0
        %1322 = vmatpush1.bf16.msra.mxu0 0
        %1323 = vmatprep.subr.bf16.mxu0 0
        %1324 = vmatpush1.bf16.msra.mxu0 0
        %1325 = vmatprep.subr.bf16.mxu0 0
        %1326 = vmatpush1.bf16.msra.mxu0 0
        %1327 = vmatprep.subr.bf16.mxu0 0
        %1328 = vmatpush1.bf16.msra.mxu0 0
        %1329 = vmatprep.subr.bf16.mxu0 0
        %1330 = vmatpush1.bf16.msra.mxu0 0
        %1331 = vmatprep.subr.bf16.mxu0 0
        %1332 = vmatpush1.bf16.msra.mxu0 0
        %1333 = vmatprep.subr.bf16.mxu0 0
        %1334 = vmatpush1.bf16.msra.mxu0 0
        %1335 = vmatprep.subr.bf16.mxu0 0
        %1336 = vmatpush1.bf16.msra.mxu0 0
        %1337 = vmatprep.subr.bf16.mxu0 0
        %1338 = vmatpush1.bf16.msra.mxu0 0
        %1339 = vmatprep.subr.bf16.mxu0 0
        %1340 = vmatpush1.bf16.msra.mxu0 0
        %1341 = vmatprep.subr.bf16.mxu0 0
        %1342 = vmatpush1.bf16.msra.mxu0 0
        %1343 = vmatprep.subr.bf16.mxu0 0
        %1344 = vmatpush1.bf16.msra.mxu0 0
        %1345 = vmatprep.subr.bf16.mxu0 0
        %1346 = vmatpush1.bf16.msra.mxu0 0
        %1347 = vmatprep.mubr.bf16.mxu0 0
        %1348 = vmatmul.mubr.bf16.gmra.mrb[0].mxu0 %v1304
        %v1349 = vpop.f32.mrb[0].mxu0
        %v1350 = vadd.f32 0.0, %v1349
        %v1351 = vpop.f32.mrb[0].mxu0
        %v1352 = vpop.f32.mrb[0].mxu0
        %v1353 = vadd.f32 0.0, %v1352
        %v1354 = vpop.f32.mrb[0].mxu0
        %1355 = vmatprep.mubr.bf16.mxu0 0
        %1356 = vmatmul.mubr.bf16.gmra.mrb[0].mxu0 %v1307
        %v1357 = vpop.f32.mrb[0].mxu0
        %v1358 = vadd.f32 0.0, %v1357
        %v1359 = vpop.f32.mrb[0].mxu0
        %v1360 = vpop.f32.mrb[0].mxu0
        %v1361 = vadd.f32 0.0, %v1360
        %v1362 = vpop.f32.mrb[0].mxu0
        %1363 = vmatprep.mubr.bf16.mxu0 0
        %1364 = vmatmul.mubr.bf16.gmra.mrb[0].mxu0 %v1310
        %v1365 = vpop.f32.mrb[0].mxu0
        %v1366 = vadd.f32 0.0, %v1365
        %v1367 = vpop.f32.mrb[0].mxu0
        %v1368 = vpop.f32.mrb[0].mxu0
        %v1369 = vadd.f32 0.0, %v1368
        %v1370 = vpop.f32.mrb[0].mxu0
        %1371 = vmatprep.mubr.bf16.mxu0 0
        %1372 = vmatmul.mubr.bf16.gmra.mrb[0].mxu0 %v1313
        %v1373 = vpop.f32.mrb[0].mxu0
        %v1374 = vadd.f32 0.0, %v1373
        %v1375 = vpop.f32.mrb[0].mxu0
        %v1376 = vpop.f32.mrb[0].mxu0
        %v1377 = vpop.f32.mrb[0].mxu0
        %1378 = vdwg.mxu0
        %v1379 = vadd.f32 %v1261, %v1350
        %v1380 = vadd.f32 %v1262, %v1353
        %v1381 = vadd.f32 %v1263, %v1358
        %v1382 = vadd.f32 %v1264, %v1361
        %v1383 = vadd.f32 %v1265, %v1366
        %v1384 = vadd.f32 %v1266, %v1369
        %v1385 = vadd.f32 %v1267, %v1374
        %v1386 = vld [vmem:[#allocation2] sm:$0xc0]
        %v1387 = vld [vmem:[#allocation2 + $0x18] sm:$0x7f]
        %v1388 = vld [vmem:[%s492 + $0x90] sm:$0xf]
        %v1389 = vld [vmem:[%s492 + $0x94] sm:$0xf]
        %v1390 = vld [vmem:[%s492 + $0x98] sm:$0xf]
        %v1391 = vld [vmem:[%s492 + $0x9c] sm:$0xf]
        %v1392 = vld [vmem:[%s492 + $0xa0] sm:$0xf]
        %v1393 = vld [vmem:[%s492 + $0xa4] sm:$0xf]
        %vm1396 = vcmask 1041408
        %v1397 = vrot.slane %v1386, 6
        %v1398 = vrot.slane %v662, 6
        %v1399 = vsel %vm1396, %v1397, %v1398
        %v1400 = vrot.slane %v663, 6
        %v1401 = vsel %vm1396, %v1398, %v1400
        %v1402 = vrot.slane %v1387, 6
        %v1403 = vsel %vm1396, %v1400, %v1402
        %v1410 = vunpack.c.l.b16 %v1388
        %v1411 = vunpack.c.l.b16 %v1389
        %v1412 = vunpack.c.l.b16 %v1390
        %v1413 = vunpack.c.l.b16 %v1391
        %v1414 = vunpack.c.l.b16 %v1392
        %v1415 = vunpack.c.l.b16 %v1393
        %v1416 = vpack.c.b16 %v1411, %v1410
        %v1417 = vpack.c.b16 %v1413, %v1412
        %v1418 = vpack.c.b16 %v1415, %v1414
        %v1423 = vsel %vm656, %v1399, 0
        %v1426 = vsel %vm656, %v1401, 0
        %v1429 = vsel %vm656, %v1403, 0
        %v1432 = vsel %vm656, %v1402, 0
        %1434 = vmatprep.subr.bf16.mxu0 0
        %1435 = vmatpush1.bf16.msra.mxu0 %v1416
        %1436 = vmatprep.subr.bf16.mxu0 0
        %1437 = vmatpush1.bf16.msra.mxu0 %v1417
        %1438 = vmatprep.subr.bf16.mxu0 0
        %1439 = vmatpush1.bf16.msra.mxu0 %v1418
        %1440 = vmatprep.subr.bf16.mxu0 0
        %1441 = vmatpush1.bf16.msra.mxu0 0
        %1442 = vmatprep.subr.bf16.mxu0 0
        %1443 = vmatpush1.bf16.msra.mxu0 0
        %1444 = vmatprep.subr.bf16.mxu0 0
        %1445 = vmatpush1.bf16.msra.mxu0 0
        %1446 = vmatprep.subr.bf16.mxu0 0
        %1447 = vmatpush1.bf16.msra.mxu0 0
        %1448 = vmatprep.subr.bf16.mxu0 0
        %1449 = vmatpush1.bf16.msra.mxu0 0
        %1450 = vmatprep.subr.bf16.mxu0 0
        %1451 = vmatpush1.bf16.msra.mxu0 0
        %1452 = vmatprep.subr.bf16.mxu0 0
        %1453 = vmatpush1.bf16.msra.mxu0 0
        %1454 = vmatprep.subr.bf16.mxu0 0
        %1455 = vmatpush1.bf16.msra.mxu0 0
        %1456 = vmatprep.subr.bf16.mxu0 0
        %1457 = vmatpush1.bf16.msra.mxu0 0
        %1458 = vmatprep.subr.bf16.mxu0 0
        %1459 = vmatpush1.bf16.msra.mxu0 0
        %1460 = vmatprep.subr.bf16.mxu0 0
        %1461 = vmatpush1.bf16.msra.mxu0 0
        %1462 = vmatprep.subr.bf16.mxu0 0
        %1463 = vmatpush1.bf16.msra.mxu0 0
        %1464 = vmatprep.subr.bf16.mxu0 0
        %1465 = vmatpush1.bf16.msra.mxu0 0
        %1466 = vmatprep.mubr.bf16.mxu0 0
        %1467 = vmatmul.mubr.bf16.gmra.mrb[0].mxu0 %v1423
        %v1468 = vpop.f32.mrb[0].mxu0
        %v1469 = vadd.f32 0.0, %v1468
        %v1470 = vpop.f32.mrb[0].mxu0
        %v1471 = vpop.f32.mrb[0].mxu0
        %v1472 = vadd.f32 0.0, %v1471
        %v1473 = vpop.f32.mrb[0].mxu0
        %1474 = vmatprep.mubr.bf16.mxu0 0
        %1475 = vmatmul.mubr.bf16.gmra.mrb[0].mxu0 %v1426
        %v1476 = vpop.f32.mrb[0].mxu0
        %v1477 = vadd.f32 0.0, %v1476
        %v1478 = vpop.f32.mrb[0].mxu0
        %v1479 = vpop.f32.mrb[0].mxu0
        %v1480 = vadd.f32 0.0, %v1479
        %v1481 = vpop.f32.mrb[0].mxu0
        %1482 = vmatprep.mubr.bf16.mxu0 0
        %1483 = vmatmul.mubr.bf16.gmra.mrb[0].mxu0 %v1429
        %v1484 = vpop.f32.mrb[0].mxu0
        %v1485 = vadd.f32 0.0, %v1484
        %v1486 = vpop.f32.mrb[0].mxu0
        %v1487 = vpop.f32.mrb[0].mxu0
        %v1488 = vadd.f32 0.0, %v1487
        %v1489 = vpop.f32.mrb[0].mxu0
        %1490 = vmatprep.mubr.bf16.mxu0 0
        %1491 = vmatmul.mubr.bf16.gmra.mrb[0].mxu0 %v1432
        %v1492 = vpop.f32.mrb[0].mxu0
        %v1493 = vadd.f32 0.0, %v1492
        %v1494 = vpop.f32.mrb[0].mxu0
        %v1495 = vpop.f32.mrb[0].mxu0
        %v1496 = vpop.f32.mrb[0].mxu0
        %1497 = vdwg.mxu0
        %v1498 = vadd.f32 %v1379, %v1469
        %v1499 = vadd.f32 %v1380, %v1472
        %v1500 = vadd.f32 %v1381, %v1477
        %v1501 = vadd.f32 %v1382, %v1480
        %v1502 = vadd.f32 %v1383, %v1485
        %v1503 = vadd.f32 %v1384, %v1488
        %v1504 = vadd.f32 %v1385, %v1493
        %v1505 = vld [vmem:[#allocation2 + $0x18] sm:$0xff]
        %v1506 = vld [vmem:[%s492 + $0xa8] sm:$0xf]
        %v1507 = vld [vmem:[%s492 + $0xac] sm:$0xf]
        %v1508 = vld [vmem:[%s492 + $0xb0] sm:$0xf]
        %v1509 = vld [vmem:[%s492 + $0xb4] sm:$0xf]
        %v1510 = vld [vmem:[%s492 + $0xb8] sm:$0xf]
        %v1511 = vld [vmem:[%s492 + $0xbc] sm:$0xf]
        %vm1512 = vsmask.f32 1280
        %v1514 = vshrl.u32 %v1386, 16
        %v1516 = vrot.slane %v1514, 6
        %v1517 = vshll.u32 %v1386, 16
        %v1519 = vrot.slane %v1517, 7
        %v1520 = vor.u32 %v1516, %v1519
        %v1521 = vrot.slane %v691, 6
        %v1522 = vrot.slane %v687, 7
        %v1523 = vor.u32 %v1521, %v1522
        %v1524 = vsel %vm1512, %v1520, %v1523
        %v1525 = vrot.slane %v699, 6
        %v1526 = vrot.slane %v695, 7
        %v1527 = vor.u32 %v1525, %v1526
        %v1528 = vsel %vm1512, %v1523, %v1527
        %v1530 = vshrl.u32 %v1505, 16
        %v1532 = vrot.slane %v1530, 6
        %v1533 = vshll.u32 %v1505, 16
        %v1535 = vrot.slane %v1533, 7
        %v1536 = vor.u32 %v1532, %v1535
        %v1537 = vsel %vm1512, %v1527, %v1536
        %v1544 = vunpack.c.l.b16 %v1506
        %v1545 = vunpack.c.l.b16 %v1507
        %v1546 = vunpack.c.l.b16 %v1508
        %v1547 = vunpack.c.l.b16 %v1509
        %v1548 = vunpack.c.l.b16 %v1510
        %v1549 = vunpack.c.l.b16 %v1511
        %v1550 = vpack.c.b16 %v1545, %v1544
        %v1551 = vpack.c.b16 %v1547, %v1546
        %v1552 = vpack.c.b16 %v1549, %v1548
        %v1557 = vsel %vm656, %v1524, 0
        %v1560 = vsel %vm656, %v1528, 0
        %v1563 = vsel %vm656, %v1537, 0
        %v1566 = vsel %vm656, %v1536, 0
        %1568 = vmatprep.subr.bf16.mxu0 0
        %1569 = vmatpush1.bf16.msra.mxu0 %v1550
        %1570 = vmatprep.subr.bf16.mxu0 0
        %1571 = vmatpush1.bf16.msra.mxu0 %v1551
        %1572 = vmatprep.subr.bf16.mxu0 0
        %1573 = vmatpush1.bf16.msra.mxu0 %v1552
        %1574 = vmatprep.subr.bf16.mxu0 0
        %1575 = vmatpush1.bf16.msra.mxu0 0
        %1576 = vmatprep.subr.bf16.mxu0 0
        %1577 = vmatpush1.bf16.msra.mxu0 0
        %1578 = vmatprep.subr.bf16.mxu0 0
        %1579 = vmatpush1.bf16.msra.mxu0 0
        %1580 = vmatprep.subr.bf16.mxu0 0
        %1581 = vmatpush1.bf16.msra.mxu0 0
        %1582 = vmatprep.subr.bf16.mxu0 0
        %1583 = vmatpush1.bf16.msra.mxu0 0
        %1584 = vmatprep.subr.bf16.mxu0 0
        %1585 = vmatpush1.bf16.msra.mxu0 0
        %1586 = vmatprep.subr.bf16.mxu0 0
        %1587 = vmatpush1.bf16.msra.mxu0 0
        %1588 = vmatprep.subr.bf16.mxu0 0
        %1589 = vmatpush1.bf16.msra.mxu0 0
        %1590 = vmatprep.subr.bf16.mxu0 0
        %1591 = vmatpush1.bf16.msra.mxu0 0
        %1592 = vmatprep.subr.bf16.mxu0 0
        %1593 = vmatpush1.bf16.msra.mxu0 0
        %1594 = vmatprep.subr.bf16.mxu0 0
        %1595 = vmatpush1.bf16.msra.mxu0 0
        %1596 = vmatprep.subr.bf16.mxu0 0
        %1597 = vmatpush1.bf16.msra.mxu0 0
        %1598 = vmatprep.subr.bf16.mxu0 0
        %1599 = vmatpush1.bf16.msra.mxu0 0
        %1600 = vmatprep.mubr.bf16.mxu0 0
        %1601 = vmatmul.mubr.bf16.gmra.mrb[0].mxu0 %v1557
        %v1602 = vpop.f32.mrb[0].mxu0
        %v1603 = vadd.f32 0.0, %v1602
        %v1604 = vpop.f32.mrb[0].mxu0
        %v1605 = vpop.f32.mrb[0].mxu0
        %v1606 = vadd.f32 0.0, %v1605
        %v1607 = vpop.f32.mrb[0].mxu0
        %1608 = vmatprep.mubr.bf16.mxu0 0
        %1609 = vmatmul.mubr.bf16.gmra.mrb[0].mxu0 %v1560
        %v1610 = vpop.f32.mrb[0].mxu0
        %v1611 = vadd.f32 0.0, %v1610
        %v1612 = vpop.f32.mrb[0].mxu0
        %v1613 = vpop.f32.mrb[0].mxu0
        %v1614 = vadd.f32 0.0, %v1613
        %v1615 = vpop.f32.mrb[0].mxu0
        %1616 = vmatprep.mubr.bf16.mxu0 0
        %1617 = vmatmul.mubr.bf16.gmra.mrb[0].mxu0 %v1563
        %v1618 = vpop.f32.mrb[0].mxu0
        %v1619 = vadd.f32 0.0, %v1618
        %v1620 = vpop.f32.mrb[0].mxu0
        %v1621 = vpop.f32.mrb[0].mxu0
        %v1622 = vadd.f32 0.0, %v1621
        %v1623 = vpop.f32.mrb[0].mxu0
        %1624 = vmatprep.mubr.bf16.mxu0 0
        %1625 = vmatmul.mubr.bf16.gmra.mrb[0].mxu0 %v1566
        %v1626 = vpop.f32.mrb[0].mxu0
        %v1627 = vadd.f32 0.0, %v1626
        %v1628 = vpop.f32.mrb[0].mxu0
        %v1629 = vpop.f32.mrb[0].mxu0
        %v1630 = vpop.f32.mrb[0].mxu0
        %1631 = vdwg.mxu0
        %v1632 = vadd.f32 %v1498, %v1603
        %v1633 = vadd.f32 %v1499, %v1606
        %v1634 = vadd.f32 %v1500, %v1611
        %v1635 = vadd.f32 %v1501, %v1614
        %v1636 = vadd.f32 %v1502, %v1619
        %v1637 = vadd.f32 %v1503, %v1622
        %v1638 = vadd.f32 %v1504, %v1627
        %v1639 = vld [vmem:[#allocation2] sm:$0x80]
        %v1640 = vld [vmem:[%s492 + $0xc0] sm:$0xf]
        %v1641 = vld [vmem:[%s492 + $0xc4] sm:$0xf]
        %v1642 = vld [vmem:[%s492 + $0xc8] sm:$0xf]
        %v1643 = vld [vmem:[%s492 + $0xcc] sm:$0xf]
        %v1644 = vld [vmem:[%s492 + $0xd0] sm:$0xf]
        %v1645 = vld [vmem:[%s492 + $0xd4] sm:$0xf]
        %vm1648 = vcmask 1040384
        %v1649 = vrot.slane %v1639, 7
        %v1650 = vrot.slane %v662, 7
        %v1651 = vsel %vm1648, %v1649, %v1650
        %v1652 = vrot.slane %v663, 7
        %v1653 = vsel %vm1648, %v1650, %v1652
        %v1654 = vrot.slane %v1505, 7
        %v1655 = vsel %vm1648, %v1652, %v1654
        %v1662 = vunpack.c.l.b16 %v1640
        %v1663 = vunpack.c.l.b16 %v1641
        %v1664 = vunpack.c.l.b16 %v1642
        %v1665 = vunpack.c.l.b16 %v1643
        %v1666 = vunpack.c.l.b16 %v1644
        %v1667 = vunpack.c.l.b16 %v1645
        %v1668 = vpack.c.b16 %v1663, %v1662
        %v1669 = vpack.c.b16 %v1665, %v1664
        %v1670 = vpack.c.b16 %v1667, %v1666
        %v1675 = vsel %vm656, %v1651, 0
        %v1678 = vsel %vm656, %v1653, 0
        %v1681 = vsel %vm656, %v1655, 0
        %v1684 = vsel %vm656, %v1654, 0
        %1686 = vmatprep.subr.bf16.mxu0 0
        %1687 = vmatpush1.bf16.msra.mxu0 %v1668
        %1688 = vmatprep.subr.bf16.mxu0 0
        %1689 = vmatpush1.bf16.msra.mxu0 %v1669
        %1690 = vmatprep.subr.bf16.mxu0 0
        %1691 = vmatpush1.bf16.msra.mxu0 %v1670
        %1692 = vmatprep.subr.bf16.mxu0 0
        %1693 = vmatpush1.bf16.msra.mxu0 0
        %1694 = vmatprep.subr.bf16.mxu0 0
        %1695 = vmatpush1.bf16.msra.mxu0 0
        %1696 = vmatprep.subr.bf16.mxu0 0
        %1697 = vmatpush1.bf16.msra.mxu0 0
        %1698 = vmatprep.subr.bf16.mxu0 0
        %1699 = vmatpush1.bf16.msra.mxu0 0
        %1700 = vmatprep.subr.bf16.mxu0 0
        %1701 = vmatpush1.bf16.msra.mxu0 0
        %1702 = vmatprep.subr.bf16.mxu0 0
        %1703 = vmatpush1.bf16.msra.mxu0 0
        %1704 = vmatprep.subr.bf16.mxu0 0
        %1705 = vmatpush1.bf16.msra.mxu0 0
        %1706 = vmatprep.subr.bf16.mxu0 0
        %1707 = vmatpush1.bf16.msra.mxu0 0
        %1708 = vmatprep.subr.bf16.mxu0 0
        %1709 = vmatpush1.bf16.msra.mxu0 0
        %1710 = vmatprep.subr.bf16.mxu0 0
        %1711 = vmatpush1.bf16.msra.mxu0 0
        %1712 = vmatprep.subr.bf16.mxu0 0
        %1713 = vmatpush1.bf16.msra.mxu0 0
        %1714 = vmatprep.subr.bf16.mxu0 0
        %1715 = vmatpush1.bf16.msra.mxu0 0
        %1716 = vmatprep.subr.bf16.mxu0 0
        %1717 = vmatpush1.bf16.msra.mxu0 0
        %1718 = vmatprep.mubr.bf16.mxu0 0
        %1719 = vmatmul.mubr.bf16.gmra.mrb[0].mxu0 %v1675
        %v1720 = vpop.f32.mrb[0].mxu0
        %v1721 = vadd.f32 0.0, %v1720
        %v1722 = vpop.f32.mrb[0].mxu0
        %v1723 = vpop.f32.mrb[0].mxu0
        %v1724 = vadd.f32 0.0, %v1723
        %v1725 = vpop.f32.mrb[0].mxu0
        %1726 = vmatprep.mubr.bf16.mxu0 0
        %1727 = vmatmul.mubr.bf16.gmra.mrb[0].mxu0 %v1678
        %v1728 = vpop.f32.mrb[0].mxu0
        %v1729 = vadd.f32 0.0, %v1728
        %v1730 = vpop.f32.mrb[0].mxu0
        %v1731 = vpop.f32.mrb[0].mxu0
        %v1732 = vadd.f32 0.0, %v1731
        %v1733 = vpop.f32.mrb[0].mxu0
        %1734 = vmatprep.mubr.bf16.mxu0 0
        %1735 = vmatmul.mubr.bf16.gmra.mrb[0].mxu0 %v1681
        %v1736 = vpop.f32.mrb[0].mxu0
        %v1737 = vadd.f32 0.0, %v1736
        %v1738 = vpop.f32.mrb[0].mxu0
        %v1739 = vpop.f32.mrb[0].mxu0
        %v1740 = vadd.f32 0.0, %v1739
        %v1741 = vpop.f32.mrb[0].mxu0
        %1742 = vmatprep.mubr.bf16.mxu0 0
        %1743 = vmatmul.mubr.bf16.gmra.mrb[0].mxu0 %v1684
        %v1744 = vpop.f32.mrb[0].mxu0
        %v1745 = vadd.f32 0.0, %v1744
        %v1746 = vpop.f32.mrb[0].mxu0
        %v1747 = vpop.f32.mrb[0].mxu0
        %v1748 = vpop.f32.mrb[0].mxu0
        %1749 = vdwg.mxu0
        %v1750 = vadd.f32 %v1632, %v1721
        %v1751 = vadd.f32 %v1633, %v1724
        %v1752 = vadd.f32 %v1634, %v1729
        %v1753 = vadd.f32 %v1635, %v1732
        %v1754 = vadd.f32 %v1636, %v1737
        %v1755 = vadd.f32 %v1637, %v1740
        %v1756 = vadd.f32 %v1638, %v1745
        %v1757 = vld [vmem:[%s498] sm:$0x1]
        %v1759 = vlaneseq
        %v1760 = vshrl.u32 %v1759, 7
        %v1761 = vsub.s32 0, %v1760
        %v1762 = vrot.slane %v1757, %v1761
        %v1764 = vadd.f32 %v1750, %v1762
        %v1765 = vadd.f32 %v1751, %v1762
        %v1766 = vadd.f32 %v1752, %v1762
        %v1767 = vadd.f32 %v1753, %v1762
        %v1768 = vadd.f32 %v1754, %v1762
        %v1769 = vadd.f32 %v1755, %v1762
        %v1770 = vadd.f32 %v1756, %v1762
        %v1771 = vld [vmem:[%s5] sm:$0xff]
        %v1772 = vld [vmem:[%s5 + $0x8] sm:$0xff]
        %v1773 = vld [vmem:[%s5 + $0x10] sm:$0xff]
        %v1774 = vld [vmem:[%s5 + $0x18] sm:$0xff]
        %v1775 = vld [vmem:[%s5 + $0x20] sm:$0xff]
        %v1776 = vld [vmem:[%s5 + $0x28] sm:$0xff]
        %v1777 = vld [vmem:[%s5 + $0x30] sm:$0x3]
        %1779 = vset.pattern.permute.xlu0 0
        %1780 = vperm.xlu0 %1779, %v1771
        %v1781 = vpop.permute.xlu0 %1780
        %1784 = vset.pattern.permute.xlu0 0
        %1785 = vperm.xlu0 %1784, %v1772
        %v1786 = vpop.permute.xlu0 %1785
        %1789 = vset.pattern.permute.xlu0 0
        %1790 = vperm.xlu0 %1789, %v1773
        %v1791 = vpop.permute.xlu0 %1790
        %1794 = vset.pattern.permute.xlu0 0
        %1795 = vperm.xlu0 %1794, %v1774
        %v1796 = vpop.permute.xlu0 %1795
        %1799 = vset.pattern.permute.xlu0 0
        %1800 = vperm.xlu0 %1799, %v1775
        %v1801 = vpop.permute.xlu0 %1800
        %1804 = vset.pattern.permute.xlu0 0
        %1805 = vperm.xlu0 %1804, %v1776
        %v1806 = vpop.permute.xlu0 %1805
        %1809 = vset.pattern.permute.xlu0 0
        %1810 = vperm.xlu0 %1809, %v1777
        %v1811 = vpop.permute.xlu0 %1810
        %v1813 = vmul.f32 %v1764, %v1781
        %v1814 = vmul.f32 %v1765, %v1786
        %v1815 = vmul.f32 %v1766, %v1791
        %v1816 = vmul.f32 %v1767, %v1796
        %v1817 = vmul.f32 %v1768, %v1801
        %v1818 = vmul.f32 %v1769, %v1806
        %v1819 = vmul.f32 %v1770, %v1811
        %v1820 = vpack.c.bf16 %v1814, %v1813
        %v1821 = vpack.c.bf16 %v1816, %v1815
        %v1822 = vpack.c.bf16 %v1818, %v1817
        %v1823 = vpack.c.bf16 %v1819, %v1819
        %v1828 = vunpack.c.l.b16 %v1820
        %v1829 = vunpack.c.h.b16 %v1820
        %v1830 = vunpack.c.l.b16 %v1821
        %v1831 = vunpack.c.h.b16 %v1821
        %v1832 = vunpack.c.l.b16 %v1822
        %v1833 = vunpack.c.h.b16 %v1822
        %v1834 = vunpack.c.l.b16 %v1823
        %v1835 = vpack.c.b16 %v1828, %v1828
        %v1836 = vpack.c.b16 %v1829, %v1829
        %v1837 = vpack.c.b16 %v1830, %v1830
        %v1838 = vpack.c.b16 %v1831, %v1831
        %v1839 = vpack.c.b16 %v1832, %v1832
        %v1840 = vpack.c.b16 %v1833, %v1833
        %v1841 = vpack.c.b16 %v1834, %v1834
        %vm1849 = vcmask 257024
        %1850 = vst.msk [vmem:[%s510] sm:$0xf] %vm1849, %v1835
        %1851 = vst.msk [vmem:[%s510 + $0x4] sm:$0xf] %vm1849, %v1836
        %1852 = vst.msk [vmem:[%s510 + $0x8] sm:$0xf] %vm1849, %v1837
        %1853 = vst.msk [vmem:[%s510 + $0xc] sm:$0xf] %vm1849, %v1838
        %1854 = vst.msk [vmem:[%s510 + $0x10] sm:$0xf] %vm1849, %v1839
        %1855 = vst.msk [vmem:[%s510 + $0x14] sm:$0xf] %vm1849, %v1840
        %vm1856 = vcmask 253952
        %1857 = vst.msk [vmem:[%s510 + $0x18] sm:$0x1] %vm1856, %v1841
      $region52: #{resnet_block_forward.8} parent=43 // pred_fallthru
        _
      %p1858 = scmp.lt.s32.totalorder %s23, 1
      %s1859 = scalar_select %p1858, %s23, 1
      %p1860 = scmp.lt.s32.totalorder %s24, 5
      %s1861 = scalar_select %p1860, %s24, 5
      %p1862 = scmp.lt.s32.totalorder %s22, 0
      %s1863 = scalar_select %p1862, %s22, 0
      %s1864 = smul.addr %s1861, 7
      %s1865 = sadd.s32 %s1863, %s1864
      %s1866 = smul.addr %s1859, 42
      %s1867 = sadd.s32 %s1865, %s1866
      %s1868 = smul.addr %s1867, 4
      %s1869 = scalar_lea.vmem %s6, %s1868
      // Predicated region
      $region53: #{resnet_block_forward.8} parent=43 // pred_check
        %p1870 = pneg %p245
      $region54: #{resnet_block_forward.8} parent=43 // pred_check_branch
        %1872 = sbr.rel (%p1870) target = $region56
      $region55: #{resnet_block_forward.8} parent=43 // pred_region
        _
      $region56: #{resnet_block_forward.8} parent=43 // pred_fallthru
        _
    $region44: #{resnet_block_forward.8} parent=5 // pred_fallthru
      _
    %p1873 = scmp.le.s32.totalorder 2, %s12
    // Predicated region
    $region57: #{resnet_block_forward.8} parent=5 // pred_check
      %p1874 = pneg %p1873
    $region58: #{resnet_block_forward.8} parent=5 // pred_check_branch
      %1876 = sbr.rel (%p1874) target = $region60
    $region59: #{resnet_block_forward.8} parent=5 // pred_region
      %s1877 = ssub.s32 %s12, 2
      // Predicated region
      $region61: #{resnet_block_forward.8} parent=59 // pred_check
        %p1878 = pneg %p251
      $region62: #{resnet_block_forward.8} parent=59 // pred_check_branch
        %1880 = sbr.rel (%p1878) target = $region64
      $region63: #{resnet_block_forward.8} parent=59 // pred_region
        %p1881 = scmp.lt.s32.totalorder %s26, 1
        %s1882 = scalar_select %p1881, %s26, 1
        %p1883 = scmp.lt.s32.totalorder %s27, 5
        %s1884 = scalar_select %p1883, %s27, 5
        %p1885 = scmp.lt.s32.totalorder %s25, 0
        %s1886 = scalar_select %p1885, %s25, 0
        %s1887 = smul.addr %s1884, 7
        %s1888 = sadd.s32 %s1886, %s1887
        %s1889 = smul.addr %s1882, 42
        %s1890 = sadd.s32 %s1888, %s1889
        %s1891 = smul.addr %s1890, 4
        %s1892 = scalar_lea.vmem %s6, %s1891
      $region64: #{resnet_block_forward.8} parent=59 // pred_fallthru
        _
    $region60: #{resnet_block_forward.8} parent=5 // pred_fallthru
      _
  $region6: #{resnet_block_forward.8} parent=0 // loop_footer
    %s16 = sadd.s32 1, %s12
  $region7: #{resnet_block_forward.8} parent=0 // loop_footer_branch
    %11 = sbr.rel target = $region3
  $region8: #{resnet_block_forward.8} parent=0 // loop_exit
    _

// kernel: squeeze.6
$region0: #{squeeze.6}
  %s0 = inlined_call_operand.vmem [shape: f32[2,32], index: 0, kind: input, shape index: {}]
  %s1 = inlined_call_operand.vmem [shape: f32[2,16,2], index: 1, kind: output, shape index: {}]
  $region1: #{squeeze.6} parent=0
    #allocation0 [shape = 'u8[4096]{0}', space=vmem, size = 0x1000, scoped, tag = 'scoped mem for input reshape']
    %s3 = sshllo.u32 0, 2
    %v4 = vld [vmem:[%s0] sm:%s3]
    %5 = vst [vmem:[#allocation0] sm:%s3] %v4
    %v6 = vld [vmem:[#allocation0] sm:$0x3]
    %vm7 = vcmask 15360
    %8 = vst.msk [vmem:[%s1] ss:$16 sm:$0x3] %vm7, %v6
    %v9 = vld [vmem:[#allocation0] sm:$0x3]
    %10 = vrot.lane.b32.xlu0 %v9, 126
    %v11 = vpop.permute.xlu0 %10
    %vm12 = vcmask 15360
    %s13 = scalar_lea.vmem %s1, 1
    %14 = vst.msk [vmem:[%s13] ss:$16 sm:$0x3] %vm12, %v11
    %v15 = vld [vmem:[#allocation0] sm:$0x3]
    %16 = vrot.lane.b32.xlu0 %v15, 124
    %v17 = vpop.permute.xlu0 %16
    %vm18 = vcmask 15360
    %s19 = scalar_lea.vmem %s1, 2
    %20 = vst.msk [vmem:[%s19] ss:$16 sm:$0x3] %vm18, %v17
    %v21 = vld [vmem:[#allocation0] sm:$0x3]
    %22 = vrot.lane.b32.xlu0 %v21, 122
    %v23 = vpop.permute.xlu0 %22
    %vm24 = vcmask 15360
    %s25 = scalar_lea.vmem %s1, 3
    %26 = vst.msk [vmem:[%s25] ss:$16 sm:$0x3] %vm24, %v23
    %v27 = vld [vmem:[#allocation0] sm:$0x3]
    %28 = vrot.lane.b32.xlu0 %v27, 120
    %v29 = vpop.permute.xlu0 %28
    %vm30 = vcmask 15360
    %s31 = scalar_lea.vmem %s1, 4
    %32 = vst.msk [vmem:[%s31] ss:$16 sm:$0x3] %vm30, %v29
    %v33 = vld [vmem:[#allocation0] sm:$0x3]
    %34 = vrot.lane.b32.xlu0 %v33, 118
    %v35 = vpop.permute.xlu0 %34
    %vm36 = vcmask 15360
    %s37 = scalar_lea.vmem %s1, 5
    %38 = vst.msk [vmem:[%s37] ss:$16 sm:$0x3] %vm36, %v35
    %v39 = vld [vmem:[#allocation0] sm:$0x3]
    %40 = vrot.lane.b32.xlu0 %v39, 116
    %v41 = vpop.permute.xlu0 %40
    %vm42 = vcmask 15360
    %s43 = scalar_lea.vmem %s1, 6
    %44 = vst.msk [vmem:[%s43] ss:$16 sm:$0x3] %vm42, %v41
    %v45 = vld [vmem:[#allocation0] sm:$0x3]
    %46 = vrot.lane.b32.xlu0 %v45, 114
    %v47 = vpop.permute.xlu0 %46
    %vm48 = vcmask 15360
    %s49 = scalar_lea.vmem %s1, 7
    %50 = vst.msk [vmem:[%s49] ss:$16 sm:$0x3] %vm48, %v47
    %v51 = vld [vmem:[#allocation0] sm:$0x3]
    %52 = vrot.lane.b32.xlu0 %v51, 112
    %v53 = vpop.permute.xlu0 %52
    %vm54 = vcmask 15360
    %s55 = scalar_lea.vmem %s1, 8
    %56 = vst.msk [vmem:[%s55] ss:$16 sm:$0x3] %vm54, %v53
    %v57 = vld [vmem:[#allocation0] sm:$0x3]
    %58 = vrot.lane.b32.xlu0 %v57, 110
    %v59 = vpop.permute.xlu0 %58
    %vm60 = vcmask 15360
    %s61 = scalar_lea.vmem %s1, 9
    %62 = vst.msk [vmem:[%s61] ss:$16 sm:$0x3] %vm60, %v59
    %v63 = vld [vmem:[#allocation0] sm:$0x3]
    %64 = vrot.lane.b32.xlu0 %v63, 108
    %v65 = vpop.permute.xlu0 %64
    %vm66 = vcmask 15360
    %s67 = scalar_lea.vmem %s1, 10
    %68 = vst.msk [vmem:[%s67] ss:$16 sm:$0x3] %vm66, %v65
    %v69 = vld [vmem:[#allocation0] sm:$0x3]
    %70 = vrot.lane.b32.xlu0 %v69, 106
    %v71 = vpop.permute.xlu0 %70
    %vm72 = vcmask 15360
    %s73 = scalar_lea.vmem %s1, 11
    %74 = vst.msk [vmem:[%s73] ss:$16 sm:$0x3] %vm72, %v71
    %v75 = vld [vmem:[#allocation0] sm:$0x3]
    %76 = vrot.lane.b32.xlu0 %v75, 104
    %v77 = vpop.permute.xlu0 %76
    %vm78 = vcmask 15360
    %s79 = scalar_lea.vmem %s1, 12
    %80 = vst.msk [vmem:[%s79] ss:$16 sm:$0x3] %vm78, %v77
    %v81 = vld [vmem:[#allocation0] sm:$0x3]
    %82 = vrot.lane.b32.xlu0 %v81, 102
    %v83 = vpop.permute.xlu0 %82
    %vm84 = vcmask 15360
    %s85 = scalar_lea.vmem %s1, 13
    %86 = vst.msk [vmem:[%s85] ss:$16 sm:$0x3] %vm84, %v83
    %v87 = vld [vmem:[#allocation0] sm:$0x3]
    %88 = vrot.lane.b32.xlu0 %v87, 100
    %v89 = vpop.permute.xlu0 %88
    %vm90 = vcmask 15360
    %s91 = scalar_lea.vmem %s1, 14
    %92 = vst.msk [vmem:[%s91] ss:$16 sm:$0x3] %vm90, %v89
    %v93 = vld [vmem:[#allocation0] sm:$0x3]
    %94 = vrot.lane.b32.xlu0 %v93, 98
    %v95 = vpop.permute.xlu0 %94
    %vm96 = vcmask 15360
    %s97 = scalar_lea.vmem %s1, 15
    %98 = vst.msk [vmem:[%s97] ss:$16 sm:$0x3] %vm96, %v95

// kernel: resnet_block_forward.9
$region0: #{resnet_block_forward.9}
  #allocation0 [shape = 'u32[]', space=smem, size = 0x4, offset = 0x4, fixed_abs, tag = 'smem constant byte address 0x4 - core index']
  #allocation1 [shape = 'u32[144,128]{1,0:T(1,128)}', space=vmem, size = 0x12000, scoped, tag = 'internal scratch']
  %s0 = inlined_call_operand.vmem [shape: bf16[2,300,32], index: 0, kind: input, shape index: {}]
  %s1 = inlined_call_operand.vmem [shape: f32[300,1], index: 1, kind: input, shape index: {}]
  %s2 = inlined_call_operand.vmem [shape: f32[2,2,32], index: 2, kind: output, shape index: {}]
  %s3 = sld [smem:[#allocation0]]
  $region49: #{resnet_block_forward.9} parent=0
    _
  %s5 = ssub.s32 1, %s3
  %s6 = scalar_select 0, %s5, %s3
  loop: start=0, step=1, limit=4
  $region2: #{resnet_block_forward.9} parent=0 // loop_pre_header
    _
  $region3: #{resnet_block_forward.9} parent=0 // loop_header
    %s8 = sphi 0, %s12
    %p9 = scmp.ge.s32.totalorder %s8, 4
    %s15 = sphi 0, %s27
    %s16 = sphi 0, %s23
    %s17 = sphi 0, %s15
    %s18 = sphi 0, %s16
    %s19 = sphi 0, %s17
    %s20 = sphi 0, %s18
    %s32 = sphi 0, %s34
    %s35 = sphi 0, %s32
    %s36 = sphi 0, %s35
    %s52 = sphi 0, %s36
    %s58 = sphi 0, %s60
    %s61 = sphi 0, %s58
    %s62 = sphi 0, %s61
    %s78 = sphi 0, %s62
    %s84 = sphi 0, %s86
    %s87 = sphi 0, %s84
    %s88 = sphi 0, %s87
    %s104 = sphi 0, %s88
  $region4: #{resnet_block_forward.9} parent=0 // loop_header_branch
    %11 = sbr.rel (%p9) target = $region8
  $region5: #{resnet_block_forward.9} parent=0 // loop_body
    %s13 = ssub.s32 %s8, 1
    %s14 = ssub.s32 %s8, 2
    %s21 = sadd.s32 1, %s16
    %p22 = scmp.ge.s32.totalorder %s21, 1
    %s23 = scalar_select %p22, 0, %s21
    %s24 = sadd.s32 1, %s15
    %s25 = scalar_select %p22, %s24, %s15
    %p26 = scmp.ge.s32.totalorder %s25, 2
    %s27 = scalar_select %p26, 0, %s25
    %s28 = ssub.s32 %s15, %s27
    %s29 = ssub.s32 %s16, %s23
    %s30 = sor.u32 %s28, %s29
    %p31 = scmp.eq.s32.totalorder %s30, 0
    %s33 = sadd.s32 %s32, 1
    %s34 = scalar_select %p31, %s32, %s33
    %p37 = pneg %p31
    %p38 = scmp.eq.s32.totalorder %s8, 1
    %p39 = por %p37, %p38
    %p40 = scmp.ne.s32.totalorder %s32, %s35
    %p41 = scmp.eq.s32.totalorder %s8, 0
    %p42 = por %p40, %p41
    %p43 = scmp.ne.s32.totalorder %s32, %s35
    %p44 = scmp.eq.s32.totalorder %s13, 1
    %p45 = por %p43, %p44
    %p46 = scmp.ne.s32.totalorder %s35, %s36
    %p47 = scmp.eq.s32.totalorder %s13, 0
    %p48 = por %p46, %p47
    %p49 = scmp.ne.s32.totalorder %s35, %s36
    %p50 = scmp.eq.s32.totalorder %s14, 1
    %p51 = por %p49, %p50
    %p53 = scmp.ne.s32.totalorder %s36, %s52
    %p54 = scmp.eq.s32.totalorder %s14, 0
    %p55 = por %p53, %p54
    %s56 = ssub.s32 %s16, %s23
    %p57 = scmp.eq.s32.totalorder %s56, 0
    %s59 = sadd.s32 %s58, 1
    %s60 = scalar_select %p57, %s58, %s59
    %p63 = pneg %p57
    %p64 = scmp.eq.s32.totalorder %s8, 1
    %p65 = por %p63, %p64
    %p66 = scmp.ne.s32.totalorder %s58, %s61
    %p67 = scmp.eq.s32.totalorder %s8, 0
    %p68 = por %p66, %p67
    %p69 = scmp.ne.s32.totalorder %s58, %s61
    %p70 = scmp.eq.s32.totalorder %s13, 1
    %p71 = por %p69, %p70
    %p72 = scmp.ne.s32.totalorder %s61, %s62
    %p73 = scmp.eq.s32.totalorder %s13, 0
    %p74 = por %p72, %p73
    %p75 = scmp.ne.s32.totalorder %s61, %s62
    %p76 = scmp.eq.s32.totalorder %s14, 1
    %p77 = por %p75, %p76
    %p79 = scmp.ne.s32.totalorder %s62, %s78
    %p80 = scmp.eq.s32.totalorder %s14, 0
    %p81 = por %p79, %p80
    %s82 = ssub.s32 %s15, %s27
    %p83 = scmp.eq.s32.totalorder %s82, 0
    %s85 = sadd.s32 %s84, 1
    %s86 = scalar_select %p83, %s84, %s85
    %p89 = pneg %p83
    %p90 = scmp.eq.s32.totalorder %s8, 1
    %p91 = por %p89, %p90
    %p92 = scmp.ne.s32.totalorder %s84, %s87
    %p93 = scmp.eq.s32.totalorder %s8, 0
    %p94 = por %p92, %p93
    %p95 = scmp.ne.s32.totalorder %s84, %s87
    %p96 = scmp.eq.s32.totalorder %s13, 1
    %p97 = por %p95, %p96
    %p98 = scmp.ne.s32.totalorder %s87, %s88
    %p99 = scmp.eq.s32.totalorder %s13, 0
    %p100 = por %p98, %p99
    %p101 = scmp.ne.s32.totalorder %s87, %s88
    %p102 = scmp.eq.s32.totalorder %s14, 1
    %p103 = por %p101, %p102
    %p105 = scmp.ne.s32.totalorder %s88, %s104
    %p106 = scmp.eq.s32.totalorder %s14, 0
    %p107 = por %p105, %p106
    %p108 = scmp.le.s32.totalorder 1, %s8
    %p109 = scmp.lt.s32.totalorder %s8, 3
    %p110 = pnand %p108, %p109
    %p111 = pneg %p110
    // Predicated region
    $region9: #{resnet_block_forward.9} parent=5 // pred_check
      _
    $region10: #{resnet_block_forward.9} parent=5 // pred_check_branch
      %113 = sbr.rel (%p110) target = $region12
    $region11: #{resnet_block_forward.9} parent=5 // pred_region
      %s114 = ssub.s32 %s8, 1
      // Predicated region
      $region13: #{resnet_block_forward.9} parent=11 // pred_check
        %p115 = pneg %p74
      $region14: #{resnet_block_forward.9} parent=11 // pred_check_branch
        %117 = sbr.rel (%p115) target = $region16
      $region15: #{resnet_block_forward.9} parent=11 // pred_region
        %s118 = smul.u32 38, %s18
        %p119 = scmp.lt.s32.totalorder %s118, 37
        %s120 = scalar_select %p119, %s118, 37
        %s121 = smul.addr %s120, 8
        %s122 = scalar_lea.vmem %s1, %s121
        %s123 = smul.u32 38, %s18
      $region16: #{resnet_block_forward.9} parent=11 // pred_fallthru
        _
    $region12: #{resnet_block_forward.9} parent=5 // pred_fallthru
      _
    %p124 = scmp.lt.s32.totalorder %s8, 2
    // Predicated region
    $region17: #{resnet_block_forward.9} parent=5 // pred_check
      %p125 = pneg %p124
    $region18: #{resnet_block_forward.9} parent=5 // pred_check_branch
      %127 = sbr.rel (%p125) target = $region20
    $region19: #{resnet_block_forward.9} parent=5 // pred_region
      // Predicated region
      $region21: #{resnet_block_forward.9} parent=19 // pred_check
        %p128 = pneg %p42
      $region22: #{resnet_block_forward.9} parent=19 // pred_check_branch
        %130 = sbr.rel (%p128) target = $region24
      $region23: #{resnet_block_forward.9} parent=19 // pred_region
        %s131 = smul.u32 38, %s16
        %p132 = scmp.lt.s32.totalorder %s15, 1
        %s133 = scalar_select %p132, %s15, 1
        %p134 = scmp.lt.s32.totalorder %s131, 37
        %s135 = scalar_select %p134, %s131, 37
        %s136 = smul.addr %s133, 38
        %s137 = sadd.s32 %s135, %s136
        %s138 = smul.addr %s137, 4
        %s139 = scalar_lea.vmem %s0, %s138
        %s140 = smul.u32 38, %s16
      $region24: #{resnet_block_forward.9} parent=19 // pred_fallthru
        _
    $region20: #{resnet_block_forward.9} parent=5 // pred_fallthru
      _
    %p141 = scmp.le.s32.totalorder 1, %s8
    %p142 = scmp.lt.s32.totalorder %s8, 3
    %p143 = pnand %p141, %p142
    %p144 = pneg %p143
    // Predicated region
    $region25: #{resnet_block_forward.9} parent=5 // pred_check
      _
    $region26: #{resnet_block_forward.9} parent=5 // pred_check_branch
      %146 = sbr.rel (%p143) target = $region28
    $region27: #{resnet_block_forward.9} parent=5 // pred_region
      %s147 = ssub.s32 %s8, 1
      %s148 = smul.u32 38, %s18
      %p149 = scmp.lt.s32.totalorder %s17, 1
      %s150 = scalar_select %p149, %s17, 1
      %p151 = scmp.lt.s32.totalorder %s148, 37
      %s152 = scalar_select %p151, %s148, 37
      %s153 = smul.addr %s150, 38
      %s154 = sadd.s32 %s152, %s153
      %s155 = smul.addr %s154, 4
      %s156 = scalar_lea.vmem %s0, %s155
      %p157 = pneg %p48
      %p158 = pneg %p45
      %s159 = smul.u32 38, %s18
      %p160 = scmp.lt.s32.totalorder %s159, 37
      %s161 = scalar_select %p160, %s159, 37
      %s162 = smul.addr %s161, 8
      %s163 = scalar_lea.vmem %s1, %s162
      %p164 = pneg %p74
      %p165 = pneg %p71
      %p166 = pneg %p100
      %p167 = pneg %p97
      %p168 = scmp.lt.s32.totalorder %s17, 1
      %s169 = scalar_select %p168, %s17, 1
      %s170 = smul.addr %s169, 2
      %s171 = scalar_lea.vmem %s2, %s170
      %s172 = smul.u32 38, %s18
      %p173 = scmp.lt.s32.totalorder %s17, 1
      %s174 = scalar_select %p173, %s17, 1
      %p175 = scmp.lt.s32.totalorder %s172, 37
      %s176 = scalar_select %p175, %s172, 37
      %s177 = smul.addr %s174, 38
      %s178 = sadd.s32 %s176, %s177
      %s179 = smul.addr %s178, 4
      %s180 = scalar_lea.vmem %s0, %s179
      %s181 = smul.u32 38, %s18
      %s182 = smul.u32 38, %s18
      %p183 = scmp.lt.s32.totalorder %s182, 37
      %s184 = scalar_select %p183, %s182, 37
      %s185 = smul.addr %s184, 8
      %s186 = scalar_lea.vmem %s1, %s185
      %s187 = smul.u32 38, %s18
      %p188 = scmp.lt.s32.totalorder %s17, 1
      %s189 = scalar_select %p188, %s17, 1
      %s190 = smul.addr %s189, 2
      %s191 = scalar_lea.vmem %s2, %s190
      %v192 = vld [vmem:[%s186] sm:$0xff]
      %v193 = vld [vmem:[%s186 + $0x8] sm:$0xff]
      %v194 = vld [vmem:[%s186 + $0x10] sm:$0xff]
      %v195 = vld [vmem:[%s186 + $0x18] sm:$0xff]
      %v196 = vld [vmem:[%s186 + $0x20] sm:$0xff]
      %v197 = vld [vmem:[%s186 + $0x28] sm:$0xff]
      %v198 = vld [vmem:[%s186 + $0x30] sm:$0xff]
      %v199 = vld [vmem:[%s186 + $0x38] sm:$0xff]
      %v200 = vld [vmem:[%s186 + $0x40] sm:$0xff]
      %v201 = vld [vmem:[%s186 + $0x48] sm:$0xff]
      %v202 = vld [vmem:[%s186 + $0x50] sm:$0xff]
      %v203 = vld [vmem:[%s186 + $0x58] sm:$0xff]
      %v204 = vld [vmem:[%s186 + $0x60] sm:$0xff]
      %v205 = vld [vmem:[%s186 + $0x68] sm:$0xff]
      %v206 = vld [vmem:[%s186 + $0x70] sm:$0xff]
      %v207 = vld [vmem:[%s186 + $0x78] sm:$0xff]
      %v208 = vld [vmem:[%s186 + $0x80] sm:$0xff]
      %v209 = vld [vmem:[%s186 + $0x88] sm:$0xff]
      %v210 = vld [vmem:[%s186 + $0x90] sm:$0xff]
      %v211 = vld [vmem:[%s186 + $0x98] sm:$0xff]
      %v212 = vld [vmem:[%s186 + $0xa0] sm:$0xff]
      %v213 = vld [vmem:[%s186 + $0xa8] sm:$0xff]
      %v214 = vld [vmem:[%s186 + $0xb0] sm:$0xff]
      %v215 = vld [vmem:[%s186 + $0xb8] sm:$0xff]
      %v216 = vld [vmem:[%s186 + $0xc0] sm:$0xff]
      %v217 = vld [vmem:[%s186 + $0xc8] sm:$0xff]
      %v218 = vld [vmem:[%s186 + $0xd0] sm:$0xff]
      %v219 = vld [vmem:[%s186 + $0xd8] sm:$0xff]
      %v220 = vld [vmem:[%s186 + $0xe0] sm:$0xff]
      %v221 = vld [vmem:[%s186 + $0xe8] sm:$0xff]
      %v222 = vld [vmem:[%s186 + $0xf0] sm:$0xff]
      %v223 = vld [vmem:[%s186 + $0xf8] sm:$0xff]
      %v224 = vld [vmem:[%s186 + $0x100] sm:$0xff]
      %v225 = vld [vmem:[%s186 + $0x108] sm:$0xff]
      %v226 = vld [vmem:[%s186 + $0x110] sm:$0xff]
      %v227 = vld [vmem:[%s186 + $0x118] sm:$0xff]
      %v228 = vld [vmem:[%s186 + $0x120] sm:$0xff]
      %v229 = vld [vmem:[%s186 + $0x128] sm:$0xf]
      %vm230 = vcmp.gt.f32.partialorder %v192, 0.0
      %vm231 = vcmp.gt.f32.partialorder %v193, 0.0
      %vm232 = vcmp.gt.f32.partialorder %v194, 0.0
      %vm233 = vcmp.gt.f32.partialorder %v195, 0.0
      %vm234 = vcmp.gt.f32.partialorder %v196, 0.0
      %vm235 = vcmp.gt.f32.partialorder %v197, 0.0
      %vm236 = vcmp.gt.f32.partialorder %v198, 0.0
      %vm237 = vcmp.gt.f32.partialorder %v199, 0.0
      %vm238 = vcmp.gt.f32.partialorder %v200, 0.0
      %vm239 = vcmp.gt.f32.partialorder %v201, 0.0
      %vm240 = vcmp.gt.f32.partialorder %v202, 0.0
      %vm241 = vcmp.gt.f32.partialorder %v203, 0.0
      %vm242 = vcmp.gt.f32.partialorder %v204, 0.0
      %vm243 = vcmp.gt.f32.partialorder %v205, 0.0
      %vm244 = vcmp.gt.f32.partialorder %v206, 0.0
      %vm245 = vcmp.gt.f32.partialorder %v207, 0.0
      %vm246 = vcmp.gt.f32.partialorder %v208, 0.0
      %vm247 = vcmp.gt.f32.partialorder %v209, 0.0
      %vm248 = vcmp.gt.f32.partialorder %v210, 0.0
      %vm249 = vcmp.gt.f32.partialorder %v211, 0.0
      %vm250 = vcmp.gt.f32.partialorder %v212, 0.0
      %vm251 = vcmp.gt.f32.partialorder %v213, 0.0
      %vm252 = vcmp.gt.f32.partialorder %v214, 0.0
      %vm253 = vcmp.gt.f32.partialorder %v215, 0.0
      %vm254 = vcmp.gt.f32.partialorder %v216, 0.0
      %vm255 = vcmp.gt.f32.partialorder %v217, 0.0
      %vm256 = vcmp.gt.f32.partialorder %v218, 0.0
      %vm257 = vcmp.gt.f32.partialorder %v219, 0.0
      %vm258 = vcmp.gt.f32.partialorder %v220, 0.0
      %vm259 = vcmp.gt.f32.partialorder %v221, 0.0
      %vm260 = vcmp.gt.f32.partialorder %v222, 0.0
      %vm261 = vcmp.gt.f32.partialorder %v223, 0.0
      %vm262 = vcmp.gt.f32.partialorder %v224, 0.0
      %vm263 = vcmp.gt.f32.partialorder %v225, 0.0
      %vm264 = vcmp.gt.f32.partialorder %v226, 0.0
      %vm265 = vcmp.gt.f32.partialorder %v227, 0.0
      %vm266 = vcmp.gt.f32.partialorder %v228, 0.0
      %vm267 = vcmp.gt.f32.partialorder %v229, 0.0
      %v268 = vld [vmem:[%s180] sm:$0xf]
      %v269 = vld [vmem:[%s180 + $0x4] sm:$0xf]
      %v270 = vld [vmem:[%s180 + $0x8] sm:$0xf]
      %v271 = vld [vmem:[%s180 + $0xc] sm:$0xf]
      %v272 = vld [vmem:[%s180 + $0x10] sm:$0xf]
      %v273 = vld [vmem:[%s180 + $0x14] sm:$0xf]
      %v274 = vld [vmem:[%s180 + $0x18] sm:$0xf]
      %v275 = vld [vmem:[%s180 + $0x1c] sm:$0xf]
      %v276 = vld [vmem:[%s180 + $0x20] sm:$0xf]
      %v277 = vld [vmem:[%s180 + $0x24] sm:$0xf]
      %v278 = vld [vmem:[%s180 + $0x28] sm:$0xf]
      %v279 = vld [vmem:[%s180 + $0x2c] sm:$0xf]
      %v280 = vld [vmem:[%s180 + $0x30] sm:$0xf]
      %v281 = vld [vmem:[%s180 + $0x34] sm:$0xf]
      %v282 = vld [vmem:[%s180 + $0x38] sm:$0xf]
      %v283 = vld [vmem:[%s180 + $0x3c] sm:$0xf]
      %v284 = vld [vmem:[%s180 + $0x40] sm:$0xf]
      %v285 = vld [vmem:[%s180 + $0x44] sm:$0xf]
      %v286 = vld [vmem:[%s180 + $0x48] sm:$0xf]
      %v287 = vld [vmem:[%s180 + $0x4c] sm:$0xf]
      %v288 = vld [vmem:[%s180 + $0x50] sm:$0xf]
      %v289 = vld [vmem:[%s180 + $0x54] sm:$0xf]
      %v290 = vld [vmem:[%s180 + $0x58] sm:$0xf]
      %v291 = vld [vmem:[%s180 + $0x5c] sm:$0xf]
      %v292 = vld [vmem:[%s180 + $0x60] sm:$0xf]
      %v293 = vld [vmem:[%s180 + $0x64] sm:$0xf]
      %v294 = vld [vmem:[%s180 + $0x68] sm:$0xf]
      %v295 = vld [vmem:[%s180 + $0x6c] sm:$0xf]
      %v296 = vld [vmem:[%s180 + $0x70] sm:$0xf]
      %v297 = vld [vmem:[%s180 + $0x74] sm:$0xf]
      %v298 = vld [vmem:[%s180 + $0x78] sm:$0xf]
      %v299 = vld [vmem:[%s180 + $0x7c] sm:$0xf]
      %v300 = vld [vmem:[%s180 + $0x80] sm:$0xf]
      %v301 = vld [vmem:[%s180 + $0x84] sm:$0xf]
      %v302 = vld [vmem:[%s180 + $0x88] sm:$0xf]
      %v303 = vld [vmem:[%s180 + $0x8c] sm:$0xf]
      %v304 = vld [vmem:[%s180 + $0x90] sm:$0xf]
      %v305 = vld [vmem:[%s180 + $0x94] sm:$0x3]
      %v306 = vunpack.c.l.bf16 %v268
      %v307 = vunpack.c.l.bf16 %v269
      %v308 = vunpack.c.l.bf16 %v270
      %v309 = vunpack.c.l.bf16 %v271
      %v310 = vunpack.c.l.bf16 %v272
      %v311 = vunpack.c.l.bf16 %v273
      %v312 = vunpack.c.l.bf16 %v274
      %v313 = vunpack.c.l.bf16 %v275
      %v314 = vunpack.c.l.bf16 %v276
      %v315 = vunpack.c.l.bf16 %v277
      %v316 = vunpack.c.l.bf16 %v278
      %v317 = vunpack.c.l.bf16 %v279
      %v318 = vunpack.c.l.bf16 %v280
      %v319 = vunpack.c.l.bf16 %v281
      %v320 = vunpack.c.l.bf16 %v282
      %v321 = vunpack.c.l.bf16 %v283
      %v322 = vunpack.c.l.bf16 %v284
      %v323 = vunpack.c.l.bf16 %v285
      %v324 = vunpack.c.l.bf16 %v286
      %v325 = vunpack.c.l.bf16 %v287
      %v326 = vunpack.c.l.bf16 %v288
      %v327 = vunpack.c.l.bf16 %v289
      %v328 = vunpack.c.l.bf16 %v290
      %v329 = vunpack.c.l.bf16 %v291
      %v330 = vunpack.c.l.bf16 %v292
      %v331 = vunpack.c.l.bf16 %v293
      %v332 = vunpack.c.l.bf16 %v294
      %v333 = vunpack.c.l.bf16 %v295
      %v334 = vunpack.c.l.bf16 %v296
      %v335 = vunpack.c.l.bf16 %v297
      %v336 = vunpack.c.l.bf16 %v298
      %v337 = vunpack.c.l.bf16 %v299
      %v338 = vunpack.c.l.bf16 %v300
      %v339 = vunpack.c.l.bf16 %v301
      %v340 = vunpack.c.l.bf16 %v302
      %v341 = vunpack.c.l.bf16 %v303
      %v342 = vunpack.c.l.bf16 %v304
      %v343 = vunpack.c.l.bf16 %v305
      %v344 = vsel %vm230, 1, 0
      %v345 = vsel %vm231, 1, 0
      %v346 = vsel %vm232, 1, 0
      %v347 = vsel %vm233, 1, 0
      %v348 = vsel %vm234, 1, 0
      %v349 = vsel %vm235, 1, 0
      %v350 = vsel %vm236, 1, 0
      %v351 = vsel %vm237, 1, 0
      %v352 = vsel %vm238, 1, 0
      %v353 = vsel %vm239, 1, 0
      %v354 = vsel %vm240, 1, 0
      %v355 = vsel %vm241, 1, 0
      %v356 = vsel %vm242, 1, 0
      %v357 = vsel %vm243, 1, 0
      %v358 = vsel %vm244, 1, 0
      %v359 = vsel %vm245, 1, 0
      %v360 = vsel %vm246, 1, 0
      %v361 = vsel %vm247, 1, 0
      %v362 = vsel %vm248, 1, 0
      %v363 = vsel %vm249, 1, 0
      %v364 = vsel %vm250, 1, 0
      %v365 = vsel %vm251, 1, 0
      %v366 = vsel %vm252, 1, 0
      %v367 = vsel %vm253, 1, 0
      %v368 = vsel %vm254, 1, 0
      %v369 = vsel %vm255, 1, 0
      %v370 = vsel %vm256, 1, 0
      %v371 = vsel %vm257, 1, 0
      %v372 = vsel %vm258, 1, 0
      %v373 = vsel %vm259, 1, 0
      %v374 = vsel %vm260, 1, 0
      %v375 = vsel %vm261, 1, 0
      %v376 = vsel %vm262, 1, 0
      %v377 = vsel %vm263, 1, 0
      %v378 = vsel %vm264, 1, 0
      %v379 = vsel %vm265, 1, 0
      %v380 = vsel %vm266, 1, 0
      %v381 = vsel %vm267, 1, 0
      %382 = vset.pattern.permute.xlu0 0
      %383 = vperm.xlu0 %382, %v344
      %v384 = vpop.permute.xlu0 %383
      %385 = vset.pattern.permute.xlu0 0
      %386 = vperm.xlu0 %385, %v345
      %v387 = vpop.permute.xlu0 %386
      %388 = vset.pattern.permute.xlu0 0
      %389 = vperm.xlu0 %388, %v346
      %v390 = vpop.permute.xlu0 %389
      %391 = vset.pattern.permute.xlu0 0
      %392 = vperm.xlu0 %391, %v347
      %v393 = vpop.permute.xlu0 %392
      %394 = vset.pattern.permute.xlu0 0
      %395 = vperm.xlu0 %394, %v348
      %v396 = vpop.permute.xlu0 %395
      %397 = vset.pattern.permute.xlu0 0
      %398 = vperm.xlu0 %397, %v349
      %v399 = vpop.permute.xlu0 %398
      %400 = vset.pattern.permute.xlu0 0
      %401 = vperm.xlu0 %400, %v350
      %v402 = vpop.permute.xlu0 %401
      %403 = vset.pattern.permute.xlu0 0
      %404 = vperm.xlu0 %403, %v351
      %v405 = vpop.permute.xlu0 %404
      %406 = vset.pattern.permute.xlu0 0
      %407 = vperm.xlu0 %406, %v352
      %v408 = vpop.permute.xlu0 %407
      %409 = vset.pattern.permute.xlu0 0
      %410 = vperm.xlu0 %409, %v353
      %v411 = vpop.permute.xlu0 %410
      %412 = vset.pattern.permute.xlu0 0
      %413 = vperm.xlu0 %412, %v354
      %v414 = vpop.permute.xlu0 %413
      %415 = vset.pattern.permute.xlu0 0
      %416 = vperm.xlu0 %415, %v355
      %v417 = vpop.permute.xlu0 %416
      %418 = vset.pattern.permute.xlu0 0
      %419 = vperm.xlu0 %418, %v356
      %v420 = vpop.permute.xlu0 %419
      %421 = vset.pattern.permute.xlu0 0
      %422 = vperm.xlu0 %421, %v357
      %v423 = vpop.permute.xlu0 %422
      %424 = vset.pattern.permute.xlu0 0
      %425 = vperm.xlu0 %424, %v358
      %v426 = vpop.permute.xlu0 %425
      %427 = vset.pattern.permute.xlu0 0
      %428 = vperm.xlu0 %427, %v359
      %v429 = vpop.permute.xlu0 %428
      %430 = vset.pattern.permute.xlu0 0
      %431 = vperm.xlu0 %430, %v360
      %v432 = vpop.permute.xlu0 %431
      %433 = vset.pattern.permute.xlu0 0
      %434 = vperm.xlu0 %433, %v361
      %v435 = vpop.permute.xlu0 %434
      %436 = vset.pattern.permute.xlu0 0
      %437 = vperm.xlu0 %436, %v362
      %v438 = vpop.permute.xlu0 %437
      %439 = vset.pattern.permute.xlu0 0
      %440 = vperm.xlu0 %439, %v363
      %v441 = vpop.permute.xlu0 %440
      %442 = vset.pattern.permute.xlu0 0
      %443 = vperm.xlu0 %442, %v364
      %v444 = vpop.permute.xlu0 %443
      %445 = vset.pattern.permute.xlu0 0
      %446 = vperm.xlu0 %445, %v365
      %v447 = vpop.permute.xlu0 %446
      %448 = vset.pattern.permute.xlu0 0
      %449 = vperm.xlu0 %448, %v366
      %v450 = vpop.permute.xlu0 %449
      %451 = vset.pattern.permute.xlu0 0
      %452 = vperm.xlu0 %451, %v367
      %v453 = vpop.permute.xlu0 %452
      %454 = vset.pattern.permute.xlu0 0
      %455 = vperm.xlu0 %454, %v368
      %v456 = vpop.permute.xlu0 %455
      %457 = vset.pattern.permute.xlu0 0
      %458 = vperm.xlu0 %457, %v369
      %v459 = vpop.permute.xlu0 %458
      %460 = vset.pattern.permute.xlu0 0
      %461 = vperm.xlu0 %460, %v370
      %v462 = vpop.permute.xlu0 %461
      %463 = vset.pattern.permute.xlu0 0
      %464 = vperm.xlu0 %463, %v371
      %v465 = vpop.permute.xlu0 %464
      %466 = vset.pattern.permute.xlu0 0
      %467 = vperm.xlu0 %466, %v372
      %v468 = vpop.permute.xlu0 %467
      %469 = vset.pattern.permute.xlu0 0
      %470 = vperm.xlu0 %469, %v373
      %v471 = vpop.permute.xlu0 %470
      %472 = vset.pattern.permute.xlu0 0
      %473 = vperm.xlu0 %472, %v374
      %v474 = vpop.permute.xlu0 %473
      %475 = vset.pattern.permute.xlu0 0
      %476 = vperm.xlu0 %475, %v375
      %v477 = vpop.permute.xlu0 %476
      %478 = vset.pattern.permute.xlu0 0
      %479 = vperm.xlu0 %478, %v376
      %v480 = vpop.permute.xlu0 %479
      %481 = vset.pattern.permute.xlu0 0
      %482 = vperm.xlu0 %481, %v377
      %v483 = vpop.permute.xlu0 %482
      %484 = vset.pattern.permute.xlu0 0
      %485 = vperm.xlu0 %484, %v378
      %v486 = vpop.permute.xlu0 %485
      %487 = vset.pattern.permute.xlu0 0
      %488 = vperm.xlu0 %487, %v379
      %v489 = vpop.permute.xlu0 %488
      %490 = vset.pattern.permute.xlu0 0
      %491 = vperm.xlu0 %490, %v380
      %v492 = vpop.permute.xlu0 %491
      %493 = vset.pattern.permute.xlu0 0
      %494 = vperm.xlu0 %493, %v381
      %v495 = vpop.permute.xlu0 %494
      %vm496 = vcmp.eq.s32.totalorder %v384, 1
      %vm497 = vcmp.eq.s32.totalorder %v387, 1
      %vm498 = vcmp.eq.s32.totalorder %v390, 1
      %vm499 = vcmp.eq.s32.totalorder %v393, 1
      %vm500 = vcmp.eq.s32.totalorder %v396, 1
      %vm501 = vcmp.eq.s32.totalorder %v399, 1
      %vm502 = vcmp.eq.s32.totalorder %v402, 1
      %vm503 = vcmp.eq.s32.totalorder %v405, 1
      %vm504 = vcmp.eq.s32.totalorder %v408, 1
      %vm505 = vcmp.eq.s32.totalorder %v411, 1
      %vm506 = vcmp.eq.s32.totalorder %v414, 1
      %vm507 = vcmp.eq.s32.totalorder %v417, 1
      %vm508 = vcmp.eq.s32.totalorder %v420, 1
      %vm509 = vcmp.eq.s32.totalorder %v423, 1
      %vm510 = vcmp.eq.s32.totalorder %v426, 1
      %vm511 = vcmp.eq.s32.totalorder %v429, 1
      %vm512 = vcmp.eq.s32.totalorder %v432, 1
      %vm513 = vcmp.eq.s32.totalorder %v435, 1
      %vm514 = vcmp.eq.s32.totalorder %v438, 1
      %vm515 = vcmp.eq.s32.totalorder %v441, 1
      %vm516 = vcmp.eq.s32.totalorder %v444, 1
      %vm517 = vcmp.eq.s32.totalorder %v447, 1
      %vm518 = vcmp.eq.s32.totalorder %v450, 1
      %vm519 = vcmp.eq.s32.totalorder %v453, 1
      %vm520 = vcmp.eq.s32.totalorder %v456, 1
      %vm521 = vcmp.eq.s32.totalorder %v459, 1
      %vm522 = vcmp.eq.s32.totalorder %v462, 1
      %vm523 = vcmp.eq.s32.totalorder %v465, 1
      %vm524 = vcmp.eq.s32.totalorder %v468, 1
      %vm525 = vcmp.eq.s32.totalorder %v471, 1
      %vm526 = vcmp.eq.s32.totalorder %v474, 1
      %vm527 = vcmp.eq.s32.totalorder %v477, 1
      %vm528 = vcmp.eq.s32.totalorder %v480, 1
      %vm529 = vcmp.eq.s32.totalorder %v483, 1
      %vm530 = vcmp.eq.s32.totalorder %v486, 1
      %vm531 = vcmp.eq.s32.totalorder %v489, 1
      %vm532 = vcmp.eq.s32.totalorder %v492, 1
      %vm533 = vcmp.eq.s32.totalorder %v495, 1
      %v534 = vsel %vm496, %v306, 0.0
      %v535 = vsel %vm497, %v307, 0.0
      %v536 = vsel %vm498, %v308, 0.0
      %v537 = vsel %vm499, %v309, 0.0
      %v538 = vsel %vm500, %v310, 0.0
      %v539 = vsel %vm501, %v311, 0.0
      %v540 = vsel %vm502, %v312, 0.0
      %v541 = vsel %vm503, %v313, 0.0
      %v542 = vsel %vm504, %v314, 0.0
      %v543 = vsel %vm505, %v315, 0.0
      %v544 = vsel %vm506, %v316, 0.0
      %v545 = vsel %vm507, %v317, 0.0
      %v546 = vsel %vm508, %v318, 0.0
      %v547 = vsel %vm509, %v319, 0.0
      %v548 = vsel %vm510, %v320, 0.0
      %v549 = vsel %vm511, %v321, 0.0
      %v550 = vsel %vm512, %v322, 0.0
      %v551 = vsel %vm513, %v323, 0.0
      %v552 = vsel %vm514, %v324, 0.0
      %v553 = vsel %vm515, %v325, 0.0
      %v554 = vsel %vm516, %v326, 0.0
      %v555 = vsel %vm517, %v327, 0.0
      %v556 = vsel %vm518, %v328, 0.0
      %v557 = vsel %vm519, %v329, 0.0
      %v558 = vsel %vm520, %v330, 0.0
      %v559 = vsel %vm521, %v331, 0.0
      %v560 = vsel %vm522, %v332, 0.0
      %v561 = vsel %vm523, %v333, 0.0
      %v562 = vsel %vm524, %v334, 0.0
      %v563 = vsel %vm525, %v335, 0.0
      %v564 = vsel %vm526, %v336, 0.0
      %v565 = vsel %vm527, %v337, 0.0
      %v566 = vsel %vm528, %v338, 0.0
      %v567 = vsel %vm529, %v339, 0.0
      %v568 = vsel %vm530, %v340, 0.0
      %v569 = vsel %vm531, %v341, 0.0
      %v570 = vsel %vm532, %v342, 0.0
      %v571 = vsel %vm533, %v343, 0.0
      %vm572 = vcmask 261120
      %v573 = vsel %vm572, %v534, 0.0
      %v574 = vsel %vm572, %v535, 0.0
      %v575 = vadd.f32 %v573, %v574
      %v576 = vsel %vm572, %v536, 0.0
      %v577 = vadd.f32 %v575, %v576
      %v578 = vsel %vm572, %v537, 0.0
      %v579 = vadd.f32 %v577, %v578
      %v580 = vsel %vm572, %v538, 0.0
      %v581 = vadd.f32 %v579, %v580
      %v582 = vsel %vm572, %v539, 0.0
      %v583 = vadd.f32 %v581, %v582
      %v584 = vsel %vm572, %v540, 0.0
      %v585 = vadd.f32 %v583, %v584
      %v586 = vsel %vm572, %v541, 0.0
      %v587 = vadd.f32 %v585, %v586
      %v588 = vsel %vm572, %v542, 0.0
      %v589 = vadd.f32 %v587, %v588
      %v590 = vsel %vm572, %v543, 0.0
      %v591 = vadd.f32 %v589, %v590
      %v592 = vsel %vm572, %v544, 0.0
      %v593 = vadd.f32 %v591, %v592
      %v594 = vsel %vm572, %v545, 0.0
      %v595 = vadd.f32 %v593, %v594
      %v596 = vsel %vm572, %v546, 0.0
      %v597 = vadd.f32 %v595, %v596
      %v598 = vsel %vm572, %v547, 0.0
      %v599 = vadd.f32 %v597, %v598
      %v600 = vsel %vm572, %v548, 0.0
      %v601 = vadd.f32 %v599, %v600
      %v602 = vsel %vm572, %v549, 0.0
      %v603 = vadd.f32 %v601, %v602
      %v604 = vsel %vm572, %v550, 0.0
      %v605 = vadd.f32 %v603, %v604
      %v606 = vsel %vm572, %v551, 0.0
      %v607 = vadd.f32 %v605, %v606
      %v608 = vsel %vm572, %v552, 0.0
      %v609 = vadd.f32 %v607, %v608
      %v610 = vsel %vm572, %v553, 0.0
      %v611 = vadd.f32 %v609, %v610
      %v612 = vsel %vm572, %v554, 0.0
      %v613 = vadd.f32 %v611, %v612
      %v614 = vsel %vm572, %v555, 0.0
      %v615 = vadd.f32 %v613, %v614
      %v616 = vsel %vm572, %v556, 0.0
      %v617 = vadd.f32 %v615, %v616
      %v618 = vsel %vm572, %v557, 0.0
      %v619 = vadd.f32 %v617, %v618
      %v620 = vsel %vm572, %v558, 0.0
      %v621 = vadd.f32 %v619, %v620
      %v622 = vsel %vm572, %v559, 0.0
      %v623 = vadd.f32 %v621, %v622
      %v624 = vsel %vm572, %v560, 0.0
      %v625 = vadd.f32 %v623, %v624
      %v626 = vsel %vm572, %v561, 0.0
      %v627 = vadd.f32 %v625, %v626
      %v628 = vsel %vm572, %v562, 0.0
      %v629 = vadd.f32 %v627, %v628
      %v630 = vsel %vm572, %v563, 0.0
      %v631 = vadd.f32 %v629, %v630
      %v632 = vsel %vm572, %v564, 0.0
      %v633 = vadd.f32 %v631, %v632
      %v634 = vsel %vm572, %v565, 0.0
      %v635 = vadd.f32 %v633, %v634
      %v636 = vsel %vm572, %v566, 0.0
      %v637 = vadd.f32 %v635, %v636
      %v638 = vsel %vm572, %v567, 0.0
      %v639 = vadd.f32 %v637, %v638
      %v640 = vsel %vm572, %v568, 0.0
      %v641 = vadd.f32 %v639, %v640
      %v642 = vsel %vm572, %v569, 0.0
      %v643 = vadd.f32 %v641, %v642
      %v644 = vsel %vm572, %v570, 0.0
      %v645 = vadd.f32 %v643, %v644
      %vm646 = vcmask 257024
      %v647 = vsel %vm646, %v571, 0.0
      %v648 = vadd.f32 %v645, %v647
      %v649 = vrot.slane %v648, 4
      %v650 = vadd.f32 %v648, %v649
      %v651 = vrot.slane %v650, 2
      %v652 = vadd.f32 %v650, %v651
      %v653 = vrot.slane %v652, 1
      %v654 = vadd.f32 %v652, %v653
      %v655 = vmul.f32 %v534, %v534
      %v656 = vmul.f32 %v535, %v535
      %v657 = vmul.f32 %v536, %v536
      %v658 = vmul.f32 %v537, %v537
      %v659 = vmul.f32 %v538, %v538
      %v660 = vmul.f32 %v539, %v539
      %v661 = vmul.f32 %v540, %v540
      %v662 = vmul.f32 %v541, %v541
      %v663 = vmul.f32 %v542, %v542
      %v664 = vmul.f32 %v543, %v543
      %v665 = vmul.f32 %v544, %v544
      %v666 = vmul.f32 %v545, %v545
      %v667 = vmul.f32 %v546, %v546
      %v668 = vmul.f32 %v547, %v547
      %v669 = vmul.f32 %v548, %v548
      %v670 = vmul.f32 %v549, %v549
      %v671 = vmul.f32 %v550, %v550
      %v672 = vmul.f32 %v551, %v551
      %v673 = vmul.f32 %v552, %v552
      %v674 = vmul.f32 %v553, %v553
      %v675 = vmul.f32 %v554, %v554
      %v676 = vmul.f32 %v555, %v555
      %v677 = vmul.f32 %v556, %v556
      %v678 = vmul.f32 %v557, %v557
      %v679 = vmul.f32 %v558, %v558
      %v680 = vmul.f32 %v559, %v559
      %v681 = vmul.f32 %v560, %v560
      %v682 = vmul.f32 %v561, %v561
      %v683 = vmul.f32 %v562, %v562
      %v684 = vmul.f32 %v563, %v563
      %v685 = vmul.f32 %v564, %v564
      %v686 = vmul.f32 %v565, %v565
      %v687 = vmul.f32 %v566, %v566
      %v688 = vmul.f32 %v567, %v567
      %v689 = vmul.f32 %v568, %v568
      %v690 = vmul.f32 %v569, %v569
      %v691 = vmul.f32 %v570, %v570
      %v692 = vmul.f32 %v571, %v571
      %v693 = vsel %vm572, %v655, 0.0
      %v694 = vsel %vm572, %v656, 0.0
      %v695 = vadd.f32 %v693, %v694
      %v696 = vsel %vm572, %v657, 0.0
      %v697 = vadd.f32 %v695, %v696
      %v698 = vsel %vm572, %v658, 0.0
      %v699 = vadd.f32 %v697, %v698
      %v700 = vsel %vm572, %v659, 0.0
      %v701 = vadd.f32 %v699, %v700
      %v702 = vsel %vm572, %v660, 0.0
      %v703 = vadd.f32 %v701, %v702
      %v704 = vsel %vm572, %v661, 0.0
      %v705 = vadd.f32 %v703, %v704
      %v706 = vsel %vm572, %v662, 0.0
      %v707 = vadd.f32 %v705, %v706
      %v708 = vsel %vm572, %v663, 0.0
      %v709 = vadd.f32 %v707, %v708
      %v710 = vsel %vm572, %v664, 0.0
      %v711 = vadd.f32 %v709, %v710
      %v712 = vsel %vm572, %v665, 0.0
      %v713 = vadd.f32 %v711, %v712
      %v714 = vsel %vm572, %v666, 0.0
      %v715 = vadd.f32 %v713, %v714
      %v716 = vsel %vm572, %v667, 0.0
      %v717 = vadd.f32 %v715, %v716
      %v718 = vsel %vm572, %v668, 0.0
      %v719 = vadd.f32 %v717, %v718
      %v720 = vsel %vm572, %v669, 0.0
      %v721 = vadd.f32 %v719, %v720
      %v722 = vsel %vm572, %v670, 0.0
      %v723 = vadd.f32 %v721, %v722
      %v724 = vsel %vm572, %v671, 0.0
      %v725 = vadd.f32 %v723, %v724
      %v726 = vsel %vm572, %v672, 0.0
      %v727 = vadd.f32 %v725, %v726
      %v728 = vsel %vm572, %v673, 0.0
      %v729 = vadd.f32 %v727, %v728
      %v730 = vsel %vm572, %v674, 0.0
      %v731 = vadd.f32 %v729, %v730
      %v732 = vsel %vm572, %v675, 0.0
      %v733 = vadd.f32 %v731, %v732
      %v734 = vsel %vm572, %v676, 0.0
      %v735 = vadd.f32 %v733, %v734
      %v736 = vsel %vm572, %v677, 0.0
      %v737 = vadd.f32 %v735, %v736
      %v738 = vsel %vm572, %v678, 0.0
      %v739 = vadd.f32 %v737, %v738
      %v740 = vsel %vm572, %v679, 0.0
      %v741 = vadd.f32 %v739, %v740
      %v742 = vsel %vm572, %v680, 0.0
      %v743 = vadd.f32 %v741, %v742
      %v744 = vsel %vm572, %v681, 0.0
      %v745 = vadd.f32 %v743, %v744
      %v746 = vsel %vm572, %v682, 0.0
      %v747 = vadd.f32 %v745, %v746
      %v748 = vsel %vm572, %v683, 0.0
      %v749 = vadd.f32 %v747, %v748
      %v750 = vsel %vm572, %v684, 0.0
      %v751 = vadd.f32 %v749, %v750
      %v752 = vsel %vm572, %v685, 0.0
      %v753 = vadd.f32 %v751, %v752
      %v754 = vsel %vm572, %v686, 0.0
      %v755 = vadd.f32 %v753, %v754
      %v756 = vsel %vm572, %v687, 0.0
      %v757 = vadd.f32 %v755, %v756
      %v758 = vsel %vm572, %v688, 0.0
      %v759 = vadd.f32 %v757, %v758
      %v760 = vsel %vm572, %v689, 0.0
      %v761 = vadd.f32 %v759, %v760
      %v762 = vsel %vm572, %v690, 0.0
      %v763 = vadd.f32 %v761, %v762
      %v764 = vsel %vm572, %v691, 0.0
      %v765 = vadd.f32 %v763, %v764
      %v766 = vsel %vm646, %v692, 0.0
      %v767 = vadd.f32 %v765, %v766
      %v768 = vrot.slane %v767, 4
      %v769 = vadd.f32 %v767, %v768
      %v770 = vrot.slane %v769, 2
      %v771 = vadd.f32 %v769, %v770
      %v772 = vrot.slane %v771, 1
      %v773 = vadd.f32 %v771, %v772
      %vm774 = vcmask 1040384
      %v775 = vsel %vm774, %v654, %v773
      %p776 = scmp.eq.s32.totalorder %s18, 0
      // Predicated region
      $region29: #{resnet_block_forward.9} parent=27 // pred_check
        %p777 = pneg %p776
      $region30: #{resnet_block_forward.9} parent=27 // pred_check_branch
        %779 = sbr.rel (%p777) target = $region32
      $region31: #{resnet_block_forward.9} parent=27 // pred_region
        %vm780 = vcmask 254976
        %781 = vst.msk [vmem:[%s191] sm:$0x3] %vm780, %v775
      $region32: #{resnet_block_forward.9} parent=27 // pred_fallthru
        _
      %p782 = scmp.gt.s32.totalorder %s18, 0
      // Predicated region
      $region33: #{resnet_block_forward.9} parent=27 // pred_check
        %p783 = pneg %p782
      $region34: #{resnet_block_forward.9} parent=27 // pred_check_branch
        %785 = sbr.rel (%p783) target = $region36
      $region35: #{resnet_block_forward.9} parent=27 // pred_region
        %v786 = vld [vmem:[%s191] sm:$0x3]
        %v787 = vadd.f32 %v786, %v775
        %vm788 = vcmask 254976
        %789 = vst.msk [vmem:[%s191] sm:$0x3] %vm788, %v787
      $region36: #{resnet_block_forward.9} parent=27 // pred_fallthru
        _
      %p790 = scmp.lt.s32.totalorder %s17, 1
      %s791 = scalar_select %p790, %s17, 1
      %s792 = smul.addr %s791, 2
      %s793 = scalar_lea.vmem %s2, %s792
      // Predicated region
      $region37: #{resnet_block_forward.9} parent=27 // pred_check
        %p794 = pneg %p97
      $region38: #{resnet_block_forward.9} parent=27 // pred_check_branch
        %796 = sbr.rel (%p794) target = $region40
      $region39: #{resnet_block_forward.9} parent=27 // pred_region
        _
      $region40: #{resnet_block_forward.9} parent=27 // pred_fallthru
        _
    $region28: #{resnet_block_forward.9} parent=5 // pred_fallthru
      _
    %p797 = scmp.le.s32.totalorder 2, %s8
    // Predicated region
    $region41: #{resnet_block_forward.9} parent=5 // pred_check
      %p798 = pneg %p797
    $region42: #{resnet_block_forward.9} parent=5 // pred_check_branch
      %800 = sbr.rel (%p798) target = $region44
    $region43: #{resnet_block_forward.9} parent=5 // pred_region
      %s801 = ssub.s32 %s8, 2
      // Predicated region
      $region45: #{resnet_block_forward.9} parent=43 // pred_check
        %p802 = pneg %p103
      $region46: #{resnet_block_forward.9} parent=43 // pred_check_branch
        %804 = sbr.rel (%p802) target = $region48
      $region47: #{resnet_block_forward.9} parent=43 // pred_region
        %p805 = scmp.lt.s32.totalorder %s19, 1
        %s806 = scalar_select %p805, %s19, 1
        %s807 = smul.addr %s806, 2
        %s808 = scalar_lea.vmem %s2, %s807
      $region48: #{resnet_block_forward.9} parent=43 // pred_fallthru
        _
    $region44: #{resnet_block_forward.9} parent=5 // pred_fallthru
      _
  $region6: #{resnet_block_forward.9} parent=0 // loop_footer
    %s12 = sadd.s32 1, %s8
  $region7: #{resnet_block_forward.9} parent=0 // loop_footer_branch
    %7 = sbr.rel target = $region3
  $region8: #{resnet_block_forward.9} parent=0 // loop_exit
    _

// kernel: resnet_block_forward.10
$region0: #{resnet_block_forward.10}
  #allocation0 [shape = 'u32[]', space=smem, size = 0x4, offset = 0x4, fixed_abs, tag = 'smem constant byte address 0x4 - core index']
  #allocation1 [shape = 'u32[144,128]{1,0:T(1,128)}', space=vmem, size = 0x12000, scoped, tag = 'internal scratch']
  %s0 = inlined_call_operand.vmem [shape: bf16[2,300,32], index: 0, kind: input, shape index: {}]
  %s1 = inlined_call_operand.vmem [shape: f32[2,1,32], index: 1, kind: input, shape index: {}]
  %s2 = inlined_call_operand.vmem [shape: f32[2,1,32], index: 2, kind: input, shape index: {}]
  %s3 = inlined_call_operand.vmem [shape: f32[300,1], index: 3, kind: input, shape index: {}]
  %s4 = inlined_call_operand.vmem [shape: bf16[2,300,32], index: 4, kind: output, shape index: {}]
  %s5 = sld [smem:[#allocation0]]
  $region49: #{resnet_block_forward.10} parent=0
    _
  %s7 = ssub.s32 1, %s5
  %s8 = scalar_select 0, %s7, %s5
  loop: start=0, step=1, limit=4
  $region2: #{resnet_block_forward.10} parent=0 // loop_pre_header
    _
  $region3: #{resnet_block_forward.10} parent=0 // loop_header
    %s10 = sphi 0, %s14
    %p11 = scmp.ge.s32.totalorder %s10, 4
    %s17 = sphi 0, %s29
    %s18 = sphi 0, %s25
    %s19 = sphi 0, %s17
    %s20 = sphi 0, %s18
    %s21 = sphi 0, %s19
    %s22 = sphi 0, %s20
    %s34 = sphi 0, %s36
    %s37 = sphi 0, %s34
    %s38 = sphi 0, %s37
    %s54 = sphi 0, %s38
    %s60 = sphi 0, %s62
    %s63 = sphi 0, %s60
    %s64 = sphi 0, %s63
    %s80 = sphi 0, %s64
    %s86 = sphi 0, %s88
    %s89 = sphi 0, %s86
    %s90 = sphi 0, %s89
    %s106 = sphi 0, %s90
    %s112 = sphi 0, %s114
    %s115 = sphi 0, %s112
    %s116 = sphi 0, %s115
    %s132 = sphi 0, %s116
    %s140 = sphi 0, %s142
    %s143 = sphi 0, %s140
    %s144 = sphi 0, %s143
    %s160 = sphi 0, %s144
  $region4: #{resnet_block_forward.10} parent=0 // loop_header_branch
    %13 = sbr.rel (%p11) target = $region8
  $region5: #{resnet_block_forward.10} parent=0 // loop_body
    %s15 = ssub.s32 %s10, 1
    %s16 = ssub.s32 %s10, 2
    %s23 = sadd.s32 1, %s18
    %p24 = scmp.ge.s32.totalorder %s23, 1
    %s25 = scalar_select %p24, 0, %s23
    %s26 = sadd.s32 1, %s17
    %s27 = scalar_select %p24, %s26, %s17
    %p28 = scmp.ge.s32.totalorder %s27, 2
    %s29 = scalar_select %p28, 0, %s27
    %s30 = ssub.s32 %s17, %s29
    %s31 = ssub.s32 %s18, %s25
    %s32 = sor.u32 %s30, %s31
    %p33 = scmp.eq.s32.totalorder %s32, 0
    %s35 = sadd.s32 %s34, 1
    %s36 = scalar_select %p33, %s34, %s35
    %p39 = pneg %p33
    %p40 = scmp.eq.s32.totalorder %s10, 1
    %p41 = por %p39, %p40
    %p42 = scmp.ne.s32.totalorder %s34, %s37
    %p43 = scmp.eq.s32.totalorder %s10, 0
    %p44 = por %p42, %p43
    %p45 = scmp.ne.s32.totalorder %s34, %s37
    %p46 = scmp.eq.s32.totalorder %s15, 1
    %p47 = por %p45, %p46
    %p48 = scmp.ne.s32.totalorder %s37, %s38
    %p49 = scmp.eq.s32.totalorder %s15, 0
    %p50 = por %p48, %p49
    %p51 = scmp.ne.s32.totalorder %s37, %s38
    %p52 = scmp.eq.s32.totalorder %s16, 1
    %p53 = por %p51, %p52
    %p55 = scmp.ne.s32.totalorder %s38, %s54
    %p56 = scmp.eq.s32.totalorder %s16, 0
    %p57 = por %p55, %p56
    %s58 = ssub.s32 %s17, %s29
    %p59 = scmp.eq.s32.totalorder %s58, 0
    %s61 = sadd.s32 %s60, 1
    %s62 = scalar_select %p59, %s60, %s61
    %p65 = pneg %p59
    %p66 = scmp.eq.s32.totalorder %s10, 1
    %p67 = por %p65, %p66
    %p68 = scmp.ne.s32.totalorder %s60, %s63
    %p69 = scmp.eq.s32.totalorder %s10, 0
    %p70 = por %p68, %p69
    %p71 = scmp.ne.s32.totalorder %s60, %s63
    %p72 = scmp.eq.s32.totalorder %s15, 1
    %p73 = por %p71, %p72
    %p74 = scmp.ne.s32.totalorder %s63, %s64
    %p75 = scmp.eq.s32.totalorder %s15, 0
    %p76 = por %p74, %p75
    %p77 = scmp.ne.s32.totalorder %s63, %s64
    %p78 = scmp.eq.s32.totalorder %s16, 1
    %p79 = por %p77, %p78
    %p81 = scmp.ne.s32.totalorder %s64, %s80
    %p82 = scmp.eq.s32.totalorder %s16, 0
    %p83 = por %p81, %p82
    %s84 = ssub.s32 %s17, %s29
    %p85 = scmp.eq.s32.totalorder %s84, 0
    %s87 = sadd.s32 %s86, 1
    %s88 = scalar_select %p85, %s86, %s87
    %p91 = pneg %p85
    %p92 = scmp.eq.s32.totalorder %s10, 1
    %p93 = por %p91, %p92
    %p94 = scmp.ne.s32.totalorder %s86, %s89
    %p95 = scmp.eq.s32.totalorder %s10, 0
    %p96 = por %p94, %p95
    %p97 = scmp.ne.s32.totalorder %s86, %s89
    %p98 = scmp.eq.s32.totalorder %s15, 1
    %p99 = por %p97, %p98
    %p100 = scmp.ne.s32.totalorder %s89, %s90
    %p101 = scmp.eq.s32.totalorder %s15, 0
    %p102 = por %p100, %p101
    %p103 = scmp.ne.s32.totalorder %s89, %s90
    %p104 = scmp.eq.s32.totalorder %s16, 1
    %p105 = por %p103, %p104
    %p107 = scmp.ne.s32.totalorder %s90, %s106
    %p108 = scmp.eq.s32.totalorder %s16, 0
    %p109 = por %p107, %p108
    %s110 = ssub.s32 %s18, %s25
    %p111 = scmp.eq.s32.totalorder %s110, 0
    %s113 = sadd.s32 %s112, 1
    %s114 = scalar_select %p111, %s112, %s113
    %p117 = pneg %p111
    %p118 = scmp.eq.s32.totalorder %s10, 1
    %p119 = por %p117, %p118
    %p120 = scmp.ne.s32.totalorder %s112, %s115
    %p121 = scmp.eq.s32.totalorder %s10, 0
    %p122 = por %p120, %p121
    %p123 = scmp.ne.s32.totalorder %s112, %s115
    %p124 = scmp.eq.s32.totalorder %s15, 1
    %p125 = por %p123, %p124
    %p126 = scmp.ne.s32.totalorder %s115, %s116
    %p127 = scmp.eq.s32.totalorder %s15, 0
    %p128 = por %p126, %p127
    %p129 = scmp.ne.s32.totalorder %s115, %s116
    %p130 = scmp.eq.s32.totalorder %s16, 1
    %p131 = por %p129, %p130
    %p133 = scmp.ne.s32.totalorder %s116, %s132
    %p134 = scmp.eq.s32.totalorder %s16, 0
    %p135 = por %p133, %p134
    %s136 = ssub.s32 %s17, %s29
    %s137 = ssub.s32 %s18, %s25
    %s138 = sor.u32 %s136, %s137
    %p139 = scmp.eq.s32.totalorder %s138, 0
    %s141 = sadd.s32 %s140, 1
    %s142 = scalar_select %p139, %s140, %s141
    %p145 = pneg %p139
    %p146 = scmp.eq.s32.totalorder %s10, 1
    %p147 = por %p145, %p146
    %p148 = scmp.ne.s32.totalorder %s140, %s143
    %p149 = scmp.eq.s32.totalorder %s10, 0
    %p150 = por %p148, %p149
    %p151 = scmp.ne.s32.totalorder %s140, %s143
    %p152 = scmp.eq.s32.totalorder %s15, 1
    %p153 = por %p151, %p152
    %p154 = scmp.ne.s32.totalorder %s143, %s144
    %p155 = scmp.eq.s32.totalorder %s15, 0
    %p156 = por %p154, %p155
    %p157 = scmp.ne.s32.totalorder %s143, %s144
    %p158 = scmp.eq.s32.totalorder %s16, 1
    %p159 = por %p157, %p158
    %p161 = scmp.ne.s32.totalorder %s144, %s160
    %p162 = scmp.eq.s32.totalorder %s16, 0
    %p163 = por %p161, %p162
    %p164 = scmp.le.s32.totalorder 1, %s10
    %p165 = scmp.lt.s32.totalorder %s10, 3
    %p166 = pnand %p164, %p165
    %p167 = pneg %p166
    // Predicated region
    $region9: #{resnet_block_forward.10} parent=5 // pred_check
      _
    $region10: #{resnet_block_forward.10} parent=5 // pred_check_branch
      %169 = sbr.rel (%p166) target = $region12
    $region11: #{resnet_block_forward.10} parent=5 // pred_region
      %s170 = ssub.s32 %s10, 1
      // Predicated region
      $region13: #{resnet_block_forward.10} parent=11 // pred_check
        %p171 = pneg %p128
      $region14: #{resnet_block_forward.10} parent=11 // pred_check_branch
        %173 = sbr.rel (%p171) target = $region16
      $region15: #{resnet_block_forward.10} parent=11 // pred_region
        %s174 = smul.u32 38, %s20
        %p175 = scmp.lt.s32.totalorder %s174, 37
        %s176 = scalar_select %p175, %s174, 37
        %s177 = smul.addr %s176, 8
        %s178 = scalar_lea.vmem %s3, %s177
        %s179 = smul.u32 38, %s20
      $region16: #{resnet_block_forward.10} parent=11 // pred_fallthru
        _
    $region12: #{resnet_block_forward.10} parent=5 // pred_fallthru
      _
    %p180 = scmp.lt.s32.totalorder %s10, 2
    // Predicated region
    $region17: #{resnet_block_forward.10} parent=5 // pred_check
      %p181 = pneg %p180
    $region18: #{resnet_block_forward.10} parent=5 // pred_check_branch
      %183 = sbr.rel (%p181) target = $region20
    $region19: #{resnet_block_forward.10} parent=5 // pred_region
      // Predicated region
      $region21: #{resnet_block_forward.10} parent=19 // pred_check
        %p184 = pneg %p44
      $region22: #{resnet_block_forward.10} parent=19 // pred_check_branch
        %186 = sbr.rel (%p184) target = $region24
      $region23: #{resnet_block_forward.10} parent=19 // pred_region
        %s187 = smul.u32 38, %s18
        %p188 = scmp.lt.s32.totalorder %s17, 1
        %s189 = scalar_select %p188, %s17, 1
        %p190 = scmp.lt.s32.totalorder %s187, 37
        %s191 = scalar_select %p190, %s187, 37
        %s192 = smul.addr %s189, 38
        %s193 = sadd.s32 %s191, %s192
        %s194 = smul.addr %s193, 4
        %s195 = scalar_lea.vmem %s0, %s194
        %s196 = smul.u32 38, %s18
      $region24: #{resnet_block_forward.10} parent=19 // pred_fallthru
        _
      // Predicated region
      $region25: #{resnet_block_forward.10} parent=19 // pred_check
        %p197 = pneg %p70
      $region26: #{resnet_block_forward.10} parent=19 // pred_check_branch
        %199 = sbr.rel (%p197) target = $region28
      $region27: #{resnet_block_forward.10} parent=19 // pred_region
        %p200 = scmp.lt.s32.totalorder %s17, 1
        %s201 = scalar_select %p200, %s17, 1
        %s202 = scalar_lea.vmem %s1, %s201
      $region28: #{resnet_block_forward.10} parent=19 // pred_fallthru
        _
      // Predicated region
      $region29: #{resnet_block_forward.10} parent=19 // pred_check
        %p203 = pneg %p96
      $region30: #{resnet_block_forward.10} parent=19 // pred_check_branch
        %205 = sbr.rel (%p203) target = $region32
      $region31: #{resnet_block_forward.10} parent=19 // pred_region
        %p206 = scmp.lt.s32.totalorder %s17, 1
        %s207 = scalar_select %p206, %s17, 1
        %s208 = scalar_lea.vmem %s2, %s207
      $region32: #{resnet_block_forward.10} parent=19 // pred_fallthru
        _
    $region20: #{resnet_block_forward.10} parent=5 // pred_fallthru
      _
    %p209 = scmp.le.s32.totalorder 1, %s10
    %p210 = scmp.lt.s32.totalorder %s10, 3
    %p211 = pnand %p209, %p210
    %p212 = pneg %p211
    // Predicated region
    $region33: #{resnet_block_forward.10} parent=5 // pred_check
      _
    $region34: #{resnet_block_forward.10} parent=5 // pred_check_branch
      %214 = sbr.rel (%p211) target = $region36
    $region35: #{resnet_block_forward.10} parent=5 // pred_region
      %s215 = ssub.s32 %s10, 1
      %s216 = smul.u32 38, %s20
      %p217 = scmp.lt.s32.totalorder %s19, 1
      %s218 = scalar_select %p217, %s19, 1
      %p219 = scmp.lt.s32.totalorder %s216, 37
      %s220 = scalar_select %p219, %s216, 37
      %s221 = smul.addr %s218, 38
      %s222 = sadd.s32 %s220, %s221
      %s223 = smul.addr %s222, 4
      %s224 = scalar_lea.vmem %s0, %s223
      %p225 = pneg %p50
      %p226 = pneg %p47
      %p227 = scmp.lt.s32.totalorder %s19, 1
      %s228 = scalar_select %p227, %s19, 1
      %s229 = scalar_lea.vmem %s1, %s228
      %p230 = pneg %p76
      %p231 = pneg %p73
      %p232 = scmp.lt.s32.totalorder %s19, 1
      %s233 = scalar_select %p232, %s19, 1
      %s234 = scalar_lea.vmem %s2, %s233
      %p235 = pneg %p102
      %p236 = pneg %p99
      %s237 = smul.u32 38, %s20
      %p238 = scmp.lt.s32.totalorder %s237, 37
      %s239 = scalar_select %p238, %s237, 37
      %s240 = smul.addr %s239, 8
      %s241 = scalar_lea.vmem %s3, %s240
      %p242 = pneg %p128
      %p243 = pneg %p125
      %p244 = pneg %p156
      %p245 = pneg %p153
      %s246 = smul.u32 38, %s20
      %p247 = scmp.lt.s32.totalorder %s19, 1
      %s248 = scalar_select %p247, %s19, 1
      %p249 = scmp.lt.s32.totalorder %s246, 37
      %s250 = scalar_select %p249, %s246, 37
      %s251 = smul.addr %s248, 38
      %s252 = sadd.s32 %s250, %s251
      %s253 = smul.addr %s252, 4
      %s254 = scalar_lea.vmem %s4, %s253
      %s255 = smul.u32 38, %s20
      %p256 = scmp.lt.s32.totalorder %s19, 1
      %s257 = scalar_select %p256, %s19, 1
      %p258 = scmp.lt.s32.totalorder %s255, 37
      %s259 = scalar_select %p258, %s255, 37
      %s260 = smul.addr %s257, 38
      %s261 = sadd.s32 %s259, %s260
      %s262 = smul.addr %s261, 4
      %s263 = scalar_lea.vmem %s0, %s262
      %s264 = smul.u32 38, %s20
      %p265 = scmp.lt.s32.totalorder %s19, 1
      %s266 = scalar_select %p265, %s19, 1
      %s267 = scalar_lea.vmem %s1, %s266
      %p268 = scmp.lt.s32.totalorder %s19, 1
      %s269 = scalar_select %p268, %s19, 1
      %s270 = scalar_lea.vmem %s2, %s269
      %s271 = smul.u32 38, %s20
      %p272 = scmp.lt.s32.totalorder %s271, 37
      %s273 = scalar_select %p272, %s271, 37
      %s274 = smul.addr %s273, 8
      %s275 = scalar_lea.vmem %s3, %s274
      %s276 = smul.u32 38, %s20
      %s277 = smul.u32 38, %s20
      %p278 = scmp.lt.s32.totalorder %s19, 1
      %s279 = scalar_select %p278, %s19, 1
      %p280 = scmp.lt.s32.totalorder %s277, 37
      %s281 = scalar_select %p280, %s277, 37
      %s282 = smul.addr %s279, 38
      %s283 = sadd.s32 %s281, %s282
      %s284 = smul.addr %s283, 4
      %s285 = scalar_lea.vmem %s4, %s284
      %s286 = smul.u32 38, %s20
      %v287 = vld [vmem:[%s263] sm:$0xf]
      %v288 = vld [vmem:[%s263 + $0x4] sm:$0xf]
      %v289 = vld [vmem:[%s263 + $0x8] sm:$0xf]
      %v290 = vld [vmem:[%s263 + $0xc] sm:$0xf]
      %v291 = vld [vmem:[%s263 + $0x10] sm:$0xf]
      %v292 = vld [vmem:[%s263 + $0x14] sm:$0xf]
      %v293 = vld [vmem:[%s263 + $0x18] sm:$0xf]
      %v294 = vld [vmem:[%s263 + $0x1c] sm:$0xf]
      %v295 = vld [vmem:[%s263 + $0x20] sm:$0xf]
      %v296 = vld [vmem:[%s263 + $0x24] sm:$0xf]
      %v297 = vld [vmem:[%s263 + $0x28] sm:$0xf]
      %v298 = vld [vmem:[%s263 + $0x2c] sm:$0xf]
      %v299 = vld [vmem:[%s263 + $0x30] sm:$0xf]
      %v300 = vld [vmem:[%s263 + $0x34] sm:$0xf]
      %v301 = vld [vmem:[%s263 + $0x38] sm:$0xf]
      %v302 = vld [vmem:[%s263 + $0x3c] sm:$0xf]
      %v303 = vld [vmem:[%s263 + $0x40] sm:$0xf]
      %v304 = vld [vmem:[%s263 + $0x44] sm:$0xf]
      %v305 = vld [vmem:[%s263 + $0x48] sm:$0xf]
      %v306 = vld [vmem:[%s263 + $0x4c] sm:$0xf]
      %v307 = vld [vmem:[%s263 + $0x50] sm:$0xf]
      %v308 = vld [vmem:[%s263 + $0x54] sm:$0xf]
      %v309 = vld [vmem:[%s263 + $0x58] sm:$0xf]
      %v310 = vld [vmem:[%s263 + $0x5c] sm:$0xf]
      %v311 = vld [vmem:[%s263 + $0x60] sm:$0xf]
      %v312 = vld [vmem:[%s263 + $0x64] sm:$0xf]
      %v313 = vld [vmem:[%s263 + $0x68] sm:$0xf]
      %v314 = vld [vmem:[%s263 + $0x6c] sm:$0xf]
      %v315 = vld [vmem:[%s263 + $0x70] sm:$0xf]
      %v316 = vld [vmem:[%s263 + $0x74] sm:$0xf]
      %v317 = vld [vmem:[%s263 + $0x78] sm:$0xf]
      %v318 = vld [vmem:[%s263 + $0x7c] sm:$0xf]
      %v319 = vld [vmem:[%s263 + $0x80] sm:$0xf]
      %v320 = vld [vmem:[%s263 + $0x84] sm:$0xf]
      %v321 = vld [vmem:[%s263 + $0x88] sm:$0xf]
      %v322 = vld [vmem:[%s263 + $0x8c] sm:$0xf]
      %v323 = vld [vmem:[%s263 + $0x90] sm:$0xf]
      %v324 = vld [vmem:[%s263 + $0x94] sm:$0x3]
      %v325 = vunpack.c.l.bf16 %v287
      %v326 = vunpack.c.l.bf16 %v288
      %v327 = vunpack.c.l.bf16 %v289
      %v328 = vunpack.c.l.bf16 %v290
      %v329 = vunpack.c.l.bf16 %v291
      %v330 = vunpack.c.l.bf16 %v292
      %v331 = vunpack.c.l.bf16 %v293
      %v332 = vunpack.c.l.bf16 %v294
      %v333 = vunpack.c.l.bf16 %v295
      %v334 = vunpack.c.l.bf16 %v296
      %v335 = vunpack.c.l.bf16 %v297
      %v336 = vunpack.c.l.bf16 %v298
      %v337 = vunpack.c.l.bf16 %v299
      %v338 = vunpack.c.l.bf16 %v300
      %v339 = vunpack.c.l.bf16 %v301
      %v340 = vunpack.c.l.bf16 %v302
      %v341 = vunpack.c.l.bf16 %v303
      %v342 = vunpack.c.l.bf16 %v304
      %v343 = vunpack.c.l.bf16 %v305
      %v344 = vunpack.c.l.bf16 %v306
      %v345 = vunpack.c.l.bf16 %v307
      %v346 = vunpack.c.l.bf16 %v308
      %v347 = vunpack.c.l.bf16 %v309
      %v348 = vunpack.c.l.bf16 %v310
      %v349 = vunpack.c.l.bf16 %v311
      %v350 = vunpack.c.l.bf16 %v312
      %v351 = vunpack.c.l.bf16 %v313
      %v352 = vunpack.c.l.bf16 %v314
      %v353 = vunpack.c.l.bf16 %v315
      %v354 = vunpack.c.l.bf16 %v316
      %v355 = vunpack.c.l.bf16 %v317
      %v356 = vunpack.c.l.bf16 %v318
      %v357 = vunpack.c.l.bf16 %v319
      %v358 = vunpack.c.l.bf16 %v320
      %v359 = vunpack.c.l.bf16 %v321
      %v360 = vunpack.c.l.bf16 %v322
      %v361 = vunpack.c.l.bf16 %v323
      %v362 = vunpack.c.l.bf16 %v324
      %v363 = vld [vmem:[%s267] sm:$0x1]
      %v365 = vlaneseq
      %v366 = vshrl.u32 %v365, 7
      %v367 = vsub.s32 0, %v366
      %v368 = vrot.slane %v363, %v367
      %v370 = vmul.f32 %v325, %v368
      %v371 = vmul.f32 %v326, %v368
      %v372 = vmul.f32 %v327, %v368
      %v373 = vmul.f32 %v328, %v368
      %v374 = vmul.f32 %v329, %v368
      %v375 = vmul.f32 %v330, %v368
      %v376 = vmul.f32 %v331, %v368
      %v377 = vmul.f32 %v332, %v368
      %v378 = vmul.f32 %v333, %v368
      %v379 = vmul.f32 %v334, %v368
      %v380 = vmul.f32 %v335, %v368
      %v381 = vmul.f32 %v336, %v368
      %v382 = vmul.f32 %v337, %v368
      %v383 = vmul.f32 %v338, %v368
      %v384 = vmul.f32 %v339, %v368
      %v385 = vmul.f32 %v340, %v368
      %v386 = vmul.f32 %v341, %v368
      %v387 = vmul.f32 %v342, %v368
      %v388 = vmul.f32 %v343, %v368
      %v389 = vmul.f32 %v344, %v368
      %v390 = vmul.f32 %v345, %v368
      %v391 = vmul.f32 %v346, %v368
      %v392 = vmul.f32 %v347, %v368
      %v393 = vmul.f32 %v348, %v368
      %v394 = vmul.f32 %v349, %v368
      %v395 = vmul.f32 %v350, %v368
      %v396 = vmul.f32 %v351, %v368
      %v397 = vmul.f32 %v352, %v368
      %v398 = vmul.f32 %v353, %v368
      %v399 = vmul.f32 %v354, %v368
      %v400 = vmul.f32 %v355, %v368
      %v401 = vmul.f32 %v356, %v368
      %v402 = vmul.f32 %v357, %v368
      %v403 = vmul.f32 %v358, %v368
      %v404 = vmul.f32 %v359, %v368
      %v405 = vmul.f32 %v360, %v368
      %v406 = vmul.f32 %v361, %v368
      %v407 = vmul.f32 %v362, %v368
      %v408 = vld [vmem:[%s270] sm:$0x1]
      %v410 = vlaneseq
      %v411 = vshrl.u32 %v410, 7
      %v412 = vsub.s32 0, %v411
      %v413 = vrot.slane %v408, %v412
      %v415 = vadd.f32 %v370, %v413
      %v416 = vadd.f32 %v371, %v413
      %v417 = vadd.f32 %v372, %v413
      %v418 = vadd.f32 %v373, %v413
      %v419 = vadd.f32 %v374, %v413
      %v420 = vadd.f32 %v375, %v413
      %v421 = vadd.f32 %v376, %v413
      %v422 = vadd.f32 %v377, %v413
      %v423 = vadd.f32 %v378, %v413
      %v424 = vadd.f32 %v379, %v413
      %v425 = vadd.f32 %v380, %v413
      %v426 = vadd.f32 %v381, %v413
      %v427 = vadd.f32 %v382, %v413
      %v428 = vadd.f32 %v383, %v413
      %v429 = vadd.f32 %v384, %v413
      %v430 = vadd.f32 %v385, %v413
      %v431 = vadd.f32 %v386, %v413
      %v432 = vadd.f32 %v387, %v413
      %v433 = vadd.f32 %v388, %v413
      %v434 = vadd.f32 %v389, %v413
      %v435 = vadd.f32 %v390, %v413
      %v436 = vadd.f32 %v391, %v413
      %v437 = vadd.f32 %v392, %v413
      %v438 = vadd.f32 %v393, %v413
      %v439 = vadd.f32 %v394, %v413
      %v440 = vadd.f32 %v395, %v413
      %v441 = vadd.f32 %v396, %v413
      %v442 = vadd.f32 %v397, %v413
      %v443 = vadd.f32 %v398, %v413
      %v444 = vadd.f32 %v399, %v413
      %v445 = vadd.f32 %v400, %v413
      %v446 = vadd.f32 %v401, %v413
      %v447 = vadd.f32 %v402, %v413
      %v448 = vadd.f32 %v403, %v413
      %v449 = vadd.f32 %v404, %v413
      %v450 = vadd.f32 %v405, %v413
      %v451 = vadd.f32 %v406, %v413
      %v452 = vadd.f32 %v407, %v413
      %v453 = vxor.u32 %v415, 2147483648
      %v454 = vxor.u32 %v416, 2147483648
      %v455 = vxor.u32 %v417, 2147483648
      %v456 = vxor.u32 %v418, 2147483648
      %v457 = vxor.u32 %v419, 2147483648
      %v458 = vxor.u32 %v420, 2147483648
      %v459 = vxor.u32 %v421, 2147483648
      %v460 = vxor.u32 %v422, 2147483648
      %v461 = vxor.u32 %v423, 2147483648
      %v462 = vxor.u32 %v424, 2147483648
      %v463 = vxor.u32 %v425, 2147483648
      %v464 = vxor.u32 %v426, 2147483648
      %v465 = vxor.u32 %v427, 2147483648
      %v466 = vxor.u32 %v428, 2147483648
      %v467 = vxor.u32 %v429, 2147483648
      %v468 = vxor.u32 %v430, 2147483648
      %v469 = vxor.u32 %v431, 2147483648
      %v470 = vxor.u32 %v432, 2147483648
      %v471 = vxor.u32 %v433, 2147483648
      %v472 = vxor.u32 %v434, 2147483648
      %v473 = vxor.u32 %v435, 2147483648
      %v474 = vxor.u32 %v436, 2147483648
      %v475 = vxor.u32 %v437, 2147483648
      %v476 = vxor.u32 %v438, 2147483648
      %v477 = vxor.u32 %v439, 2147483648
      %v478 = vxor.u32 %v440, 2147483648
      %v479 = vxor.u32 %v441, 2147483648
      %v480 = vxor.u32 %v442, 2147483648
      %v481 = vxor.u32 %v443, 2147483648
      %v482 = vxor.u32 %v444, 2147483648
      %v483 = vxor.u32 %v445, 2147483648
      %v484 = vxor.u32 %v446, 2147483648
      %v485 = vxor.u32 %v447, 2147483648
      %v486 = vxor.u32 %v448, 2147483648
      %v487 = vxor.u32 %v449, 2147483648
      %v488 = vxor.u32 %v450, 2147483648
      %v489 = vxor.u32 %v451, 2147483648
      %v490 = vxor.u32 %v452, 2147483648
      %v491 = vmul.f32 %v453, 1.442695
      %v492 = vpow.pop %v491
      %v493 = vmul.f32 %v454, 1.442695
      %v494 = vpow.pop %v493
      %v495 = vmul.f32 %v455, 1.442695
      %v496 = vpow.pop %v495
      %v497 = vmul.f32 %v456, 1.442695
      %v498 = vpow.pop %v497
      %v499 = vmul.f32 %v457, 1.442695
      %v500 = vpow.pop %v499
      %v501 = vmul.f32 %v458, 1.442695
      %v502 = vpow.pop %v501
      %v503 = vmul.f32 %v459, 1.442695
      %v504 = vpow.pop %v503
      %v505 = vmul.f32 %v460, 1.442695
      %v506 = vpow.pop %v505
      %v507 = vmul.f32 %v461, 1.442695
      %v508 = vpow.pop %v507
      %v509 = vmul.f32 %v462, 1.442695
      %v510 = vpow.pop %v509
      %v511 = vmul.f32 %v463, 1.442695
      %v512 = vpow.pop %v511
      %v513 = vmul.f32 %v464, 1.442695
      %v514 = vpow.pop %v513
      %v515 = vmul.f32 %v465, 1.442695
      %v516 = vpow.pop %v515
      %v517 = vmul.f32 %v466, 1.442695
      %v518 = vpow.pop %v517
      %v519 = vmul.f32 %v467, 1.442695
      %v520 = vpow.pop %v519
      %v521 = vmul.f32 %v468, 1.442695
      %v522 = vpow.pop %v521
      %v523 = vmul.f32 %v469, 1.442695
      %v524 = vpow.pop %v523
      %v525 = vmul.f32 %v470, 1.442695
      %v526 = vpow.pop %v525
      %v527 = vmul.f32 %v471, 1.442695
      %v528 = vpow.pop %v527
      %v529 = vmul.f32 %v472, 1.442695
      %v530 = vpow.pop %v529
      %v531 = vmul.f32 %v473, 1.442695
      %v532 = vpow.pop %v531
      %v533 = vmul.f32 %v474, 1.442695
      %v534 = vpow.pop %v533
      %v535 = vmul.f32 %v475, 1.442695
      %v536 = vpow.pop %v535
      %v537 = vmul.f32 %v476, 1.442695
      %v538 = vpow.pop %v537
      %v539 = vmul.f32 %v477, 1.442695
      %v540 = vpow.pop %v539
      %v541 = vmul.f32 %v478, 1.442695
      %v542 = vpow.pop %v541
      %v543 = vmul.f32 %v479, 1.442695
      %v544 = vpow.pop %v543
      %v545 = vmul.f32 %v480, 1.442695
      %v546 = vpow.pop %v545
      %v547 = vmul.f32 %v481, 1.442695
      %v548 = vpow.pop %v547
      %v549 = vmul.f32 %v482, 1.442695
      %v550 = vpow.pop %v549
      %v551 = vmul.f32 %v483, 1.442695
      %v552 = vpow.pop %v551
      %v553 = vmul.f32 %v484, 1.442695
      %v554 = vpow.pop %v553
      %v555 = vmul.f32 %v485, 1.442695
      %v556 = vpow.pop %v555
      %v557 = vmul.f32 %v486, 1.442695
      %v558 = vpow.pop %v557
      %v559 = vmul.f32 %v487, 1.442695
      %v560 = vpow.pop %v559
      %v561 = vmul.f32 %v488, 1.442695
      %v562 = vpow.pop %v561
      %v563 = vmul.f32 %v489, 1.442695
      %v564 = vpow.pop %v563
      %v565 = vmul.f32 %v490, 1.442695
      %v566 = vpow.pop %v565
      %v567 = vadd.f32 %v492, 1.0
      %v568 = vadd.f32 %v494, 1.0
      %v569 = vadd.f32 %v496, 1.0
      %v570 = vadd.f32 %v498, 1.0
      %v571 = vadd.f32 %v500, 1.0
      %v572 = vadd.f32 %v502, 1.0
      %v573 = vadd.f32 %v504, 1.0
      %v574 = vadd.f32 %v506, 1.0
      %v575 = vadd.f32 %v508, 1.0
      %v576 = vadd.f32 %v510, 1.0
      %v577 = vadd.f32 %v512, 1.0
      %v578 = vadd.f32 %v514, 1.0
      %v579 = vadd.f32 %v516, 1.0
      %v580 = vadd.f32 %v518, 1.0
      %v581 = vadd.f32 %v520, 1.0
      %v582 = vadd.f32 %v522, 1.0
      %v583 = vadd.f32 %v524, 1.0
      %v584 = vadd.f32 %v526, 1.0
      %v585 = vadd.f32 %v528, 1.0
      %v586 = vadd.f32 %v530, 1.0
      %v587 = vadd.f32 %v532, 1.0
      %v588 = vadd.f32 %v534, 1.0
      %v589 = vadd.f32 %v536, 1.0
      %v590 = vadd.f32 %v538, 1.0
      %v591 = vadd.f32 %v540, 1.0
      %v592 = vadd.f32 %v542, 1.0
      %v593 = vadd.f32 %v544, 1.0
      %v594 = vadd.f32 %v546, 1.0
      %v595 = vadd.f32 %v548, 1.0
      %v596 = vadd.f32 %v550, 1.0
      %v597 = vadd.f32 %v552, 1.0
      %v598 = vadd.f32 %v554, 1.0
      %v599 = vadd.f32 %v556, 1.0
      %v600 = vadd.f32 %v558, 1.0
      %v601 = vadd.f32 %v560, 1.0
      %v602 = vadd.f32 %v562, 1.0
      %v603 = vadd.f32 %v564, 1.0
      %v604 = vadd.f32 %v566, 1.0
      %v605 = vrcp.pop %v567
      %v606 = vmul.f32 1.0, %v605
      %v607 = vrcp.pop %v568
      %v608 = vmul.f32 1.0, %v607
      %v609 = vrcp.pop %v569
      %v610 = vmul.f32 1.0, %v609
      %v611 = vrcp.pop %v570
      %v612 = vmul.f32 1.0, %v611
      %v613 = vrcp.pop %v571
      %v614 = vmul.f32 1.0, %v613
      %v615 = vrcp.pop %v572
      %v616 = vmul.f32 1.0, %v615
      %v617 = vrcp.pop %v573
      %v618 = vmul.f32 1.0, %v617
      %v619 = vrcp.pop %v574
      %v620 = vmul.f32 1.0, %v619
      %v621 = vrcp.pop %v575
      %v622 = vmul.f32 1.0, %v621
      %v623 = vrcp.pop %v576
      %v624 = vmul.f32 1.0, %v623
      %v625 = vrcp.pop %v577
      %v626 = vmul.f32 1.0, %v625
      %v627 = vrcp.pop %v578
      %v628 = vmul.f32 1.0, %v627
      %v629 = vrcp.pop %v579
      %v630 = vmul.f32 1.0, %v629
      %v631 = vrcp.pop %v580
      %v632 = vmul.f32 1.0, %v631
      %v633 = vrcp.pop %v581
      %v634 = vmul.f32 1.0, %v633
      %v635 = vrcp.pop %v582
      %v636 = vmul.f32 1.0, %v635
      %v637 = vrcp.pop %v583
      %v638 = vmul.f32 1.0, %v637
      %v639 = vrcp.pop %v584
      %v640 = vmul.f32 1.0, %v639
      %v641 = vrcp.pop %v585
      %v642 = vmul.f32 1.0, %v641
      %v643 = vrcp.pop %v586
      %v644 = vmul.f32 1.0, %v643
      %v645 = vrcp.pop %v587
      %v646 = vmul.f32 1.0, %v645
      %v647 = vrcp.pop %v588
      %v648 = vmul.f32 1.0, %v647
      %v649 = vrcp.pop %v589
      %v650 = vmul.f32 1.0, %v649
      %v651 = vrcp.pop %v590
      %v652 = vmul.f32 1.0, %v651
      %v653 = vrcp.pop %v591
      %v654 = vmul.f32 1.0, %v653
      %v655 = vrcp.pop %v592
      %v656 = vmul.f32 1.0, %v655
      %v657 = vrcp.pop %v593
      %v658 = vmul.f32 1.0, %v657
      %v659 = vrcp.pop %v594
      %v660 = vmul.f32 1.0, %v659
      %v661 = vrcp.pop %v595
      %v662 = vmul.f32 1.0, %v661
      %v663 = vrcp.pop %v596
      %v664 = vmul.f32 1.0, %v663
      %v665 = vrcp.pop %v597
      %v666 = vmul.f32 1.0, %v665
      %v667 = vrcp.pop %v598
      %v668 = vmul.f32 1.0, %v667
      %v669 = vrcp.pop %v599
      %v670 = vmul.f32 1.0, %v669
      %v671 = vrcp.pop %v600
      %v672 = vmul.f32 1.0, %v671
      %v673 = vrcp.pop %v601
      %v674 = vmul.f32 1.0, %v673
      %v675 = vrcp.pop %v602
      %v676 = vmul.f32 1.0, %v675
      %v677 = vrcp.pop %v603
      %v678 = vmul.f32 1.0, %v677
      %v679 = vrcp.pop %v604
      %v680 = vmul.f32 1.0, %v679
      %v681 = vmul.f32 %v415, %v606
      %v682 = vmul.f32 %v416, %v608
      %v683 = vmul.f32 %v417, %v610
      %v684 = vmul.f32 %v418, %v612
      %v685 = vmul.f32 %v419, %v614
      %v686 = vmul.f32 %v420, %v616
      %v687 = vmul.f32 %v421, %v618
      %v688 = vmul.f32 %v422, %v620
      %v689 = vmul.f32 %v423, %v622
      %v690 = vmul.f32 %v424, %v624
      %v691 = vmul.f32 %v425, %v626
      %v692 = vmul.f32 %v426, %v628
      %v693 = vmul.f32 %v427, %v630
      %v694 = vmul.f32 %v428, %v632
      %v695 = vmul.f32 %v429, %v634
      %v696 = vmul.f32 %v430, %v636
      %v697 = vmul.f32 %v431, %v638
      %v698 = vmul.f32 %v432, %v640
      %v699 = vmul.f32 %v433, %v642
      %v700 = vmul.f32 %v434, %v644
      %v701 = vmul.f32 %v435, %v646
      %v702 = vmul.f32 %v436, %v648
      %v703 = vmul.f32 %v437, %v650
      %v704 = vmul.f32 %v438, %v652
      %v705 = vmul.f32 %v439, %v654
      %v706 = vmul.f32 %v440, %v656
      %v707 = vmul.f32 %v441, %v658
      %v708 = vmul.f32 %v442, %v660
      %v709 = vmul.f32 %v443, %v662
      %v710 = vmul.f32 %v444, %v664
      %v711 = vmul.f32 %v445, %v666
      %v712 = vmul.f32 %v446, %v668
      %v713 = vmul.f32 %v447, %v670
      %v714 = vmul.f32 %v448, %v672
      %v715 = vmul.f32 %v449, %v674
      %v716 = vmul.f32 %v450, %v676
      %v717 = vmul.f32 %v451, %v678
      %v718 = vmul.f32 %v452, %v680
      %v719 = vld [vmem:[%s275] sm:$0xff]
      %v720 = vld [vmem:[%s275 + $0x8] sm:$0xff]
      %v721 = vld [vmem:[%s275 + $0x10] sm:$0xff]
      %v722 = vld [vmem:[%s275 + $0x18] sm:$0xff]
      %v723 = vld [vmem:[%s275 + $0x20] sm:$0xff]
      %v724 = vld [vmem:[%s275 + $0x28] sm:$0xff]
      %v725 = vld [vmem:[%s275 + $0x30] sm:$0xff]
      %v726 = vld [vmem:[%s275 + $0x38] sm:$0xff]
      %v727 = vld [vmem:[%s275 + $0x40] sm:$0xff]
      %v728 = vld [vmem:[%s275 + $0x48] sm:$0xff]
      %v729 = vld [vmem:[%s275 + $0x50] sm:$0xff]
      %v730 = vld [vmem:[%s275 + $0x58] sm:$0xff]
      %v731 = vld [vmem:[%s275 + $0x60] sm:$0xff]
      %v732 = vld [vmem:[%s275 + $0x68] sm:$0xff]
      %v733 = vld [vmem:[%s275 + $0x70] sm:$0xff]
      %v734 = vld [vmem:[%s275 + $0x78] sm:$0xff]
      %v735 = vld [vmem:[%s275 + $0x80] sm:$0xff]
      %v736 = vld [vmem:[%s275 + $0x88] sm:$0xff]
      %v737 = vld [vmem:[%s275 + $0x90] sm:$0xff]
      %v738 = vld [vmem:[%s275 + $0x98] sm:$0xff]
      %v739 = vld [vmem:[%s275 + $0xa0] sm:$0xff]
      %v740 = vld [vmem:[%s275 + $0xa8] sm:$0xff]
      %v741 = vld [vmem:[%s275 + $0xb0] sm:$0xff]
      %v742 = vld [vmem:[%s275 + $0xb8] sm:$0xff]
      %v743 = vld [vmem:[%s275 + $0xc0] sm:$0xff]
      %v744 = vld [vmem:[%s275 + $0xc8] sm:$0xff]
      %v745 = vld [vmem:[%s275 + $0xd0] sm:$0xff]
      %v746 = vld [vmem:[%s275 + $0xd8] sm:$0xff]
      %v747 = vld [vmem:[%s275 + $0xe0] sm:$0xff]
      %v748 = vld [vmem:[%s275 + $0xe8] sm:$0xff]
      %v749 = vld [vmem:[%s275 + $0xf0] sm:$0xff]
      %v750 = vld [vmem:[%s275 + $0xf8] sm:$0xff]
      %v751 = vld [vmem:[%s275 + $0x100] sm:$0xff]
      %v752 = vld [vmem:[%s275 + $0x108] sm:$0xff]
      %v753 = vld [vmem:[%s275 + $0x110] sm:$0xff]
      %v754 = vld [vmem:[%s275 + $0x118] sm:$0xff]
      %v755 = vld [vmem:[%s275 + $0x120] sm:$0xff]
      %v756 = vld [vmem:[%s275 + $0x128] sm:$0xf]
      %vm757 = vcmp.gt.f32.partialorder %v719, 0.0
      %vm758 = vcmp.gt.f32.partialorder %v720, 0.0
      %vm759 = vcmp.gt.f32.partialorder %v721, 0.0
      %vm760 = vcmp.gt.f32.partialorder %v722, 0.0
      %vm761 = vcmp.gt.f32.partialorder %v723, 0.0
      %vm762 = vcmp.gt.f32.partialorder %v724, 0.0
      %vm763 = vcmp.gt.f32.partialorder %v725, 0.0
      %vm764 = vcmp.gt.f32.partialorder %v726, 0.0
      %vm765 = vcmp.gt.f32.partialorder %v727, 0.0
      %vm766 = vcmp.gt.f32.partialorder %v728, 0.0
      %vm767 = vcmp.gt.f32.partialorder %v729, 0.0
      %vm768 = vcmp.gt.f32.partialorder %v730, 0.0
      %vm769 = vcmp.gt.f32.partialorder %v731, 0.0
      %vm770 = vcmp.gt.f32.partialorder %v732, 0.0
      %vm771 = vcmp.gt.f32.partialorder %v733, 0.0
      %vm772 = vcmp.gt.f32.partialorder %v734, 0.0
      %vm773 = vcmp.gt.f32.partialorder %v735, 0.0
      %vm774 = vcmp.gt.f32.partialorder %v736, 0.0
      %vm775 = vcmp.gt.f32.partialorder %v737, 0.0
      %vm776 = vcmp.gt.f32.partialorder %v738, 0.0
      %vm777 = vcmp.gt.f32.partialorder %v739, 0.0
      %vm778 = vcmp.gt.f32.partialorder %v740, 0.0
      %vm779 = vcmp.gt.f32.partialorder %v741, 0.0
      %vm780 = vcmp.gt.f32.partialorder %v742, 0.0
      %vm781 = vcmp.gt.f32.partialorder %v743, 0.0
      %vm782 = vcmp.gt.f32.partialorder %v744, 0.0
      %vm783 = vcmp.gt.f32.partialorder %v745, 0.0
      %vm784 = vcmp.gt.f32.partialorder %v746, 0.0
      %vm785 = vcmp.gt.f32.partialorder %v747, 0.0
      %vm786 = vcmp.gt.f32.partialorder %v748, 0.0
      %vm787 = vcmp.gt.f32.partialorder %v749, 0.0
      %vm788 = vcmp.gt.f32.partialorder %v750, 0.0
      %vm789 = vcmp.gt.f32.partialorder %v751, 0.0
      %vm790 = vcmp.gt.f32.partialorder %v752, 0.0
      %vm791 = vcmp.gt.f32.partialorder %v753, 0.0
      %vm792 = vcmp.gt.f32.partialorder %v754, 0.0
      %vm793 = vcmp.gt.f32.partialorder %v755, 0.0
      %vm794 = vcmp.gt.f32.partialorder %v756, 0.0
      %v795 = vsel %vm757, 1, 0
      %v796 = vsel %vm758, 1, 0
      %v797 = vsel %vm759, 1, 0
      %v798 = vsel %vm760, 1, 0
      %v799 = vsel %vm761, 1, 0
      %v800 = vsel %vm762, 1, 0
      %v801 = vsel %vm763, 1, 0
      %v802 = vsel %vm764, 1, 0
      %v803 = vsel %vm765, 1, 0
      %v804 = vsel %vm766, 1, 0
      %v805 = vsel %vm767, 1, 0
      %v806 = vsel %vm768, 1, 0
      %v807 = vsel %vm769, 1, 0
      %v808 = vsel %vm770, 1, 0
      %v809 = vsel %vm771, 1, 0
      %v810 = vsel %vm772, 1, 0
      %v811 = vsel %vm773, 1, 0
      %v812 = vsel %vm774, 1, 0
      %v813 = vsel %vm775, 1, 0
      %v814 = vsel %vm776, 1, 0
      %v815 = vsel %vm777, 1, 0
      %v816 = vsel %vm778, 1, 0
      %v817 = vsel %vm779, 1, 0
      %v818 = vsel %vm780, 1, 0
      %v819 = vsel %vm781, 1, 0
      %v820 = vsel %vm782, 1, 0
      %v821 = vsel %vm783, 1, 0
      %v822 = vsel %vm784, 1, 0
      %v823 = vsel %vm785, 1, 0
      %v824 = vsel %vm786, 1, 0
      %v825 = vsel %vm787, 1, 0
      %v826 = vsel %vm788, 1, 0
      %v827 = vsel %vm789, 1, 0
      %v828 = vsel %vm790, 1, 0
      %v829 = vsel %vm791, 1, 0
      %v830 = vsel %vm792, 1, 0
      %v831 = vsel %vm793, 1, 0
      %v832 = vsel %vm794, 1, 0
      %833 = vset.pattern.permute.xlu0 0
      %834 = vperm.xlu0 %833, %v795
      %v835 = vpop.permute.xlu0 %834
      %836 = vset.pattern.permute.xlu0 0
      %837 = vperm.xlu0 %836, %v796
      %v838 = vpop.permute.xlu0 %837
      %839 = vset.pattern.permute.xlu0 0
      %840 = vperm.xlu0 %839, %v797
      %v841 = vpop.permute.xlu0 %840
      %842 = vset.pattern.permute.xlu0 0
      %843 = vperm.xlu0 %842, %v798
      %v844 = vpop.permute.xlu0 %843
      %845 = vset.pattern.permute.xlu0 0
      %846 = vperm.xlu0 %845, %v799
      %v847 = vpop.permute.xlu0 %846
      %848 = vset.pattern.permute.xlu0 0
      %849 = vperm.xlu0 %848, %v800
      %v850 = vpop.permute.xlu0 %849
      %851 = vset.pattern.permute.xlu0 0
      %852 = vperm.xlu0 %851, %v801
      %v853 = vpop.permute.xlu0 %852
      %854 = vset.pattern.permute.xlu0 0
      %855 = vperm.xlu0 %854, %v802
      %v856 = vpop.permute.xlu0 %855
      %857 = vset.pattern.permute.xlu0 0
      %858 = vperm.xlu0 %857, %v803
      %v859 = vpop.permute.xlu0 %858
      %860 = vset.pattern.permute.xlu0 0
      %861 = vperm.xlu0 %860, %v804
      %v862 = vpop.permute.xlu0 %861
      %863 = vset.pattern.permute.xlu0 0
      %864 = vperm.xlu0 %863, %v805
      %v865 = vpop.permute.xlu0 %864
      %866 = vset.pattern.permute.xlu0 0
      %867 = vperm.xlu0 %866, %v806
      %v868 = vpop.permute.xlu0 %867
      %869 = vset.pattern.permute.xlu0 0
      %870 = vperm.xlu0 %869, %v807
      %v871 = vpop.permute.xlu0 %870
      %872 = vset.pattern.permute.xlu0 0
      %873 = vperm.xlu0 %872, %v808
      %v874 = vpop.permute.xlu0 %873
      %875 = vset.pattern.permute.xlu0 0
      %876 = vperm.xlu0 %875, %v809
      %v877 = vpop.permute.xlu0 %876
      %878 = vset.pattern.permute.xlu0 0
      %879 = vperm.xlu0 %878, %v810
      %v880 = vpop.permute.xlu0 %879
      %881 = vset.pattern.permute.xlu0 0
      %882 = vperm.xlu0 %881, %v811
      %v883 = vpop.permute.xlu0 %882
      %884 = vset.pattern.permute.xlu0 0
      %885 = vperm.xlu0 %884, %v812
      %v886 = vpop.permute.xlu0 %885
      %887 = vset.pattern.permute.xlu0 0
      %888 = vperm.xlu0 %887, %v813
      %v889 = vpop.permute.xlu0 %888
      %890 = vset.pattern.permute.xlu0 0
      %891 = vperm.xlu0 %890, %v814
      %v892 = vpop.permute.xlu0 %891
      %893 = vset.pattern.permute.xlu0 0
      %894 = vperm.xlu0 %893, %v815
      %v895 = vpop.permute.xlu0 %894
      %896 = vset.pattern.permute.xlu0 0
      %897 = vperm.xlu0 %896, %v816
      %v898 = vpop.permute.xlu0 %897
      %899 = vset.pattern.permute.xlu0 0
      %900 = vperm.xlu0 %899, %v817
      %v901 = vpop.permute.xlu0 %900
      %902 = vset.pattern.permute.xlu0 0
      %903 = vperm.xlu0 %902, %v818
      %v904 = vpop.permute.xlu0 %903
      %905 = vset.pattern.permute.xlu0 0
      %906 = vperm.xlu0 %905, %v819
      %v907 = vpop.permute.xlu0 %906
      %908 = vset.pattern.permute.xlu0 0
      %909 = vperm.xlu0 %908, %v820
      %v910 = vpop.permute.xlu0 %909
      %911 = vset.pattern.permute.xlu0 0
      %912 = vperm.xlu0 %911, %v821
      %v913 = vpop.permute.xlu0 %912
      %914 = vset.pattern.permute.xlu0 0
      %915 = vperm.xlu0 %914, %v822
      %v916 = vpop.permute.xlu0 %915
      %917 = vset.pattern.permute.xlu0 0
      %918 = vperm.xlu0 %917, %v823
      %v919 = vpop.permute.xlu0 %918
      %920 = vset.pattern.permute.xlu0 0
      %921 = vperm.xlu0 %920, %v824
      %v922 = vpop.permute.xlu0 %921
      %923 = vset.pattern.permute.xlu0 0
      %924 = vperm.xlu0 %923, %v825
      %v925 = vpop.permute.xlu0 %924
      %926 = vset.pattern.permute.xlu0 0
      %927 = vperm.xlu0 %926, %v826
      %v928 = vpop.permute.xlu0 %927
      %929 = vset.pattern.permute.xlu0 0
      %930 = vperm.xlu0 %929, %v827
      %v931 = vpop.permute.xlu0 %930
      %932 = vset.pattern.permute.xlu0 0
      %933 = vperm.xlu0 %932, %v828
      %v934 = vpop.permute.xlu0 %933
      %935 = vset.pattern.permute.xlu0 0
      %936 = vperm.xlu0 %935, %v829
      %v937 = vpop.permute.xlu0 %936
      %938 = vset.pattern.permute.xlu0 0
      %939 = vperm.xlu0 %938, %v830
      %v940 = vpop.permute.xlu0 %939
      %941 = vset.pattern.permute.xlu0 0
      %942 = vperm.xlu0 %941, %v831
      %v943 = vpop.permute.xlu0 %942
      %944 = vset.pattern.permute.xlu0 0
      %945 = vperm.xlu0 %944, %v832
      %v946 = vpop.permute.xlu0 %945
      %vm947 = vcmp.eq.s32.totalorder %v835, 1
      %vm948 = vcmp.eq.s32.totalorder %v838, 1
      %vm949 = vcmp.eq.s32.totalorder %v841, 1
      %vm950 = vcmp.eq.s32.totalorder %v844, 1
      %vm951 = vcmp.eq.s32.totalorder %v847, 1
      %vm952 = vcmp.eq.s32.totalorder %v850, 1
      %vm953 = vcmp.eq.s32.totalorder %v853, 1
      %vm954 = vcmp.eq.s32.totalorder %v856, 1
      %vm955 = vcmp.eq.s32.totalorder %v859, 1
      %vm956 = vcmp.eq.s32.totalorder %v862, 1
      %vm957 = vcmp.eq.s32.totalorder %v865, 1
      %vm958 = vcmp.eq.s32.totalorder %v868, 1
      %vm959 = vcmp.eq.s32.totalorder %v871, 1
      %vm960 = vcmp.eq.s32.totalorder %v874, 1
      %vm961 = vcmp.eq.s32.totalorder %v877, 1
      %vm962 = vcmp.eq.s32.totalorder %v880, 1
      %vm963 = vcmp.eq.s32.totalorder %v883, 1
      %vm964 = vcmp.eq.s32.totalorder %v886, 1
      %vm965 = vcmp.eq.s32.totalorder %v889, 1
      %vm966 = vcmp.eq.s32.totalorder %v892, 1
      %vm967 = vcmp.eq.s32.totalorder %v895, 1
      %vm968 = vcmp.eq.s32.totalorder %v898, 1
      %vm969 = vcmp.eq.s32.totalorder %v901, 1
      %vm970 = vcmp.eq.s32.totalorder %v904, 1
      %vm971 = vcmp.eq.s32.totalorder %v907, 1
      %vm972 = vcmp.eq.s32.totalorder %v910, 1
      %vm973 = vcmp.eq.s32.totalorder %v913, 1
      %vm974 = vcmp.eq.s32.totalorder %v916, 1
      %vm975 = vcmp.eq.s32.totalorder %v919, 1
      %vm976 = vcmp.eq.s32.totalorder %v922, 1
      %vm977 = vcmp.eq.s32.totalorder %v925, 1
      %vm978 = vcmp.eq.s32.totalorder %v928, 1
      %vm979 = vcmp.eq.s32.totalorder %v931, 1
      %vm980 = vcmp.eq.s32.totalorder %v934, 1
      %vm981 = vcmp.eq.s32.totalorder %v937, 1
      %vm982 = vcmp.eq.s32.totalorder %v940, 1
      %vm983 = vcmp.eq.s32.totalorder %v943, 1
      %vm984 = vcmp.eq.s32.totalorder %v946, 1
      %v985 = vsel %vm947, %v681, 0.0
      %v986 = vsel %vm948, %v682, 0.0
      %v987 = vsel %vm949, %v683, 0.0
      %v988 = vsel %vm950, %v684, 0.0
      %v989 = vsel %vm951, %v685, 0.0
      %v990 = vsel %vm952, %v686, 0.0
      %v991 = vsel %vm953, %v687, 0.0
      %v992 = vsel %vm954, %v688, 0.0
      %v993 = vsel %vm955, %v689, 0.0
      %v994 = vsel %vm956, %v690, 0.0
      %v995 = vsel %vm957, %v691, 0.0
      %v996 = vsel %vm958, %v692, 0.0
      %v997 = vsel %vm959, %v693, 0.0
      %v998 = vsel %vm960, %v694, 0.0
      %v999 = vsel %vm961, %v695, 0.0
      %v1000 = vsel %vm962, %v696, 0.0
      %v1001 = vsel %vm963, %v697, 0.0
      %v1002 = vsel %vm964, %v698, 0.0
      %v1003 = vsel %vm965, %v699, 0.0
      %v1004 = vsel %vm966, %v700, 0.0
      %v1005 = vsel %vm967, %v701, 0.0
      %v1006 = vsel %vm968, %v702, 0.0
      %v1007 = vsel %vm969, %v703, 0.0
      %v1008 = vsel %vm970, %v704, 0.0
      %v1009 = vsel %vm971, %v705, 0.0
      %v1010 = vsel %vm972, %v706, 0.0
      %v1011 = vsel %vm973, %v707, 0.0
      %v1012 = vsel %vm974, %v708, 0.0
      %v1013 = vsel %vm975, %v709, 0.0
      %v1014 = vsel %vm976, %v710, 0.0
      %v1015 = vsel %vm977, %v711, 0.0
      %v1016 = vsel %vm978, %v712, 0.0
      %v1017 = vsel %vm979, %v713, 0.0
      %v1018 = vsel %vm980, %v714, 0.0
      %v1019 = vsel %vm981, %v715, 0.0
      %v1020 = vsel %vm982, %v716, 0.0
      %v1021 = vsel %vm983, %v717, 0.0
      %v1022 = vsel %vm984, %v718, 0.0
      %v1023 = vpack.c.bf16 %v986, %v985
      %v1024 = vpack.c.bf16 %v988, %v987
      %v1025 = vpack.c.bf16 %v990, %v989
      %v1026 = vpack.c.bf16 %v992, %v991
      %v1027 = vpack.c.bf16 %v994, %v993
      %v1028 = vpack.c.bf16 %v996, %v995
      %v1029 = vpack.c.bf16 %v998, %v997
      %v1030 = vpack.c.bf16 %v1000, %v999
      %v1031 = vpack.c.bf16 %v1002, %v1001
      %v1032 = vpack.c.bf16 %v1004, %v1003
      %v1033 = vpack.c.bf16 %v1006, %v1005
      %v1034 = vpack.c.bf16 %v1008, %v1007
      %v1035 = vpack.c.bf16 %v1010, %v1009
      %v1036 = vpack.c.bf16 %v1012, %v1011
      %v1037 = vpack.c.bf16 %v1014, %v1013
      %v1038 = vpack.c.bf16 %v1016, %v1015
      %v1039 = vpack.c.bf16 %v1018, %v1017
      %v1040 = vpack.c.bf16 %v1020, %v1019
      %v1041 = vpack.c.bf16 %v1022, %v1021
      %v1061 = vunpack.c.l.b16 %v1023
      %v1062 = vunpack.c.h.b16 %v1023
      %v1063 = vunpack.c.l.b16 %v1024
      %v1064 = vunpack.c.h.b16 %v1024
      %v1065 = vunpack.c.l.b16 %v1025
      %v1066 = vunpack.c.h.b16 %v1025
      %v1067 = vunpack.c.l.b16 %v1026
      %v1068 = vunpack.c.h.b16 %v1026
      %v1069 = vunpack.c.l.b16 %v1027
      %v1070 = vunpack.c.h.b16 %v1027
      %v1071 = vunpack.c.l.b16 %v1028
      %v1072 = vunpack.c.h.b16 %v1028
      %v1073 = vunpack.c.l.b16 %v1029
      %v1074 = vunpack.c.h.b16 %v1029
      %v1075 = vunpack.c.l.b16 %v1030
      %v1076 = vunpack.c.h.b16 %v1030
      %v1077 = vunpack.c.l.b16 %v1031
      %v1078 = vunpack.c.h.b16 %v1031
      %v1079 = vunpack.c.l.b16 %v1032
      %v1080 = vunpack.c.h.b16 %v1032
      %v1081 = vunpack.c.l.b16 %v1033
      %v1082 = vunpack.c.h.b16 %v1033
      %v1083 = vunpack.c.l.b16 %v1034
      %v1084 = vunpack.c.h.b16 %v1034
      %v1085 = vunpack.c.l.b16 %v1035
      %v1086 = vunpack.c.h.b16 %v1035
      %v1087 = vunpack.c.l.b16 %v1036
      %v1088 = vunpack.c.h.b16 %v1036
      %v1089 = vunpack.c.l.b16 %v1037
      %v1090 = vunpack.c.h.b16 %v1037
      %v1091 = vunpack.c.l.b16 %v1038
      %v1092 = vunpack.c.h.b16 %v1038
      %v1093 = vunpack.c.l.b16 %v1039
      %v1094 = vunpack.c.h.b16 %v1039
      %v1095 = vunpack.c.l.b16 %v1040
      %v1096 = vunpack.c.h.b16 %v1040
      %v1097 = vunpack.c.l.b16 %v1041
      %v1098 = vunpack.c.h.b16 %v1041
      %v1099 = vpack.c.b16 %v1061, %v1061
      %v1100 = vpack.c.b16 %v1062, %v1062
      %v1101 = vpack.c.b16 %v1063, %v1063
      %v1102 = vpack.c.b16 %v1064, %v1064
      %v1103 = vpack.c.b16 %v1065, %v1065
      %v1104 = vpack.c.b16 %v1066, %v1066
      %v1105 = vpack.c.b16 %v1067, %v1067
      %v1106 = vpack.c.b16 %v1068, %v1068
      %v1107 = vpack.c.b16 %v1069, %v1069
      %v1108 = vpack.c.b16 %v1070, %v1070
      %v1109 = vpack.c.b16 %v1071, %v1071
      %v1110 = vpack.c.b16 %v1072, %v1072
      %v1111 = vpack.c.b16 %v1073, %v1073
      %v1112 = vpack.c.b16 %v1074, %v1074
      %v1113 = vpack.c.b16 %v1075, %v1075
      %v1114 = vpack.c.b16 %v1076, %v1076
      %v1115 = vpack.c.b16 %v1077, %v1077
      %v1116 = vpack.c.b16 %v1078, %v1078
      %v1117 = vpack.c.b16 %v1079, %v1079
      %v1118 = vpack.c.b16 %v1080, %v1080
      %v1119 = vpack.c.b16 %v1081, %v1081
      %v1120 = vpack.c.b16 %v1082, %v1082
      %v1121 = vpack.c.b16 %v1083, %v1083
      %v1122 = vpack.c.b16 %v1084, %v1084
      %v1123 = vpack.c.b16 %v1085, %v1085
      %v1124 = vpack.c.b16 %v1086, %v1086
      %v1125 = vpack.c.b16 %v1087, %v1087
      %v1126 = vpack.c.b16 %v1088, %v1088
      %v1127 = vpack.c.b16 %v1089, %v1089
      %v1128 = vpack.c.b16 %v1090, %v1090
      %v1129 = vpack.c.b16 %v1091, %v1091
      %v1130 = vpack.c.b16 %v1092, %v1092
      %v1131 = vpack.c.b16 %v1093, %v1093
      %v1132 = vpack.c.b16 %v1094, %v1094
      %v1133 = vpack.c.b16 %v1095, %v1095
      %v1134 = vpack.c.b16 %v1096, %v1096
      %v1135 = vpack.c.b16 %v1097, %v1097
      %v1136 = vpack.c.b16 %v1098, %v1098
      %vm1175 = vcmask 257024
      %1176 = vst.msk [vmem:[%s285] sm:$0xf] %vm1175, %v1099
      %1177 = vst.msk [vmem:[%s285 + $0x4] sm:$0xf] %vm1175, %v1100
      %1178 = vst.msk [vmem:[%s285 + $0x8] sm:$0xf] %vm1175, %v1101
      %1179 = vst.msk [vmem:[%s285 + $0xc] sm:$0xf] %vm1175, %v1102
      %1180 = vst.msk [vmem:[%s285 + $0x10] sm:$0xf] %vm1175, %v1103
      %1181 = vst.msk [vmem:[%s285 + $0x14] sm:$0xf] %vm1175, %v1104
      %1182 = vst.msk [vmem:[%s285 + $0x18] sm:$0xf] %vm1175, %v1105
      %1183 = vst.msk [vmem:[%s285 + $0x1c] sm:$0xf] %vm1175, %v1106
      %1184 = vst.msk [vmem:[%s285 + $0x20] sm:$0xf] %vm1175, %v1107
      %1185 = vst.msk [vmem:[%s285 + $0x24] sm:$0xf] %vm1175, %v1108
      %1186 = vst.msk [vmem:[%s285 + $0x28] sm:$0xf] %vm1175, %v1109
      %1187 = vst.msk [vmem:[%s285 + $0x2c] sm:$0xf] %vm1175, %v1110
      %1188 = vst.msk [vmem:[%s285 + $0x30] sm:$0xf] %vm1175, %v1111
      %1189 = vst.msk [vmem:[%s285 + $0x34] sm:$0xf] %vm1175, %v1112
      %1190 = vst.msk [vmem:[%s285 + $0x38] sm:$0xf] %vm1175, %v1113
      %1191 = vst.msk [vmem:[%s285 + $0x3c] sm:$0xf] %vm1175, %v1114
      %1192 = vst.msk [vmem:[%s285 + $0x40] sm:$0xf] %vm1175, %v1115
      %1193 = vst.msk [vmem:[%s285 + $0x44] sm:$0xf] %vm1175, %v1116
      %1194 = vst.msk [vmem:[%s285 + $0x48] sm:$0xf] %vm1175, %v1117
      %1195 = vst.msk [vmem:[%s285 + $0x4c] sm:$0xf] %vm1175, %v1118
      %1196 = vst.msk [vmem:[%s285 + $0x50] sm:$0xf] %vm1175, %v1119
      %1197 = vst.msk [vmem:[%s285 + $0x54] sm:$0xf] %vm1175, %v1120
      %1198 = vst.msk [vmem:[%s285 + $0x58] sm:$0xf] %vm1175, %v1121
      %1199 = vst.msk [vmem:[%s285 + $0x5c] sm:$0xf] %vm1175, %v1122
      %1200 = vst.msk [vmem:[%s285 + $0x60] sm:$0xf] %vm1175, %v1123
      %1201 = vst.msk [vmem:[%s285 + $0x64] sm:$0xf] %vm1175, %v1124
      %1202 = vst.msk [vmem:[%s285 + $0x68] sm:$0xf] %vm1175, %v1125
      %1203 = vst.msk [vmem:[%s285 + $0x6c] sm:$0xf] %vm1175, %v1126
      %1204 = vst.msk [vmem:[%s285 + $0x70] sm:$0xf] %vm1175, %v1127
      %1205 = vst.msk [vmem:[%s285 + $0x74] sm:$0xf] %vm1175, %v1128
      %1206 = vst.msk [vmem:[%s285 + $0x78] sm:$0xf] %vm1175, %v1129
      %1207 = vst.msk [vmem:[%s285 + $0x7c] sm:$0xf] %vm1175, %v1130
      %1208 = vst.msk [vmem:[%s285 + $0x80] sm:$0xf] %vm1175, %v1131
      %1209 = vst.msk [vmem:[%s285 + $0x84] sm:$0xf] %vm1175, %v1132
      %1210 = vst.msk [vmem:[%s285 + $0x88] sm:$0xf] %vm1175, %v1133
      %1211 = vst.msk [vmem:[%s285 + $0x8c] sm:$0xf] %vm1175, %v1134
      %1212 = vst.msk [vmem:[%s285 + $0x90] sm:$0xf] %vm1175, %v1135
      %vm1213 = vcmask 254976
      %1214 = vst.msk [vmem:[%s285 + $0x94] sm:$0x3] %vm1213, %v1136
      %s1215 = smul.u32 38, %s20
      %p1216 = scmp.lt.s32.totalorder %s19, 1
      %s1217 = scalar_select %p1216, %s19, 1
      %p1218 = scmp.lt.s32.totalorder %s1215, 37
      %s1219 = scalar_select %p1218, %s1215, 37
      %s1220 = smul.addr %s1217, 38
      %s1221 = sadd.s32 %s1219, %s1220
      %s1222 = smul.addr %s1221, 4
      %s1223 = scalar_lea.vmem %s4, %s1222
      // Predicated region
      $region37: #{resnet_block_forward.10} parent=35 // pred_check
        %p1224 = pneg %p153
      $region38: #{resnet_block_forward.10} parent=35 // pred_check_branch
        %1226 = sbr.rel (%p1224) target = $region40
      $region39: #{resnet_block_forward.10} parent=35 // pred_region
        %s1227 = smul.u32 38, %s20
      $region40: #{resnet_block_forward.10} parent=35 // pred_fallthru
        _
    $region36: #{resnet_block_forward.10} parent=5 // pred_fallthru
      _
    %p1228 = scmp.le.s32.totalorder 2, %s10
    // Predicated region
    $region41: #{resnet_block_forward.10} parent=5 // pred_check
      %p1229 = pneg %p1228
    $region42: #{resnet_block_forward.10} parent=5 // pred_check_branch
      %1231 = sbr.rel (%p1229) target = $region44
    $region43: #{resnet_block_forward.10} parent=5 // pred_region
      %s1232 = ssub.s32 %s10, 2
      // Predicated region
      $region45: #{resnet_block_forward.10} parent=43 // pred_check
        %p1233 = pneg %p159
      $region46: #{resnet_block_forward.10} parent=43 // pred_check_branch
        %1235 = sbr.rel (%p1233) target = $region48
      $region47: #{resnet_block_forward.10} parent=43 // pred_region
        %s1236 = smul.u32 38, %s22
        %p1237 = scmp.lt.s32.totalorder %s21, 1
        %s1238 = scalar_select %p1237, %s21, 1
        %p1239 = scmp.lt.s32.totalorder %s1236, 37
        %s1240 = scalar_select %p1239, %s1236, 37
        %s1241 = smul.addr %s1238, 38
        %s1242 = sadd.s32 %s1240, %s1241
        %s1243 = smul.addr %s1242, 4
        %s1244 = scalar_lea.vmem %s4, %s1243
      $region48: #{resnet_block_forward.10} parent=43 // pred_fallthru
        _
    $region44: #{resnet_block_forward.10} parent=5 // pred_fallthru
      _
  $region6: #{resnet_block_forward.10} parent=0 // loop_footer
    %s14 = sadd.s32 1, %s10
  $region7: #{resnet_block_forward.10} parent=0 // loop_footer_branch
    %9 = sbr.rel target = $region3
  $region8: #{resnet_block_forward.10} parent=0 // loop_exit
    _

// kernel: resnet_block_forward.11
$region0: #{resnet_block_forward.11}
  #allocation0 [shape = 'u32[]', space=smem, size = 0x4, offset = 0x4, fixed_abs, tag = 'smem constant byte address 0x4 - core index']
  #allocation1 [shape = 'u32[144,128]{1,0:T(1,128)}', space=vmem, size = 0x12000, scoped, tag = 'internal scratch']
  #allocation2 [shape = 'bf16[50,96]{1,0:T(8,128)(2,1)}', space=vmem, size = 0x3800, scoped, tag = 'scratch operand']
  %s0 = inlined_call_operand.vmem [shape: bf16[2,6,50,32], index: 0, kind: input, shape index: {}, may-alias: {0,1,2}]
  %s1 = inlined_call_operand.vmem [shape: bf16[2,6,50,32], index: 1, kind: input, shape index: {}, may-alias: {0,1,2}]
  %s2 = inlined_call_operand.vmem [shape: bf16[2,6,50,32], index: 2, kind: input, shape index: {}, may-alias: {0,1,2}]
  %s3 = inlined_call_operand.vmem [shape: bf16[864,32], index: 3, kind: input, shape index: {}]
  %s4 = inlined_call_operand.vmem [shape: f32[1,32], index: 4, kind: input, shape index: {}]
  %s5 = inlined_call_operand.vmem [shape: bf16[2,4,36,16], index: 5, kind: input, shape index: {}]
  %s6 = inlined_call_operand.vmem [shape: bf16[16,32], index: 6, kind: input, shape index: {}]
  %s7 = inlined_call_operand.vmem [shape: f32[2,4,36,32], index: 7, kind: output, shape index: {}]
  %s8 = sld [smem:[#allocation0]]
  $region61: #{resnet_block_forward.11} parent=0
    _
  %s10 = ssub.s32 1, %s8
  %s11 = scalar_select 0, %s10, %s8
  loop: start=0, step=1, limit=10
  $region2: #{resnet_block_forward.11} parent=0 // loop_pre_header
    _
  $region3: #{resnet_block_forward.11} parent=0 // loop_header
    %s13 = sphi 0, %s17
    %p14 = scmp.ge.s32.totalorder %s13, 10
    %s20 = sphi 0, %s39
    %s21 = sphi 0, %s35
    %s22 = sphi 0, %s31
    %s23 = sphi 0, %s20
    %s24 = sphi 0, %s21
    %s25 = sphi 0, %s22
    %s26 = sphi 0, %s23
    %s27 = sphi 0, %s24
    %s28 = sphi 0, %s25
    %s44 = sphi 0, %s46
    %s47 = sphi 0, %s44
    %s48 = sphi 0, %s47
    %s64 = sphi 0, %s48
    %s74 = sphi 0, %s76
    %s77 = sphi 0, %s74
    %s78 = sphi 0, %s77
    %s94 = sphi 0, %s78
    %s104 = sphi 0, %s106
    %s107 = sphi 0, %s104
    %s108 = sphi 0, %s107
    %s124 = sphi 0, %s108
    %s130 = sphi 0, %s132
    %s133 = sphi 0, %s130
    %s134 = sphi 0, %s133
    %s150 = sphi 0, %s134
    %s156 = sphi 0, %s158
    %s159 = sphi 0, %s156
    %s160 = sphi 0, %s159
    %s176 = sphi 0, %s160
    %s184 = sphi 0, %s186
    %s187 = sphi 0, %s184
    %s188 = sphi 0, %s187
    %s204 = sphi 0, %s188
    %s210 = sphi 0, %s212
    %s213 = sphi 0, %s210
    %s214 = sphi 0, %s213
    %s230 = sphi 0, %s214
    %s240 = sphi 0, %s242
    %s243 = sphi 0, %s240
    %s244 = sphi 0, %s243
    %s260 = sphi 0, %s244
  $region4: #{resnet_block_forward.11} parent=0 // loop_header_branch
    %16 = sbr.rel (%p14) target = $region8
  $region5: #{resnet_block_forward.11} parent=0 // loop_body
    %s18 = ssub.s32 %s13, 1
    %s19 = ssub.s32 %s13, 2
    %s29 = sadd.s32 1, %s22
    %p30 = scmp.ge.s32.totalorder %s29, 4
    %s31 = scalar_select %p30, 0, %s29
    %s32 = sadd.s32 1, %s21
    %s33 = scalar_select %p30, %s32, %s21
    %p34 = scmp.ge.s32.totalorder %s33, 2
    %s35 = scalar_select %p34, 0, %s33
    %s36 = sadd.s32 1, %s20
    %s37 = scalar_select %p34, %s36, %s20
    %p38 = scmp.ge.s32.totalorder %s37, 1
    %s39 = scalar_select %p38, 0, %s37
    %s40 = ssub.s32 %s21, %s35
    %s41 = ssub.s32 %s22, %s31
    %s42 = sor.u32 %s40, %s41
    %p43 = scmp.eq.s32.totalorder %s42, 0
    %s45 = sadd.s32 %s44, 1
    %s46 = scalar_select %p43, %s44, %s45
    %p49 = pneg %p43
    %p50 = scmp.eq.s32.totalorder %s13, 7
    %p51 = por %p49, %p50
    %p52 = scmp.ne.s32.totalorder %s44, %s47
    %p53 = scmp.eq.s32.totalorder %s13, 0
    %p54 = por %p52, %p53
    %p55 = scmp.ne.s32.totalorder %s44, %s47
    %p56 = scmp.eq.s32.totalorder %s18, 7
    %p57 = por %p55, %p56
    %p58 = scmp.ne.s32.totalorder %s47, %s48
    %p59 = scmp.eq.s32.totalorder %s18, 0
    %p60 = por %p58, %p59
    %p61 = scmp.ne.s32.totalorder %s47, %s48
    %p62 = scmp.eq.s32.totalorder %s19, 7
    %p63 = por %p61, %p62
    %p65 = scmp.ne.s32.totalorder %s48, %s64
    %p66 = scmp.eq.s32.totalorder %s19, 0
    %p67 = por %p65, %p66
    %s68 = sadd.s32 %s22, 1
    %s69 = sadd.s32 %s31, 1
    %s70 = ssub.s32 %s21, %s35
    %s71 = ssub.s32 %s68, %s69
    %s72 = sor.u32 %s70, %s71
    %p73 = scmp.eq.s32.totalorder %s72, 0
    %s75 = sadd.s32 %s74, 1
    %s76 = scalar_select %p73, %s74, %s75
    %p79 = pneg %p73
    %p80 = scmp.eq.s32.totalorder %s13, 7
    %p81 = por %p79, %p80
    %p82 = scmp.ne.s32.totalorder %s74, %s77
    %p83 = scmp.eq.s32.totalorder %s13, 0
    %p84 = por %p82, %p83
    %p85 = scmp.ne.s32.totalorder %s74, %s77
    %p86 = scmp.eq.s32.totalorder %s18, 7
    %p87 = por %p85, %p86
    %p88 = scmp.ne.s32.totalorder %s77, %s78
    %p89 = scmp.eq.s32.totalorder %s18, 0
    %p90 = por %p88, %p89
    %p91 = scmp.ne.s32.totalorder %s77, %s78
    %p92 = scmp.eq.s32.totalorder %s19, 7
    %p93 = por %p91, %p92
    %p95 = scmp.ne.s32.totalorder %s78, %s94
    %p96 = scmp.eq.s32.totalorder %s19, 0
    %p97 = por %p95, %p96
    %s98 = sadd.s32 %s22, 2
    %s99 = sadd.s32 %s31, 2
    %s100 = ssub.s32 %s21, %s35
    %s101 = ssub.s32 %s98, %s99
    %s102 = sor.u32 %s100, %s101
    %p103 = scmp.eq.s32.totalorder %s102, 0
    %s105 = sadd.s32 %s104, 1
    %s106 = scalar_select %p103, %s104, %s105
    %p109 = pneg %p103
    %p110 = scmp.eq.s32.totalorder %s13, 7
    %p111 = por %p109, %p110
    %p112 = scmp.ne.s32.totalorder %s104, %s107
    %p113 = scmp.eq.s32.totalorder %s13, 0
    %p114 = por %p112, %p113
    %p115 = scmp.ne.s32.totalorder %s104, %s107
    %p116 = scmp.eq.s32.totalorder %s18, 7
    %p117 = por %p115, %p116
    %p118 = scmp.ne.s32.totalorder %s107, %s108
    %p119 = scmp.eq.s32.totalorder %s18, 0
    %p120 = por %p118, %p119
    %p121 = scmp.ne.s32.totalorder %s107, %s108
    %p122 = scmp.eq.s32.totalorder %s19, 7
    %p123 = por %p121, %p122
    %p125 = scmp.ne.s32.totalorder %s108, %s124
    %p126 = scmp.eq.s32.totalorder %s19, 0
    %p127 = por %p125, %p126
    %s128 = ssub.s32 %s20, %s39
    %p129 = scmp.eq.s32.totalorder %s128, 0
    %s131 = sadd.s32 %s130, 1
    %s132 = scalar_select %p129, %s130, %s131
    %p135 = pneg %p129
    %p136 = scmp.eq.s32.totalorder %s13, 7
    %p137 = por %p135, %p136
    %p138 = scmp.ne.s32.totalorder %s130, %s133
    %p139 = scmp.eq.s32.totalorder %s13, 0
    %p140 = por %p138, %p139
    %p141 = scmp.ne.s32.totalorder %s130, %s133
    %p142 = scmp.eq.s32.totalorder %s18, 7
    %p143 = por %p141, %p142
    %p144 = scmp.ne.s32.totalorder %s133, %s134
    %p145 = scmp.eq.s32.totalorder %s18, 0
    %p146 = por %p144, %p145
    %p147 = scmp.ne.s32.totalorder %s133, %s134
    %p148 = scmp.eq.s32.totalorder %s19, 7
    %p149 = por %p147, %p148
    %p151 = scmp.ne.s32.totalorder %s134, %s150
    %p152 = scmp.eq.s32.totalorder %s19, 0
    %p153 = por %p151, %p152
    %s154 = ssub.s32 %s20, %s39
    %p155 = scmp.eq.s32.totalorder %s154, 0
    %s157 = sadd.s32 %s156, 1
    %s158 = scalar_select %p155, %s156, %s157
    %p161 = pneg %p155
    %p162 = scmp.eq.s32.totalorder %s13, 7
    %p163 = por %p161, %p162
    %p164 = scmp.ne.s32.totalorder %s156, %s159
    %p165 = scmp.eq.s32.totalorder %s13, 0
    %p166 = por %p164, %p165
    %p167 = scmp.ne.s32.totalorder %s156, %s159
    %p168 = scmp.eq.s32.totalorder %s18, 7
    %p169 = por %p167, %p168
    %p170 = scmp.ne.s32.totalorder %s159, %s160
    %p171 = scmp.eq.s32.totalorder %s18, 0
    %p172 = por %p170, %p171
    %p173 = scmp.ne.s32.totalorder %s159, %s160
    %p174 = scmp.eq.s32.totalorder %s19, 7
    %p175 = por %p173, %p174
    %p177 = scmp.ne.s32.totalorder %s160, %s176
    %p178 = scmp.eq.s32.totalorder %s19, 0
    %p179 = por %p177, %p178
    %s180 = ssub.s32 %s21, %s35
    %s181 = ssub.s32 %s22, %s31
    %s182 = sor.u32 %s180, %s181
    %p183 = scmp.eq.s32.totalorder %s182, 0
    %s185 = sadd.s32 %s184, 1
    %s186 = scalar_select %p183, %s184, %s185
    %p189 = pneg %p183
    %p190 = scmp.eq.s32.totalorder %s13, 7
    %p191 = por %p189, %p190
    %p192 = scmp.ne.s32.totalorder %s184, %s187
    %p193 = scmp.eq.s32.totalorder %s13, 0
    %p194 = por %p192, %p193
    %p195 = scmp.ne.s32.totalorder %s184, %s187
    %p196 = scmp.eq.s32.totalorder %s18, 7
    %p197 = por %p195, %p196
    %p198 = scmp.ne.s32.totalorder %s187, %s188
    %p199 = scmp.eq.s32.totalorder %s18, 0
    %p200 = por %p198, %p199
    %p201 = scmp.ne.s32.totalorder %s187, %s188
    %p202 = scmp.eq.s32.totalorder %s19, 7
    %p203 = por %p201, %p202
    %p205 = scmp.ne.s32.totalorder %s188, %s204
    %p206 = scmp.eq.s32.totalorder %s19, 0
    %p207 = por %p205, %p206
    %s208 = ssub.s32 %s20, %s39
    %p209 = scmp.eq.s32.totalorder %s208, 0
    %s211 = sadd.s32 %s210, 1
    %s212 = scalar_select %p209, %s210, %s211
    %p215 = pneg %p209
    %p216 = scmp.eq.s32.totalorder %s13, 7
    %p217 = por %p215, %p216
    %p218 = scmp.ne.s32.totalorder %s210, %s213
    %p219 = scmp.eq.s32.totalorder %s13, 0
    %p220 = por %p218, %p219
    %p221 = scmp.ne.s32.totalorder %s210, %s213
    %p222 = scmp.eq.s32.totalorder %s18, 7
    %p223 = por %p221, %p222
    %p224 = scmp.ne.s32.totalorder %s213, %s214
    %p225 = scmp.eq.s32.totalorder %s18, 0
    %p226 = por %p224, %p225
    %p227 = scmp.ne.s32.totalorder %s213, %s214
    %p228 = scmp.eq.s32.totalorder %s19, 7
    %p229 = por %p227, %p228
    %p231 = scmp.ne.s32.totalorder %s214, %s230
    %p232 = scmp.eq.s32.totalorder %s19, 0
    %p233 = por %p231, %p232
    %s234 = ssub.s32 %s21, %s35
    %s235 = ssub.s32 %s22, %s31
    %s236 = sor.u32 %s234, %s235
    %s237 = ssub.s32 %s20, %s39
    %s238 = sor.u32 %s236, %s237
    %p239 = scmp.eq.s32.totalorder %s238, 0
    %s241 = sadd.s32 %s240, 1
    %s242 = scalar_select %p239, %s240, %s241
    %p245 = pneg %p239
    %p246 = scmp.eq.s32.totalorder %s13, 7
    %p247 = por %p245, %p246
    %p248 = scmp.ne.s32.totalorder %s240, %s243
    %p249 = scmp.eq.s32.totalorder %s13, 0
    %p250 = por %p248, %p249
    %p251 = scmp.ne.s32.totalorder %s240, %s243
    %p252 = scmp.eq.s32.totalorder %s18, 7
    %p253 = por %p251, %p252
    %p254 = scmp.ne.s32.totalorder %s243, %s244
    %p255 = scmp.eq.s32.totalorder %s18, 0
    %p256 = por %p254, %p255
    %p257 = scmp.ne.s32.totalorder %s243, %s244
    %p258 = scmp.eq.s32.totalorder %s19, 7
    %p259 = por %p257, %p258
    %p261 = scmp.ne.s32.totalorder %s244, %s260
    %p262 = scmp.eq.s32.totalorder %s19, 0
    %p263 = por %p261, %p262
    %p264 = scmp.le.s32.totalorder 1, %s13
    %p265 = scmp.lt.s32.totalorder %s13, 9
    %p266 = pnand %p264, %p265
    %p267 = pneg %p266
    // Predicated region
    $region9: #{resnet_block_forward.11} parent=5 // pred_check
      _
    $region10: #{resnet_block_forward.11} parent=5 // pred_check_branch
      %269 = sbr.rel (%p266) target = $region12
    $region11: #{resnet_block_forward.11} parent=5 // pred_region
      %s270 = ssub.s32 %s13, 1
      // Predicated region
      $region13: #{resnet_block_forward.11} parent=11 // pred_check
        %p271 = pneg %p146
      $region14: #{resnet_block_forward.11} parent=11 // pred_check_branch
        %273 = sbr.rel (%p271) target = $region16
      $region15: #{resnet_block_forward.11} parent=11 // pred_region
        %p274 = scmp.lt.s32.totalorder %s23, 0
        %s275 = scalar_select %p274, %s23, 0
        %s276 = smul.addr %s275, 4
        %s277 = scalar_lea.vmem %s3, %s276
      $region16: #{resnet_block_forward.11} parent=11 // pred_fallthru
        _
      // Predicated region
      $region17: #{resnet_block_forward.11} parent=11 // pred_check
        %p278 = pneg %p172
      $region18: #{resnet_block_forward.11} parent=11 // pred_check_branch
        %280 = sbr.rel (%p278) target = $region20
      $region19: #{resnet_block_forward.11} parent=11 // pred_region
        %p281 = scmp.lt.s32.totalorder %s23, 0
        %s282 = scalar_select %p281, %s23, 0
        %s283 = scalar_lea.vmem %s4, %s282
      $region20: #{resnet_block_forward.11} parent=11 // pred_fallthru
        _
      // Predicated region
      $region21: #{resnet_block_forward.11} parent=11 // pred_check
        %p284 = pneg %p226
      $region22: #{resnet_block_forward.11} parent=11 // pred_check_branch
        %286 = sbr.rel (%p284) target = $region24
      $region23: #{resnet_block_forward.11} parent=11 // pred_region
        %p287 = scmp.lt.s32.totalorder %s23, 0
        %s288 = scalar_select %p287, %s23, 0
        %s289 = smul.addr %s288, 4
        %s290 = scalar_lea.vmem %s6, %s289
      $region24: #{resnet_block_forward.11} parent=11 // pred_fallthru
        _
    $region12: #{resnet_block_forward.11} parent=5 // pred_fallthru
      _
    %p291 = scmp.lt.s32.totalorder %s13, 8
    // Predicated region
    $region25: #{resnet_block_forward.11} parent=5 // pred_check
      %p292 = pneg %p291
    $region26: #{resnet_block_forward.11} parent=5 // pred_check_branch
      %294 = sbr.rel (%p292) target = $region28
    $region27: #{resnet_block_forward.11} parent=5 // pred_region
      // Predicated region
      $region29: #{resnet_block_forward.11} parent=27 // pred_check
        %p295 = pneg %p54
      $region30: #{resnet_block_forward.11} parent=27 // pred_check_branch
        %297 = sbr.rel (%p295) target = $region32
      $region31: #{resnet_block_forward.11} parent=27 // pred_region
        %p298 = scmp.lt.s32.totalorder %s21, 1
        %s299 = scalar_select %p298, %s21, 1
        %p300 = scmp.lt.s32.totalorder %s22, 5
        %s301 = scalar_select %p300, %s22, 5
        %s302 = smul.addr %s301, 7
        %s303 = smul.addr %s299, 42
        %s304 = sadd.s32 %s302, %s303
        %s305 = smul.addr %s304, 4
        %s306 = scalar_lea.vmem %s0, %s305
      $region32: #{resnet_block_forward.11} parent=27 // pred_fallthru
        _
      // Predicated region
      $region33: #{resnet_block_forward.11} parent=27 // pred_check
        %p307 = pneg %p84
      $region34: #{resnet_block_forward.11} parent=27 // pred_check_branch
        %309 = sbr.rel (%p307) target = $region36
      $region35: #{resnet_block_forward.11} parent=27 // pred_region
        %s310 = sadd.s32 %s22, 1
        %p311 = scmp.lt.s32.totalorder %s21, 1
        %s312 = scalar_select %p311, %s21, 1
        %p313 = scmp.lt.s32.totalorder %s310, 5
        %s314 = scalar_select %p313, %s310, 5
        %s315 = smul.addr %s314, 7
        %s316 = smul.addr %s312, 42
        %s317 = sadd.s32 %s315, %s316
        %s318 = smul.addr %s317, 4
        %s319 = scalar_lea.vmem %s1, %s318
        %s320 = sadd.s32 %s22, 1
      $region36: #{resnet_block_forward.11} parent=27 // pred_fallthru
        _
      // Predicated region
      $region37: #{resnet_block_forward.11} parent=27 // pred_check
        %p321 = pneg %p114
      $region38: #{resnet_block_forward.11} parent=27 // pred_check_branch
        %323 = sbr.rel (%p321) target = $region40
      $region39: #{resnet_block_forward.11} parent=27 // pred_region
        %s324 = sadd.s32 %s22, 2
        %p325 = scmp.lt.s32.totalorder %s21, 1
        %s326 = scalar_select %p325, %s21, 1
        %p327 = scmp.lt.s32.totalorder %s324, 5
        %s328 = scalar_select %p327, %s324, 5
        %s329 = smul.addr %s328, 7
        %s330 = smul.addr %s326, 42
        %s331 = sadd.s32 %s329, %s330
        %s332 = smul.addr %s331, 4
        %s333 = scalar_lea.vmem %s2, %s332
        %s334 = sadd.s32 %s22, 2
      $region40: #{resnet_block_forward.11} parent=27 // pred_fallthru
        _
      // Predicated region
      $region41: #{resnet_block_forward.11} parent=27 // pred_check
        %p335 = pneg %p194
      $region42: #{resnet_block_forward.11} parent=27 // pred_check_branch
        %337 = sbr.rel (%p335) target = $region44
      $region43: #{resnet_block_forward.11} parent=27 // pred_region
        %p338 = scmp.lt.s32.totalorder %s21, 1
        %s339 = scalar_select %p338, %s21, 1
        %p340 = scmp.lt.s32.totalorder %s22, 3
        %s341 = scalar_select %p340, %s22, 3
        %s342 = smul.addr %s341, 5
        %s343 = smul.addr %s339, 20
        %s344 = sadd.s32 %s342, %s343
        %s345 = smul.addr %s344, 4
        %s346 = scalar_lea.vmem %s5, %s345
      $region44: #{resnet_block_forward.11} parent=27 // pred_fallthru
        _
    $region28: #{resnet_block_forward.11} parent=5 // pred_fallthru
      _
    %p347 = scmp.le.s32.totalorder 1, %s13
    %p348 = scmp.lt.s32.totalorder %s13, 9
    %p349 = pnand %p347, %p348
    %p350 = pneg %p349
    // Predicated region
    $region45: #{resnet_block_forward.11} parent=5 // pred_check
      _
    $region46: #{resnet_block_forward.11} parent=5 // pred_check_branch
      %352 = sbr.rel (%p349) target = $region48
    $region47: #{resnet_block_forward.11} parent=5 // pred_region
      %s353 = ssub.s32 %s13, 1
      %p354 = scmp.lt.s32.totalorder %s24, 1
      %s355 = scalar_select %p354, %s24, 1
      %p356 = scmp.lt.s32.totalorder %s25, 5
      %s357 = scalar_select %p356, %s25, 5
      %s358 = smul.addr %s357, 7
      %s359 = smul.addr %s355, 42
      %s360 = sadd.s32 %s358, %s359
      %s361 = smul.addr %s360, 4
      %s362 = scalar_lea.vmem %s0, %s361
      %p363 = pneg %p60
      %p364 = pneg %p57
      %s365 = sadd.s32 %s25, 1
      %p366 = scmp.lt.s32.totalorder %s24, 1
      %s367 = scalar_select %p366, %s24, 1
      %p368 = scmp.lt.s32.totalorder %s365, 5
      %s369 = scalar_select %p368, %s365, 5
      %s370 = smul.addr %s369, 7
      %s371 = smul.addr %s367, 42
      %s372 = sadd.s32 %s370, %s371
      %s373 = smul.addr %s372, 4
      %s374 = scalar_lea.vmem %s1, %s373
      %p375 = pneg %p90
      %p376 = pneg %p87
      %s377 = sadd.s32 %s25, 2
      %p378 = scmp.lt.s32.totalorder %s24, 1
      %s379 = scalar_select %p378, %s24, 1
      %p380 = scmp.lt.s32.totalorder %s377, 5
      %s381 = scalar_select %p380, %s377, 5
      %s382 = smul.addr %s381, 7
      %s383 = smul.addr %s379, 42
      %s384 = sadd.s32 %s382, %s383
      %s385 = smul.addr %s384, 4
      %s386 = scalar_lea.vmem %s2, %s385
      %p387 = pneg %p120
      %p388 = pneg %p117
      %p389 = scmp.lt.s32.totalorder %s23, 0
      %s390 = scalar_select %p389, %s23, 0
      %s391 = smul.addr %s390, 4
      %s392 = scalar_lea.vmem %s3, %s391
      %p393 = pneg %p146
      %p394 = pneg %p143
      %p395 = scmp.lt.s32.totalorder %s23, 0
      %s396 = scalar_select %p395, %s23, 0
      %s397 = scalar_lea.vmem %s4, %s396
      %p398 = pneg %p172
      %p399 = pneg %p169
      %p400 = scmp.lt.s32.totalorder %s24, 1
      %s401 = scalar_select %p400, %s24, 1
      %p402 = scmp.lt.s32.totalorder %s25, 3
      %s403 = scalar_select %p402, %s25, 3
      %s404 = smul.addr %s403, 5
      %s405 = smul.addr %s401, 20
      %s406 = sadd.s32 %s404, %s405
      %s407 = smul.addr %s406, 4
      %s408 = scalar_lea.vmem %s5, %s407
      %p409 = pneg %p200
      %p410 = pneg %p197
      %p411 = scmp.lt.s32.totalorder %s23, 0
      %s412 = scalar_select %p411, %s23, 0
      %s413 = smul.addr %s412, 4
      %s414 = scalar_lea.vmem %s6, %s413
      %p415 = pneg %p226
      %p416 = pneg %p223
      %p417 = pneg %p256
      %p418 = pneg %p253
      %p419 = scmp.lt.s32.totalorder %s24, 1
      %s420 = scalar_select %p419, %s24, 1
      %p421 = scmp.lt.s32.totalorder %s25, 3
      %s422 = scalar_select %p421, %s25, 3
      %p423 = scmp.lt.s32.totalorder %s23, 0
      %s424 = scalar_select %p423, %s23, 0
      %s425 = smul.addr %s422, 5
      %s426 = sadd.s32 %s424, %s425
      %s427 = smul.addr %s420, 20
      %s428 = sadd.s32 %s426, %s427
      %s429 = smul.addr %s428, 8
      %s430 = scalar_lea.vmem %s7, %s429
      %p431 = scmp.lt.s32.totalorder %s24, 1
      %s432 = scalar_select %p431, %s24, 1
      %p433 = scmp.lt.s32.totalorder %s25, 5
      %s434 = scalar_select %p433, %s25, 5
      %s435 = smul.addr %s434, 7
      %s436 = smul.addr %s432, 42
      %s437 = sadd.s32 %s435, %s436
      %s438 = smul.addr %s437, 4
      %s439 = scalar_lea.vmem %s0, %s438
      %s440 = sadd.s32 %s25, 1
      %p441 = scmp.lt.s32.totalorder %s24, 1
      %s442 = scalar_select %p441, %s24, 1
      %p443 = scmp.lt.s32.totalorder %s440, 5
      %s444 = scalar_select %p443, %s440, 5
      %s445 = smul.addr %s444, 7
      %s446 = smul.addr %s442, 42
      %s447 = sadd.s32 %s445, %s446
      %s448 = smul.addr %s447, 4
      %s449 = scalar_lea.vmem %s1, %s448
      %s450 = sadd.s32 %s25, 1
      %s451 = sadd.s32 %s25, 2
      %p452 = scmp.lt.s32.totalorder %s24, 1
      %s453 = scalar_select %p452, %s24, 1
      %p454 = scmp.lt.s32.totalorder %s451, 5
      %s455 = scalar_select %p454, %s451, 5
      %s456 = smul.addr %s455, 7
      %s457 = smul.addr %s453, 42
      %s458 = sadd.s32 %s456, %s457
      %s459 = smul.addr %s458, 4
      %s460 = scalar_lea.vmem %s2, %s459
      %s461 = sadd.s32 %s25, 2
      %p462 = scmp.lt.s32.totalorder %s23, 0
      %s463 = scalar_select %p462, %s23, 0
      %s464 = smul.addr %s463, 4
      %s465 = scalar_lea.vmem %s3, %s464
      %p466 = scmp.lt.s32.totalorder %s23, 0
      %s467 = scalar_select %p466, %s23, 0
      %s468 = scalar_lea.vmem %s4, %s467
      %p469 = scmp.lt.s32.totalorder %s24, 1
      %s470 = scalar_select %p469, %s24, 1
      %p471 = scmp.lt.s32.totalorder %s25, 3
      %s472 = scalar_select %p471, %s25, 3
      %s473 = smul.addr %s472, 5
      %s474 = smul.addr %s470, 20
      %s475 = sadd.s32 %s473, %s474
      %s476 = smul.addr %s475, 4
      %s477 = scalar_lea.vmem %s5, %s476
      %p478 = scmp.lt.s32.totalorder %s23, 0
      %s479 = scalar_select %p478, %s23, 0
      %s480 = smul.addr %s479, 4
      %s481 = scalar_lea.vmem %s6, %s480
      %p482 = scmp.lt.s32.totalorder %s24, 1
      %s483 = scalar_select %p482, %s24, 1
      %p484 = scmp.lt.s32.totalorder %s25, 3
      %s485 = scalar_select %p484, %s25, 3
      %p486 = scmp.lt.s32.totalorder %s23, 0
      %s487 = scalar_select %p486, %s23, 0
      %s488 = smul.addr %s485, 5
      %s489 = sadd.s32 %s487, %s488
      %s490 = smul.addr %s483, 20
      %s491 = sadd.s32 %s489, %s490
      %s492 = smul.addr %s491, 8
      %s493 = scalar_lea.vmem %s7, %s492
      %v495 = vld [vmem:[%s439] sm:$0xf]
      %v496 = vld [vmem:[%s439 + $0x4] sm:$0xf]
      %v497 = vld [vmem:[%s439 + $0x8] sm:$0xf]
      %v498 = vld [vmem:[%s439 + $0xc] sm:$0xf]
      %v499 = vld [vmem:[%s439 + $0x10] sm:$0xf]
      %v500 = vld [vmem:[%s439 + $0x14] sm:$0xf]
      %v501 = vld [vmem:[%s439 + $0x18] sm:$0x1]
      %v502 = vld [vmem:[%s449] sm:$0xf]
      %v503 = vld [vmem:[%s449 + $0x4] sm:$0xf]
      %v504 = vld [vmem:[%s449 + $0x8] sm:$0xf]
      %v505 = vld [vmem:[%s449 + $0xc] sm:$0xf]
      %v506 = vld [vmem:[%s449 + $0x10] sm:$0xf]
      %v507 = vld [vmem:[%s449 + $0x14] sm:$0xf]
      %v508 = vld [vmem:[%s449 + $0x18] sm:$0x1]
      %v509 = vld [vmem:[%s460] sm:$0xf]
      %v510 = vld [vmem:[%s460 + $0x4] sm:$0xf]
      %v511 = vld [vmem:[%s460 + $0x8] sm:$0xf]
      %v512 = vld [vmem:[%s460 + $0xc] sm:$0xf]
      %v513 = vld [vmem:[%s460 + $0x10] sm:$0xf]
      %v514 = vld [vmem:[%s460 + $0x14] sm:$0xf]
      %v515 = vld [vmem:[%s460 + $0x18] sm:$0x1]
      %v523 = vunpack.c.l.b16 %v495
      %v524 = vunpack.c.l.b16 %v496
      %v525 = vunpack.c.l.b16 %v497
      %v526 = vunpack.c.l.b16 %v498
      %v527 = vunpack.c.l.b16 %v499
      %v528 = vunpack.c.l.b16 %v500
      %v529 = vunpack.c.l.b16 %v501
      %v530 = vpack.c.b16 %v524, %v523
      %v531 = vpack.c.b16 %v526, %v525
      %v532 = vpack.c.b16 %v528, %v527
      %v533 = vpack.c.b16 %v529, %v529
      %v541 = vunpack.c.l.b16 %v502
      %v542 = vunpack.c.l.b16 %v503
      %v543 = vunpack.c.l.b16 %v504
      %v544 = vunpack.c.l.b16 %v505
      %v545 = vunpack.c.l.b16 %v506
      %v546 = vunpack.c.l.b16 %v507
      %v547 = vunpack.c.l.b16 %v508
      %v548 = vpack.c.b16 %v542, %v541
      %v549 = vpack.c.b16 %v544, %v543
      %v550 = vpack.c.b16 %v546, %v545
      %v551 = vpack.c.b16 %v547, %v547
      %552 = vrot.lane.b32.xlu0 %v548, 32
      %v553 = vpop.permute.xlu0 %552
      %554 = vrot.lane.b32.xlu0 %v549, 32
      %v555 = vpop.permute.xlu0 %554
      %556 = vrot.lane.b32.xlu0 %v550, 32
      %v557 = vpop.permute.xlu0 %556
      %558 = vrot.lane.b32.xlu0 %v551, 32
      %v559 = vpop.permute.xlu0 %558
      %v567 = vunpack.c.l.b16 %v509
      %v568 = vunpack.c.l.b16 %v510
      %v569 = vunpack.c.l.b16 %v511
      %v570 = vunpack.c.l.b16 %v512
      %v571 = vunpack.c.l.b16 %v513
      %v572 = vunpack.c.l.b16 %v514
      %v573 = vunpack.c.l.b16 %v515
      %v574 = vpack.c.b16 %v568, %v567
      %v575 = vpack.c.b16 %v570, %v569
      %v576 = vpack.c.b16 %v572, %v571
      %v577 = vpack.c.b16 %v573, %v573
      %578 = vrot.lane.b32.xlu0 %v574, 64
      %v579 = vpop.permute.xlu0 %578
      %580 = vrot.lane.b32.xlu0 %v575, 64
      %v581 = vpop.permute.xlu0 %580
      %582 = vrot.lane.b32.xlu0 %v576, 64
      %v583 = vpop.permute.xlu0 %582
      %584 = vrot.lane.b32.xlu0 %v577, 64
      %v585 = vpop.permute.xlu0 %584
      %vm586 = vcmask 261120
      %v589 = vsel %vm586, %v530, %v553
      %v592 = vsel %vm586, %v531, %v555
      %v595 = vsel %vm586, %v532, %v557
      %v598 = vsel %vm586, %v533, %v559
      %vm599 = vcmask 523264
      %v601 = vsel %vm599, %v589, %v579
      %v603 = vsel %vm599, %v592, %v581
      %v605 = vsel %vm599, %v595, %v583
      %v607 = vsel %vm599, %v598, %v585
      %v612 = vunpack.c.l.b16 %v601
      %v613 = vunpack.c.h.b16 %v601
      %v614 = vunpack.c.l.b16 %v603
      %v615 = vunpack.c.h.b16 %v603
      %v616 = vunpack.c.l.b16 %v605
      %v617 = vunpack.c.h.b16 %v605
      %v618 = vunpack.c.l.b16 %v607
      %v619 = vpack.c.b16 %v612, %v612
      %v620 = vpack.c.b16 %v613, %v613
      %v621 = vpack.c.b16 %v614, %v614
      %v622 = vpack.c.b16 %v615, %v615
      %v623 = vpack.c.b16 %v616, %v616
      %v624 = vpack.c.b16 %v617, %v617
      %v625 = vpack.c.b16 %v618, %v618
      %vm633 = vcmask 781312
      %634 = vst.msk [vmem:[#allocation2] sm:$0xf] %vm633, %v619
      %635 = vst.msk [vmem:[#allocation2 + $0x4] sm:$0xf] %vm633, %v620
      %636 = vst.msk [vmem:[#allocation2 + $0x8] sm:$0xf] %vm633, %v621
      %637 = vst.msk [vmem:[#allocation2 + $0xc] sm:$0xf] %vm633, %v622
      %638 = vst.msk [vmem:[#allocation2 + $0x10] sm:$0xf] %vm633, %v623
      %639 = vst.msk [vmem:[#allocation2 + $0x14] sm:$0xf] %vm633, %v624
      %vm640 = vcmask 778240
      %641 = vst.msk [vmem:[#allocation2 + $0x18] sm:$0x1] %vm640, %v625
      %v642 = vld [vmem:[#allocation2] sm:$0xf]
      %v643 = vld [vmem:[#allocation2 + $0x4] sm:$0xf]
      %v644 = vld [vmem:[#allocation2 + $0x8] sm:$0xf]
      %v645 = vld [vmem:[#allocation2 + $0xc] sm:$0xf]
      %v646 = vld [vmem:[#allocation2 + $0x10] sm:$0x3]
      %v647 = vld [vmem:[%s465] sm:$0xf]
      %v648 = vld [vmem:[%s465 + $0x4] sm:$0xf]
      %v649 = vld [vmem:[%s465 + $0x8] sm:$0xf]
      %v650 = vld [vmem:[%s465 + $0xc] sm:$0xf]
      %v651 = vld [vmem:[%s465 + $0x10] sm:$0xf]
      %v652 = vld [vmem:[%s465 + $0x14] sm:$0xf]
      %v653 = vld [vmem:[%s465 + $0x18] sm:$0xf]
      %v654 = vld [vmem:[%s465 + $0x1c] sm:$0xf]
      %v655 = vld [vmem:[%s465 + $0x20] sm:$0xf]
      %v656 = vld [vmem:[%s465 + $0x24] sm:$0xf]
      %v657 = vld [vmem:[%s465 + $0x28] sm:$0xf]
      %v658 = vld [vmem:[%s465 + $0x2c] sm:$0xf]
      %v659 = vld [vmem:[#allocation2 + $0x10] sm:$0x7]
      %v660 = vld [vmem:[%s465 + $0x30] sm:$0xf]
      %v661 = vld [vmem:[%s465 + $0x34] sm:$0xf]
      %v662 = vld [vmem:[%s465 + $0x38] sm:$0xf]
      %v663 = vld [vmem:[%s465 + $0x3c] sm:$0xf]
      %v664 = vld [vmem:[%s465 + $0x40] sm:$0xf]
      %v665 = vld [vmem:[%s465 + $0x44] sm:$0xf]
      %v666 = vld [vmem:[%s465 + $0x48] sm:$0xf]
      %v667 = vld [vmem:[%s465 + $0x4c] sm:$0xf]
      %v668 = vld [vmem:[%s465 + $0x50] sm:$0xf]
      %v669 = vld [vmem:[%s465 + $0x54] sm:$0xf]
      %v670 = vld [vmem:[%s465 + $0x58] sm:$0xf]
      %v671 = vld [vmem:[%s465 + $0x5c] sm:$0xf]
      %v677 = vunpack.c.l.b16 %v642
      %v678 = vunpack.c.l.b16 %v643
      %v679 = vunpack.c.l.b16 %v644
      %v680 = vunpack.c.l.b16 %v645
      %v681 = vunpack.c.l.b16 %v659
      %v682 = vpack.c.b16 %v678, %v677
      %v683 = vpack.c.b16 %v680, %v679
      %v684 = vpack.c.b16 %v681, %v681
      %vm685 = vsmask.f32 7424
      %v687 = vshrl.u32 %v682, 16
      %v689 = vshll.u32 %v682, 16
      %v691 = vrot.slane %v689, 1
      %v692 = vor.u32 %v687, %v691
      %v694 = vshll.u32 %v683, 16
      %v696 = vrot.slane %v694, 1
      %v697 = vsel %vm685, %v692, %v696
      %v698 = vshrl.u32 %v683, 16
      %v700 = vor.u32 %v698, %v696
      %v702 = vshll.u32 %v684, 16
      %v704 = vrot.slane %v702, 1
      %v705 = vsel %vm685, %v700, %v704
      %v706 = vshrl.u32 %v684, 16
      %v708 = vor.u32 %v706, %v704
      %v721 = vunpack.c.l.b16 %v660
      %v722 = vunpack.c.l.b16 %v661
      %v723 = vunpack.c.l.b16 %v662
      %v724 = vunpack.c.l.b16 %v663
      %v725 = vunpack.c.l.b16 %v664
      %v726 = vunpack.c.l.b16 %v665
      %v727 = vunpack.c.l.b16 %v666
      %v728 = vunpack.c.l.b16 %v667
      %v729 = vunpack.c.l.b16 %v668
      %v730 = vunpack.c.l.b16 %v669
      %v731 = vunpack.c.l.b16 %v670
      %v732 = vunpack.c.l.b16 %v671
      %v733 = vpack.c.b16 %v722, %v721
      %v734 = vpack.c.b16 %v724, %v723
      %v735 = vpack.c.b16 %v726, %v725
      %v736 = vpack.c.b16 %v728, %v727
      %v737 = vpack.c.b16 %v730, %v729
      %v738 = vpack.c.b16 %v732, %v731
      %vm745 = vcmask 785408
      %v747 = vsel %vm745, %v697, 0
      %v750 = vsel %vm745, %v705, 0
      %v753 = vsel %vm745, %v708, 0
      %755 = vmatprep.subr.bf16.mxu0 0
      %756 = vmatpush1.bf16.msra.mxu0 %v733
      %757 = vmatprep.subr.bf16.mxu0 0
      %758 = vmatpush1.bf16.msra.mxu0 %v734
      %759 = vmatprep.subr.bf16.mxu0 0
      %760 = vmatpush1.bf16.msra.mxu0 %v735
      %761 = vmatprep.subr.bf16.mxu0 0
      %762 = vmatpush1.bf16.msra.mxu0 %v736
      %763 = vmatprep.subr.bf16.mxu0 0
      %764 = vmatpush1.bf16.msra.mxu0 %v737
      %765 = vmatprep.subr.bf16.mxu0 0
      %766 = vmatpush1.bf16.msra.mxu0 %v738
      %767 = vmatprep.subr.bf16.mxu0 0
      %768 = vmatpush1.bf16.msra.mxu0 0
      %769 = vmatprep.subr.bf16.mxu0 0
      %770 = vmatpush1.bf16.msra.mxu0 0
      %771 = vmatprep.subr.bf16.mxu0 0
      %772 = vmatpush1.bf16.msra.mxu0 0
      %773 = vmatprep.subr.bf16.mxu0 0
      %774 = vmatpush1.bf16.msra.mxu0 0
      %775 = vmatprep.subr.bf16.mxu0 0
      %776 = vmatpush1.bf16.msra.mxu0 0
      %777 = vmatprep.subr.bf16.mxu0 0
      %778 = vmatpush1.bf16.msra.mxu0 0
      %779 = vmatprep.subr.bf16.mxu0 0
      %780 = vmatpush1.bf16.msra.mxu0 0
      %781 = vmatprep.subr.bf16.mxu0 0
      %782 = vmatpush1.bf16.msra.mxu0 0
      %783 = vmatprep.subr.bf16.mxu0 0
      %784 = vmatpush1.bf16.msra.mxu0 0
      %785 = vmatprep.subr.bf16.mxu0 0
      %786 = vmatpush1.bf16.msra.mxu0 0
      %787 = vmatprep.mubr.bf16.mxu0 0
      %788 = vmatmul.mubr.bf16.gmra.mrb[0].mxu0 %v747
      %v789 = vpop.f32.mrb[0].mxu0
      %v790 = vadd.f32 0.0, %v789
      %v791 = vpop.f32.mrb[0].mxu0
      %v792 = vpop.f32.mrb[0].mxu0
      %v793 = vadd.f32 0.0, %v792
      %v794 = vpop.f32.mrb[0].mxu0
      %795 = vmatprep.mubr.bf16.mxu0 0
      %796 = vmatmul.mubr.bf16.gmra.mrb[0].mxu0 %v750
      %v797 = vpop.f32.mrb[0].mxu0
      %v798 = vadd.f32 0.0, %v797
      %v799 = vpop.f32.mrb[0].mxu0
      %v800 = vpop.f32.mrb[0].mxu0
      %v801 = vadd.f32 0.0, %v800
      %v802 = vpop.f32.mrb[0].mxu0
      %803 = vmatprep.mubr.bf16.mxu0 0
      %804 = vmatmul.mubr.bf16.gmra.mrb[0].mxu0 %v753
      %v805 = vpop.f32.mrb[0].mxu0
      %v806 = vadd.f32 0.0, %v805
      %v807 = vpop.f32.mrb[0].mxu0
      %v808 = vpop.f32.mrb[0].mxu0
      %v809 = vpop.f32.mrb[0].mxu0
      %810 = vdwg.mxu0
      %v812 = vunpack.c.l.b16 %v646
      %v813 = vpack.c.b16 %v812, %v812
      %v826 = vunpack.c.l.b16 %v647
      %v827 = vunpack.c.l.b16 %v648
      %v828 = vunpack.c.l.b16 %v649
      %v829 = vunpack.c.l.b16 %v650
      %v830 = vunpack.c.l.b16 %v651
      %v831 = vunpack.c.l.b16 %v652
      %v832 = vunpack.c.l.b16 %v653
      %v833 = vunpack.c.l.b16 %v654
      %v834 = vunpack.c.l.b16 %v655
      %v835 = vunpack.c.l.b16 %v656
      %v836 = vunpack.c.l.b16 %v657
      %v837 = vunpack.c.l.b16 %v658
      %v838 = vpack.c.b16 %v827, %v826
      %v839 = vpack.c.b16 %v829, %v828
      %v840 = vpack.c.b16 %v831, %v830
      %v841 = vpack.c.b16 %v833, %v832
      %v842 = vpack.c.b16 %v835, %v834
      %v843 = vpack.c.b16 %v837, %v836
      %v850 = vsel %vm745, %v682, 0
      %v852 = vsel %vm745, %v683, 0
      %v855 = vsel %vm745, %v813, 0
      %857 = vmatprep.subr.bf16.mxu0 0
      %858 = vmatpush1.bf16.msra.mxu0 %v838
      %859 = vmatprep.subr.bf16.mxu0 0
      %860 = vmatpush1.bf16.msra.mxu0 %v839
      %861 = vmatprep.subr.bf16.mxu0 0
      %862 = vmatpush1.bf16.msra.mxu0 %v840
      %863 = vmatprep.subr.bf16.mxu0 0
      %864 = vmatpush1.bf16.msra.mxu0 %v841
      %865 = vmatprep.subr.bf16.mxu0 0
      %866 = vmatpush1.bf16.msra.mxu0 %v842
      %867 = vmatprep.subr.bf16.mxu0 0
      %868 = vmatpush1.bf16.msra.mxu0 %v843
      %869 = vmatprep.subr.bf16.mxu0 0
      %870 = vmatpush1.bf16.msra.mxu0 0
      %871 = vmatprep.subr.bf16.mxu0 0
      %872 = vmatpush1.bf16.msra.mxu0 0
      %873 = vmatprep.subr.bf16.mxu0 0
      %874 = vmatpush1.bf16.msra.mxu0 0
      %875 = vmatprep.subr.bf16.mxu0 0
      %876 = vmatpush1.bf16.msra.mxu0 0
      %877 = vmatprep.subr.bf16.mxu0 0
      %878 = vmatpush1.bf16.msra.mxu0 0
      %879 = vmatprep.subr.bf16.mxu0 0
      %880 = vmatpush1.bf16.msra.mxu0 0
      %881 = vmatprep.subr.bf16.mxu0 0
      %882 = vmatpush1.bf16.msra.mxu0 0
      %883 = vmatprep.subr.bf16.mxu0 0
      %884 = vmatpush1.bf16.msra.mxu0 0
      %885 = vmatprep.subr.bf16.mxu0 0
      %886 = vmatpush1.bf16.msra.mxu0 0
      %887 = vmatprep.subr.bf16.mxu0 0
      %888 = vmatpush1.bf16.msra.mxu0 0
      %889 = vmatprep.mubr.bf16.mxu0 0
      %890 = vmatmul.mubr.bf16.gmra.mrb[0].mxu0 %v850
      %v891 = vpop.f32.mrb[0].mxu0
      %v892 = vadd.f32 %v790, %v891
      %v893 = vpop.f32.mrb[0].mxu0
      %v894 = vpop.f32.mrb[0].mxu0
      %v895 = vadd.f32 %v793, %v894
      %v896 = vpop.f32.mrb[0].mxu0
      %897 = vmatprep.mubr.bf16.mxu0 0
      %898 = vmatmul.mubr.bf16.gmra.mrb[0].mxu0 %v852
      %v899 = vpop.f32.mrb[0].mxu0
      %v900 = vadd.f32 %v798, %v899
      %v901 = vpop.f32.mrb[0].mxu0
      %v902 = vpop.f32.mrb[0].mxu0
      %v903 = vadd.f32 %v801, %v902
      %v904 = vpop.f32.mrb[0].mxu0
      %905 = vmatprep.mubr.bf16.mxu0 0
      %906 = vmatmul.mubr.bf16.gmra.mrb[0].mxu0 %v855
      %v907 = vpop.f32.mrb[0].mxu0
      %v908 = vadd.f32 %v806, %v907
      %v909 = vpop.f32.mrb[0].mxu0
      %v910 = vpop.f32.mrb[0].mxu0
      %v911 = vpop.f32.mrb[0].mxu0
      %912 = vdwg.mxu0
      %v913 = vld [vmem:[#allocation2] sm:$0xe]
      %v914 = vld [vmem:[%s465 + $0x60] sm:$0xf]
      %v915 = vld [vmem:[%s465 + $0x64] sm:$0xf]
      %v916 = vld [vmem:[%s465 + $0x68] sm:$0xf]
      %v917 = vld [vmem:[%s465 + $0x6c] sm:$0xf]
      %v918 = vld [vmem:[%s465 + $0x70] sm:$0xf]
      %v919 = vld [vmem:[%s465 + $0x74] sm:$0xf]
      %v920 = vld [vmem:[%s465 + $0x78] sm:$0xf]
      %v921 = vld [vmem:[%s465 + $0x7c] sm:$0xf]
      %v922 = vld [vmem:[%s465 + $0x80] sm:$0xf]
      %v923 = vld [vmem:[%s465 + $0x84] sm:$0xf]
      %v924 = vld [vmem:[%s465 + $0x88] sm:$0xf]
      %v925 = vld [vmem:[%s465 + $0x8c] sm:$0xf]
      %v927 = vunpack.c.l.b16 %v913
      %v928 = vpack.c.b16 %v678, %v927
      %vm929 = vcmask 1046528
      %v930 = vrot.slane %v928, 1
      %v931 = vrot.slane %v683, 1
      %v932 = vsel %vm929, %v930, %v931
      %v933 = vrot.slane %v684, 1
      %v934 = vsel %vm929, %v931, %v933
      %v947 = vunpack.c.l.b16 %v914
      %v948 = vunpack.c.l.b16 %v915
      %v949 = vunpack.c.l.b16 %v916
      %v950 = vunpack.c.l.b16 %v917
      %v951 = vunpack.c.l.b16 %v918
      %v952 = vunpack.c.l.b16 %v919
      %v953 = vunpack.c.l.b16 %v920
      %v954 = vunpack.c.l.b16 %v921
      %v955 = vunpack.c.l.b16 %v922
      %v956 = vunpack.c.l.b16 %v923
      %v957 = vunpack.c.l.b16 %v924
      %v958 = vunpack.c.l.b16 %v925
      %v959 = vpack.c.b16 %v948, %v947
      %v960 = vpack.c.b16 %v950, %v949
      %v961 = vpack.c.b16 %v952, %v951
      %v962 = vpack.c.b16 %v954, %v953
      %v963 = vpack.c.b16 %v956, %v955
      %v964 = vpack.c.b16 %v958, %v957
      %v972 = vsel %vm745, %v932, 0
      %v975 = vsel %vm745, %v934, 0
      %v978 = vsel %vm745, %v933, 0
      %980 = vmatprep.subr.bf16.mxu0 0
      %981 = vmatpush1.bf16.msra.mxu0 %v959
      %982 = vmatprep.subr.bf16.mxu0 0
      %983 = vmatpush1.bf16.msra.mxu0 %v960
      %984 = vmatprep.subr.bf16.mxu0 0
      %985 = vmatpush1.bf16.msra.mxu0 %v961
      %986 = vmatprep.subr.bf16.mxu0 0
      %987 = vmatpush1.bf16.msra.mxu0 %v962
      %988 = vmatprep.subr.bf16.mxu0 0
      %989 = vmatpush1.bf16.msra.mxu0 %v963
      %990 = vmatprep.subr.bf16.mxu0 0
      %991 = vmatpush1.bf16.msra.mxu0 %v964
      %992 = vmatprep.subr.bf16.mxu0 0
      %993 = vmatpush1.bf16.msra.mxu0 0
      %994 = vmatprep.subr.bf16.mxu0 0
      %995 = vmatpush1.bf16.msra.mxu0 0
      %996 = vmatprep.subr.bf16.mxu0 0
      %997 = vmatpush1.bf16.msra.mxu0 0
      %998 = vmatprep.subr.bf16.mxu0 0
      %999 = vmatpush1.bf16.msra.mxu0 0
      %1000 = vmatprep.subr.bf16.mxu0 0
      %1001 = vmatpush1.bf16.msra.mxu0 0
      %1002 = vmatprep.subr.bf16.mxu0 0
      %1003 = vmatpush1.bf16.msra.mxu0 0
      %1004 = vmatprep.subr.bf16.mxu0 0
      %1005 = vmatpush1.bf16.msra.mxu0 0
      %1006 = vmatprep.subr.bf16.mxu0 0
      %1007 = vmatpush1.bf16.msra.mxu0 0
      %1008 = vmatprep.subr.bf16.mxu0 0
      %1009 = vmatpush1.bf16.msra.mxu0 0
      %1010 = vmatprep.subr.bf16.mxu0 0
      %1011 = vmatpush1.bf16.msra.mxu0 0
      %1012 = vmatprep.mubr.bf16.mxu0 0
      %1013 = vmatmul.mubr.bf16.gmra.mrb[0].mxu0 %v972
      %v1014 = vpop.f32.mrb[0].mxu0
      %v1015 = vadd.f32 0.0, %v1014
      %v1016 = vpop.f32.mrb[0].mxu0
      %v1017 = vpop.f32.mrb[0].mxu0
      %v1018 = vadd.f32 0.0, %v1017
      %v1019 = vpop.f32.mrb[0].mxu0
      %1020 = vmatprep.mubr.bf16.mxu0 0
      %1021 = vmatmul.mubr.bf16.gmra.mrb[0].mxu0 %v975
      %v1022 = vpop.f32.mrb[0].mxu0
      %v1023 = vadd.f32 0.0, %v1022
      %v1024 = vpop.f32.mrb[0].mxu0
      %v1025 = vpop.f32.mrb[0].mxu0
      %v1026 = vadd.f32 0.0, %v1025
      %v1027 = vpop.f32.mrb[0].mxu0
      %1028 = vmatprep.mubr.bf16.mxu0 0
      %1029 = vmatmul.mubr.bf16.gmra.mrb[0].mxu0 %v978
      %v1030 = vpop.f32.mrb[0].mxu0
      %v1031 = vadd.f32 0.0, %v1030
      %v1032 = vpop.f32.mrb[0].mxu0
      %v1033 = vpop.f32.mrb[0].mxu0
      %v1034 = vpop.f32.mrb[0].mxu0
      %1035 = vdwg.mxu0
      %v1036 = vadd.f32 %v892, %v1015
      %v1037 = vadd.f32 %v895, %v1018
      %v1038 = vadd.f32 %v900, %v1023
      %v1039 = vadd.f32 %v903, %v1026
      %v1040 = vadd.f32 %v908, %v1031
      %v1041 = vld [vmem:[#allocation2] sm:$0x8]
      %v1042 = vld [vmem:[#allocation2 + $0x4] sm:$0xf]
      %v1043 = vld [vmem:[#allocation2 + $0x8] sm:$0xf]
      %v1044 = vld [vmem:[#allocation2 + $0xc] sm:$0xf]
      %v1045 = vld [vmem:[#allocation2 + $0x10] sm:$0xf]
      %v1046 = vld [vmem:[#allocation2 + $0x14] sm:$0x1]
      %v1047 = vld [vmem:[%s465 + $0x90] sm:$0xf]
      %v1048 = vld [vmem:[%s465 + $0x94] sm:$0xf]
      %v1049 = vld [vmem:[%s465 + $0x98] sm:$0xf]
      %v1050 = vld [vmem:[%s465 + $0x9c] sm:$0xf]
      %v1051 = vld [vmem:[%s465 + $0xa0] sm:$0xf]
      %v1052 = vld [vmem:[%s465 + $0xa4] sm:$0xf]
      %v1053 = vld [vmem:[%s465 + $0xa8] sm:$0xf]
      %v1054 = vld [vmem:[%s465 + $0xac] sm:$0xf]
      %v1055 = vld [vmem:[%s465 + $0xb0] sm:$0xf]
      %v1056 = vld [vmem:[%s465 + $0xb4] sm:$0xf]
      %v1057 = vld [vmem:[%s465 + $0xb8] sm:$0xf]
      %v1058 = vld [vmem:[%s465 + $0xbc] sm:$0xf]
      %v1065 = vunpack.c.l.b16 %v1041
      %v1066 = vunpack.c.l.b16 %v1042
      %v1067 = vunpack.c.l.b16 %v1043
      %v1068 = vunpack.c.l.b16 %v1044
      %v1069 = vunpack.c.l.b16 %v1045
      %v1070 = vunpack.c.l.b16 %v1046
      %v1071 = vpack.c.b16 %v1066, %v1065
      %v1072 = vpack.c.b16 %v1068, %v1067
      %v1073 = vpack.c.b16 %v1070, %v1069
      %vm1074 = vcmask 1044480
      %v1075 = vrot.slane %v1071, 3
      %v1076 = vrot.slane %v1072, 3
      %v1077 = vsel %vm1074, %v1075, %v1076
      %v1078 = vrot.slane %v1073, 3
      %v1079 = vsel %vm1074, %v1076, %v1078
      %v1092 = vunpack.c.l.b16 %v1047
      %v1093 = vunpack.c.l.b16 %v1048
      %v1094 = vunpack.c.l.b16 %v1049
      %v1095 = vunpack.c.l.b16 %v1050
      %v1096 = vunpack.c.l.b16 %v1051
      %v1097 = vunpack.c.l.b16 %v1052
      %v1098 = vunpack.c.l.b16 %v1053
      %v1099 = vunpack.c.l.b16 %v1054
      %v1100 = vunpack.c.l.b16 %v1055
      %v1101 = vunpack.c.l.b16 %v1056
      %v1102 = vunpack.c.l.b16 %v1057
      %v1103 = vunpack.c.l.b16 %v1058
      %v1104 = vpack.c.b16 %v1093, %v1092
      %v1105 = vpack.c.b16 %v1095, %v1094
      %v1106 = vpack.c.b16 %v1097, %v1096
      %v1107 = vpack.c.b16 %v1099, %v1098
      %v1108 = vpack.c.b16 %v1101, %v1100
      %v1109 = vpack.c.b16 %v1103, %v1102
      %v1117 = vsel %vm745, %v1077, 0
      %v1120 = vsel %vm745, %v1079, 0
      %v1123 = vsel %vm745, %v1078, 0
      %1125 = vmatprep.subr.bf16.mxu0 0
      %1126 = vmatpush1.bf16.msra.mxu0 %v1104
      %1127 = vmatprep.subr.bf16.mxu0 0
      %1128 = vmatpush1.bf16.msra.mxu0 %v1105
      %1129 = vmatprep.subr.bf16.mxu0 0
      %1130 = vmatpush1.bf16.msra.mxu0 %v1106
      %1131 = vmatprep.subr.bf16.mxu0 0
      %1132 = vmatpush1.bf16.msra.mxu0 %v1107
      %1133 = vmatprep.subr.bf16.mxu0 0
      %1134 = vmatpush1.bf16.msra.mxu0 %v1108
      %1135 = vmatprep.subr.bf16.mxu0 0
      %1136 = vmatpush1.bf16.msra.mxu0 %v1109
      %1137 = vmatprep.subr.bf16.mxu0 0
      %1138 = vmatpush1.bf16.msra.mxu0 0
      %1139 = vmatprep.subr.bf16.mxu0 0
      %1140 = vmatpush1.bf16.msra.mxu0 0
      %1141 = vmatprep.subr.bf16.mxu0 0
      %1142 = vmatpush1.bf16.msra.mxu0 0
      %1143 = vmatprep.subr.bf16.mxu0 0
      %1144 = vmatpush1.bf16.msra.mxu0 0
      %1145 = vmatprep.subr.bf16.mxu0 0
      %1146 = vmatpush1.bf16.msra.mxu0 0
      %1147 = vmatprep.subr.bf16.mxu0 0
      %1148 = vmatpush1.bf16.msra.mxu0 0
      %1149 = vmatprep.subr.bf16.mxu0 0
      %1150 = vmatpush1.bf16.msra.mxu0 0
      %1151 = vmatprep.subr.bf16.mxu0 0
      %1152 = vmatpush1.bf16.msra.mxu0 0
      %1153 = vmatprep.subr.bf16.mxu0 0
      %1154 = vmatpush1.bf16.msra.mxu0 0
      %1155 = vmatprep.subr.bf16.mxu0 0
      %1156 = vmatpush1.bf16.msra.mxu0 0
      %1157 = vmatprep.mubr.bf16.mxu0 0
      %1158 = vmatmul.mubr.bf16.gmra.mrb[0].mxu0 %v1117
      %v1159 = vpop.f32.mrb[0].mxu0
      %v1160 = vadd.f32 0.0, %v1159
      %v1161 = vpop.f32.mrb[0].mxu0
      %v1162 = vpop.f32.mrb[0].mxu0
      %v1163 = vadd.f32 0.0, %v1162
      %v1164 = vpop.f32.mrb[0].mxu0
      %1165 = vmatprep.mubr.bf16.mxu0 0
      %1166 = vmatmul.mubr.bf16.gmra.mrb[0].mxu0 %v1120
      %v1167 = vpop.f32.mrb[0].mxu0
      %v1168 = vadd.f32 0.0, %v1167
      %v1169 = vpop.f32.mrb[0].mxu0
      %v1170 = vpop.f32.mrb[0].mxu0
      %v1171 = vadd.f32 0.0, %v1170
      %v1172 = vpop.f32.mrb[0].mxu0
      %1173 = vmatprep.mubr.bf16.mxu0 0
      %1174 = vmatmul.mubr.bf16.gmra.mrb[0].mxu0 %v1123
      %v1175 = vpop.f32.mrb[0].mxu0
      %v1176 = vadd.f32 0.0, %v1175
      %v1177 = vpop.f32.mrb[0].mxu0
      %v1178 = vpop.f32.mrb[0].mxu0
      %v1179 = vpop.f32.mrb[0].mxu0
      %1180 = vdwg.mxu0
      %v1181 = vadd.f32 %v1036, %v1160
      %v1182 = vadd.f32 %v1037, %v1163
      %v1183 = vadd.f32 %v1038, %v1168
      %v1184 = vadd.f32 %v1039, %v1171
      %v1185 = vadd.f32 %v1040, %v1176
      %v1186 = vld [vmem:[#allocation2 + $0x14] sm:$0x3]
      %v1187 = vld [vmem:[%s465 + $0xc0] sm:$0xf]
      %v1188 = vld [vmem:[%s465 + $0xc4] sm:$0xf]
      %v1189 = vld [vmem:[%s465 + $0xc8] sm:$0xf]
      %v1190 = vld [vmem:[%s465 + $0xcc] sm:$0xf]
      %v1191 = vld [vmem:[%s465 + $0xd0] sm:$0xf]
      %v1192 = vld [vmem:[%s465 + $0xd4] sm:$0xf]
      %v1193 = vld [vmem:[%s465 + $0xd8] sm:$0xf]
      %v1194 = vld [vmem:[%s465 + $0xdc] sm:$0xf]
      %v1195 = vld [vmem:[%s465 + $0xe0] sm:$0xf]
      %v1196 = vld [vmem:[%s465 + $0xe4] sm:$0xf]
      %v1197 = vld [vmem:[%s465 + $0xe8] sm:$0xf]
      %v1198 = vld [vmem:[%s465 + $0xec] sm:$0xf]
      %v1200 = vunpack.c.l.b16 %v1186
      %v1201 = vpack.c.b16 %v1200, %v1069
      %vm1202 = vsmask.f32 4352
      %v1204 = vshrl.u32 %v1071, 16
      %v1206 = vrot.slane %v1204, 3
      %v1207 = vshll.u32 %v1071, 16
      %v1209 = vrot.slane %v1207, 4
      %v1210 = vor.u32 %v1206, %v1209
      %v1212 = vshrl.u32 %v1072, 16
      %v1214 = vrot.slane %v1212, 3
      %v1215 = vshll.u32 %v1072, 16
      %v1217 = vrot.slane %v1215, 4
      %v1218 = vor.u32 %v1214, %v1217
      %v1219 = vsel %vm1202, %v1210, %v1218
      %v1221 = vshrl.u32 %v1201, 16
      %v1223 = vrot.slane %v1221, 3
      %v1224 = vshll.u32 %v1201, 16
      %v1226 = vrot.slane %v1224, 4
      %v1227 = vor.u32 %v1223, %v1226
      %v1228 = vsel %vm1202, %v1218, %v1227
      %v1241 = vunpack.c.l.b16 %v1187
      %v1242 = vunpack.c.l.b16 %v1188
      %v1243 = vunpack.c.l.b16 %v1189
      %v1244 = vunpack.c.l.b16 %v1190
      %v1245 = vunpack.c.l.b16 %v1191
      %v1246 = vunpack.c.l.b16 %v1192
      %v1247 = vunpack.c.l.b16 %v1193
      %v1248 = vunpack.c.l.b16 %v1194
      %v1249 = vunpack.c.l.b16 %v1195
      %v1250 = vunpack.c.l.b16 %v1196
      %v1251 = vunpack.c.l.b16 %v1197
      %v1252 = vunpack.c.l.b16 %v1198
      %v1253 = vpack.c.b16 %v1242, %v1241
      %v1254 = vpack.c.b16 %v1244, %v1243
      %v1255 = vpack.c.b16 %v1246, %v1245
      %v1256 = vpack.c.b16 %v1248, %v1247
      %v1257 = vpack.c.b16 %v1250, %v1249
      %v1258 = vpack.c.b16 %v1252, %v1251
      %v1266 = vsel %vm745, %v1219, 0
      %v1269 = vsel %vm745, %v1228, 0
      %v1272 = vsel %vm745, %v1227, 0
      %1274 = vmatprep.subr.bf16.mxu0 0
      %1275 = vmatpush1.bf16.msra.mxu0 %v1253
      %1276 = vmatprep.subr.bf16.mxu0 0
      %1277 = vmatpush1.bf16.msra.mxu0 %v1254
      %1278 = vmatprep.subr.bf16.mxu0 0
      %1279 = vmatpush1.bf16.msra.mxu0 %v1255
      %1280 = vmatprep.subr.bf16.mxu0 0
      %1281 = vmatpush1.bf16.msra.mxu0 %v1256
      %1282 = vmatprep.subr.bf16.mxu0 0
      %1283 = vmatpush1.bf16.msra.mxu0 %v1257
      %1284 = vmatprep.subr.bf16.mxu0 0
      %1285 = vmatpush1.bf16.msra.mxu0 %v1258
      %1286 = vmatprep.subr.bf16.mxu0 0
      %1287 = vmatpush1.bf16.msra.mxu0 0
      %1288 = vmatprep.subr.bf16.mxu0 0
      %1289 = vmatpush1.bf16.msra.mxu0 0
      %1290 = vmatprep.subr.bf16.mxu0 0
      %1291 = vmatpush1.bf16.msra.mxu0 0
      %1292 = vmatprep.subr.bf16.mxu0 0
      %1293 = vmatpush1.bf16.msra.mxu0 0
      %1294 = vmatprep.subr.bf16.mxu0 0
      %1295 = vmatpush1.bf16.msra.mxu0 0
      %1296 = vmatprep.subr.bf16.mxu0 0
      %1297 = vmatpush1.bf16.msra.mxu0 0
      %1298 = vmatprep.subr.bf16.mxu0 0
      %1299 = vmatpush1.bf16.msra.mxu0 0
      %1300 = vmatprep.subr.bf16.mxu0 0
      %1301 = vmatpush1.bf16.msra.mxu0 0
      %1302 = vmatprep.subr.bf16.mxu0 0
      %1303 = vmatpush1.bf16.msra.mxu0 0
      %1304 = vmatprep.subr.bf16.mxu0 0
      %1305 = vmatpush1.bf16.msra.mxu0 0
      %1306 = vmatprep.mubr.bf16.mxu0 0
      %1307 = vmatmul.mubr.bf16.gmra.mrb[0].mxu0 %v1266
      %v1308 = vpop.f32.mrb[0].mxu0
      %v1309 = vadd.f32 0.0, %v1308
      %v1310 = vpop.f32.mrb[0].mxu0
      %v1311 = vpop.f32.mrb[0].mxu0
      %v1312 = vadd.f32 0.0, %v1311
      %v1313 = vpop.f32.mrb[0].mxu0
      %1314 = vmatprep.mubr.bf16.mxu0 0
      %1315 = vmatmul.mubr.bf16.gmra.mrb[0].mxu0 %v1269
      %v1316 = vpop.f32.mrb[0].mxu0
      %v1317 = vadd.f32 0.0, %v1316
      %v1318 = vpop.f32.mrb[0].mxu0
      %v1319 = vpop.f32.mrb[0].mxu0
      %v1320 = vadd.f32 0.0, %v1319
      %v1321 = vpop.f32.mrb[0].mxu0
      %1322 = vmatprep.mubr.bf16.mxu0 0
      %1323 = vmatmul.mubr.bf16.gmra.mrb[0].mxu0 %v1272
      %v1324 = vpop.f32.mrb[0].mxu0
      %v1325 = vadd.f32 0.0, %v1324
      %v1326 = vpop.f32.mrb[0].mxu0
      %v1327 = vpop.f32.mrb[0].mxu0
      %v1328 = vpop.f32.mrb[0].mxu0
      %1329 = vdwg.mxu0
      %v1330 = vadd.f32 %v1181, %v1309
      %v1331 = vadd.f32 %v1182, %v1312
      %v1332 = vadd.f32 %v1183, %v1317
      %v1333 = vadd.f32 %v1184, %v1320
      %v1334 = vadd.f32 %v1185, %v1325
      %v1335 = vld [vmem:[%s465 + $0xf0] sm:$0xf]
      %v1336 = vld [vmem:[%s465 + $0xf4] sm:$0xf]
      %v1337 = vld [vmem:[%s465 + $0xf8] sm:$0xf]
      %v1338 = vld [vmem:[%s465 + $0xfc] sm:$0xf]
      %v1339 = vld [vmem:[%s465 + $0x100] sm:$0xf]
      %v1340 = vld [vmem:[%s465 + $0x104] sm:$0xf]
      %v1341 = vld [vmem:[%s465 + $0x108] sm:$0xf]
      %v1342 = vld [vmem:[%s465 + $0x10c] sm:$0xf]
      %v1343 = vld [vmem:[%s465 + $0x110] sm:$0xf]
      %v1344 = vld [vmem:[%s465 + $0x114] sm:$0xf]
      %v1345 = vld [vmem:[%s465 + $0x118] sm:$0xf]
      %v1346 = vld [vmem:[%s465 + $0x11c] sm:$0xf]
      %v1347 = vpack.c.b16 %v1067, %v1066
      %v1348 = vpack.c.b16 %v1069, %v1068
      %v1349 = vpack.c.b16 %v1200, %v1200
      %v1362 = vunpack.c.l.b16 %v1335
      %v1363 = vunpack.c.l.b16 %v1336
      %v1364 = vunpack.c.l.b16 %v1337
      %v1365 = vunpack.c.l.b16 %v1338
      %v1366 = vunpack.c.l.b16 %v1339
      %v1367 = vunpack.c.l.b16 %v1340
      %v1368 = vunpack.c.l.b16 %v1341
      %v1369 = vunpack.c.l.b16 %v1342
      %v1370 = vunpack.c.l.b16 %v1343
      %v1371 = vunpack.c.l.b16 %v1344
      %v1372 = vunpack.c.l.b16 %v1345
      %v1373 = vunpack.c.l.b16 %v1346
      %v1374 = vpack.c.b16 %v1363, %v1362
      %v1375 = vpack.c.b16 %v1365, %v1364
      %v1376 = vpack.c.b16 %v1367, %v1366
      %v1377 = vpack.c.b16 %v1369, %v1368
      %v1378 = vpack.c.b16 %v1371, %v1370
      %v1379 = vpack.c.b16 %v1373, %v1372
      %v1387 = vsel %vm745, %v1347, 0
      %v1390 = vsel %vm745, %v1348, 0
      %v1393 = vsel %vm745, %v1349, 0
      %1395 = vmatprep.subr.bf16.mxu0 0
      %1396 = vmatpush1.bf16.msra.mxu0 %v1374
      %1397 = vmatprep.subr.bf16.mxu0 0
      %1398 = vmatpush1.bf16.msra.mxu0 %v1375
      %1399 = vmatprep.subr.bf16.mxu0 0
      %1400 = vmatpush1.bf16.msra.mxu0 %v1376
      %1401 = vmatprep.subr.bf16.mxu0 0
      %1402 = vmatpush1.bf16.msra.mxu0 %v1377
      %1403 = vmatprep.subr.bf16.mxu0 0
      %1404 = vmatpush1.bf16.msra.mxu0 %v1378
      %1405 = vmatprep.subr.bf16.mxu0 0
      %1406 = vmatpush1.bf16.msra.mxu0 %v1379
      %1407 = vmatprep.subr.bf16.mxu0 0
      %1408 = vmatpush1.bf16.msra.mxu0 0
      %1409 = vmatprep.subr.bf16.mxu0 0
      %1410 = vmatpush1.bf16.msra.mxu0 0
      %1411 = vmatprep.subr.bf16.mxu0 0
      %1412 = vmatpush1.bf16.msra.mxu0 0
      %1413 = vmatprep.subr.bf16.mxu0 0
      %1414 = vmatpush1.bf16.msra.mxu0 0
      %1415 = vmatprep.subr.bf16.mxu0 0
      %1416 = vmatpush1.bf16.msra.mxu0 0
      %1417 = vmatprep.subr.bf16.mxu0 0
      %1418 = vmatpush1.bf16.msra.mxu0 0
      %1419 = vmatprep.subr.bf16.mxu0 0
      %1420 = vmatpush1.bf16.msra.mxu0 0
      %1421 = vmatprep.subr.bf16.mxu0 0
      %1422 = vmatpush1.bf16.msra.mxu0 0
      %1423 = vmatprep.subr.bf16.mxu0 0
      %1424 = vmatpush1.bf16.msra.mxu0 0
      %1425 = vmatprep.subr.bf16.mxu0 0
      %1426 = vmatpush1.bf16.msra.mxu0 0
      %1427 = vmatprep.mubr.bf16.mxu0 0
      %1428 = vmatmul.mubr.bf16.gmra.mrb[0].mxu0 %v1387
      %v1429 = vpop.f32.mrb[0].mxu0
      %v1430 = vadd.f32 0.0, %v1429
      %v1431 = vpop.f32.mrb[0].mxu0
      %v1432 = vpop.f32.mrb[0].mxu0
      %v1433 = vadd.f32 0.0, %v1432
      %v1434 = vpop.f32.mrb[0].mxu0
      %1435 = vmatprep.mubr.bf16.mxu0 0
      %1436 = vmatmul.mubr.bf16.gmra.mrb[0].mxu0 %v1390
      %v1437 = vpop.f32.mrb[0].mxu0
      %v1438 = vadd.f32 0.0, %v1437
      %v1439 = vpop.f32.mrb[0].mxu0
      %v1440 = vpop.f32.mrb[0].mxu0
      %v1441 = vadd.f32 0.0, %v1440
      %v1442 = vpop.f32.mrb[0].mxu0
      %1443 = vmatprep.mubr.bf16.mxu0 0
      %1444 = vmatmul.mubr.bf16.gmra.mrb[0].mxu0 %v1393
      %v1445 = vpop.f32.mrb[0].mxu0
      %v1446 = vadd.f32 0.0, %v1445
      %v1447 = vpop.f32.mrb[0].mxu0
      %v1448 = vpop.f32.mrb[0].mxu0
      %v1449 = vpop.f32.mrb[0].mxu0
      %1450 = vdwg.mxu0
      %v1451 = vadd.f32 %v1330, %v1430
      %v1452 = vadd.f32 %v1331, %v1433
      %v1453 = vadd.f32 %v1332, %v1438
      %v1454 = vadd.f32 %v1333, %v1441
      %v1455 = vadd.f32 %v1334, %v1446
      %v1456 = vld [vmem:[#allocation2 + $0x4] sm:$0xc]
      %v1457 = vld [vmem:[#allocation2 + $0x14] sm:$0xf]
      %v1458 = vld [vmem:[%s465 + $0x120] sm:$0xf]
      %v1459 = vld [vmem:[%s465 + $0x124] sm:$0xf]
      %v1460 = vld [vmem:[%s465 + $0x128] sm:$0xf]
      %v1461 = vld [vmem:[%s465 + $0x12c] sm:$0xf]
      %v1462 = vld [vmem:[%s465 + $0x130] sm:$0xf]
      %v1463 = vld [vmem:[%s465 + $0x134] sm:$0xf]
      %v1464 = vld [vmem:[%s465 + $0x138] sm:$0xf]
      %v1465 = vld [vmem:[%s465 + $0x13c] sm:$0xf]
      %v1466 = vld [vmem:[%s465 + $0x140] sm:$0xf]
      %v1467 = vld [vmem:[%s465 + $0x144] sm:$0xf]
      %v1468 = vld [vmem:[%s465 + $0x148] sm:$0xf]
      %v1469 = vld [vmem:[%s465 + $0x14c] sm:$0xf]
      %v1472 = vunpack.c.l.b16 %v1456
      %v1473 = vunpack.c.l.b16 %v1457
      %v1474 = vpack.c.b16 %v1067, %v1472
      %v1475 = vpack.c.b16 %v1473, %v1473
      %vm1476 = vcmask 1045504
      %v1477 = vrot.slane %v1474, 2
      %v1478 = vrot.slane %v1348, 2
      %v1479 = vsel %vm1476, %v1477, %v1478
      %v1480 = vrot.slane %v1475, 2
      %v1481 = vsel %vm1476, %v1478, %v1480
      %v1494 = vunpack.c.l.b16 %v1458
      %v1495 = vunpack.c.l.b16 %v1459
      %v1496 = vunpack.c.l.b16 %v1460
      %v1497 = vunpack.c.l.b16 %v1461
      %v1498 = vunpack.c.l.b16 %v1462
      %v1499 = vunpack.c.l.b16 %v1463
      %v1500 = vunpack.c.l.b16 %v1464
      %v1501 = vunpack.c.l.b16 %v1465
      %v1502 = vunpack.c.l.b16 %v1466
      %v1503 = vunpack.c.l.b16 %v1467
      %v1504 = vunpack.c.l.b16 %v1468
      %v1505 = vunpack.c.l.b16 %v1469
      %v1506 = vpack.c.b16 %v1495, %v1494
      %v1507 = vpack.c.b16 %v1497, %v1496
      %v1508 = vpack.c.b16 %v1499, %v1498
      %v1509 = vpack.c.b16 %v1501, %v1500
      %v1510 = vpack.c.b16 %v1503, %v1502
      %v1511 = vpack.c.b16 %v1505, %v1504
      %v1519 = vsel %vm745, %v1479, 0
      %v1522 = vsel %vm745, %v1481, 0
      %v1525 = vsel %vm745, %v1480, 0
      %1527 = vmatprep.subr.bf16.mxu0 0
      %1528 = vmatpush1.bf16.msra.mxu0 %v1506
      %1529 = vmatprep.subr.bf16.mxu0 0
      %1530 = vmatpush1.bf16.msra.mxu0 %v1507
      %1531 = vmatprep.subr.bf16.mxu0 0
      %1532 = vmatpush1.bf16.msra.mxu0 %v1508
      %1533 = vmatprep.subr.bf16.mxu0 0
      %1534 = vmatpush1.bf16.msra.mxu0 %v1509
      %1535 = vmatprep.subr.bf16.mxu0 0
      %1536 = vmatpush1.bf16.msra.mxu0 %v1510
      %1537 = vmatprep.subr.bf16.mxu0 0
      %1538 = vmatpush1.bf16.msra.mxu0 %v1511
      %1539 = vmatprep.subr.bf16.mxu0 0
      %1540 = vmatpush1.bf16.msra.mxu0 0
      %1541 = vmatprep.subr.bf16.mxu0 0
      %1542 = vmatpush1.bf16.msra.mxu0 0
      %1543 = vmatprep.subr.bf16.mxu0 0
      %1544 = vmatpush1.bf16.msra.mxu0 0
      %1545 = vmatprep.subr.bf16.mxu0 0
      %1546 = vmatpush1.bf16.msra.mxu0 0
      %1547 = vmatprep.subr.bf16.mxu0 0
      %1548 = vmatpush1.bf16.msra.mxu0 0
      %1549 = vmatprep.subr.bf16.mxu0 0
      %1550 = vmatpush1.bf16.msra.mxu0 0
      %1551 = vmatprep.subr.bf16.mxu0 0
      %1552 = vmatpush1.bf16.msra.mxu0 0
      %1553 = vmatprep.subr.bf16.mxu0 0
      %1554 = vmatpush1.bf16.msra.mxu0 0
      %1555 = vmatprep.subr.bf16.mxu0 0
      %1556 = vmatpush1.bf16.msra.mxu0 0
      %1557 = vmatprep.subr.bf16.mxu0 0
      %1558 = vmatpush1.bf16.msra.mxu0 0
      %1559 = vmatprep.mubr.bf16.mxu0 0
      %1560 = vmatmul.mubr.bf16.gmra.mrb[0].mxu0 %v1519
      %v1561 = vpop.f32.mrb[0].mxu0
      %v1562 = vadd.f32 0.0, %v1561
      %v1563 = vpop.f32.mrb[0].mxu0
      %v1564 = vpop.f32.mrb[0].mxu0
      %v1565 = vadd.f32 0.0, %v1564
      %v1566 = vpop.f32.mrb[0].mxu0
      %1567 = vmatprep.mubr.bf16.mxu0 0
      %1568 = vmatmul.mubr.bf16.gmra.mrb[0].mxu0 %v1522
      %v1569 = vpop.f32.mrb[0].mxu0
      %v1570 = vadd.f32 0.0, %v1569
      %v1571 = vpop.f32.mrb[0].mxu0
      %v1572 = vpop.f32.mrb[0].mxu0
      %v1573 = vadd.f32 0.0, %v1572
      %v1574 = vpop.f32.mrb[0].mxu0
      %1575 = vmatprep.mubr.bf16.mxu0 0
      %1576 = vmatmul.mubr.bf16.gmra.mrb[0].mxu0 %v1525
      %v1577 = vpop.f32.mrb[0].mxu0
      %v1578 = vadd.f32 0.0, %v1577
      %v1579 = vpop.f32.mrb[0].mxu0
      %v1580 = vpop.f32.mrb[0].mxu0
      %v1581 = vpop.f32.mrb[0].mxu0
      %1582 = vdwg.mxu0
      %v1583 = vadd.f32 %v1451, %v1562
      %v1584 = vadd.f32 %v1452, %v1565
      %v1585 = vadd.f32 %v1453, %v1570
      %v1586 = vadd.f32 %v1454, %v1573
      %v1587 = vadd.f32 %v1455, %v1578
      %v1588 = vld [vmem:[#allocation2 + $0x4] sm:$0xc]
      %v1589 = vld [vmem:[#allocation2 + $0x8] sm:$0xf]
      %v1590 = vld [vmem:[#allocation2 + $0xc] sm:$0xf]
      %v1591 = vld [vmem:[#allocation2 + $0x10] sm:$0xf]
      %v1592 = vld [vmem:[#allocation2 + $0x14] sm:$0xf]
      %v1593 = vld [vmem:[#allocation2 + $0x18] sm:$0x1]
      %v1594 = vld [vmem:[%s465 + $0x150] sm:$0xf]
      %v1595 = vld [vmem:[%s465 + $0x154] sm:$0xf]
      %v1596 = vld [vmem:[%s465 + $0x158] sm:$0xf]
      %v1597 = vld [vmem:[%s465 + $0x15c] sm:$0xf]
      %v1598 = vld [vmem:[%s465 + $0x160] sm:$0xf]
      %v1599 = vld [vmem:[%s465 + $0x164] sm:$0xf]
      %v1600 = vld [vmem:[%s465 + $0x168] sm:$0xf]
      %v1601 = vld [vmem:[%s465 + $0x16c] sm:$0xf]
      %v1602 = vld [vmem:[%s465 + $0x170] sm:$0xf]
      %v1603 = vld [vmem:[%s465 + $0x174] sm:$0xf]
      %v1604 = vld [vmem:[%s465 + $0x178] sm:$0xf]
      %v1605 = vld [vmem:[%s465 + $0x17c] sm:$0xf]
      %v1612 = vunpack.c.l.b16 %v1588
      %v1613 = vunpack.c.l.b16 %v1589
      %v1614 = vunpack.c.l.b16 %v1590
      %v1615 = vunpack.c.l.b16 %v1591
      %v1616 = vunpack.c.l.b16 %v1592
      %v1617 = vunpack.c.l.b16 %v1593
      %v1618 = vpack.c.b16 %v1613, %v1612
      %v1619 = vpack.c.b16 %v1615, %v1614
      %v1620 = vpack.c.b16 %v1617, %v1616
      %vm1621 = vsmask.f32 5376
      %v1623 = vshrl.u32 %v1618, 16
      %v1625 = vrot.slane %v1623, 2
      %v1626 = vshll.u32 %v1618, 16
      %v1628 = vrot.slane %v1626, 3
      %v1629 = vor.u32 %v1625, %v1628
      %v1631 = vshrl.u32 %v1619, 16
      %v1633 = vrot.slane %v1631, 2
      %v1634 = vshll.u32 %v1619, 16
      %v1636 = vrot.slane %v1634, 3
      %v1637 = vor.u32 %v1633, %v1636
      %v1638 = vsel %vm1621, %v1629, %v1637
      %v1640 = vshrl.u32 %v1620, 16
      %v1642 = vrot.slane %v1640, 2
      %v1643 = vshll.u32 %v1620, 16
      %v1645 = vrot.slane %v1643, 3
      %v1646 = vor.u32 %v1642, %v1645
      %v1647 = vsel %vm1621, %v1637, %v1646
      %v1660 = vunpack.c.l.b16 %v1594
      %v1661 = vunpack.c.l.b16 %v1595
      %v1662 = vunpack.c.l.b16 %v1596
      %v1663 = vunpack.c.l.b16 %v1597
      %v1664 = vunpack.c.l.b16 %v1598
      %v1665 = vunpack.c.l.b16 %v1599
      %v1666 = vunpack.c.l.b16 %v1600
      %v1667 = vunpack.c.l.b16 %v1601
      %v1668 = vunpack.c.l.b16 %v1602
      %v1669 = vunpack.c.l.b16 %v1603
      %v1670 = vunpack.c.l.b16 %v1604
      %v1671 = vunpack.c.l.b16 %v1605
      %v1672 = vpack.c.b16 %v1661, %v1660
      %v1673 = vpack.c.b16 %v1663, %v1662
      %v1674 = vpack.c.b16 %v1665, %v1664
      %v1675 = vpack.c.b16 %v1667, %v1666
      %v1676 = vpack.c.b16 %v1669, %v1668
      %v1677 = vpack.c.b16 %v1671, %v1670
      %v1685 = vsel %vm745, %v1638, 0
      %v1688 = vsel %vm745, %v1647, 0
      %v1691 = vsel %vm745, %v1646, 0
      %1693 = vmatprep.subr.bf16.mxu0 0
      %1694 = vmatpush1.bf16.msra.mxu0 %v1672
      %1695 = vmatprep.subr.bf16.mxu0 0
      %1696 = vmatpush1.bf16.msra.mxu0 %v1673
      %1697 = vmatprep.subr.bf16.mxu0 0
      %1698 = vmatpush1.bf16.msra.mxu0 %v1674
      %1699 = vmatprep.subr.bf16.mxu0 0
      %1700 = vmatpush1.bf16.msra.mxu0 %v1675
      %1701 = vmatprep.subr.bf16.mxu0 0
      %1702 = vmatpush1.bf16.msra.mxu0 %v1676
      %1703 = vmatprep.subr.bf16.mxu0 0
      %1704 = vmatpush1.bf16.msra.mxu0 %v1677
      %1705 = vmatprep.subr.bf16.mxu0 0
      %1706 = vmatpush1.bf16.msra.mxu0 0
      %1707 = vmatprep.subr.bf16.mxu0 0
      %1708 = vmatpush1.bf16.msra.mxu0 0
      %1709 = vmatprep.subr.bf16.mxu0 0
      %1710 = vmatpush1.bf16.msra.mxu0 0
      %1711 = vmatprep.subr.bf16.mxu0 0
      %1712 = vmatpush1.bf16.msra.mxu0 0
      %1713 = vmatprep.subr.bf16.mxu0 0
      %1714 = vmatpush1.bf16.msra.mxu0 0
      %1715 = vmatprep.subr.bf16.mxu0 0
      %1716 = vmatpush1.bf16.msra.mxu0 0
      %1717 = vmatprep.subr.bf16.mxu0 0
      %1718 = vmatpush1.bf16.msra.mxu0 0
      %1719 = vmatprep.subr.bf16.mxu0 0
      %1720 = vmatpush1.bf16.msra.mxu0 0
      %1721 = vmatprep.subr.bf16.mxu0 0
      %1722 = vmatpush1.bf16.msra.mxu0 0
      %1723 = vmatprep.subr.bf16.mxu0 0
      %1724 = vmatpush1.bf16.msra.mxu0 0
      %1725 = vmatprep.mubr.bf16.mxu0 0
      %1726 = vmatmul.mubr.bf16.gmra.mrb[0].mxu0 %v1685
      %v1727 = vpop.f32.mrb[0].mxu0
      %v1728 = vadd.f32 0.0, %v1727
      %v1729 = vpop.f32.mrb[0].mxu0
      %v1730 = vpop.f32.mrb[0].mxu0
      %v1731 = vadd.f32 0.0, %v1730
      %v1732 = vpop.f32.mrb[0].mxu0
      %1733 = vmatprep.mubr.bf16.mxu0 0
      %1734 = vmatmul.mubr.bf16.gmra.mrb[0].mxu0 %v1688
      %v1735 = vpop.f32.mrb[0].mxu0
      %v1736 = vadd.f32 0.0, %v1735
      %v1737 = vpop.f32.mrb[0].mxu0
      %v1738 = vpop.f32.mrb[0].mxu0
      %v1739 = vadd.f32 0.0, %v1738
      %v1740 = vpop.f32.mrb[0].mxu0
      %1741 = vmatprep.mubr.bf16.mxu0 0
      %1742 = vmatmul.mubr.bf16.gmra.mrb[0].mxu0 %v1691
      %v1743 = vpop.f32.mrb[0].mxu0
      %v1744 = vadd.f32 0.0, %v1743
      %v1745 = vpop.f32.mrb[0].mxu0
      %v1746 = vpop.f32.mrb[0].mxu0
      %v1747 = vpop.f32.mrb[0].mxu0
      %1748 = vdwg.mxu0
      %v1749 = vadd.f32 %v1583, %v1728
      %v1750 = vadd.f32 %v1584, %v1731
      %v1751 = vadd.f32 %v1585, %v1736
      %v1752 = vadd.f32 %v1586, %v1739
      %v1753 = vadd.f32 %v1587, %v1744
      %v1754 = vld [vmem:[#allocation2 + $0x4] sm:$0x8]
      %v1755 = vld [vmem:[%s465 + $0x180] sm:$0xf]
      %v1756 = vld [vmem:[%s465 + $0x184] sm:$0xf]
      %v1757 = vld [vmem:[%s465 + $0x188] sm:$0xf]
      %v1758 = vld [vmem:[%s465 + $0x18c] sm:$0xf]
      %v1759 = vld [vmem:[%s465 + $0x190] sm:$0xf]
      %v1760 = vld [vmem:[%s465 + $0x194] sm:$0xf]
      %v1761 = vld [vmem:[%s465 + $0x198] sm:$0xf]
      %v1762 = vld [vmem:[%s465 + $0x19c] sm:$0xf]
      %v1763 = vld [vmem:[%s465 + $0x1a0] sm:$0xf]
      %v1764 = vld [vmem:[%s465 + $0x1a4] sm:$0xf]
      %v1765 = vld [vmem:[%s465 + $0x1a8] sm:$0xf]
      %v1766 = vld [vmem:[%s465 + $0x1ac] sm:$0xf]
      %v1768 = vunpack.c.l.b16 %v1754
      %v1769 = vpack.c.b16 %v1613, %v1768
      %v1770 = vrot.slane %v1769, 3
      %v1771 = vrot.slane %v1619, 3
      %v1772 = vsel %vm1074, %v1770, %v1771
      %v1773 = vrot.slane %v1620, 3
      %v1774 = vsel %vm1074, %v1771, %v1773
      %v1787 = vunpack.c.l.b16 %v1755
      %v1788 = vunpack.c.l.b16 %v1756
      %v1789 = vunpack.c.l.b16 %v1757
      %v1790 = vunpack.c.l.b16 %v1758
      %v1791 = vunpack.c.l.b16 %v1759
      %v1792 = vunpack.c.l.b16 %v1760
      %v1793 = vunpack.c.l.b16 %v1761
      %v1794 = vunpack.c.l.b16 %v1762
      %v1795 = vunpack.c.l.b16 %v1763
      %v1796 = vunpack.c.l.b16 %v1764
      %v1797 = vunpack.c.l.b16 %v1765
      %v1798 = vunpack.c.l.b16 %v1766
      %v1799 = vpack.c.b16 %v1788, %v1787
      %v1800 = vpack.c.b16 %v1790, %v1789
      %v1801 = vpack.c.b16 %v1792, %v1791
      %v1802 = vpack.c.b16 %v1794, %v1793
      %v1803 = vpack.c.b16 %v1796, %v1795
      %v1804 = vpack.c.b16 %v1798, %v1797
      %v1812 = vsel %vm745, %v1772, 0
      %v1815 = vsel %vm745, %v1774, 0
      %v1818 = vsel %vm745, %v1773, 0
      %1820 = vmatprep.subr.bf16.mxu0 0
      %1821 = vmatpush1.bf16.msra.mxu0 %v1799
      %1822 = vmatprep.subr.bf16.mxu0 0
      %1823 = vmatpush1.bf16.msra.mxu0 %v1800
      %1824 = vmatprep.subr.bf16.mxu0 0
      %1825 = vmatpush1.bf16.msra.mxu0 %v1801
      %1826 = vmatprep.subr.bf16.mxu0 0
      %1827 = vmatpush1.bf16.msra.mxu0 %v1802
      %1828 = vmatprep.subr.bf16.mxu0 0
      %1829 = vmatpush1.bf16.msra.mxu0 %v1803
      %1830 = vmatprep.subr.bf16.mxu0 0
      %1831 = vmatpush1.bf16.msra.mxu0 %v1804
      %1832 = vmatprep.subr.bf16.mxu0 0
      %1833 = vmatpush1.bf16.msra.mxu0 0
      %1834 = vmatprep.subr.bf16.mxu0 0
      %1835 = vmatpush1.bf16.msra.mxu0 0
      %1836 = vmatprep.subr.bf16.mxu0 0
      %1837 = vmatpush1.bf16.msra.mxu0 0
      %1838 = vmatprep.subr.bf16.mxu0 0
      %1839 = vmatpush1.bf16.msra.mxu0 0
      %1840 = vmatprep.subr.bf16.mxu0 0
      %1841 = vmatpush1.bf16.msra.mxu0 0
      %1842 = vmatprep.subr.bf16.mxu0 0
      %1843 = vmatpush1.bf16.msra.mxu0 0
      %1844 = vmatprep.subr.bf16.mxu0 0
      %1845 = vmatpush1.bf16.msra.mxu0 0
      %1846 = vmatprep.subr.bf16.mxu0 0
      %1847 = vmatpush1.bf16.msra.mxu0 0
      %1848 = vmatprep.subr.bf16.mxu0 0
      %1849 = vmatpush1.bf16.msra.mxu0 0
      %1850 = vmatprep.subr.bf16.mxu0 0
      %1851 = vmatpush1.bf16.msra.mxu0 0
      %1852 = vmatprep.mubr.bf16.mxu0 0
      %1853 = vmatmul.mubr.bf16.gmra.mrb[0].mxu0 %v1812
      %v1854 = vpop.f32.mrb[0].mxu0
      %v1855 = vadd.f32 0.0, %v1854
      %v1856 = vpop.f32.mrb[0].mxu0
      %v1857 = vpop.f32.mrb[0].mxu0
      %v1858 = vadd.f32 0.0, %v1857
      %v1859 = vpop.f32.mrb[0].mxu0
      %1860 = vmatprep.mubr.bf16.mxu0 0
      %1861 = vmatmul.mubr.bf16.gmra.mrb[0].mxu0 %v1815
      %v1862 = vpop.f32.mrb[0].mxu0
      %v1863 = vadd.f32 0.0, %v1862
      %v1864 = vpop.f32.mrb[0].mxu0
      %v1865 = vpop.f32.mrb[0].mxu0
      %v1866 = vadd.f32 0.0, %v1865
      %v1867 = vpop.f32.mrb[0].mxu0
      %1868 = vmatprep.mubr.bf16.mxu0 0
      %1869 = vmatmul.mubr.bf16.gmra.mrb[0].mxu0 %v1818
      %v1870 = vpop.f32.mrb[0].mxu0
      %v1871 = vadd.f32 0.0, %v1870
      %v1872 = vpop.f32.mrb[0].mxu0
      %v1873 = vpop.f32.mrb[0].mxu0
      %v1874 = vpop.f32.mrb[0].mxu0
      %1875 = vdwg.mxu0
      %v1876 = vadd.f32 %v1749, %v1855
      %v1877 = vadd.f32 %v1750, %v1858
      %v1878 = vadd.f32 %v1751, %v1863
      %v1879 = vadd.f32 %v1752, %v1866
      %v1880 = vadd.f32 %v1753, %v1871
      %v1881 = vld [vmem:[%s468] sm:$0x1]
      %v1883 = vlaneseq
      %v1884 = vshrl.u32 %v1883, 7
      %v1885 = vsub.s32 0, %v1884
      %v1886 = vrot.slane %v1881, %v1885
      %v1888 = vadd.f32 %v1876, %v1886
      %v1889 = vadd.f32 %v1877, %v1886
      %v1890 = vadd.f32 %v1878, %v1886
      %v1891 = vadd.f32 %v1879, %v1886
      %v1892 = vadd.f32 %v1880, %v1886
      %v1893 = vld [vmem:[%s477] sm:$0xf]
      %v1894 = vld [vmem:[%s477 + $0x4] sm:$0xf]
      %v1895 = vld [vmem:[%s477 + $0x8] sm:$0xf]
      %v1896 = vld [vmem:[%s477 + $0xc] sm:$0xf]
      %v1897 = vld [vmem:[%s477 + $0x10] sm:$0x3]
      %v1898 = vld [vmem:[%s481] sm:$0xf]
      %v1899 = vld [vmem:[%s481 + $0x4] sm:$0xf]
      %v1905 = vunpack.c.l.b16 %v1893
      %v1906 = vunpack.c.l.b16 %v1894
      %v1907 = vunpack.c.l.b16 %v1895
      %v1908 = vunpack.c.l.b16 %v1896
      %v1909 = vunpack.c.l.b16 %v1897
      %v1910 = vpack.c.b16 %v1906, %v1905
      %v1911 = vpack.c.b16 %v1908, %v1907
      %v1912 = vpack.c.b16 %v1909, %v1909
      %v1915 = vunpack.c.l.b16 %v1898
      %v1916 = vunpack.c.l.b16 %v1899
      %v1917 = vpack.c.b16 %v1916, %v1915
      %vm1919 = vcmask 130048
      %v1921 = vsel %vm1919, %v1910, 0
      %v1924 = vsel %vm1919, %v1911, 0
      %v1927 = vsel %vm1919, %v1912, 0
      %1929 = vmatprep.subr.bf16.mxu0 0
      %1930 = vmatpush1.bf16.msra.mxu0 %v1917
      %1931 = vmatprep.subr.bf16.mxu0 0
      %1932 = vmatpush1.bf16.msra.mxu0 0
      %1933 = vmatprep.subr.bf16.mxu0 0
      %1934 = vmatpush1.bf16.msra.mxu0 0
      %1935 = vmatprep.subr.bf16.mxu0 0
      %1936 = vmatpush1.bf16.msra.mxu0 0
      %1937 = vmatprep.subr.bf16.mxu0 0
      %1938 = vmatpush1.bf16.msra.mxu0 0
      %1939 = vmatprep.subr.bf16.mxu0 0
      %1940 = vmatpush1.bf16.msra.mxu0 0
      %1941 = vmatprep.subr.bf16.mxu0 0
      %1942 = vmatpush1.bf16.msra.mxu0 0
      %1943 = vmatprep.subr.bf16.mxu0 0
      %1944 = vmatpush1.bf16.msra.mxu0 0
      %1945 = vmatprep.subr.bf16.mxu0 0
      %1946 = vmatpush1.bf16.msra.mxu0 0
      %1947 = vmatprep.subr.bf16.mxu0 0
      %1948 = vmatpush1.bf16.msra.mxu0 0
      %1949 = vmatprep.subr.bf16.mxu0 0
      %1950 = vmatpush1.bf16.msra.mxu0 0
      %1951 = vmatprep.subr.bf16.mxu0 0
      %1952 = vmatpush1.bf16.msra.mxu0 0
      %1953 = vmatprep.subr.bf16.mxu0 0
      %1954 = vmatpush1.bf16.msra.mxu0 0
      %1955 = vmatprep.subr.bf16.mxu0 0
      %1956 = vmatpush1.bf16.msra.mxu0 0
      %1957 = vmatprep.subr.bf16.mxu0 0
      %1958 = vmatpush1.bf16.msra.mxu0 0
      %1959 = vmatprep.subr.bf16.mxu0 0
      %1960 = vmatpush1.bf16.msra.mxu0 0
      %1961 = vmatprep.mubr.bf16.mxu0 0
      %1962 = vmatmul.mubr.bf16.gmra.mrb[0].mxu0 %v1921
      %v1963 = vpop.f32.mrb[0].mxu0
      %v1964 = vadd.f32 0.0, %v1963
      %v1965 = vpop.f32.mrb[0].mxu0
      %v1966 = vpop.f32.mrb[0].mxu0
      %v1967 = vadd.f32 0.0, %v1966
      %v1968 = vpop.f32.mrb[0].mxu0
      %1969 = vmatprep.mubr.bf16.mxu0 0
      %1970 = vmatmul.mubr.bf16.gmra.mrb[0].mxu0 %v1924
      %v1971 = vpop.f32.mrb[0].mxu0
      %v1972 = vadd.f32 0.0, %v1971
      %v1973 = vpop.f32.mrb[0].mxu0
      %v1974 = vpop.f32.mrb[0].mxu0
      %v1975 = vadd.f32 0.0, %v1974
      %v1976 = vpop.f32.mrb[0].mxu0
      %1977 = vmatprep.mubr.bf16.mxu0 0
      %1978 = vmatmul.mubr.bf16.gmra.mrb[0].mxu0 %v1927
      %v1979 = vpop.f32.mrb[0].mxu0
      %v1980 = vadd.f32 0.0, %v1979
      %v1981 = vpop.f32.mrb[0].mxu0
      %v1982 = vpop.f32.mrb[0].mxu0
      %v1983 = vpop.f32.mrb[0].mxu0
      %1984 = vdwg.mxu0
      %v1985 = vadd.f32 %v1888, %v1964
      %v1986 = vadd.f32 %v1889, %v1967
      %v1987 = vadd.f32 %v1890, %v1972
      %v1988 = vadd.f32 %v1891, %v1975
      %v1989 = vadd.f32 %v1892, %v1980
      %1990 = vst.msk [vmem:[%s493] sm:$0xff] %vm586, %v1985
      %1991 = vst.msk [vmem:[%s493 + $0x8] sm:$0xff] %vm586, %v1986
      %1992 = vst.msk [vmem:[%s493 + $0x10] sm:$0xff] %vm586, %v1987
      %1993 = vst.msk [vmem:[%s493 + $0x18] sm:$0xff] %vm586, %v1988
      %vm1994 = vcmask 257024
      %1995 = vst.msk [vmem:[%s493 + $0x20] sm:$0xf] %vm1994, %v1989
      %p1996 = scmp.lt.s32.totalorder %s24, 1
      %s1997 = scalar_select %p1996, %s24, 1
      %p1998 = scmp.lt.s32.totalorder %s25, 3
      %s1999 = scalar_select %p1998, %s25, 3
      %p2000 = scmp.lt.s32.totalorder %s23, 0
      %s2001 = scalar_select %p2000, %s23, 0
      %s2002 = smul.addr %s1999, 5
      %s2003 = sadd.s32 %s2001, %s2002
      %s2004 = smul.addr %s1997, 20
      %s2005 = sadd.s32 %s2003, %s2004
      %s2006 = smul.addr %s2005, 8
      %s2007 = scalar_lea.vmem %s7, %s2006
      // Predicated region
      $region49: #{resnet_block_forward.11} parent=47 // pred_check
        %p2008 = pneg %p253
      $region50: #{resnet_block_forward.11} parent=47 // pred_check_branch
        %2010 = sbr.rel (%p2008) target = $region52
      $region51: #{resnet_block_forward.11} parent=47 // pred_region
        _
      $region52: #{resnet_block_forward.11} parent=47 // pred_fallthru
        _
    $region48: #{resnet_block_forward.11} parent=5 // pred_fallthru
      _
    %p2011 = scmp.le.s32.totalorder 2, %s13
    // Predicated region
    $region53: #{resnet_block_forward.11} parent=5 // pred_check
      %p2012 = pneg %p2011
    $region54: #{resnet_block_forward.11} parent=5 // pred_check_branch
      %2014 = sbr.rel (%p2012) target = $region56
    $region55: #{resnet_block_forward.11} parent=5 // pred_region
      %s2015 = ssub.s32 %s13, 2
      // Predicated region
      $region57: #{resnet_block_forward.11} parent=55 // pred_check
        %p2016 = pneg %p259
      $region58: #{resnet_block_forward.11} parent=55 // pred_check_branch
        %2018 = sbr.rel (%p2016) target = $region60
      $region59: #{resnet_block_forward.11} parent=55 // pred_region
        %p2019 = scmp.lt.s32.totalorder %s27, 1
        %s2020 = scalar_select %p2019, %s27, 1
        %p2021 = scmp.lt.s32.totalorder %s28, 3
        %s2022 = scalar_select %p2021, %s28, 3
        %p2023 = scmp.lt.s32.totalorder %s26, 0
        %s2024 = scalar_select %p2023, %s26, 0
        %s2025 = smul.addr %s2022, 5
        %s2026 = sadd.s32 %s2024, %s2025
        %s2027 = smul.addr %s2020, 20
        %s2028 = sadd.s32 %s2026, %s2027
        %s2029 = smul.addr %s2028, 8
        %s2030 = scalar_lea.vmem %s7, %s2029
      $region60: #{resnet_block_forward.11} parent=55 // pred_fallthru
        _
    $region56: #{resnet_block_forward.11} parent=5 // pred_fallthru
      _
  $region6: #{resnet_block_forward.11} parent=0 // loop_footer
    %s17 = sadd.s32 1, %s13
  $region7: #{resnet_block_forward.11} parent=0 // loop_footer_branch
    %12 = sbr.rel target = $region3
  $region8: #{resnet_block_forward.11} parent=0 // loop_exit
    _

</llo_original>
